<compile_context>
chip_gen: v7x
topology: tpu7x:2x2x1
jax: 0.10.0
libtpu: 0.0.40
codegen_flags: <defaults>
</compile_context>

<pallas_src>
import functools

import jax
import jax.numpy as jnp
from jax.experimental import pallas as pl
from jax.experimental.pallas import tpu as pltpu

KSIZE = 5
PAD = 2
SLOT = 32            # lanes reserved per input channel (>= W + 2*PAD)


# ----------------------------- Pallas kernel ------------------------------ #
def _conv_bn_sigmoid_kernel(x_ref, wv_ref, shift_ref, o_ref, p_ref,
                            *, B, C, H, W):
    """Fused Conv2d(5x5, same) + folded BatchNorm + Sigmoid, whole batch.

    x_ref:     (B, C, H, W)          VMEM  input, NCHW
    wv_ref:    (C, 5, 5, C*SLOT)     VMEM  BN-folded weights, pre-broadcast so
                                           lane 32*ci + j holds w'[co,ci,kh,kw]
    shift_ref: (C,)                  SMEM  folded conv-bias + BN shift per co
    o_ref:     (B, C, H, W)          VMEM  output, NCHW
    p_ref:     (B, ROWS, PLANES)     VMEM  scratch: zero-padded input planes,
                                           input channels in 32-lane slots
    """
    LANES = C * SLOT

    # ---- build zero-padded, channel-slotted planes (one per batch) -------- #
    p_ref[...] = jnp.zeros_like(p_ref)
    for b in range(B):
        for ci in range(C):
            lo = ci * SLOT + PAD
            p_ref[b, PAD:PAD + H, lo:lo + W] = x_ref[b, ci, :, :]

    # ---- 5x5 conv: full 128-lane FMAs; per-lane weight selects (co, ci) --- #
    accs = [[jnp.zeros((H, LANES), jnp.float32) for _ in range(C)]
            for _ in range(B)]
    for kh in range(KSIZE):
        for kw in range(KSIZE):
            # one pre-broadcast weight row per output channel for this tap
            wrows = [jnp.broadcast_to(wv_ref[co, kh, kw:kw + 1, :], (H, LANES))
                     for co in range(C)]
            for b in range(B):
                # shifted window: kh -> sublane offset, kw -> lane offset
                win = p_ref[b, kh:kh + H, kw:kw + LANES]        # (H, LANES)
                for co in range(C):
                    accs[b][co] = accs[b][co] + win * wrows[co]

    # ---- reduce ci slots, add folded shift, sigmoid, store NCHW ----------- #
    for b in range(B):
        for co in range(C):
            acc = accs[b][co]
            res = acc[:, 0:W]
            for ci in range(1, C):
                res = res + acc[:, ci * SLOT:ci * SLOT + W]     # (H, W)
            z = res + shift_ref[co]
            y = pl.reciprocal(1.0 + jnp.exp(-z), approx=False)  # exact sigmoid
            o_ref[b, co, :, :] = y.astype(o_ref.dtype)


# ------------------------------- Wrapper ----------------------------------- #
@jax.jit
def img_disturb_forward(x, w, b, gamma, beta, run_mean, run_var, eps=1e-5):
    """x: (B, C, H, W) NCHW; w: (C, C, 5, 5); b/gamma/beta/mean/var: (C,)."""
    B, C, H, W = x.shape
    assert w.shape == (C, C, KSIZE, KSIZE)
    assert W + 2 * PAD <= SLOT, "width must fit a 32-lane slot"
    assert C * SLOT <= 128, "channel-slot packing assumes C*32 <= 128"

    LANES = C * SLOT
    plane_rows = ((H + 2 * PAD + 7) // 8) * 8
    plane_lanes = ((LANES + 2 * PAD + 127) // 128) * 128

    x = x.astype(jnp.float32)

    # Fold conv bias + inference BatchNorm:  y = conv(x; w*scale) + shift
    scale = (gamma / jnp.sqrt(run_var + eps)).astype(jnp.float32)        # (C,)
    shift = ((b - run_mean) * scale + beta).astype(jnp.float32)          # (C,)
    wf = w.astype(jnp.float32) * scale[:, None, None, None]              # (C,C,5,5)
    # Lane-broadcast weights: wv[co, kh, kw, ci*SLOT + j] = wf[co, ci, kh, kw]
    wv = jnp.broadcast_to(
        jnp.transpose(wf, (0, 2, 3, 1))[..., None],
        (C, KSIZE, KSIZE, C, SLOT)).reshape(C, KSIZE, KSIZE, LANES)

    kernel = functools.partial(_conv_bn_sigmoid_kernel, B=B, C=C, H=H, W=W)

    flops = 2 * B * C * C * KSIZE * KSIZE * H * W
    bytes_accessed = 4 * (x.size + wv.size + shift.size + B * C * H * W)

    return pl.pallas_call(
        kernel,
        out_shape=jax.ShapeDtypeStruct((B, C, H, W), jnp.float32),
        grid=(1,),
        in_specs=[
            pl.BlockSpec((B, C, H, W), lambda i: (0, 0, 0, 0)),
            pl.BlockSpec((C, KSIZE, KSIZE, LANES), lambda i: (0, 0, 0, 0)),
            pl.BlockSpec(memory_space=pltpu.MemorySpace.SMEM),   # shift (C,)
        ],
        out_specs=pl.BlockSpec((B, C, H, W), lambda i: (0, 0, 0, 0)),
        scratch_shapes=[
            pltpu.VMEM((B, plane_rows, plane_lanes), jnp.float32),
        ],
        compiler_params=pltpu.CompilerParams(
            dimension_semantics=("arbitrary",),
        ),
        cost_estimate=pl.CostEstimate(
            flops=flops,
            transcendentals=B * C * H * W,
            bytes_accessed=bytes_accessed,
        ),
    )(x, wv, shift)


# ------------------------------ Reference ---------------------------------- #
def reference_forward(x, w, b, gamma, beta, run_mean, run_var, eps=1e-5):
    y = jax.lax.conv_general_dilated(
        x.astype(jnp.float32), w.astype(jnp.float32),
        window_strides=(1, 1),
        padding=((PAD, PAD), (PAD, PAD)),
        dimension_numbers=("NCHW", "OIHW", "NCHW"),
    )
    y = y + b[None, :, None, None]
    y = (y - run_mean[None, :, None, None]) / jnp.sqrt(
        run_var[None, :, None, None] + eps)
    y = y * gamma[None, :, None, None] + beta[None, :, None, None]
    return jax.nn.sigmoid(y)


# --------------------------------- Main ------------------------------------ #
if __name__ == "__main__":
    key = jax.random.PRNGKey(0)
    B, C, H, W = 2, 4, 16, 16

    key, kx, kw, kb, kg, kbe, km, kv = jax.random.split(key, 8)
    x = jax.random.normal(kx, (B, C, H, W), jnp.float32)

    fan_in = C * KSIZE * KSIZE
    w = jax.random.normal(kw, (C, C, KSIZE, KSIZE), jnp.float32)
    w = w * (1.0 / jnp.sqrt(jnp.float32(fan_in)))
    b = 0.1 * jax.random.normal(kb, (C,), jnp.float32)
    gamma = 1.0 + 0.1 * jax.random.normal(kg, (C,), jnp.float32)
    beta = 0.1 * jax.random.normal(kbe, (C,), jnp.float32)
    run_mean = 0.1 * jax.random.normal(km, (C,), jnp.float32)
    run_var = 0.5 + 0.5 * jnp.abs(jax.random.normal(kv, (C,), jnp.float32))

    out = img_disturb_forward(x, w, b, gamma, beta, run_mean, run_var)
    out = jax.block_until_ready(out)

    ref = reference_forward(x, w, b, gamma, beta, run_mean, run_var)
    assert out.shape == (B, C, H, W)
    err = float(jnp.max(jnp.abs(out - ref)))
    assert jnp.allclose(out, ref, rtol=1e-4, atol=1e-4), f"mismatch vs ref: {err}"

    print("KERNEL_OK")
</pallas_src>

<mosaic_0001>
module attributes {stable_mosaic.version = 11 : i64} {
  func.func @_conv_bn_sigmoid_kernel(%arg0: i32, %arg1: memref<2x4x16x16xf32, #tpu.memory_space<vmem>>, %arg2: memref<4x5x5x128xf32, #tpu.memory_space<vmem>>, %arg3: memref<4xf32, #tpu.memory_space<smem>>, %arg4: memref<2x4x16x16xf32, #tpu.memory_space<vmem>>, %arg5: memref<2x24x256xf32, #tpu.memory_space<vmem>>) attributes {dimension_semantics = [#tpu.dimension_semantics<arbitrary>], iteration_bounds = array<i64: 1>, scalar_prefetch = 0 : i64, scratch_operands = 1 : i64, tpu.core_type = #tpu.core_type<tc>, window_params = [{pipeline_mode = #tpu.pipeline_mode<synchronous>, transform_indices = @transform_0, window_bounds = array<i64: 2, 4, 16, 16>}, {pipeline_mode = #tpu.pipeline_mode<synchronous>, transform_indices = @transform_1, window_bounds = array<i64: 4, 5, 5, 128>}, {transform_indices = @transform_2, window_bounds = array<i64: 4>}, {pipeline_mode = #tpu.pipeline_mode<synchronous>, transform_indices = @transform_3, window_bounds = array<i64: 2, 4, 16, 16>}]} {
    %cst = arith.constant 0.000000e+00 : f32
    %0 = vector.broadcast %cst : f32 to vector<2x24x256xf32>
    %c0 = arith.constant 0 : index
    %c0_0 = arith.constant 0 : index
    %c0_1 = arith.constant 0 : index
    %1 = vector.load %arg5[%c0, %c0_0, %c0_1] : memref<2x24x256xf32, #tpu.memory_space<vmem>>, vector<2x24x256xf32>
    tpu.vector_store %arg5[%c0, %c0_0, %c0_1], %0 {strides = array<i32>} : memref<2x24x256xf32, #tpu.memory_space<vmem>>, vector<2x24x256xf32>,
    %c0_2 = arith.constant 0 : index
    %c0_3 = arith.constant 0 : index
    %c0_4 = arith.constant 0 : index
    %c0_5 = arith.constant 0 : index
    %2 = vector.load %arg1[%c0_2, %c0_3, %c0_4, %c0_5] : memref<2x4x16x16xf32, #tpu.memory_space<vmem>>, vector<1x1x16x16xf32>
    %3 = vector.shape_cast %2 : vector<1x1x16x16xf32> to vector<16x16xf32>
    %c0_6 = arith.constant 0 : index
    %c2 = arith.constant 2 : index
    %c2_7 = arith.constant 2 : index
    %4 = vector.load %arg5[%c0_6, %c2, %c2_7] : memref<2x24x256xf32, #tpu.memory_space<vmem>>, vector<1x16x16xf32>
    %5 = vector.shape_cast %4 : vector<1x16x16xf32> to vector<16x16xf32>
    %6 = vector.shape_cast %3 : vector<16x16xf32> to vector<1x16x16xf32>
    tpu.vector_store %arg5[%c0_6, %c2, %c2_7], %6 {strides = array<i32>} : memref<2x24x256xf32, #tpu.memory_space<vmem>>, vector<1x16x16xf32>,
    %c0_8 = arith.constant 0 : index
    %c1 = arith.constant 1 : index
    %c0_9 = arith.constant 0 : index
    %c0_10 = arith.constant 0 : index
    %7 = vector.load %arg1[%c0_8, %c1, %c0_9, %c0_10] : memref<2x4x16x16xf32, #tpu.memory_space<vmem>>, vector<1x1x16x16xf32>
    %8 = vector.shape_cast %7 : vector<1x1x16x16xf32> to vector<16x16xf32>
    %c0_11 = arith.constant 0 : index
    %c2_12 = arith.constant 2 : index
    %c34 = arith.constant 34 : index
    %9 = vector.load %arg5[%c0_11, %c2_12, %c34] : memref<2x24x256xf32, #tpu.memory_space<vmem>>, vector<1x16x16xf32>
    %10 = vector.shape_cast %9 : vector<1x16x16xf32> to vector<16x16xf32>
    %11 = vector.shape_cast %8 : vector<16x16xf32> to vector<1x16x16xf32>
    tpu.vector_store %arg5[%c0_11, %c2_12, %c34], %11 {strides = array<i32>} : memref<2x24x256xf32, #tpu.memory_space<vmem>>, vector<1x16x16xf32>,
    %c0_13 = arith.constant 0 : index
    %c2_14 = arith.constant 2 : index
    %c0_15 = arith.constant 0 : index
    %c0_16 = arith.constant 0 : index
    %12 = vector.load %arg1[%c0_13, %c2_14, %c0_15, %c0_16] : memref<2x4x16x16xf32, #tpu.memory_space<vmem>>, vector<1x1x16x16xf32>
    %13 = vector.shape_cast %12 : vector<1x1x16x16xf32> to vector<16x16xf32>
    %c0_17 = arith.constant 0 : index
    %c2_18 = arith.constant 2 : index
    %c66 = arith.constant 66 : index
    %14 = vector.load %arg5[%c0_17, %c2_18, %c66] : memref<2x24x256xf32, #tpu.memory_space<vmem>>, vector<1x16x16xf32>
    %15 = vector.shape_cast %14 : vector<1x16x16xf32> to vector<16x16xf32>
    %16 = vector.shape_cast %13 : vector<16x16xf32> to vector<1x16x16xf32>
    tpu.vector_store %arg5[%c0_17, %c2_18, %c66], %16 {strides = array<i32>} : memref<2x24x256xf32, #tpu.memory_space<vmem>>, vector<1x16x16xf32>,
    %c0_19 = arith.constant 0 : index
    %c3 = arith.constant 3 : index
    %c0_20 = arith.constant 0 : index
    %c0_21 = arith.constant 0 : index
    %17 = vector.load %arg1[%c0_19, %c3, %c0_20, %c0_21] : memref<2x4x16x16xf32, #tpu.memory_space<vmem>>, vector<1x1x16x16xf32>
    %18 = vector.shape_cast %17 : vector<1x1x16x16xf32> to vector<16x16xf32>
    %c0_22 = arith.constant 0 : index
    %c2_23 = arith.constant 2 : index
    %c98 = arith.constant 98 : index
    %19 = vector.load %arg5[%c0_22, %c2_23, %c98] : memref<2x24x256xf32, #tpu.memory_space<vmem>>, vector<1x16x16xf32>
    %20 = vector.shape_cast %19 : vector<1x16x16xf32> to vector<16x16xf32>
    %21 = vector.shape_cast %18 : vector<16x16xf32> to vector<1x16x16xf32>
    tpu.vector_store %arg5[%c0_22, %c2_23, %c98], %21 {strides = array<i32>} : memref<2x24x256xf32, #tpu.memory_space<vmem>>, vector<1x16x16xf32>,
    %c1_24 = arith.constant 1 : index
    %c0_25 = arith.constant 0 : index
    %c0_26 = arith.constant 0 : index
    %c0_27 = arith.constant 0 : index
    %22 = vector.load %arg1[%c1_24, %c0_25, %c0_26, %c0_27] : memref<2x4x16x16xf32, #tpu.memory_space<vmem>>, vector<1x1x16x16xf32>
    %23 = vector.shape_cast %22 : vector<1x1x16x16xf32> to vector<16x16xf32>
    %c1_28 = arith.constant 1 : index
    %c2_29 = arith.constant 2 : index
    %c2_30 = arith.constant 2 : index
    %24 = vector.load %arg5[%c1_28, %c2_29, %c2_30] : memref<2x24x256xf32, #tpu.memory_space<vmem>>, vector<1x16x16xf32>
    %25 = vector.shape_cast %24 : vector<1x16x16xf32> to vector<16x16xf32>
    %26 = vector.shape_cast %23 : vector<16x16xf32> to vector<1x16x16xf32>
    tpu.vector_store %arg5[%c1_28, %c2_29, %c2_30], %26 {strides = array<i32>} : memref<2x24x256xf32, #tpu.memory_space<vmem>>, vector<1x16x16xf32>,
    %c1_31 = arith.constant 1 : index
    %c1_32 = arith.constant 1 : index
    %c0_33 = arith.constant 0 : index
    %c0_34 = arith.constant 0 : index
    %27 = vector.load %arg1[%c1_31, %c1_32, %c0_33, %c0_34] : memref<2x4x16x16xf32, #tpu.memory_space<vmem>>, vector<1x1x16x16xf32>
    %28 = vector.shape_cast %27 : vector<1x1x16x16xf32> to vector<16x16xf32>
    %c1_35 = arith.constant 1 : index
    %c2_36 = arith.constant 2 : index
    %c34_37 = arith.constant 34 : index
    %29 = vector.load %arg5[%c1_35, %c2_36, %c34_37] : memref<2x24x256xf32, #tpu.memory_space<vmem>>, vector<1x16x16xf32>
    %30 = vector.shape_cast %29 : vector<1x16x16xf32> to vector<16x16xf32>
    %31 = vector.shape_cast %28 : vector<16x16xf32> to vector<1x16x16xf32>
    tpu.vector_store %arg5[%c1_35, %c2_36, %c34_37], %31 {strides = array<i32>} : memref<2x24x256xf32, #tpu.memory_space<vmem>>, vector<1x16x16xf32>,
    %c1_38 = arith.constant 1 : index
    %c2_39 = arith.constant 2 : index
    %c0_40 = arith.constant 0 : index
    %c0_41 = arith.constant 0 : index
    %32 = vector.load %arg1[%c1_38, %c2_39, %c0_40, %c0_41] : memref<2x4x16x16xf32, #tpu.memory_space<vmem>>, vector<1x1x16x16xf32>
    %33 = vector.shape_cast %32 : vector<1x1x16x16xf32> to vector<16x16xf32>
    %c1_42 = arith.constant 1 : index
    %c2_43 = arith.constant 2 : index
    %c66_44 = arith.constant 66 : index
    %34 = vector.load %arg5[%c1_42, %c2_43, %c66_44] : memref<2x24x256xf32, #tpu.memory_space<vmem>>, vector<1x16x16xf32>
    %35 = vector.shape_cast %34 : vector<1x16x16xf32> to vector<16x16xf32>
    %36 = vector.shape_cast %33 : vector<16x16xf32> to vector<1x16x16xf32>
    tpu.vector_store %arg5[%c1_42, %c2_43, %c66_44], %36 {strides = array<i32>} : memref<2x24x256xf32, #tpu.memory_space<vmem>>, vector<1x16x16xf32>,
    %c1_45 = arith.constant 1 : index
    %c3_46 = arith.constant 3 : index
    %c0_47 = arith.constant 0 : index
    %c0_48 = arith.constant 0 : index
    %37 = vector.load %arg1[%c1_45, %c3_46, %c0_47, %c0_48] : memref<2x4x16x16xf32, #tpu.memory_space<vmem>>, vector<1x1x16x16xf32>
    %38 = vector.shape_cast %37 : vector<1x1x16x16xf32> to vector<16x16xf32>
    %c1_49 = arith.constant 1 : index
    %c2_50 = arith.constant 2 : index
    %c98_51 = arith.constant 98 : index
    %39 = vector.load %arg5[%c1_49, %c2_50, %c98_51] : memref<2x24x256xf32, #tpu.memory_space<vmem>>, vector<1x16x16xf32>
    %40 = vector.shape_cast %39 : vector<1x16x16xf32> to vector<16x16xf32>
    %41 = vector.shape_cast %38 : vector<16x16xf32> to vector<1x16x16xf32>
    tpu.vector_store %arg5[%c1_49, %c2_50, %c98_51], %41 {strides = array<i32>} : memref<2x24x256xf32, #tpu.memory_space<vmem>>, vector<1x16x16xf32>,
    %cst_52 = arith.constant 0.000000e+00 : f32
    %42 = vector.broadcast %cst_52 : f32 to vector<16x128xf32>
    %cst_53 = arith.constant 0.000000e+00 : f32
    %43 = vector.broadcast %cst_53 : f32 to vector<16x128xf32>
    %cst_54 = arith.constant 0.000000e+00 : f32
    %44 = vector.broadcast %cst_54 : f32 to vector<16x128xf32>
    %cst_55 = arith.constant 0.000000e+00 : f32
    %45 = vector.broadcast %cst_55 : f32 to vector<16x128xf32>
    %cst_56 = arith.constant 0.000000e+00 : f32
    %46 = vector.broadcast %cst_56 : f32 to vector<16x128xf32>
    %cst_57 = arith.constant 0.000000e+00 : f32
    %47 = vector.broadcast %cst_57 : f32 to vector<16x128xf32>
    %cst_58 = arith.constant 0.000000e+00 : f32
    %48 = vector.broadcast %cst_58 : f32 to vector<16x128xf32>
    %cst_59 = arith.constant 0.000000e+00 : f32
    %49 = vector.broadcast %cst_59 : f32 to vector<16x128xf32>
    %c0_60 = arith.constant 0 : index
    %c0_61 = arith.constant 0 : index
    %c0_62 = arith.constant 0 : index
    %c0_63 = arith.constant 0 : index
    %50 = vector.load %arg2[%c0_60, %c0_61, %c0_62, %c0_63] : memref<4x5x5x128xf32, #tpu.memory_space<vmem>>, vector<1x1x1x128xf32>
    %51 = vector.shape_cast %50 : vector<1x1x1x128xf32> to vector<1x128xf32>
    %52 = vector.shape_cast %51 : vector<1x128xf32> to vector<1x128xf32>
    %53 = vector.broadcast %52 : vector<1x128xf32> to vector<16x128xf32>
    %c1_64 = arith.constant 1 : index
    %c0_65 = arith.constant 0 : index
    %c0_66 = arith.constant 0 : index
    %c0_67 = arith.constant 0 : index
    %54 = vector.load %arg2[%c1_64, %c0_65, %c0_66, %c0_67] : memref<4x5x5x128xf32, #tpu.memory_space<vmem>>, vector<1x1x1x128xf32>
    %55 = vector.shape_cast %54 : vector<1x1x1x128xf32> to vector<1x128xf32>
    %56 = vector.shape_cast %55 : vector<1x128xf32> to vector<1x128xf32>
    %57 = vector.broadcast %56 : vector<1x128xf32> to vector<16x128xf32>
    %c2_68 = arith.constant 2 : index
    %c0_69 = arith.constant 0 : index
    %c0_70 = arith.constant 0 : index
    %c0_71 = arith.constant 0 : index
    %58 = vector.load %arg2[%c2_68, %c0_69, %c0_70, %c0_71] : memref<4x5x5x128xf32, #tpu.memory_space<vmem>>, vector<1x1x1x128xf32>
    %59 = vector.shape_cast %58 : vector<1x1x1x128xf32> to vector<1x128xf32>
    %60 = vector.shape_cast %59 : vector<1x128xf32> to vector<1x128xf32>
    %61 = vector.broadcast %60 : vector<1x128xf32> to vector<16x128xf32>
    %c3_72 = arith.constant 3 : index
    %c0_73 = arith.constant 0 : index
    %c0_74 = arith.constant 0 : index
    %c0_75 = arith.constant 0 : index
    %62 = vector.load %arg2[%c3_72, %c0_73, %c0_74, %c0_75] : memref<4x5x5x128xf32, #tpu.memory_space<vmem>>, vector<1x1x1x128xf32>
    %63 = vector.shape_cast %62 : vector<1x1x1x128xf32> to vector<1x128xf32>
    %64 = vector.shape_cast %63 : vector<1x128xf32> to vector<1x128xf32>
    %65 = vector.broadcast %64 : vector<1x128xf32> to vector<16x128xf32>
    %c0_76 = arith.constant 0 : index
    %c0_77 = arith.constant 0 : index
    %c0_78 = arith.constant 0 : index
    %66 = vector.load %arg5[%c0_76, %c0_77, %c0_78] : memref<2x24x256xf32, #tpu.memory_space<vmem>>, vector<1x16x128xf32>
    %67 = vector.shape_cast %66 : vector<1x16x128xf32> to vector<16x128xf32>
    %68 = arith.mulf %67, %53 : vector<16x128xf32>
    %69 = arith.addf %42, %68 : vector<16x128xf32>
    %70 = arith.mulf %67, %57 : vector<16x128xf32>
    %71 = arith.addf %43, %70 : vector<16x128xf32>
    %72 = arith.mulf %67, %61 : vector<16x128xf32>
    %73 = arith.addf %44, %72 : vector<16x128xf32>
    %74 = arith.mulf %67, %65 : vector<16x128xf32>
    %75 = arith.addf %45, %74 : vector<16x128xf32>
    %c1_79 = arith.constant 1 : index
    %c0_80 = arith.constant 0 : index
    %c0_81 = arith.constant 0 : index
    %76 = vector.load %arg5[%c1_79, %c0_80, %c0_81] : memref<2x24x256xf32, #tpu.memory_space<vmem>>, vector<1x16x128xf32>
    %77 = vector.shape_cast %76 : vector<1x16x128xf32> to vector<16x128xf32>
    %78 = arith.mulf %77, %53 : vector<16x128xf32>
    %79 = arith.addf %46, %78 : vector<16x128xf32>
    %80 = arith.mulf %77, %57 : vector<16x128xf32>
    %81 = arith.addf %47, %80 : vector<16x128xf32>
    %82 = arith.mulf %77, %61 : vector<16x128xf32>
    %83 = arith.addf %48, %82 : vector<16x128xf32>
    %84 = arith.mulf %77, %65 : vector<16x128xf32>
    %85 = arith.addf %49, %84 : vector<16x128xf32>
    %c0_82 = arith.constant 0 : index
    %c0_83 = arith.constant 0 : index
    %c1_84 = arith.constant 1 : index
    %c0_85 = arith.constant 0 : index
    %86 = vector.load %arg2[%c0_82, %c0_83, %c1_84, %c0_85] : memref<4x5x5x128xf32, #tpu.memory_space<vmem>>, vector<1x1x1x128xf32>
    %87 = vector.shape_cast %86 : vector<1x1x1x128xf32> to vector<1x128xf32>
    %88 = vector.shape_cast %87 : vector<1x128xf32> to vector<1x128xf32>
    %89 = vector.broadcast %88 : vector<1x128xf32> to vector<16x128xf32>
    %c1_86 = arith.constant 1 : index
    %c0_87 = arith.constant 0 : index
    %c1_88 = arith.constant 1 : index
    %c0_89 = arith.constant 0 : index
    %90 = vector.load %arg2[%c1_86, %c0_87, %c1_88, %c0_89] : memref<4x5x5x128xf32, #tpu.memory_space<vmem>>, vector<1x1x1x128xf32>
    %91 = vector.shape_cast %90 : vector<1x1x1x128xf32> to vector<1x128xf32>
    %92 = vector.shape_cast %91 : vector<1x128xf32> to vector<1x128xf32>
    %93 = vector.broadcast %92 : vector<1x128xf32> to vector<16x128xf32>
    %c2_90 = arith.constant 2 : index
    %c0_91 = arith.constant 0 : index
    %c1_92 = arith.constant 1 : index
    %c0_93 = arith.constant 0 : index
    %94 = vector.load %arg2[%c2_90, %c0_91, %c1_92, %c0_93] : memref<4x5x5x128xf32, #tpu.memory_space<vmem>>, vector<1x1x1x128xf32>
    %95 = vector.shape_cast %94 : vector<1x1x1x128xf32> to vector<1x128xf32>
    %96 = vector.shape_cast %95 : vector<1x128xf32> to vector<1x128xf32>
    %97 = vector.broadcast %96 : vector<1x128xf32> to vector<16x128xf32>
    %c3_94 = arith.constant 3 : index
    %c0_95 = arith.constant 0 : index
    %c1_96 = arith.constant 1 : index
    %c0_97 = arith.constant 0 : index
    %98 = vector.load %arg2[%c3_94, %c0_95, %c1_96, %c0_97] : memref<4x5x5x128xf32, #tpu.memory_space<vmem>>, vector<1x1x1x128xf32>
    %99 = vector.shape_cast %98 : vector<1x1x1x128xf32> to vector<1x128xf32>
    %100 = vector.shape_cast %99 : vector<1x128xf32> to vector<1x128xf32>
    %101 = vector.broadcast %100 : vector<1x128xf32> to vector<16x128xf32>
    %c0_98 = arith.constant 0 : index
    %c0_99 = arith.constant 0 : index
    %c1_100 = arith.constant 1 : index
    %102 = vector.load %arg5[%c0_98, %c0_99, %c1_100] : memref<2x24x256xf32, #tpu.memory_space<vmem>>, vector<1x16x128xf32>
    %103 = vector.shape_cast %102 : vector<1x16x128xf32> to vector<16x128xf32>
    %104 = arith.mulf %103, %89 : vector<16x128xf32>
    %105 = arith.addf %69, %104 : vector<16x128xf32>
    %106 = arith.mulf %103, %93 : vector<16x128xf32>
    %107 = arith.addf %71, %106 : vector<16x128xf32>
    %108 = arith.mulf %103, %97 : vector<16x128xf32>
    %109 = arith.addf %73, %108 : vector<16x128xf32>
    %110 = arith.mulf %103, %101 : vector<16x128xf32>
    %111 = arith.addf %75, %110 : vector<16x128xf32>
    %c1_101 = arith.constant 1 : index
    %c0_102 = arith.constant 0 : index
    %c1_103 = arith.constant 1 : index
    %112 = vector.load %arg5[%c1_101, %c0_102, %c1_103] : memref<2x24x256xf32, #tpu.memory_space<vmem>>, vector<1x16x128xf32>
    %113 = vector.shape_cast %112 : vector<1x16x128xf32> to vector<16x128xf32>
    %114 = arith.mulf %113, %89 : vector<16x128xf32>
    %115 = arith.addf %79, %114 : vector<16x128xf32>
    %116 = arith.mulf %113, %93 : vector<16x128xf32>
    %117 = arith.addf %81, %116 : vector<16x128xf32>
    %118 = arith.mulf %113, %97 : vector<16x128xf32>
    %119 = arith.addf %83, %118 : vector<16x128xf32>
    %120 = arith.mulf %113, %101 : vector<16x128xf32>
    %121 = arith.addf %85, %120 : vector<16x128xf32>
    %c0_104 = arith.constant 0 : index
    %c0_105 = arith.constant 0 : index
    %c2_106 = arith.constant 2 : index
    %c0_107 = arith.constant 0 : index
    %122 = vector.load %arg2[%c0_104, %c0_105, %c2_106, %c0_107] : memref<4x5x5x128xf32, #tpu.memory_space<vmem>>, vector<1x1x1x128xf32>
    %123 = vector.shape_cast %122 : vector<1x1x1x128xf32> to vector<1x128xf32>
    %124 = vector.shape_cast %123 : vector<1x128xf32> to vector<1x128xf32>
    %125 = vector.broadcast %124 : vector<1x128xf32> to vector<16x128xf32>
    %c1_108 = arith.constant 1 : index
    %c0_109 = arith.constant 0 : index
    %c2_110 = arith.constant 2 : index
    %c0_111 = arith.constant 0 : index
    %126 = vector.load %arg2[%c1_108, %c0_109, %c2_110, %c0_111] : memref<4x5x5x128xf32, #tpu.memory_space<vmem>>, vector<1x1x1x128xf32>
    %127 = vector.shape_cast %126 : vector<1x1x1x128xf32> to vector<1x128xf32>
    %128 = vector.shape_cast %127 : vector<1x128xf32> to vector<1x128xf32>
    %129 = vector.broadcast %128 : vector<1x128xf32> to vector<16x128xf32>
    %c2_112 = arith.constant 2 : index
    %c0_113 = arith.constant 0 : index
    %c2_114 = arith.constant 2 : index
    %c0_115 = arith.constant 0 : index
    %130 = vector.load %arg2[%c2_112, %c0_113, %c2_114, %c0_115] : memref<4x5x5x128xf32, #tpu.memory_space<vmem>>, vector<1x1x1x128xf32>
    %131 = vector.shape_cast %130 : vector<1x1x1x128xf32> to vector<1x128xf32>
    %132 = vector.shape_cast %131 : vector<1x128xf32> to vector<1x128xf32>
    %133 = vector.broadcast %132 : vector<1x128xf32> to vector<16x128xf32>
    %c3_116 = arith.constant 3 : index
    %c0_117 = arith.constant 0 : index
    %c2_118 = arith.constant 2 : index
    %c0_119 = arith.constant 0 : index
    %134 = vector.load %arg2[%c3_116, %c0_117, %c2_118, %c0_119] : memref<4x5x5x128xf32, #tpu.memory_space<vmem>>, vector<1x1x1x128xf32>
    %135 = vector.shape_cast %134 : vector<1x1x1x128xf32> to vector<1x128xf32>
    %136 = vector.shape_cast %135 : vector<1x128xf32> to vector<1x128xf32>
    %137 = vector.broadcast %136 : vector<1x128xf32> to vector<16x128xf32>
    %c0_120 = arith.constant 0 : index
    %c0_121 = arith.constant 0 : index
    %c2_122 = arith.constant 2 : index
    %138 = vector.load %arg5[%c0_120, %c0_121, %c2_122] : memref<2x24x256xf32, #tpu.memory_space<vmem>>, vector<1x16x128xf32>
    %139 = vector.shape_cast %138 : vector<1x16x128xf32> to vector<16x128xf32>
    %140 = arith.mulf %139, %125 : vector<16x128xf32>
    %141 = arith.addf %105, %140 : vector<16x128xf32>
    %142 = arith.mulf %139, %129 : vector<16x128xf32>
    %143 = arith.addf %107, %142 : vector<16x128xf32>
    %144 = arith.mulf %139, %133 : vector<16x128xf32>
    %145 = arith.addf %109, %144 : vector<16x128xf32>
    %146 = arith.mulf %139, %137 : vector<16x128xf32>
    %147 = arith.addf %111, %146 : vector<16x128xf32>
    %c1_123 = arith.constant 1 : index
    %c0_124 = arith.constant 0 : index
    %c2_125 = arith.constant 2 : index
    %148 = vector.load %arg5[%c1_123, %c0_124, %c2_125] : memref<2x24x256xf32, #tpu.memory_space<vmem>>, vector<1x16x128xf32>
    %149 = vector.shape_cast %148 : vector<1x16x128xf32> to vector<16x128xf32>
    %150 = arith.mulf %149, %125 : vector<16x128xf32>
    %151 = arith.addf %115, %150 : vector<16x128xf32>
    %152 = arith.mulf %149, %129 : vector<16x128xf32>
    %153 = arith.addf %117, %152 : vector<16x128xf32>
    %154 = arith.mulf %149, %133 : vector<16x128xf32>
    %155 = arith.addf %119, %154 : vector<16x128xf32>
    %156 = arith.mulf %149, %137 : vector<16x128xf32>
    %157 = arith.addf %121, %156 : vector<16x128xf32>
    %c0_126 = arith.constant 0 : index
    %c0_127 = arith.constant 0 : index
    %c3_128 = arith.constant 3 : index
    %c0_129 = arith.constant 0 : index
    %158 = vector.load %arg2[%c0_126, %c0_127, %c3_128, %c0_129] : memref<4x5x5x128xf32, #tpu.memory_space<vmem>>, vector<1x1x1x128xf32>
    %159 = vector.shape_cast %158 : vector<1x1x1x128xf32> to vector<1x128xf32>
    %160 = vector.shape_cast %159 : vector<1x128xf32> to vector<1x128xf32>
    %161 = vector.broadcast %160 : vector<1x128xf32> to vector<16x128xf32>
    %c1_130 = arith.constant 1 : index
    %c0_131 = arith.constant 0 : index
    %c3_132 = arith.constant 3 : index
    %c0_133 = arith.constant 0 : index
    %162 = vector.load %arg2[%c1_130, %c0_131, %c3_132, %c0_133] : memref<4x5x5x128xf32, #tpu.memory_space<vmem>>, vector<1x1x1x128xf32>
    %163 = vector.shape_cast %162 : vector<1x1x1x128xf32> to vector<1x128xf32>
    %164 = vector.shape_cast %163 : vector<1x128xf32> to vector<1x128xf32>
    %165 = vector.broadcast %164 : vector<1x128xf32> to vector<16x128xf32>
    %c2_134 = arith.constant 2 : index
    %c0_135 = arith.constant 0 : index
    %c3_136 = arith.constant 3 : index
    %c0_137 = arith.constant 0 : index
    %166 = vector.load %arg2[%c2_134, %c0_135, %c3_136, %c0_137] : memref<4x5x5x128xf32, #tpu.memory_space<vmem>>, vector<1x1x1x128xf32>
    %167 = vector.shape_cast %166 : vector<1x1x1x128xf32> to vector<1x128xf32>
    %168 = vector.shape_cast %167 : vector<1x128xf32> to vector<1x128xf32>
    %169 = vector.broadcast %168 : vector<1x128xf32> to vector<16x128xf32>
    %c3_138 = arith.constant 3 : index
    %c0_139 = arith.constant 0 : index
    %c3_140 = arith.constant 3 : index
    %c0_141 = arith.constant 0 : index
    %170 = vector.load %arg2[%c3_138, %c0_139, %c3_140, %c0_141] : memref<4x5x5x128xf32, #tpu.memory_space<vmem>>, vector<1x1x1x128xf32>
    %171 = vector.shape_cast %170 : vector<1x1x1x128xf32> to vector<1x128xf32>
    %172 = vector.shape_cast %171 : vector<1x128xf32> to vector<1x128xf32>
    %173 = vector.broadcast %172 : vector<1x128xf32> to vector<16x128xf32>
    %c0_142 = arith.constant 0 : index
    %c0_143 = arith.constant 0 : index
    %c3_144 = arith.constant 3 : index
    %174 = vector.load %arg5[%c0_142, %c0_143, %c3_144] : memref<2x24x256xf32, #tpu.memory_space<vmem>>, vector<1x16x128xf32>
    %175 = vector.shape_cast %174 : vector<1x16x128xf32> to vector<16x128xf32>
    %176 = arith.mulf %175, %161 : vector<16x128xf32>
    %177 = arith.addf %141, %176 : vector<16x128xf32>
    %178 = arith.mulf %175, %165 : vector<16x128xf32>
    %179 = arith.addf %143, %178 : vector<16x128xf32>
    %180 = arith.mulf %175, %169 : vector<16x128xf32>
    %181 = arith.addf %145, %180 : vector<16x128xf32>
    %182 = arith.mulf %175, %173 : vector<16x128xf32>
    %183 = arith.addf %147, %182 : vector<16x128xf32>
    %c1_145 = arith.constant 1 : index
    %c0_146 = arith.constant 0 : index
    %c3_147 = arith.constant 3 : index
    %184 = vector.load %arg5[%c1_145, %c0_146, %c3_147] : memref<2x24x256xf32, #tpu.memory_space<vmem>>, vector<1x16x128xf32>
    %185 = vector.shape_cast %184 : vector<1x16x128xf32> to vector<16x128xf32>
    %186 = arith.mulf %185, %161 : vector<16x128xf32>
    %187 = arith.addf %151, %186 : vector<16x128xf32>
    %188 = arith.mulf %185, %165 : vector<16x128xf32>
    %189 = arith.addf %153, %188 : vector<16x128xf32>
    %190 = arith.mulf %185, %169 : vector<16x128xf32>
    %191 = arith.addf %155, %190 : vector<16x128xf32>
    %192 = arith.mulf %185, %173 : vector<16x128xf32>
    %193 = arith.addf %157, %192 : vector<16x128xf32>
    %c0_148 = arith.constant 0 : index
    %c0_149 = arith.constant 0 : index
    %c4 = arith.constant 4 : index
    %c0_150 = arith.constant 0 : index
    %194 = vector.load %arg2[%c0_148, %c0_149, %c4, %c0_150] : memref<4x5x5x128xf32, #tpu.memory_space<vmem>>, vector<1x1x1x128xf32>
    %195 = vector.shape_cast %194 : vector<1x1x1x128xf32> to vector<1x128xf32>
    %196 = vector.shape_cast %195 : vector<1x128xf32> to vector<1x128xf32>
    %197 = vector.broadcast %196 : vector<1x128xf32> to vector<16x128xf32>
    %c1_151 = arith.constant 1 : index
    %c0_152 = arith.constant 0 : index
    %c4_153 = arith.constant 4 : index
    %c0_154 = arith.constant 0 : index
    %198 = vector.load %arg2[%c1_151, %c0_152, %c4_153, %c0_154] : memref<4x5x5x128xf32, #tpu.memory_space<vmem>>, vector<1x1x1x128xf32>
    %199 = vector.shape_cast %198 : vector<1x1x1x128xf32> to vector<1x128xf32>
    %200 = vector.shape_cast %199 : vector<1x128xf32> to vector<1x128xf32>
    %201 = vector.broadcast %200 : vector<1x128xf32> to vector<16x128xf32>
    %c2_155 = arith.constant 2 : index
    %c0_156 = arith.constant 0 : index
    %c4_157 = arith.constant 4 : index
    %c0_158 = arith.constant 0 : index
    %202 = vector.load %arg2[%c2_155, %c0_156, %c4_157, %c0_158] : memref<4x5x5x128xf32, #tpu.memory_space<vmem>>, vector<1x1x1x128xf32>
    %203 = vector.shape_cast %202 : vector<1x1x1x128xf32> to vector<1x128xf32>
    %204 = vector.shape_cast %203 : vector<1x128xf32> to vector<1x128xf32>
    %205 = vector.broadcast %204 : vector<1x128xf32> to vector<16x128xf32>
    %c3_159 = arith.constant 3 : index
    %c0_160 = arith.constant 0 : index
    %c4_161 = arith.constant 4 : index
    %c0_162 = arith.constant 0 : index
    %206 = vector.load %arg2[%c3_159, %c0_160, %c4_161, %c0_162] : memref<4x5x5x128xf32, #tpu.memory_space<vmem>>, vector<1x1x1x128xf32>
    %207 = vector.shape_cast %206 : vector<1x1x1x128xf32> to vector<1x128xf32>
    %208 = vector.shape_cast %207 : vector<1x128xf32> to vector<1x128xf32>
    %209 = vector.broadcast %208 : vector<1x128xf32> to vector<16x128xf32>
    %c0_163 = arith.constant 0 : index
    %c0_164 = arith.constant 0 : index
    %c4_165 = arith.constant 4 : index
    %210 = vector.load %arg5[%c0_163, %c0_164, %c4_165] : memref<2x24x256xf32, #tpu.memory_space<vmem>>, vector<1x16x128xf32>
    %211 = vector.shape_cast %210 : vector<1x16x128xf32> to vector<16x128xf32>
    %212 = arith.mulf %211, %197 : vector<16x128xf32>
    %213 = arith.addf %177, %212 : vector<16x128xf32>
    %214 = arith.mulf %211, %201 : vector<16x128xf32>
    %215 = arith.addf %179, %214 : vector<16x128xf32>
    %216 = arith.mulf %211, %205 : vector<16x128xf32>
    %217 = arith.addf %181, %216 : vector<16x128xf32>
    %218 = arith.mulf %211, %209 : vector<16x128xf32>
    %219 = arith.addf %183, %218 : vector<16x128xf32>
    %c1_166 = arith.constant 1 : index
    %c0_167 = arith.constant 0 : index
    %c4_168 = arith.constant 4 : index
    %220 = vector.load %arg5[%c1_166, %c0_167, %c4_168] : memref<2x24x256xf32, #tpu.memory_space<vmem>>, vector<1x16x128xf32>
    %221 = vector.shape_cast %220 : vector<1x16x128xf32> to vector<16x128xf32>
    %222 = arith.mulf %221, %197 : vector<16x128xf32>
    %223 = arith.addf %187, %222 : vector<16x128xf32>
    %224 = arith.mulf %221, %201 : vector<16x128xf32>
    %225 = arith.addf %189, %224 : vector<16x128xf32>
    %226 = arith.mulf %221, %205 : vector<16x128xf32>
    %227 = arith.addf %191, %226 : vector<16x128xf32>
    %228 = arith.mulf %221, %209 : vector<16x128xf32>
    %229 = arith.addf %193, %228 : vector<16x128xf32>
    %c0_169 = arith.constant 0 : index
    %c1_170 = arith.constant 1 : index
    %c0_171 = arith.constant 0 : index
    %c0_172 = arith.constant 0 : index
    %230 = vector.load %arg2[%c0_169, %c1_170, %c0_171, %c0_172] : memref<4x5x5x128xf32, #tpu.memory_space<vmem>>, vector<1x1x1x128xf32>
    %231 = vector.shape_cast %230 : vector<1x1x1x128xf32> to vector<1x128xf32>
    %232 = vector.shape_cast %231 : vector<1x128xf32> to vector<1x128xf32>
    %233 = vector.broadcast %232 : vector<1x128xf32> to vector<16x128xf32>
    %c1_173 = arith.constant 1 : index
    %c1_174 = arith.constant 1 : index
    %c0_175 = arith.constant 0 : index
    %c0_176 = arith.constant 0 : index
    %234 = vector.load %arg2[%c1_173, %c1_174, %c0_175, %c0_176] : memref<4x5x5x128xf32, #tpu.memory_space<vmem>>, vector<1x1x1x128xf32>
    %235 = vector.shape_cast %234 : vector<1x1x1x128xf32> to vector<1x128xf32>
    %236 = vector.shape_cast %235 : vector<1x128xf32> to vector<1x128xf32>
    %237 = vector.broadcast %236 : vector<1x128xf32> to vector<16x128xf32>
    %c2_177 = arith.constant 2 : index
    %c1_178 = arith.constant 1 : index
    %c0_179 = arith.constant 0 : index
    %c0_180 = arith.constant 0 : index
    %238 = vector.load %arg2[%c2_177, %c1_178, %c0_179, %c0_180] : memref<4x5x5x128xf32, #tpu.memory_space<vmem>>, vector<1x1x1x128xf32>
    %239 = vector.shape_cast %238 : vector<1x1x1x128xf32> to vector<1x128xf32>
    %240 = vector.shape_cast %239 : vector<1x128xf32> to vector<1x128xf32>
    %241 = vector.broadcast %240 : vector<1x128xf32> to vector<16x128xf32>
    %c3_181 = arith.constant 3 : index
    %c1_182 = arith.constant 1 : index
    %c0_183 = arith.constant 0 : index
    %c0_184 = arith.constant 0 : index
    %242 = vector.load %arg2[%c3_181, %c1_182, %c0_183, %c0_184] : memref<4x5x5x128xf32, #tpu.memory_space<vmem>>, vector<1x1x1x128xf32>
    %243 = vector.shape_cast %242 : vector<1x1x1x128xf32> to vector<1x128xf32>
    %244 = vector.shape_cast %243 : vector<1x128xf32> to vector<1x128xf32>
    %245 = vector.broadcast %244 : vector<1x128xf32> to vector<16x128xf32>
    %c0_185 = arith.constant 0 : index
    %c1_186 = arith.constant 1 : index
    %c0_187 = arith.constant 0 : index
    %246 = vector.load %arg5[%c0_185, %c1_186, %c0_187] : memref<2x24x256xf32, #tpu.memory_space<vmem>>, vector<1x16x128xf32>
    %247 = vector.shape_cast %246 : vector<1x16x128xf32> to vector<16x128xf32>
    %248 = arith.mulf %247, %233 : vector<16x128xf32>
    %249 = arith.addf %213, %248 : vector<16x128xf32>
    %250 = arith.mulf %247, %237 : vector<16x128xf32>
    %251 = arith.addf %215, %250 : vector<16x128xf32>
    %252 = arith.mulf %247, %241 : vector<16x128xf32>
    %253 = arith.addf %217, %252 : vector<16x128xf32>
    %254 = arith.mulf %247, %245 : vector<16x128xf32>
    %255 = arith.addf %219, %254 : vector<16x128xf32>
    %c1_188 = arith.constant 1 : index
    %c1_189 = arith.constant 1 : index
    %c0_190 = arith.constant 0 : index
    %256 = vector.load %arg5[%c1_188, %c1_189, %c0_190] : memref<2x24x256xf32, #tpu.memory_space<vmem>>, vector<1x16x128xf32>
    %257 = vector.shape_cast %256 : vector<1x16x128xf32> to vector<16x128xf32>
    %258 = arith.mulf %257, %233 : vector<16x128xf32>
    %259 = arith.addf %223, %258 : vector<16x128xf32>
    %260 = arith.mulf %257, %237 : vector<16x128xf32>
    %261 = arith.addf %225, %260 : vector<16x128xf32>
    %262 = arith.mulf %257, %241 : vector<16x128xf32>
    %263 = arith.addf %227, %262 : vector<16x128xf32>
    %264 = arith.mulf %257, %245 : vector<16x128xf32>
    %265 = arith.addf %229, %264 : vector<16x128xf32>
    %c0_191 = arith.constant 0 : index
    %c1_192 = arith.constant 1 : index
    %c1_193 = arith.constant 1 : index
    %c0_194 = arith.constant 0 : index
    %266 = vector.load %arg2[%c0_191, %c1_192, %c1_193, %c0_194] : memref<4x5x5x128xf32, #tpu.memory_space<vmem>>, vector<1x1x1x128xf32>
    %267 = vector.shape_cast %266 : vector<1x1x1x128xf32> to vector<1x128xf32>
    %268 = vector.shape_cast %267 : vector<1x128xf32> to vector<1x128xf32>
    %269 = vector.broadcast %268 : vector<1x128xf32> to vector<16x128xf32>
    %c1_195 = arith.constant 1 : index
    %c1_196 = arith.constant 1 : index
    %c1_197 = arith.constant 1 : index
    %c0_198 = arith.constant 0 : index
    %270 = vector.load %arg2[%c1_195, %c1_196, %c1_197, %c0_198] : memref<4x5x5x128xf32, #tpu.memory_space<vmem>>, vector<1x1x1x128xf32>
    %271 = vector.shape_cast %270 : vector<1x1x1x128xf32> to vector<1x128xf32>
    %272 = vector.shape_cast %271 : vector<1x128xf32> to vector<1x128xf32>
    %273 = vector.broadcast %272 : vector<1x128xf32> to vector<16x128xf32>
    %c2_199 = arith.constant 2 : index
    %c1_200 = arith.constant 1 : index
    %c1_201 = arith.constant 1 : index
    %c0_202 = arith.constant 0 : index
    %274 = vector.load %arg2[%c2_199, %c1_200, %c1_201, %c0_202] : memref<4x5x5x128xf32, #tpu.memory_space<vmem>>, vector<1x1x1x128xf32>
    %275 = vector.shape_cast %274 : vector<1x1x1x128xf32> to vector<1x128xf32>
    %276 = vector.shape_cast %275 : vector<1x128xf32> to vector<1x128xf32>
    %277 = vector.broadcast %276 : vector<1x128xf32> to vector<16x128xf32>
    %c3_203 = arith.constant 3 : index
    %c1_204 = arith.constant 1 : index
    %c1_205 = arith.constant 1 : index
    %c0_206 = arith.constant 0 : index
    %278 = vector.load %arg2[%c3_203, %c1_204, %c1_205, %c0_206] : memref<4x5x5x128xf32, #tpu.memory_space<vmem>>, vector<1x1x1x128xf32>
    %279 = vector.shape_cast %278 : vector<1x1x1x128xf32> to vector<1x128xf32>
    %280 = vector.shape_cast %279 : vector<1x128xf32> to vector<1x128xf32>
    %281 = vector.broadcast %280 : vector<1x128xf32> to vector<16x128xf32>
    %c0_207 = arith.constant 0 : index
    %c1_208 = arith.constant 1 : index
    %c1_209 = arith.constant 1 : index
    %282 = vector.load %arg5[%c0_207, %c1_208, %c1_209] : memref<2x24x256xf32, #tpu.memory_space<vmem>>, vector<1x16x128xf32>
    %283 = vector.shape_cast %282 : vector<1x16x128xf32> to vector<16x128xf32>
    %284 = arith.mulf %283, %269 : vector<16x128xf32>
    %285 = arith.addf %249, %284 : vector<16x128xf32>
    %286 = arith.mulf %283, %273 : vector<16x128xf32>
    %287 = arith.addf %251, %286 : vector<16x128xf32>
    %288 = arith.mulf %283, %277 : vector<16x128xf32>
    %289 = arith.addf %253, %288 : vector<16x128xf32>
    %290 = arith.mulf %283, %281 : vector<16x128xf32>
    %291 = arith.addf %255, %290 : vector<16x128xf32>
    %c1_210 = arith.constant 1 : index
    %c1_211 = arith.constant 1 : index
    %c1_212 = arith.constant 1 : index
    %292 = vector.load %arg5[%c1_210, %c1_211, %c1_212] : memref<2x24x256xf32, #tpu.memory_space<vmem>>, vector<1x16x128xf32>
    %293 = vector.shape_cast %292 : vector<1x16x128xf32> to vector<16x128xf32>
    %294 = arith.mulf %293, %269 : vector<16x128xf32>
    %295 = arith.addf %259, %294 : vector<16x128xf32>
    %296 = arith.mulf %293, %273 : vector<16x128xf32>
    %297 = arith.addf %261, %296 : vector<16x128xf32>
    %298 = arith.mulf %293, %277 : vector<16x128xf32>
    %299 = arith.addf %263, %298 : vector<16x128xf32>
    %300 = arith.mulf %293, %281 : vector<16x128xf32>
    %301 = arith.addf %265, %300 : vector<16x128xf32>
    %c0_213 = arith.constant 0 : index
    %c1_214 = arith.constant 1 : index
    %c2_215 = arith.constant 2 : index
    %c0_216 = arith.constant 0 : index
    %302 = vector.load %arg2[%c0_213, %c1_214, %c2_215, %c0_216] : memref<4x5x5x128xf32, #tpu.memory_space<vmem>>, vector<1x1x1x128xf32>
    %303 = vector.shape_cast %302 : vector<1x1x1x128xf32> to vector<1x128xf32>
    %304 = vector.shape_cast %303 : vector<1x128xf32> to vector<1x128xf32>
    %305 = vector.broadcast %304 : vector<1x128xf32> to vector<16x128xf32>
    %c1_217 = arith.constant 1 : index
    %c1_218 = arith.constant 1 : index
    %c2_219 = arith.constant 2 : index
    %c0_220 = arith.constant 0 : index
    %306 = vector.load %arg2[%c1_217, %c1_218, %c2_219, %c0_220] : memref<4x5x5x128xf32, #tpu.memory_space<vmem>>, vector<1x1x1x128xf32>
    %307 = vector.shape_cast %306 : vector<1x1x1x128xf32> to vector<1x128xf32>
    %308 = vector.shape_cast %307 : vector<1x128xf32> to vector<1x128xf32>
    %309 = vector.broadcast %308 : vector<1x128xf32> to vector<16x128xf32>
    %c2_221 = arith.constant 2 : index
    %c1_222 = arith.constant 1 : index
    %c2_223 = arith.constant 2 : index
    %c0_224 = arith.constant 0 : index
    %310 = vector.load %arg2[%c2_221, %c1_222, %c2_223, %c0_224] : memref<4x5x5x128xf32, #tpu.memory_space<vmem>>, vector<1x1x1x128xf32>
    %311 = vector.shape_cast %310 : vector<1x1x1x128xf32> to vector<1x128xf32>
    %312 = vector.shape_cast %311 : vector<1x128xf32> to vector<1x128xf32>
    %313 = vector.broadcast %312 : vector<1x128xf32> to vector<16x128xf32>
    %c3_225 = arith.constant 3 : index
    %c1_226 = arith.constant 1 : index
    %c2_227 = arith.constant 2 : index
    %c0_228 = arith.constant 0 : index
    %314 = vector.load %arg2[%c3_225, %c1_226, %c2_227, %c0_228] : memref<4x5x5x128xf32, #tpu.memory_space<vmem>>, vector<1x1x1x128xf32>
    %315 = vector.shape_cast %314 : vector<1x1x1x128xf32> to vector<1x128xf32>
    %316 = vector.shape_cast %315 : vector<1x128xf32> to vector<1x128xf32>
    %317 = vector.broadcast %316 : vector<1x128xf32> to vector<16x128xf32>
    %c0_229 = arith.constant 0 : index
    %c1_230 = arith.constant 1 : index
    %c2_231 = arith.constant 2 : index
    %318 = vector.load %arg5[%c0_229, %c1_230, %c2_231] : memref<2x24x256xf32, #tpu.memory_space<vmem>>, vector<1x16x128xf32>
    %319 = vector.shape_cast %318 : vector<1x16x128xf32> to vector<16x128xf32>
    %320 = arith.mulf %319, %305 : vector<16x128xf32>
    %321 = arith.addf %285, %320 : vector<16x128xf32>
    %322 = arith.mulf %319, %309 : vector<16x128xf32>
    %323 = arith.addf %287, %322 : vector<16x128xf32>
    %324 = arith.mulf %319, %313 : vector<16x128xf32>
    %325 = arith.addf %289, %324 : vector<16x128xf32>
    %326 = arith.mulf %319, %317 : vector<16x128xf32>
    %327 = arith.addf %291, %326 : vector<16x128xf32>
    %c1_232 = arith.constant 1 : index
    %c1_233 = arith.constant 1 : index
    %c2_234 = arith.constant 2 : index
    %328 = vector.load %arg5[%c1_232, %c1_233, %c2_234] : memref<2x24x256xf32, #tpu.memory_space<vmem>>, vector<1x16x128xf32>
    %329 = vector.shape_cast %328 : vector<1x16x128xf32> to vector<16x128xf32>
    %330 = arith.mulf %329, %305 : vector<16x128xf32>
    %331 = arith.addf %295, %330 : vector<16x128xf32>
    %332 = arith.mulf %329, %309 : vector<16x128xf32>
    %333 = arith.addf %297, %332 : vector<16x128xf32>
    %334 = arith.mulf %329, %313 : vector<16x128xf32>
    %335 = arith.addf %299, %334 : vector<16x128xf32>
    %336 = arith.mulf %329, %317 : vector<16x128xf32>
    %337 = arith.addf %301, %336 : vector<16x128xf32>
    %c0_235 = arith.constant 0 : index
    %c1_236 = arith.constant 1 : index
    %c3_237 = arith.constant 3 : index
    %c0_238 = arith.constant 0 : index
    %338 = vector.load %arg2[%c0_235, %c1_236, %c3_237, %c0_238] : memref<4x5x5x128xf32, #tpu.memory_space<vmem>>, vector<1x1x1x128xf32>
    %339 = vector.shape_cast %338 : vector<1x1x1x128xf32> to vector<1x128xf32>
    %340 = vector.shape_cast %339 : vector<1x128xf32> to vector<1x128xf32>
    %341 = vector.broadcast %340 : vector<1x128xf32> to vector<16x128xf32>
    %c1_239 = arith.constant 1 : index
    %c1_240 = arith.constant 1 : index
    %c3_241 = arith.constant 3 : index
    %c0_242 = arith.constant 0 : index
    %342 = vector.load %arg2[%c1_239, %c1_240, %c3_241, %c0_242] : memref<4x5x5x128xf32, #tpu.memory_space<vmem>>, vector<1x1x1x128xf32>
    %343 = vector.shape_cast %342 : vector<1x1x1x128xf32> to vector<1x128xf32>
    %344 = vector.shape_cast %343 : vector<1x128xf32> to vector<1x128xf32>
    %345 = vector.broadcast %344 : vector<1x128xf32> to vector<16x128xf32>
    %c2_243 = arith.constant 2 : index
    %c1_244 = arith.constant 1 : index
    %c3_245 = arith.constant 3 : index
    %c0_246 = arith.constant 0 : index
    %346 = vector.load %arg2[%c2_243, %c1_244, %c3_245, %c0_246] : memref<4x5x5x128xf32, #tpu.memory_space<vmem>>, vector<1x1x1x128xf32>
    %347 = vector.shape_cast %346 : vector<1x1x1x128xf32> to vector<1x128xf32>
    %348 = vector.shape_cast %347 : vector<1x128xf32> to vector<1x128xf32>
    %349 = vector.broadcast %348 : vector<1x128xf32> to vector<16x128xf32>
    %c3_247 = arith.constant 3 : index
    %c1_248 = arith.constant 1 : index
    %c3_249 = arith.constant 3 : index
    %c0_250 = arith.constant 0 : index
    %350 = vector.load %arg2[%c3_247, %c1_248, %c3_249, %c0_250] : memref<4x5x5x128xf32, #tpu.memory_space<vmem>>, vector<1x1x1x128xf32>
    %351 = vector.shape_cast %350 : vector<1x1x1x128xf32> to vector<1x128xf32>
    %352 = vector.shape_cast %351 : vector<1x128xf32> to vector<1x128xf32>
    %353 = vector.broadcast %352 : vector<1x128xf32> to vector<16x128xf32>
    %c0_251 = arith.constant 0 : index
    %c1_252 = arith.constant 1 : index
    %c3_253 = arith.constant 3 : index
    %354 = vector.load %arg5[%c0_251, %c1_252, %c3_253] : memref<2x24x256xf32, #tpu.memory_space<vmem>>, vector<1x16x128xf32>
    %355 = vector.shape_cast %354 : vector<1x16x128xf32> to vector<16x128xf32>
    %356 = arith.mulf %355, %341 : vector<16x128xf32>
    %357 = arith.addf %321, %356 : vector<16x128xf32>
    %358 = arith.mulf %355, %345 : vector<16x128xf32>
    %359 = arith.addf %323, %358 : vector<16x128xf32>
    %360 = arith.mulf %355, %349 : vector<16x128xf32>
    %361 = arith.addf %325, %360 : vector<16x128xf32>
    %362 = arith.mulf %355, %353 : vector<16x128xf32>
    %363 = arith.addf %327, %362 : vector<16x128xf32>
    %c1_254 = arith.constant 1 : index
    %c1_255 = arith.constant 1 : index
    %c3_256 = arith.constant 3 : index
    %364 = vector.load %arg5[%c1_254, %c1_255, %c3_256] : memref<2x24x256xf32, #tpu.memory_space<vmem>>, vector<1x16x128xf32>
    %365 = vector.shape_cast %364 : vector<1x16x128xf32> to vector<16x128xf32>
    %366 = arith.mulf %365, %341 : vector<16x128xf32>
    %367 = arith.addf %331, %366 : vector<16x128xf32>
    %368 = arith.mulf %365, %345 : vector<16x128xf32>
    %369 = arith.addf %333, %368 : vector<16x128xf32>
    %370 = arith.mulf %365, %349 : vector<16x128xf32>
    %371 = arith.addf %335, %370 : vector<16x128xf32>
    %372 = arith.mulf %365, %353 : vector<16x128xf32>
    %373 = arith.addf %337, %372 : vector<16x128xf32>
    %c0_257 = arith.constant 0 : index
    %c1_258 = arith.constant 1 : index
    %c4_259 = arith.constant 4 : index
    %c0_260 = arith.constant 0 : index
    %374 = vector.load %arg2[%c0_257, %c1_258, %c4_259, %c0_260] : memref<4x5x5x128xf32, #tpu.memory_space<vmem>>, vector<1x1x1x128xf32>
    %375 = vector.shape_cast %374 : vector<1x1x1x128xf32> to vector<1x128xf32>
    %376 = vector.shape_cast %375 : vector<1x128xf32> to vector<1x128xf32>
    %377 = vector.broadcast %376 : vector<1x128xf32> to vector<16x128xf32>
    %c1_261 = arith.constant 1 : index
    %c1_262 = arith.constant 1 : index
    %c4_263 = arith.constant 4 : index
    %c0_264 = arith.constant 0 : index
    %378 = vector.load %arg2[%c1_261, %c1_262, %c4_263, %c0_264] : memref<4x5x5x128xf32, #tpu.memory_space<vmem>>, vector<1x1x1x128xf32>
    %379 = vector.shape_cast %378 : vector<1x1x1x128xf32> to vector<1x128xf32>
    %380 = vector.shape_cast %379 : vector<1x128xf32> to vector<1x128xf32>
    %381 = vector.broadcast %380 : vector<1x128xf32> to vector<16x128xf32>
    %c2_265 = arith.constant 2 : index
    %c1_266 = arith.constant 1 : index
    %c4_267 = arith.constant 4 : index
    %c0_268 = arith.constant 0 : index
    %382 = vector.load %arg2[%c2_265, %c1_266, %c4_267, %c0_268] : memref<4x5x5x128xf32, #tpu.memory_space<vmem>>, vector<1x1x1x128xf32>
    %383 = vector.shape_cast %382 : vector<1x1x1x128xf32> to vector<1x128xf32>
    %384 = vector.shape_cast %383 : vector<1x128xf32> to vector<1x128xf32>
    %385 = vector.broadcast %384 : vector<1x128xf32> to vector<16x128xf32>
    %c3_269 = arith.constant 3 : index
    %c1_270 = arith.constant 1 : index
    %c4_271 = arith.constant 4 : index
    %c0_272 = arith.constant 0 : index
    %386 = vector.load %arg2[%c3_269, %c1_270, %c4_271, %c0_272] : memref<4x5x5x128xf32, #tpu.memory_space<vmem>>, vector<1x1x1x128xf32>
    %387 = vector.shape_cast %386 : vector<1x1x1x128xf32> to vector<1x128xf32>
    %388 = vector.shape_cast %387 : vector<1x128xf32> to vector<1x128xf32>
    %389 = vector.broadcast %388 : vector<1x128xf32> to vector<16x128xf32>
    %c0_273 = arith.constant 0 : index
    %c1_274 = arith.constant 1 : index
    %c4_275 = arith.constant 4 : index
    %390 = vector.load %arg5[%c0_273, %c1_274, %c4_275] : memref<2x24x256xf32, #tpu.memory_space<vmem>>, vector<1x16x128xf32>
    %391 = vector.shape_cast %390 : vector<1x16x128xf32> to vector<16x128xf32>
    %392 = arith.mulf %391, %377 : vector<16x128xf32>
    %393 = arith.addf %357, %392 : vector<16x128xf32>
    %394 = arith.mulf %391, %381 : vector<16x128xf32>
    %395 = arith.addf %359, %394 : vector<16x128xf32>
    %396 = arith.mulf %391, %385 : vector<16x128xf32>
    %397 = arith.addf %361, %396 : vector<16x128xf32>
    %398 = arith.mulf %391, %389 : vector<16x128xf32>
    %399 = arith.addf %363, %398 : vector<16x128xf32>
    %c1_276 = arith.constant 1 : index
    %c1_277 = arith.constant 1 : index
    %c4_278 = arith.constant 4 : index
    %400 = vector.load %arg5[%c1_276, %c1_277, %c4_278] : memref<2x24x256xf32, #tpu.memory_space<vmem>>, vector<1x16x128xf32>
    %401 = vector.shape_cast %400 : vector<1x16x128xf32> to vector<16x128xf32>
    %402 = arith.mulf %401, %377 : vector<16x128xf32>
    %403 = arith.addf %367, %402 : vector<16x128xf32>
    %404 = arith.mulf %401, %381 : vector<16x128xf32>
    %405 = arith.addf %369, %404 : vector<16x128xf32>
    %406 = arith.mulf %401, %385 : vector<16x128xf32>
    %407 = arith.addf %371, %406 : vector<16x128xf32>
    %408 = arith.mulf %401, %389 : vector<16x128xf32>
    %409 = arith.addf %373, %408 : vector<16x128xf32>
    %c0_279 = arith.constant 0 : index
    %c2_280 = arith.constant 2 : index
    %c0_281 = arith.constant 0 : index
    %c0_282 = arith.constant 0 : index
    %410 = vector.load %arg2[%c0_279, %c2_280, %c0_281, %c0_282] : memref<4x5x5x128xf32, #tpu.memory_space<vmem>>, vector<1x1x1x128xf32>
    %411 = vector.shape_cast %410 : vector<1x1x1x128xf32> to vector<1x128xf32>
    %412 = vector.shape_cast %411 : vector<1x128xf32> to vector<1x128xf32>
    %413 = vector.broadcast %412 : vector<1x128xf32> to vector<16x128xf32>
    %c1_283 = arith.constant 1 : index
    %c2_284 = arith.constant 2 : index
    %c0_285 = arith.constant 0 : index
    %c0_286 = arith.constant 0 : index
    %414 = vector.load %arg2[%c1_283, %c2_284, %c0_285, %c0_286] : memref<4x5x5x128xf32, #tpu.memory_space<vmem>>, vector<1x1x1x128xf32>
    %415 = vector.shape_cast %414 : vector<1x1x1x128xf32> to vector<1x128xf32>
    %416 = vector.shape_cast %415 : vector<1x128xf32> to vector<1x128xf32>
    %417 = vector.broadcast %416 : vector<1x128xf32> to vector<16x128xf32>
    %c2_287 = arith.constant 2 : index
    %c2_288 = arith.constant 2 : index
    %c0_289 = arith.constant 0 : index
    %c0_290 = arith.constant 0 : index
    %418 = vector.load %arg2[%c2_287, %c2_288, %c0_289, %c0_290] : memref<4x5x5x128xf32, #tpu.memory_space<vmem>>, vector<1x1x1x128xf32>
    %419 = vector.shape_cast %418 : vector<1x1x1x128xf32> to vector<1x128xf32>
    %420 = vector.shape_cast %419 : vector<1x128xf32> to vector<1x128xf32>
    %421 = vector.broadcast %420 : vector<1x128xf32> to vector<16x128xf32>
    %c3_291 = arith.constant 3 : index
    %c2_292 = arith.constant 2 : index
    %c0_293 = arith.constant 0 : index
    %c0_294 = arith.constant 0 : index
    %422 = vector.load %arg2[%c3_291, %c2_292, %c0_293, %c0_294] : memref<4x5x5x128xf32, #tpu.memory_space<vmem>>, vector<1x1x1x128xf32>
    %423 = vector.shape_cast %422 : vector<1x1x1x128xf32> to vector<1x128xf32>
    %424 = vector.shape_cast %423 : vector<1x128xf32> to vector<1x128xf32>
    %425 = vector.broadcast %424 : vector<1x128xf32> to vector<16x128xf32>
    %c0_295 = arith.constant 0 : index
    %c2_296 = arith.constant 2 : index
    %c0_297 = arith.constant 0 : index
    %426 = vector.load %arg5[%c0_295, %c2_296, %c0_297] : memref<2x24x256xf32, #tpu.memory_space<vmem>>, vector<1x16x128xf32>
    %427 = vector.shape_cast %426 : vector<1x16x128xf32> to vector<16x128xf32>
    %428 = arith.mulf %427, %413 : vector<16x128xf32>
    %429 = arith.addf %393, %428 : vector<16x128xf32>
    %430 = arith.mulf %427, %417 : vector<16x128xf32>
    %431 = arith.addf %395, %430 : vector<16x128xf32>
    %432 = arith.mulf %427, %421 : vector<16x128xf32>
    %433 = arith.addf %397, %432 : vector<16x128xf32>
    %434 = arith.mulf %427, %425 : vector<16x128xf32>
    %435 = arith.addf %399, %434 : vector<16x128xf32>
    %c1_298 = arith.constant 1 : index
    %c2_299 = arith.constant 2 : index
    %c0_300 = arith.constant 0 : index
    %436 = vector.load %arg5[%c1_298, %c2_299, %c0_300] : memref<2x24x256xf32, #tpu.memory_space<vmem>>, vector<1x16x128xf32>
    %437 = vector.shape_cast %436 : vector<1x16x128xf32> to vector<16x128xf32>
    %438 = arith.mulf %437, %413 : vector<16x128xf32>
    %439 = arith.addf %403, %438 : vector<16x128xf32>
    %440 = arith.mulf %437, %417 : vector<16x128xf32>
    %441 = arith.addf %405, %440 : vector<16x128xf32>
    %442 = arith.mulf %437, %421 : vector<16x128xf32>
    %443 = arith.addf %407, %442 : vector<16x128xf32>
    %444 = arith.mulf %437, %425 : vector<16x128xf32>
    %445 = arith.addf %409, %444 : vector<16x128xf32>
    %c0_301 = arith.constant 0 : index
    %c2_302 = arith.constant 2 : index
    %c1_303 = arith.constant 1 : index
    %c0_304 = arith.constant 0 : index
    %446 = vector.load %arg2[%c0_301, %c2_302, %c1_303, %c0_304] : memref<4x5x5x128xf32, #tpu.memory_space<vmem>>, vector<1x1x1x128xf32>
    %447 = vector.shape_cast %446 : vector<1x1x1x128xf32> to vector<1x128xf32>
    %448 = vector.shape_cast %447 : vector<1x128xf32> to vector<1x128xf32>
    %449 = vector.broadcast %448 : vector<1x128xf32> to vector<16x128xf32>
    %c1_305 = arith.constant 1 : index
    %c2_306 = arith.constant 2 : index
    %c1_307 = arith.constant 1 : index
    %c0_308 = arith.constant 0 : index
    %450 = vector.load %arg2[%c1_305, %c2_306, %c1_307, %c0_308] : memref<4x5x5x128xf32, #tpu.memory_space<vmem>>, vector<1x1x1x128xf32>
    %451 = vector.shape_cast %450 : vector<1x1x1x128xf32> to vector<1x128xf32>
    %452 = vector.shape_cast %451 : vector<1x128xf32> to vector<1x128xf32>
    %453 = vector.broadcast %452 : vector<1x128xf32> to vector<16x128xf32>
    %c2_309 = arith.constant 2 : index
    %c2_310 = arith.constant 2 : index
    %c1_311 = arith.constant 1 : index
    %c0_312 = arith.constant 0 : index
    %454 = vector.load %arg2[%c2_309, %c2_310, %c1_311, %c0_312] : memref<4x5x5x128xf32, #tpu.memory_space<vmem>>, vector<1x1x1x128xf32>
    %455 = vector.shape_cast %454 : vector<1x1x1x128xf32> to vector<1x128xf32>
    %456 = vector.shape_cast %455 : vector<1x128xf32> to vector<1x128xf32>
    %457 = vector.broadcast %456 : vector<1x128xf32> to vector<16x128xf32>
    %c3_313 = arith.constant 3 : index
    %c2_314 = arith.constant 2 : index
    %c1_315 = arith.constant 1 : index
    %c0_316 = arith.constant 0 : index
    %458 = vector.load %arg2[%c3_313, %c2_314, %c1_315, %c0_316] : memref<4x5x5x128xf32, #tpu.memory_space<vmem>>, vector<1x1x1x128xf32>
    %459 = vector.shape_cast %458 : vector<1x1x1x128xf32> to vector<1x128xf32>
    %460 = vector.shape_cast %459 : vector<1x128xf32> to vector<1x128xf32>
    %461 = vector.broadcast %460 : vector<1x128xf32> to vector<16x128xf32>
    %c0_317 = arith.constant 0 : index
    %c2_318 = arith.constant 2 : index
    %c1_319 = arith.constant 1 : index
    %462 = vector.load %arg5[%c0_317, %c2_318, %c1_319] : memref<2x24x256xf32, #tpu.memory_space<vmem>>, vector<1x16x128xf32>
    %463 = vector.shape_cast %462 : vector<1x16x128xf32> to vector<16x128xf32>
    %464 = arith.mulf %463, %449 : vector<16x128xf32>
    %465 = arith.addf %429, %464 : vector<16x128xf32>
    %466 = arith.mulf %463, %453 : vector<16x128xf32>
    %467 = arith.addf %431, %466 : vector<16x128xf32>
    %468 = arith.mulf %463, %457 : vector<16x128xf32>
    %469 = arith.addf %433, %468 : vector<16x128xf32>
    %470 = arith.mulf %463, %461 : vector<16x128xf32>
    %471 = arith.addf %435, %470 : vector<16x128xf32>
    %c1_320 = arith.constant 1 : index
    %c2_321 = arith.constant 2 : index
    %c1_322 = arith.constant 1 : index
    %472 = vector.load %arg5[%c1_320, %c2_321, %c1_322] : memref<2x24x256xf32, #tpu.memory_space<vmem>>, vector<1x16x128xf32>
    %473 = vector.shape_cast %472 : vector<1x16x128xf32> to vector<16x128xf32>
    %474 = arith.mulf %473, %449 : vector<16x128xf32>
    %475 = arith.addf %439, %474 : vector<16x128xf32>
    %476 = arith.mulf %473, %453 : vector<16x128xf32>
    %477 = arith.addf %441, %476 : vector<16x128xf32>
    %478 = arith.mulf %473, %457 : vector<16x128xf32>
    %479 = arith.addf %443, %478 : vector<16x128xf32>
    %480 = arith.mulf %473, %461 : vector<16x128xf32>
    %481 = arith.addf %445, %480 : vector<16x128xf32>
    %c0_323 = arith.constant 0 : index
    %c2_324 = arith.constant 2 : index
    %c2_325 = arith.constant 2 : index
    %c0_326 = arith.constant 0 : index
    %482 = vector.load %arg2[%c0_323, %c2_324, %c2_325, %c0_326] : memref<4x5x5x128xf32, #tpu.memory_space<vmem>>, vector<1x1x1x128xf32>
    %483 = vector.shape_cast %482 : vector<1x1x1x128xf32> to vector<1x128xf32>
    %484 = vector.shape_cast %483 : vector<1x128xf32> to vector<1x128xf32>
    %485 = vector.broadcast %484 : vector<1x128xf32> to vector<16x128xf32>
    %c1_327 = arith.constant 1 : index
    %c2_328 = arith.constant 2 : index
    %c2_329 = arith.constant 2 : index
    %c0_330 = arith.constant 0 : index
    %486 = vector.load %arg2[%c1_327, %c2_328, %c2_329, %c0_330] : memref<4x5x5x128xf32, #tpu.memory_space<vmem>>, vector<1x1x1x128xf32>
    %487 = vector.shape_cast %486 : vector<1x1x1x128xf32> to vector<1x128xf32>
    %488 = vector.shape_cast %487 : vector<1x128xf32> to vector<1x128xf32>
    %489 = vector.broadcast %488 : vector<1x128xf32> to vector<16x128xf32>
    %c2_331 = arith.constant 2 : index
    %c2_332 = arith.constant 2 : index
    %c2_333 = arith.constant 2 : index
    %c0_334 = arith.constant 0 : index
    %490 = vector.load %arg2[%c2_331, %c2_332, %c2_333, %c0_334] : memref<4x5x5x128xf32, #tpu.memory_space<vmem>>, vector<1x1x1x128xf32>
    %491 = vector.shape_cast %490 : vector<1x1x1x128xf32> to vector<1x128xf32>
    %492 = vector.shape_cast %491 : vector<1x128xf32> to vector<1x128xf32>
    %493 = vector.broadcast %492 : vector<1x128xf32> to vector<16x128xf32>
    %c3_335 = arith.constant 3 : index
    %c2_336 = arith.constant 2 : index
    %c2_337 = arith.constant 2 : index
    %c0_338 = arith.constant 0 : index
    %494 = vector.load %arg2[%c3_335, %c2_336, %c2_337, %c0_338] : memref<4x5x5x128xf32, #tpu.memory_space<vmem>>, vector<1x1x1x128xf32>
    %495 = vector.shape_cast %494 : vector<1x1x1x128xf32> to vector<1x128xf32>
    %496 = vector.shape_cast %495 : vector<1x128xf32> to vector<1x128xf32>
    %497 = vector.broadcast %496 : vector<1x128xf32> to vector<16x128xf32>
    %c0_339 = arith.constant 0 : index
    %c2_340 = arith.constant 2 : index
    %c2_341 = arith.constant 2 : index
    %498 = vector.load %arg5[%c0_339, %c2_340, %c2_341] : memref<2x24x256xf32, #tpu.memory_space<vmem>>, vector<1x16x128xf32>
    %499 = vector.shape_cast %498 : vector<1x16x128xf32> to vector<16x128xf32>
    %500 = arith.mulf %499, %485 : vector<16x128xf32>
    %501 = arith.addf %465, %500 : vector<16x128xf32>
    %502 = arith.mulf %499, %489 : vector<16x128xf32>
    %503 = arith.addf %467, %502 : vector<16x128xf32>
    %504 = arith.mulf %499, %493 : vector<16x128xf32>
    %505 = arith.addf %469, %504 : vector<16x128xf32>
    %506 = arith.mulf %499, %497 : vector<16x128xf32>
    %507 = arith.addf %471, %506 : vector<16x128xf32>
    %c1_342 = arith.constant 1 : index
    %c2_343 = arith.constant 2 : index
    %c2_344 = arith.constant 2 : index
    %508 = vector.load %arg5[%c1_342, %c2_343, %c2_344] : memref<2x24x256xf32, #tpu.memory_space<vmem>>, vector<1x16x128xf32>
    %509 = vector.shape_cast %508 : vector<1x16x128xf32> to vector<16x128xf32>
    %510 = arith.mulf %509, %485 : vector<16x128xf32>
    %511 = arith.addf %475, %510 : vector<16x128xf32>
    %512 = arith.mulf %509, %489 : vector<16x128xf32>
    %513 = arith.addf %477, %512 : vector<16x128xf32>
    %514 = arith.mulf %509, %493 : vector<16x128xf32>
    %515 = arith.addf %479, %514 : vector<16x128xf32>
    %516 = arith.mulf %509, %497 : vector<16x128xf32>
    %517 = arith.addf %481, %516 : vector<16x128xf32>
    %c0_345 = arith.constant 0 : index
    %c2_346 = arith.constant 2 : index
    %c3_347 = arith.constant 3 : index
    %c0_348 = arith.constant 0 : index
    %518 = vector.load %arg2[%c0_345, %c2_346, %c3_347, %c0_348] : memref<4x5x5x128xf32, #tpu.memory_space<vmem>>, vector<1x1x1x128xf32>
    %519 = vector.shape_cast %518 : vector<1x1x1x128xf32> to vector<1x128xf32>
    %520 = vector.shape_cast %519 : vector<1x128xf32> to vector<1x128xf32>
    %521 = vector.broadcast %520 : vector<1x128xf32> to vector<16x128xf32>
    %c1_349 = arith.constant 1 : index
    %c2_350 = arith.constant 2 : index
    %c3_351 = arith.constant 3 : index
    %c0_352 = arith.constant 0 : index
    %522 = vector.load %arg2[%c1_349, %c2_350, %c3_351, %c0_352] : memref<4x5x5x128xf32, #tpu.memory_space<vmem>>, vector<1x1x1x128xf32>
    %523 = vector.shape_cast %522 : vector<1x1x1x128xf32> to vector<1x128xf32>
    %524 = vector.shape_cast %523 : vector<1x128xf32> to vector<1x128xf32>
    %525 = vector.broadcast %524 : vector<1x128xf32> to vector<16x128xf32>
    %c2_353 = arith.constant 2 : index
    %c2_354 = arith.constant 2 : index
    %c3_355 = arith.constant 3 : index
    %c0_356 = arith.constant 0 : index
    %526 = vector.load %arg2[%c2_353, %c2_354, %c3_355, %c0_356] : memref<4x5x5x128xf32, #tpu.memory_space<vmem>>, vector<1x1x1x128xf32>
    %527 = vector.shape_cast %526 : vector<1x1x1x128xf32> to vector<1x128xf32>
    %528 = vector.shape_cast %527 : vector<1x128xf32> to vector<1x128xf32>
    %529 = vector.broadcast %528 : vector<1x128xf32> to vector<16x128xf32>
    %c3_357 = arith.constant 3 : index
    %c2_358 = arith.constant 2 : index
    %c3_359 = arith.constant 3 : index
    %c0_360 = arith.constant 0 : index
    %530 = vector.load %arg2[%c3_357, %c2_358, %c3_359, %c0_360] : memref<4x5x5x128xf32, #tpu.memory_space<vmem>>, vector<1x1x1x128xf32>
    %531 = vector.shape_cast %530 : vector<1x1x1x128xf32> to vector<1x128xf32>
    %532 = vector.shape_cast %531 : vector<1x128xf32> to vector<1x128xf32>
    %533 = vector.broadcast %532 : vector<1x128xf32> to vector<16x128xf32>
    %c0_361 = arith.constant 0 : index
    %c2_362 = arith.constant 2 : index
    %c3_363 = arith.constant 3 : index
    %534 = vector.load %arg5[%c0_361, %c2_362, %c3_363] : memref<2x24x256xf32, #tpu.memory_space<vmem>>, vector<1x16x128xf32>
    %535 = vector.shape_cast %534 : vector<1x16x128xf32> to vector<16x128xf32>
    %536 = arith.mulf %535, %521 : vector<16x128xf32>
    %537 = arith.addf %501, %536 : vector<16x128xf32>
    %538 = arith.mulf %535, %525 : vector<16x128xf32>
    %539 = arith.addf %503, %538 : vector<16x128xf32>
    %540 = arith.mulf %535, %529 : vector<16x128xf32>
    %541 = arith.addf %505, %540 : vector<16x128xf32>
    %542 = arith.mulf %535, %533 : vector<16x128xf32>
    %543 = arith.addf %507, %542 : vector<16x128xf32>
    %c1_364 = arith.constant 1 : index
    %c2_365 = arith.constant 2 : index
    %c3_366 = arith.constant 3 : index
    %544 = vector.load %arg5[%c1_364, %c2_365, %c3_366] : memref<2x24x256xf32, #tpu.memory_space<vmem>>, vector<1x16x128xf32>
    %545 = vector.shape_cast %544 : vector<1x16x128xf32> to vector<16x128xf32>
    %546 = arith.mulf %545, %521 : vector<16x128xf32>
    %547 = arith.addf %511, %546 : vector<16x128xf32>
    %548 = arith.mulf %545, %525 : vector<16x128xf32>
    %549 = arith.addf %513, %548 : vector<16x128xf32>
    %550 = arith.mulf %545, %529 : vector<16x128xf32>
    %551 = arith.addf %515, %550 : vector<16x128xf32>
    %552 = arith.mulf %545, %533 : vector<16x128xf32>
    %553 = arith.addf %517, %552 : vector<16x128xf32>
    %c0_367 = arith.constant 0 : index
    %c2_368 = arith.constant 2 : index
    %c4_369 = arith.constant 4 : index
    %c0_370 = arith.constant 0 : index
    %554 = vector.load %arg2[%c0_367, %c2_368, %c4_369, %c0_370] : memref<4x5x5x128xf32, #tpu.memory_space<vmem>>, vector<1x1x1x128xf32>
    %555 = vector.shape_cast %554 : vector<1x1x1x128xf32> to vector<1x128xf32>
    %556 = vector.shape_cast %555 : vector<1x128xf32> to vector<1x128xf32>
    %557 = vector.broadcast %556 : vector<1x128xf32> to vector<16x128xf32>
    %c1_371 = arith.constant 1 : index
    %c2_372 = arith.constant 2 : index
    %c4_373 = arith.constant 4 : index
    %c0_374 = arith.constant 0 : index
    %558 = vector.load %arg2[%c1_371, %c2_372, %c4_373, %c0_374] : memref<4x5x5x128xf32, #tpu.memory_space<vmem>>, vector<1x1x1x128xf32>
    %559 = vector.shape_cast %558 : vector<1x1x1x128xf32> to vector<1x128xf32>
    %560 = vector.shape_cast %559 : vector<1x128xf32> to vector<1x128xf32>
    %561 = vector.broadcast %560 : vector<1x128xf32> to vector<16x128xf32>
    %c2_375 = arith.constant 2 : index
    %c2_376 = arith.constant 2 : index
    %c4_377 = arith.constant 4 : index
    %c0_378 = arith.constant 0 : index
    %562 = vector.load %arg2[%c2_375, %c2_376, %c4_377, %c0_378] : memref<4x5x5x128xf32, #tpu.memory_space<vmem>>, vector<1x1x1x128xf32>
    %563 = vector.shape_cast %562 : vector<1x1x1x128xf32> to vector<1x128xf32>
    %564 = vector.shape_cast %563 : vector<1x128xf32> to vector<1x128xf32>
    %565 = vector.broadcast %564 : vector<1x128xf32> to vector<16x128xf32>
    %c3_379 = arith.constant 3 : index
    %c2_380 = arith.constant 2 : index
    %c4_381 = arith.constant 4 : index
    %c0_382 = arith.constant 0 : index
    %566 = vector.load %arg2[%c3_379, %c2_380, %c4_381, %c0_382] : memref<4x5x5x128xf32, #tpu.memory_space<vmem>>, vector<1x1x1x128xf32>
    %567 = vector.shape_cast %566 : vector<1x1x1x128xf32> to vector<1x128xf32>
    %568 = vector.shape_cast %567 : vector<1x128xf32> to vector<1x128xf32>
    %569 = vector.broadcast %568 : vector<1x128xf32> to vector<16x128xf32>
    %c0_383 = arith.constant 0 : index
    %c2_384 = arith.constant 2 : index
    %c4_385 = arith.constant 4 : index
    %570 = vector.load %arg5[%c0_383, %c2_384, %c4_385] : memref<2x24x256xf32, #tpu.memory_space<vmem>>, vector<1x16x128xf32>
    %571 = vector.shape_cast %570 : vector<1x16x128xf32> to vector<16x128xf32>
    %572 = arith.mulf %571, %557 : vector<16x128xf32>
    %573 = arith.addf %537, %572 : vector<16x128xf32>
    %574 = arith.mulf %571, %561 : vector<16x128xf32>
    %575 = arith.addf %539, %574 : vector<16x128xf32>
    %576 = arith.mulf %571, %565 : vector<16x128xf32>
    %577 = arith.addf %541, %576 : vector<16x128xf32>
    %578 = arith.mulf %571, %569 : vector<16x128xf32>
    %579 = arith.addf %543, %578 : vector<16x128xf32>
    %c1_386 = arith.constant 1 : index
    %c2_387 = arith.constant 2 : index
    %c4_388 = arith.constant 4 : index
    %580 = vector.load %arg5[%c1_386, %c2_387, %c4_388] : memref<2x24x256xf32, #tpu.memory_space<vmem>>, vector<1x16x128xf32>
    %581 = vector.shape_cast %580 : vector<1x16x128xf32> to vector<16x128xf32>
    %582 = arith.mulf %581, %557 : vector<16x128xf32>
    %583 = arith.addf %547, %582 : vector<16x128xf32>
    %584 = arith.mulf %581, %561 : vector<16x128xf32>
    %585 = arith.addf %549, %584 : vector<16x128xf32>
    %586 = arith.mulf %581, %565 : vector<16x128xf32>
    %587 = arith.addf %551, %586 : vector<16x128xf32>
    %588 = arith.mulf %581, %569 : vector<16x128xf32>
    %589 = arith.addf %553, %588 : vector<16x128xf32>
    %c0_389 = arith.constant 0 : index
    %c3_390 = arith.constant 3 : index
    %c0_391 = arith.constant 0 : index
    %c0_392 = arith.constant 0 : index
    %590 = vector.load %arg2[%c0_389, %c3_390, %c0_391, %c0_392] : memref<4x5x5x128xf32, #tpu.memory_space<vmem>>, vector<1x1x1x128xf32>
    %591 = vector.shape_cast %590 : vector<1x1x1x128xf32> to vector<1x128xf32>
    %592 = vector.shape_cast %591 : vector<1x128xf32> to vector<1x128xf32>
    %593 = vector.broadcast %592 : vector<1x128xf32> to vector<16x128xf32>
    %c1_393 = arith.constant 1 : index
    %c3_394 = arith.constant 3 : index
    %c0_395 = arith.constant 0 : index
    %c0_396 = arith.constant 0 : index
    %594 = vector.load %arg2[%c1_393, %c3_394, %c0_395, %c0_396] : memref<4x5x5x128xf32, #tpu.memory_space<vmem>>, vector<1x1x1x128xf32>
    %595 = vector.shape_cast %594 : vector<1x1x1x128xf32> to vector<1x128xf32>
    %596 = vector.shape_cast %595 : vector<1x128xf32> to vector<1x128xf32>
    %597 = vector.broadcast %596 : vector<1x128xf32> to vector<16x128xf32>
    %c2_397 = arith.constant 2 : index
    %c3_398 = arith.constant 3 : index
    %c0_399 = arith.constant 0 : index
    %c0_400 = arith.constant 0 : index
    %598 = vector.load %arg2[%c2_397, %c3_398, %c0_399, %c0_400] : memref<4x5x5x128xf32, #tpu.memory_space<vmem>>, vector<1x1x1x128xf32>
    %599 = vector.shape_cast %598 : vector<1x1x1x128xf32> to vector<1x128xf32>
    %600 = vector.shape_cast %599 : vector<1x128xf32> to vector<1x128xf32>
    %601 = vector.broadcast %600 : vector<1x128xf32> to vector<16x128xf32>
    %c3_401 = arith.constant 3 : index
    %c3_402 = arith.constant 3 : index
    %c0_403 = arith.constant 0 : index
    %c0_404 = arith.constant 0 : index
    %602 = vector.load %arg2[%c3_401, %c3_402, %c0_403, %c0_404] : memref<4x5x5x128xf32, #tpu.memory_space<vmem>>, vector<1x1x1x128xf32>
    %603 = vector.shape_cast %602 : vector<1x1x1x128xf32> to vector<1x128xf32>
    %604 = vector.shape_cast %603 : vector<1x128xf32> to vector<1x128xf32>
    %605 = vector.broadcast %604 : vector<1x128xf32> to vector<16x128xf32>
    %c0_405 = arith.constant 0 : index
    %c3_406 = arith.constant 3 : index
    %c0_407 = arith.constant 0 : index
    %606 = vector.load %arg5[%c0_405, %c3_406, %c0_407] : memref<2x24x256xf32, #tpu.memory_space<vmem>>, vector<1x16x128xf32>
    %607 = vector.shape_cast %606 : vector<1x16x128xf32> to vector<16x128xf32>
    %608 = arith.mulf %607, %593 : vector<16x128xf32>
    %609 = arith.addf %573, %608 : vector<16x128xf32>
    %610 = arith.mulf %607, %597 : vector<16x128xf32>
    %611 = arith.addf %575, %610 : vector<16x128xf32>
    %612 = arith.mulf %607, %601 : vector<16x128xf32>
    %613 = arith.addf %577, %612 : vector<16x128xf32>
    %614 = arith.mulf %607, %605 : vector<16x128xf32>
    %615 = arith.addf %579, %614 : vector<16x128xf32>
    %c1_408 = arith.constant 1 : index
    %c3_409 = arith.constant 3 : index
    %c0_410 = arith.constant 0 : index
    %616 = vector.load %arg5[%c1_408, %c3_409, %c0_410] : memref<2x24x256xf32, #tpu.memory_space<vmem>>, vector<1x16x128xf32>
    %617 = vector.shape_cast %616 : vector<1x16x128xf32> to vector<16x128xf32>
    %618 = arith.mulf %617, %593 : vector<16x128xf32>
    %619 = arith.addf %583, %618 : vector<16x128xf32>
    %620 = arith.mulf %617, %597 : vector<16x128xf32>
    %621 = arith.addf %585, %620 : vector<16x128xf32>
    %622 = arith.mulf %617, %601 : vector<16x128xf32>
    %623 = arith.addf %587, %622 : vector<16x128xf32>
    %624 = arith.mulf %617, %605 : vector<16x128xf32>
    %625 = arith.addf %589, %624 : vector<16x128xf32>
    %c0_411 = arith.constant 0 : index
    %c3_412 = arith.constant 3 : index
    %c1_413 = arith.constant 1 : index
    %c0_414 = arith.constant 0 : index
    %626 = vector.load %arg2[%c0_411, %c3_412, %c1_413, %c0_414] : memref<4x5x5x128xf32, #tpu.memory_space<vmem>>, vector<1x1x1x128xf32>
    %627 = vector.shape_cast %626 : vector<1x1x1x128xf32> to vector<1x128xf32>
    %628 = vector.shape_cast %627 : vector<1x128xf32> to vector<1x128xf32>
    %629 = vector.broadcast %628 : vector<1x128xf32> to vector<16x128xf32>
    %c1_415 = arith.constant 1 : index
    %c3_416 = arith.constant 3 : index
    %c1_417 = arith.constant 1 : index
    %c0_418 = arith.constant 0 : index
    %630 = vector.load %arg2[%c1_415, %c3_416, %c1_417, %c0_418] : memref<4x5x5x128xf32, #tpu.memory_space<vmem>>, vector<1x1x1x128xf32>
    %631 = vector.shape_cast %630 : vector<1x1x1x128xf32> to vector<1x128xf32>
    %632 = vector.shape_cast %631 : vector<1x128xf32> to vector<1x128xf32>
    %633 = vector.broadcast %632 : vector<1x128xf32> to vector<16x128xf32>
    %c2_419 = arith.constant 2 : index
    %c3_420 = arith.constant 3 : index
    %c1_421 = arith.constant 1 : index
    %c0_422 = arith.constant 0 : index
    %634 = vector.load %arg2[%c2_419, %c3_420, %c1_421, %c0_422] : memref<4x5x5x128xf32, #tpu.memory_space<vmem>>, vector<1x1x1x128xf32>
    %635 = vector.shape_cast %634 : vector<1x1x1x128xf32> to vector<1x128xf32>
    %636 = vector.shape_cast %635 : vector<1x128xf32> to vector<1x128xf32>
    %637 = vector.broadcast %636 : vector<1x128xf32> to vector<16x128xf32>
    %c3_423 = arith.constant 3 : index
    %c3_424 = arith.constant 3 : index
    %c1_425 = arith.constant 1 : index
    %c0_426 = arith.constant 0 : index
    %638 = vector.load %arg2[%c3_423, %c3_424, %c1_425, %c0_426] : memref<4x5x5x128xf32, #tpu.memory_space<vmem>>, vector<1x1x1x128xf32>
    %639 = vector.shape_cast %638 : vector<1x1x1x128xf32> to vector<1x128xf32>
    %640 = vector.shape_cast %639 : vector<1x128xf32> to vector<1x128xf32>
    %641 = vector.broadcast %640 : vector<1x128xf32> to vector<16x128xf32>
    %c0_427 = arith.constant 0 : index
    %c3_428 = arith.constant 3 : index
    %c1_429 = arith.constant 1 : index
    %642 = vector.load %arg5[%c0_427, %c3_428, %c1_429] : memref<2x24x256xf32, #tpu.memory_space<vmem>>, vector<1x16x128xf32>
    %643 = vector.shape_cast %642 : vector<1x16x128xf32> to vector<16x128xf32>
    %644 = arith.mulf %643, %629 : vector<16x128xf32>
    %645 = arith.addf %609, %644 : vector<16x128xf32>
    %646 = arith.mulf %643, %633 : vector<16x128xf32>
    %647 = arith.addf %611, %646 : vector<16x128xf32>
    %648 = arith.mulf %643, %637 : vector<16x128xf32>
    %649 = arith.addf %613, %648 : vector<16x128xf32>
    %650 = arith.mulf %643, %641 : vector<16x128xf32>
    %651 = arith.addf %615, %650 : vector<16x128xf32>
    %c1_430 = arith.constant 1 : index
    %c3_431 = arith.constant 3 : index
    %c1_432 = arith.constant 1 : index
    %652 = vector.load %arg5[%c1_430, %c3_431, %c1_432] : memref<2x24x256xf32, #tpu.memory_space<vmem>>, vector<1x16x128xf32>
    %653 = vector.shape_cast %652 : vector<1x16x128xf32> to vector<16x128xf32>
    %654 = arith.mulf %653, %629 : vector<16x128xf32>
    %655 = arith.addf %619, %654 : vector<16x128xf32>
    %656 = arith.mulf %653, %633 : vector<16x128xf32>
    %657 = arith.addf %621, %656 : vector<16x128xf32>
    %658 = arith.mulf %653, %637 : vector<16x128xf32>
    %659 = arith.addf %623, %658 : vector<16x128xf32>
    %660 = arith.mulf %653, %641 : vector<16x128xf32>
    %661 = arith.addf %625, %660 : vector<16x128xf32>
    %c0_433 = arith.constant 0 : index
    %c3_434 = arith.constant 3 : index
    %c2_435 = arith.constant 2 : index
    %c0_436 = arith.constant 0 : index
    %662 = vector.load %arg2[%c0_433, %c3_434, %c2_435, %c0_436] : memref<4x5x5x128xf32, #tpu.memory_space<vmem>>, vector<1x1x1x128xf32>
    %663 = vector.shape_cast %662 : vector<1x1x1x128xf32> to vector<1x128xf32>
    %664 = vector.shape_cast %663 : vector<1x128xf32> to vector<1x128xf32>
    %665 = vector.broadcast %664 : vector<1x128xf32> to vector<16x128xf32>
    %c1_437 = arith.constant 1 : index
    %c3_438 = arith.constant 3 : index
    %c2_439 = arith.constant 2 : index
    %c0_440 = arith.constant 0 : index
    %666 = vector.load %arg2[%c1_437, %c3_438, %c2_439, %c0_440] : memref<4x5x5x128xf32, #tpu.memory_space<vmem>>, vector<1x1x1x128xf32>
    %667 = vector.shape_cast %666 : vector<1x1x1x128xf32> to vector<1x128xf32>
    %668 = vector.shape_cast %667 : vector<1x128xf32> to vector<1x128xf32>
    %669 = vector.broadcast %668 : vector<1x128xf32> to vector<16x128xf32>
    %c2_441 = arith.constant 2 : index
    %c3_442 = arith.constant 3 : index
    %c2_443 = arith.constant 2 : index
    %c0_444 = arith.constant 0 : index
    %670 = vector.load %arg2[%c2_441, %c3_442, %c2_443, %c0_444] : memref<4x5x5x128xf32, #tpu.memory_space<vmem>>, vector<1x1x1x128xf32>
    %671 = vector.shape_cast %670 : vector<1x1x1x128xf32> to vector<1x128xf32>
    %672 = vector.shape_cast %671 : vector<1x128xf32> to vector<1x128xf32>
    %673 = vector.broadcast %672 : vector<1x128xf32> to vector<16x128xf32>
    %c3_445 = arith.constant 3 : index
    %c3_446 = arith.constant 3 : index
    %c2_447 = arith.constant 2 : index
    %c0_448 = arith.constant 0 : index
    %674 = vector.load %arg2[%c3_445, %c3_446, %c2_447, %c0_448] : memref<4x5x5x128xf32, #tpu.memory_space<vmem>>, vector<1x1x1x128xf32>
    %675 = vector.shape_cast %674 : vector<1x1x1x128xf32> to vector<1x128xf32>
    %676 = vector.shape_cast %675 : vector<1x128xf32> to vector<1x128xf32>
    %677 = vector.broadcast %676 : vector<1x128xf32> to vector<16x128xf32>
    %c0_449 = arith.constant 0 : index
    %c3_450 = arith.constant 3 : index
    %c2_451 = arith.constant 2 : index
    %678 = vector.load %arg5[%c0_449, %c3_450, %c2_451] : memref<2x24x256xf32, #tpu.memory_space<vmem>>, vector<1x16x128xf32>
    %679 = vector.shape_cast %678 : vector<1x16x128xf32> to vector<16x128xf32>
    %680 = arith.mulf %679, %665 : vector<16x128xf32>
    %681 = arith.addf %645, %680 : vector<16x128xf32>
    %682 = arith.mulf %679, %669 : vector<16x128xf32>
    %683 = arith.addf %647, %682 : vector<16x128xf32>
    %684 = arith.mulf %679, %673 : vector<16x128xf32>
    %685 = arith.addf %649, %684 : vector<16x128xf32>
    %686 = arith.mulf %679, %677 : vector<16x128xf32>
    %687 = arith.addf %651, %686 : vector<16x128xf32>
    %c1_452 = arith.constant 1 : index
    %c3_453 = arith.constant 3 : index
    %c2_454 = arith.constant 2 : index
    %688 = vector.load %arg5[%c1_452, %c3_453, %c2_454] : memref<2x24x256xf32, #tpu.memory_space<vmem>>, vector<1x16x128xf32>
    %689 = vector.shape_cast %688 : vector<1x16x128xf32> to vector<16x128xf32>
    %690 = arith.mulf %689, %665 : vector<16x128xf32>
    %691 = arith.addf %655, %690 : vector<16x128xf32>
    %692 = arith.mulf %689, %669 : vector<16x128xf32>
    %693 = arith.addf %657, %692 : vector<16x128xf32>
    %694 = arith.mulf %689, %673 : vector<16x128xf32>
    %695 = arith.addf %659, %694 : vector<16x128xf32>
    %696 = arith.mulf %689, %677 : vector<16x128xf32>
    %697 = arith.addf %661, %696 : vector<16x128xf32>
    %c0_455 = arith.constant 0 : index
    %c3_456 = arith.constant 3 : index
    %c3_457 = arith.constant 3 : index
    %c0_458 = arith.constant 0 : index
    %698 = vector.load %arg2[%c0_455, %c3_456, %c3_457, %c0_458] : memref<4x5x5x128xf32, #tpu.memory_space<vmem>>, vector<1x1x1x128xf32>
    %699 = vector.shape_cast %698 : vector<1x1x1x128xf32> to vector<1x128xf32>
    %700 = vector.shape_cast %699 : vector<1x128xf32> to vector<1x128xf32>
    %701 = vector.broadcast %700 : vector<1x128xf32> to vector<16x128xf32>
    %c1_459 = arith.constant 1 : index
    %c3_460 = arith.constant 3 : index
    %c3_461 = arith.constant 3 : index
    %c0_462 = arith.constant 0 : index
    %702 = vector.load %arg2[%c1_459, %c3_460, %c3_461, %c0_462] : memref<4x5x5x128xf32, #tpu.memory_space<vmem>>, vector<1x1x1x128xf32>
    %703 = vector.shape_cast %702 : vector<1x1x1x128xf32> to vector<1x128xf32>
    %704 = vector.shape_cast %703 : vector<1x128xf32> to vector<1x128xf32>
    %705 = vector.broadcast %704 : vector<1x128xf32> to vector<16x128xf32>
    %c2_463 = arith.constant 2 : index
    %c3_464 = arith.constant 3 : index
    %c3_465 = arith.constant 3 : index
    %c0_466 = arith.constant 0 : index
    %706 = vector.load %arg2[%c2_463, %c3_464, %c3_465, %c0_466] : memref<4x5x5x128xf32, #tpu.memory_space<vmem>>, vector<1x1x1x128xf32>
    %707 = vector.shape_cast %706 : vector<1x1x1x128xf32> to vector<1x128xf32>
    %708 = vector.shape_cast %707 : vector<1x128xf32> to vector<1x128xf32>
    %709 = vector.broadcast %708 : vector<1x128xf32> to vector<16x128xf32>
    %c3_467 = arith.constant 3 : index
    %c3_468 = arith.constant 3 : index
    %c3_469 = arith.constant 3 : index
    %c0_470 = arith.constant 0 : index
    %710 = vector.load %arg2[%c3_467, %c3_468, %c3_469, %c0_470] : memref<4x5x5x128xf32, #tpu.memory_space<vmem>>, vector<1x1x1x128xf32>
    %711 = vector.shape_cast %710 : vector<1x1x1x128xf32> to vector<1x128xf32>
    %712 = vector.shape_cast %711 : vector<1x128xf32> to vector<1x128xf32>
    %713 = vector.broadcast %712 : vector<1x128xf32> to vector<16x128xf32>
    %c0_471 = arith.constant 0 : index
    %c3_472 = arith.constant 3 : index
    %c3_473 = arith.constant 3 : index
    %714 = vector.load %arg5[%c0_471, %c3_472, %c3_473] : memref<2x24x256xf32, #tpu.memory_space<vmem>>, vector<1x16x128xf32>
    %715 = vector.shape_cast %714 : vector<1x16x128xf32> to vector<16x128xf32>
    %716 = arith.mulf %715, %701 : vector<16x128xf32>
    %717 = arith.addf %681, %716 : vector<16x128xf32>
    %718 = arith.mulf %715, %705 : vector<16x128xf32>
    %719 = arith.addf %683, %718 : vector<16x128xf32>
    %720 = arith.mulf %715, %709 : vector<16x128xf32>
    %721 = arith.addf %685, %720 : vector<16x128xf32>
    %722 = arith.mulf %715, %713 : vector<16x128xf32>
    %723 = arith.addf %687, %722 : vector<16x128xf32>
    %c1_474 = arith.constant 1 : index
    %c3_475 = arith.constant 3 : index
    %c3_476 = arith.constant 3 : index
    %724 = vector.load %arg5[%c1_474, %c3_475, %c3_476] : memref<2x24x256xf32, #tpu.memory_space<vmem>>, vector<1x16x128xf32>
    %725 = vector.shape_cast %724 : vector<1x16x128xf32> to vector<16x128xf32>
    %726 = arith.mulf %725, %701 : vector<16x128xf32>
    %727 = arith.addf %691, %726 : vector<16x128xf32>
    %728 = arith.mulf %725, %705 : vector<16x128xf32>
    %729 = arith.addf %693, %728 : vector<16x128xf32>
    %730 = arith.mulf %725, %709 : vector<16x128xf32>
    %731 = arith.addf %695, %730 : vector<16x128xf32>
    %732 = arith.mulf %725, %713 : vector<16x128xf32>
    %733 = arith.addf %697, %732 : vector<16x128xf32>
    %c0_477 = arith.constant 0 : index
    %c3_478 = arith.constant 3 : index
    %c4_479 = arith.constant 4 : index
    %c0_480 = arith.constant 0 : index
    %734 = vector.load %arg2[%c0_477, %c3_478, %c4_479, %c0_480] : memref<4x5x5x128xf32, #tpu.memory_space<vmem>>, vector<1x1x1x128xf32>
    %735 = vector.shape_cast %734 : vector<1x1x1x128xf32> to vector<1x128xf32>
    %736 = vector.shape_cast %735 : vector<1x128xf32> to vector<1x128xf32>
    %737 = vector.broadcast %736 : vector<1x128xf32> to vector<16x128xf32>
    %c1_481 = arith.constant 1 : index
    %c3_482 = arith.constant 3 : index
    %c4_483 = arith.constant 4 : index
    %c0_484 = arith.constant 0 : index
    %738 = vector.load %arg2[%c1_481, %c3_482, %c4_483, %c0_484] : memref<4x5x5x128xf32, #tpu.memory_space<vmem>>, vector<1x1x1x128xf32>
    %739 = vector.shape_cast %738 : vector<1x1x1x128xf32> to vector<1x128xf32>
    %740 = vector.shape_cast %739 : vector<1x128xf32> to vector<1x128xf32>
    %741 = vector.broadcast %740 : vector<1x128xf32> to vector<16x128xf32>
    %c2_485 = arith.constant 2 : index
    %c3_486 = arith.constant 3 : index
    %c4_487 = arith.constant 4 : index
    %c0_488 = arith.constant 0 : index
    %742 = vector.load %arg2[%c2_485, %c3_486, %c4_487, %c0_488] : memref<4x5x5x128xf32, #tpu.memory_space<vmem>>, vector<1x1x1x128xf32>
    %743 = vector.shape_cast %742 : vector<1x1x1x128xf32> to vector<1x128xf32>
    %744 = vector.shape_cast %743 : vector<1x128xf32> to vector<1x128xf32>
    %745 = vector.broadcast %744 : vector<1x128xf32> to vector<16x128xf32>
    %c3_489 = arith.constant 3 : index
    %c3_490 = arith.constant 3 : index
    %c4_491 = arith.constant 4 : index
    %c0_492 = arith.constant 0 : index
    %746 = vector.load %arg2[%c3_489, %c3_490, %c4_491, %c0_492] : memref<4x5x5x128xf32, #tpu.memory_space<vmem>>, vector<1x1x1x128xf32>
    %747 = vector.shape_cast %746 : vector<1x1x1x128xf32> to vector<1x128xf32>
    %748 = vector.shape_cast %747 : vector<1x128xf32> to vector<1x128xf32>
    %749 = vector.broadcast %748 : vector<1x128xf32> to vector<16x128xf32>
    %c0_493 = arith.constant 0 : index
    %c3_494 = arith.constant 3 : index
    %c4_495 = arith.constant 4 : index
    %750 = vector.load %arg5[%c0_493, %c3_494, %c4_495] : memref<2x24x256xf32, #tpu.memory_space<vmem>>, vector<1x16x128xf32>
    %751 = vector.shape_cast %750 : vector<1x16x128xf32> to vector<16x128xf32>
    %752 = arith.mulf %751, %737 : vector<16x128xf32>
    %753 = arith.addf %717, %752 : vector<16x128xf32>
    %754 = arith.mulf %751, %741 : vector<16x128xf32>
    %755 = arith.addf %719, %754 : vector<16x128xf32>
    %756 = arith.mulf %751, %745 : vector<16x128xf32>
    %757 = arith.addf %721, %756 : vector<16x128xf32>
    %758 = arith.mulf %751, %749 : vector<16x128xf32>
    %759 = arith.addf %723, %758 : vector<16x128xf32>
    %c1_496 = arith.constant 1 : index
    %c3_497 = arith.constant 3 : index
    %c4_498 = arith.constant 4 : index
    %760 = vector.load %arg5[%c1_496, %c3_497, %c4_498] : memref<2x24x256xf32, #tpu.memory_space<vmem>>, vector<1x16x128xf32>
    %761 = vector.shape_cast %760 : vector<1x16x128xf32> to vector<16x128xf32>
    %762 = arith.mulf %761, %737 : vector<16x128xf32>
    %763 = arith.addf %727, %762 : vector<16x128xf32>
    %764 = arith.mulf %761, %741 : vector<16x128xf32>
    %765 = arith.addf %729, %764 : vector<16x128xf32>
    %766 = arith.mulf %761, %745 : vector<16x128xf32>
    %767 = arith.addf %731, %766 : vector<16x128xf32>
    %768 = arith.mulf %761, %749 : vector<16x128xf32>
    %769 = arith.addf %733, %768 : vector<16x128xf32>
    %c0_499 = arith.constant 0 : index
    %c4_500 = arith.constant 4 : index
    %c0_501 = arith.constant 0 : index
    %c0_502 = arith.constant 0 : index
    %770 = vector.load %arg2[%c0_499, %c4_500, %c0_501, %c0_502] : memref<4x5x5x128xf32, #tpu.memory_space<vmem>>, vector<1x1x1x128xf32>
    %771 = vector.shape_cast %770 : vector<1x1x1x128xf32> to vector<1x128xf32>
    %772 = vector.shape_cast %771 : vector<1x128xf32> to vector<1x128xf32>
    %773 = vector.broadcast %772 : vector<1x128xf32> to vector<16x128xf32>
    %c1_503 = arith.constant 1 : index
    %c4_504 = arith.constant 4 : index
    %c0_505 = arith.constant 0 : index
    %c0_506 = arith.constant 0 : index
    %774 = vector.load %arg2[%c1_503, %c4_504, %c0_505, %c0_506] : memref<4x5x5x128xf32, #tpu.memory_space<vmem>>, vector<1x1x1x128xf32>
    %775 = vector.shape_cast %774 : vector<1x1x1x128xf32> to vector<1x128xf32>
    %776 = vector.shape_cast %775 : vector<1x128xf32> to vector<1x128xf32>
    %777 = vector.broadcast %776 : vector<1x128xf32> to vector<16x128xf32>
    %c2_507 = arith.constant 2 : index
    %c4_508 = arith.constant 4 : index
    %c0_509 = arith.constant 0 : index
    %c0_510 = arith.constant 0 : index
    %778 = vector.load %arg2[%c2_507, %c4_508, %c0_509, %c0_510] : memref<4x5x5x128xf32, #tpu.memory_space<vmem>>, vector<1x1x1x128xf32>
    %779 = vector.shape_cast %778 : vector<1x1x1x128xf32> to vector<1x128xf32>
    %780 = vector.shape_cast %779 : vector<1x128xf32> to vector<1x128xf32>
    %781 = vector.broadcast %780 : vector<1x128xf32> to vector<16x128xf32>
    %c3_511 = arith.constant 3 : index
    %c4_512 = arith.constant 4 : index
    %c0_513 = arith.constant 0 : index
    %c0_514 = arith.constant 0 : index
    %782 = vector.load %arg2[%c3_511, %c4_512, %c0_513, %c0_514] : memref<4x5x5x128xf32, #tpu.memory_space<vmem>>, vector<1x1x1x128xf32>
    %783 = vector.shape_cast %782 : vector<1x1x1x128xf32> to vector<1x128xf32>
    %784 = vector.shape_cast %783 : vector<1x128xf32> to vector<1x128xf32>
    %785 = vector.broadcast %784 : vector<1x128xf32> to vector<16x128xf32>
    %c0_515 = arith.constant 0 : index
    %c4_516 = arith.constant 4 : index
    %c0_517 = arith.constant 0 : index
    %786 = vector.load %arg5[%c0_515, %c4_516, %c0_517] : memref<2x24x256xf32, #tpu.memory_space<vmem>>, vector<1x16x128xf32>
    %787 = vector.shape_cast %786 : vector<1x16x128xf32> to vector<16x128xf32>
    %788 = arith.mulf %787, %773 : vector<16x128xf32>
    %789 = arith.addf %753, %788 : vector<16x128xf32>
    %790 = arith.mulf %787, %777 : vector<16x128xf32>
    %791 = arith.addf %755, %790 : vector<16x128xf32>
    %792 = arith.mulf %787, %781 : vector<16x128xf32>
    %793 = arith.addf %757, %792 : vector<16x128xf32>
    %794 = arith.mulf %787, %785 : vector<16x128xf32>
    %795 = arith.addf %759, %794 : vector<16x128xf32>
    %c1_518 = arith.constant 1 : index
    %c4_519 = arith.constant 4 : index
    %c0_520 = arith.constant 0 : index
    %796 = vector.load %arg5[%c1_518, %c4_519, %c0_520] : memref<2x24x256xf32, #tpu.memory_space<vmem>>, vector<1x16x128xf32>
    %797 = vector.shape_cast %796 : vector<1x16x128xf32> to vector<16x128xf32>
    %798 = arith.mulf %797, %773 : vector<16x128xf32>
    %799 = arith.addf %763, %798 : vector<16x128xf32>
    %800 = arith.mulf %797, %777 : vector<16x128xf32>
    %801 = arith.addf %765, %800 : vector<16x128xf32>
    %802 = arith.mulf %797, %781 : vector<16x128xf32>
    %803 = arith.addf %767, %802 : vector<16x128xf32>
    %804 = arith.mulf %797, %785 : vector<16x128xf32>
    %805 = arith.addf %769, %804 : vector<16x128xf32>
    %c0_521 = arith.constant 0 : index
    %c4_522 = arith.constant 4 : index
    %c1_523 = arith.constant 1 : index
    %c0_524 = arith.constant 0 : index
    %806 = vector.load %arg2[%c0_521, %c4_522, %c1_523, %c0_524] : memref<4x5x5x128xf32, #tpu.memory_space<vmem>>, vector<1x1x1x128xf32>
    %807 = vector.shape_cast %806 : vector<1x1x1x128xf32> to vector<1x128xf32>
    %808 = vector.shape_cast %807 : vector<1x128xf32> to vector<1x128xf32>
    %809 = vector.broadcast %808 : vector<1x128xf32> to vector<16x128xf32>
    %c1_525 = arith.constant 1 : index
    %c4_526 = arith.constant 4 : index
    %c1_527 = arith.constant 1 : index
    %c0_528 = arith.constant 0 : index
    %810 = vector.load %arg2[%c1_525, %c4_526, %c1_527, %c0_528] : memref<4x5x5x128xf32, #tpu.memory_space<vmem>>, vector<1x1x1x128xf32>
    %811 = vector.shape_cast %810 : vector<1x1x1x128xf32> to vector<1x128xf32>
    %812 = vector.shape_cast %811 : vector<1x128xf32> to vector<1x128xf32>
    %813 = vector.broadcast %812 : vector<1x128xf32> to vector<16x128xf32>
    %c2_529 = arith.constant 2 : index
    %c4_530 = arith.constant 4 : index
    %c1_531 = arith.constant 1 : index
    %c0_532 = arith.constant 0 : index
    %814 = vector.load %arg2[%c2_529, %c4_530, %c1_531, %c0_532] : memref<4x5x5x128xf32, #tpu.memory_space<vmem>>, vector<1x1x1x128xf32>
    %815 = vector.shape_cast %814 : vector<1x1x1x128xf32> to vector<1x128xf32>
    %816 = vector.shape_cast %815 : vector<1x128xf32> to vector<1x128xf32>
    %817 = vector.broadcast %816 : vector<1x128xf32> to vector<16x128xf32>
    %c3_533 = arith.constant 3 : index
    %c4_534 = arith.constant 4 : index
    %c1_535 = arith.constant 1 : index
    %c0_536 = arith.constant 0 : index
    %818 = vector.load %arg2[%c3_533, %c4_534, %c1_535, %c0_536] : memref<4x5x5x128xf32, #tpu.memory_space<vmem>>, vector<1x1x1x128xf32>
    %819 = vector.shape_cast %818 : vector<1x1x1x128xf32> to vector<1x128xf32>
    %820 = vector.shape_cast %819 : vector<1x128xf32> to vector<1x128xf32>
    %821 = vector.broadcast %820 : vector<1x128xf32> to vector<16x128xf32>
    %c0_537 = arith.constant 0 : index
    %c4_538 = arith.constant 4 : index
    %c1_539 = arith.constant 1 : index
    %822 = vector.load %arg5[%c0_537, %c4_538, %c1_539] : memref<2x24x256xf32, #tpu.memory_space<vmem>>, vector<1x16x128xf32>
    %823 = vector.shape_cast %822 : vector<1x16x128xf32> to vector<16x128xf32>
    %824 = arith.mulf %823, %809 : vector<16x128xf32>
    %825 = arith.addf %789, %824 : vector<16x128xf32>
    %826 = arith.mulf %823, %813 : vector<16x128xf32>
    %827 = arith.addf %791, %826 : vector<16x128xf32>
    %828 = arith.mulf %823, %817 : vector<16x128xf32>
    %829 = arith.addf %793, %828 : vector<16x128xf32>
    %830 = arith.mulf %823, %821 : vector<16x128xf32>
    %831 = arith.addf %795, %830 : vector<16x128xf32>
    %c1_540 = arith.constant 1 : index
    %c4_541 = arith.constant 4 : index
    %c1_542 = arith.constant 1 : index
    %832 = vector.load %arg5[%c1_540, %c4_541, %c1_542] : memref<2x24x256xf32, #tpu.memory_space<vmem>>, vector<1x16x128xf32>
    %833 = vector.shape_cast %832 : vector<1x16x128xf32> to vector<16x128xf32>
    %834 = arith.mulf %833, %809 : vector<16x128xf32>
    %835 = arith.addf %799, %834 : vector<16x128xf32>
    %836 = arith.mulf %833, %813 : vector<16x128xf32>
    %837 = arith.addf %801, %836 : vector<16x128xf32>
    %838 = arith.mulf %833, %817 : vector<16x128xf32>
    %839 = arith.addf %803, %838 : vector<16x128xf32>
    %840 = arith.mulf %833, %821 : vector<16x128xf32>
    %841 = arith.addf %805, %840 : vector<16x128xf32>
    %c0_543 = arith.constant 0 : index
    %c4_544 = arith.constant 4 : index
    %c2_545 = arith.constant 2 : index
    %c0_546 = arith.constant 0 : index
    %842 = vector.load %arg2[%c0_543, %c4_544, %c2_545, %c0_546] : memref<4x5x5x128xf32, #tpu.memory_space<vmem>>, vector<1x1x1x128xf32>
    %843 = vector.shape_cast %842 : vector<1x1x1x128xf32> to vector<1x128xf32>
    %844 = vector.shape_cast %843 : vector<1x128xf32> to vector<1x128xf32>
    %845 = vector.broadcast %844 : vector<1x128xf32> to vector<16x128xf32>
    %c1_547 = arith.constant 1 : index
    %c4_548 = arith.constant 4 : index
    %c2_549 = arith.constant 2 : index
    %c0_550 = arith.constant 0 : index
    %846 = vector.load %arg2[%c1_547, %c4_548, %c2_549, %c0_550] : memref<4x5x5x128xf32, #tpu.memory_space<vmem>>, vector<1x1x1x128xf32>
    %847 = vector.shape_cast %846 : vector<1x1x1x128xf32> to vector<1x128xf32>
    %848 = vector.shape_cast %847 : vector<1x128xf32> to vector<1x128xf32>
    %849 = vector.broadcast %848 : vector<1x128xf32> to vector<16x128xf32>
    %c2_551 = arith.constant 2 : index
    %c4_552 = arith.constant 4 : index
    %c2_553 = arith.constant 2 : index
    %c0_554 = arith.constant 0 : index
    %850 = vector.load %arg2[%c2_551, %c4_552, %c2_553, %c0_554] : memref<4x5x5x128xf32, #tpu.memory_space<vmem>>, vector<1x1x1x128xf32>
    %851 = vector.shape_cast %850 : vector<1x1x1x128xf32> to vector<1x128xf32>
    %852 = vector.shape_cast %851 : vector<1x128xf32> to vector<1x128xf32>
    %853 = vector.broadcast %852 : vector<1x128xf32> to vector<16x128xf32>
    %c3_555 = arith.constant 3 : index
    %c4_556 = arith.constant 4 : index
    %c2_557 = arith.constant 2 : index
    %c0_558 = arith.constant 0 : index
    %854 = vector.load %arg2[%c3_555, %c4_556, %c2_557, %c0_558] : memref<4x5x5x128xf32, #tpu.memory_space<vmem>>, vector<1x1x1x128xf32>
    %855 = vector.shape_cast %854 : vector<1x1x1x128xf32> to vector<1x128xf32>
    %856 = vector.shape_cast %855 : vector<1x128xf32> to vector<1x128xf32>
    %857 = vector.broadcast %856 : vector<1x128xf32> to vector<16x128xf32>
    %c0_559 = arith.constant 0 : index
    %c4_560 = arith.constant 4 : index
    %c2_561 = arith.constant 2 : index
    %858 = vector.load %arg5[%c0_559, %c4_560, %c2_561] : memref<2x24x256xf32, #tpu.memory_space<vmem>>, vector<1x16x128xf32>
    %859 = vector.shape_cast %858 : vector<1x16x128xf32> to vector<16x128xf32>
    %860 = arith.mulf %859, %845 : vector<16x128xf32>
    %861 = arith.addf %825, %860 : vector<16x128xf32>
    %862 = arith.mulf %859, %849 : vector<16x128xf32>
    %863 = arith.addf %827, %862 : vector<16x128xf32>
    %864 = arith.mulf %859, %853 : vector<16x128xf32>
    %865 = arith.addf %829, %864 : vector<16x128xf32>
    %866 = arith.mulf %859, %857 : vector<16x128xf32>
    %867 = arith.addf %831, %866 : vector<16x128xf32>
    %c1_562 = arith.constant 1 : index
    %c4_563 = arith.constant 4 : index
    %c2_564 = arith.constant 2 : index
    %868 = vector.load %arg5[%c1_562, %c4_563, %c2_564] : memref<2x24x256xf32, #tpu.memory_space<vmem>>, vector<1x16x128xf32>
    %869 = vector.shape_cast %868 : vector<1x16x128xf32> to vector<16x128xf32>
    %870 = arith.mulf %869, %845 : vector<16x128xf32>
    %871 = arith.addf %835, %870 : vector<16x128xf32>
    %872 = arith.mulf %869, %849 : vector<16x128xf32>
    %873 = arith.addf %837, %872 : vector<16x128xf32>
    %874 = arith.mulf %869, %853 : vector<16x128xf32>
    %875 = arith.addf %839, %874 : vector<16x128xf32>
    %876 = arith.mulf %869, %857 : vector<16x128xf32>
    %877 = arith.addf %841, %876 : vector<16x128xf32>
    %c0_565 = arith.constant 0 : index
    %c4_566 = arith.constant 4 : index
    %c3_567 = arith.constant 3 : index
    %c0_568 = arith.constant 0 : index
    %878 = vector.load %arg2[%c0_565, %c4_566, %c3_567, %c0_568] : memref<4x5x5x128xf32, #tpu.memory_space<vmem>>, vector<1x1x1x128xf32>
    %879 = vector.shape_cast %878 : vector<1x1x1x128xf32> to vector<1x128xf32>
    %880 = vector.shape_cast %879 : vector<1x128xf32> to vector<1x128xf32>
    %881 = vector.broadcast %880 : vector<1x128xf32> to vector<16x128xf32>
    %c1_569 = arith.constant 1 : index
    %c4_570 = arith.constant 4 : index
    %c3_571 = arith.constant 3 : index
    %c0_572 = arith.constant 0 : index
    %882 = vector.load %arg2[%c1_569, %c4_570, %c3_571, %c0_572] : memref<4x5x5x128xf32, #tpu.memory_space<vmem>>, vector<1x1x1x128xf32>
    %883 = vector.shape_cast %882 : vector<1x1x1x128xf32> to vector<1x128xf32>
    %884 = vector.shape_cast %883 : vector<1x128xf32> to vector<1x128xf32>
    %885 = vector.broadcast %884 : vector<1x128xf32> to vector<16x128xf32>
    %c2_573 = arith.constant 2 : index
    %c4_574 = arith.constant 4 : index
    %c3_575 = arith.constant 3 : index
    %c0_576 = arith.constant 0 : index
    %886 = vector.load %arg2[%c2_573, %c4_574, %c3_575, %c0_576] : memref<4x5x5x128xf32, #tpu.memory_space<vmem>>, vector<1x1x1x128xf32>
    %887 = vector.shape_cast %886 : vector<1x1x1x128xf32> to vector<1x128xf32>
    %888 = vector.shape_cast %887 : vector<1x128xf32> to vector<1x128xf32>
    %889 = vector.broadcast %888 : vector<1x128xf32> to vector<16x128xf32>
    %c3_577 = arith.constant 3 : index
    %c4_578 = arith.constant 4 : index
    %c3_579 = arith.constant 3 : index
    %c0_580 = arith.constant 0 : index
    %890 = vector.load %arg2[%c3_577, %c4_578, %c3_579, %c0_580] : memref<4x5x5x128xf32, #tpu.memory_space<vmem>>, vector<1x1x1x128xf32>
    %891 = vector.shape_cast %890 : vector<1x1x1x128xf32> to vector<1x128xf32>
    %892 = vector.shape_cast %891 : vector<1x128xf32> to vector<1x128xf32>
    %893 = vector.broadcast %892 : vector<1x128xf32> to vector<16x128xf32>
    %c0_581 = arith.constant 0 : index
    %c4_582 = arith.constant 4 : index
    %c3_583 = arith.constant 3 : index
    %894 = vector.load %arg5[%c0_581, %c4_582, %c3_583] : memref<2x24x256xf32, #tpu.memory_space<vmem>>, vector<1x16x128xf32>
    %895 = vector.shape_cast %894 : vector<1x16x128xf32> to vector<16x128xf32>
    %896 = arith.mulf %895, %881 : vector<16x128xf32>
    %897 = arith.addf %861, %896 : vector<16x128xf32>
    %898 = arith.mulf %895, %885 : vector<16x128xf32>
    %899 = arith.addf %863, %898 : vector<16x128xf32>
    %900 = arith.mulf %895, %889 : vector<16x128xf32>
    %901 = arith.addf %865, %900 : vector<16x128xf32>
    %902 = arith.mulf %895, %893 : vector<16x128xf32>
    %903 = arith.addf %867, %902 : vector<16x128xf32>
    %c1_584 = arith.constant 1 : index
    %c4_585 = arith.constant 4 : index
    %c3_586 = arith.constant 3 : index
    %904 = vector.load %arg5[%c1_584, %c4_585, %c3_586] : memref<2x24x256xf32, #tpu.memory_space<vmem>>, vector<1x16x128xf32>
    %905 = vector.shape_cast %904 : vector<1x16x128xf32> to vector<16x128xf32>
    %906 = arith.mulf %905, %881 : vector<16x128xf32>
    %907 = arith.addf %871, %906 : vector<16x128xf32>
    %908 = arith.mulf %905, %885 : vector<16x128xf32>
    %909 = arith.addf %873, %908 : vector<16x128xf32>
    %910 = arith.mulf %905, %889 : vector<16x128xf32>
    %911 = arith.addf %875, %910 : vector<16x128xf32>
    %912 = arith.mulf %905, %893 : vector<16x128xf32>
    %913 = arith.addf %877, %912 : vector<16x128xf32>
    %c0_587 = arith.constant 0 : index
    %c4_588 = arith.constant 4 : index
    %c4_589 = arith.constant 4 : index
    %c0_590 = arith.constant 0 : index
    %914 = vector.load %arg2[%c0_587, %c4_588, %c4_589, %c0_590] : memref<4x5x5x128xf32, #tpu.memory_space<vmem>>, vector<1x1x1x128xf32>
    %915 = vector.shape_cast %914 : vector<1x1x1x128xf32> to vector<1x128xf32>
    %916 = vector.shape_cast %915 : vector<1x128xf32> to vector<1x128xf32>
    %917 = vector.broadcast %916 : vector<1x128xf32> to vector<16x128xf32>
    %c1_591 = arith.constant 1 : index
    %c4_592 = arith.constant 4 : index
    %c4_593 = arith.constant 4 : index
    %c0_594 = arith.constant 0 : index
    %918 = vector.load %arg2[%c1_591, %c4_592, %c4_593, %c0_594] : memref<4x5x5x128xf32, #tpu.memory_space<vmem>>, vector<1x1x1x128xf32>
    %919 = vector.shape_cast %918 : vector<1x1x1x128xf32> to vector<1x128xf32>
    %920 = vector.shape_cast %919 : vector<1x128xf32> to vector<1x128xf32>
    %921 = vector.broadcast %920 : vector<1x128xf32> to vector<16x128xf32>
    %c2_595 = arith.constant 2 : index
    %c4_596 = arith.constant 4 : index
    %c4_597 = arith.constant 4 : index
    %c0_598 = arith.constant 0 : index
    %922 = vector.load %arg2[%c2_595, %c4_596, %c4_597, %c0_598] : memref<4x5x5x128xf32, #tpu.memory_space<vmem>>, vector<1x1x1x128xf32>
    %923 = vector.shape_cast %922 : vector<1x1x1x128xf32> to vector<1x128xf32>
    %924 = vector.shape_cast %923 : vector<1x128xf32> to vector<1x128xf32>
    %925 = vector.broadcast %924 : vector<1x128xf32> to vector<16x128xf32>
    %c3_599 = arith.constant 3 : index
    %c4_600 = arith.constant 4 : index
    %c4_601 = arith.constant 4 : index
    %c0_602 = arith.constant 0 : index
    %926 = vector.load %arg2[%c3_599, %c4_600, %c4_601, %c0_602] : memref<4x5x5x128xf32, #tpu.memory_space<vmem>>, vector<1x1x1x128xf32>
    %927 = vector.shape_cast %926 : vector<1x1x1x128xf32> to vector<1x128xf32>
    %928 = vector.shape_cast %927 : vector<1x128xf32> to vector<1x128xf32>
    %929 = vector.broadcast %928 : vector<1x128xf32> to vector<16x128xf32>
    %c0_603 = arith.constant 0 : index
    %c4_604 = arith.constant 4 : index
    %c4_605 = arith.constant 4 : index
    %930 = vector.load %arg5[%c0_603, %c4_604, %c4_605] : memref<2x24x256xf32, #tpu.memory_space<vmem>>, vector<1x16x128xf32>
    %931 = vector.shape_cast %930 : vector<1x16x128xf32> to vector<16x128xf32>
    %932 = arith.mulf %931, %917 : vector<16x128xf32>
    %933 = arith.addf %897, %932 : vector<16x128xf32>
    %934 = arith.mulf %931, %921 : vector<16x128xf32>
    %935 = arith.addf %899, %934 : vector<16x128xf32>
    %936 = arith.mulf %931, %925 : vector<16x128xf32>
    %937 = arith.addf %901, %936 : vector<16x128xf32>
    %938 = arith.mulf %931, %929 : vector<16x128xf32>
    %939 = arith.addf %903, %938 : vector<16x128xf32>
    %c1_606 = arith.constant 1 : index
    %c4_607 = arith.constant 4 : index
    %c4_608 = arith.constant 4 : index
    %940 = vector.load %arg5[%c1_606, %c4_607, %c4_608] : memref<2x24x256xf32, #tpu.memory_space<vmem>>, vector<1x16x128xf32>
    %941 = vector.shape_cast %940 : vector<1x16x128xf32> to vector<16x128xf32>
    %942 = arith.mulf %941, %917 : vector<16x128xf32>
    %943 = arith.addf %907, %942 : vector<16x128xf32>
    %944 = arith.mulf %941, %921 : vector<16x128xf32>
    %945 = arith.addf %909, %944 : vector<16x128xf32>
    %946 = arith.mulf %941, %925 : vector<16x128xf32>
    %947 = arith.addf %911, %946 : vector<16x128xf32>
    %948 = arith.mulf %941, %929 : vector<16x128xf32>
    %949 = arith.addf %913, %948 : vector<16x128xf32>
    %950 = vector.extract_strided_slice %933 {offsets = [0, 0], sizes = [16, 16], strides = [1, 1]} : vector<16x128xf32> to vector<16x16xf32>
    %951 = vector.extract_strided_slice %933 {offsets = [0, 32], sizes = [16, 16], strides = [1, 1]} : vector<16x128xf32> to vector<16x16xf32>
    %952 = arith.addf %950, %951 : vector<16x16xf32>
    %953 = vector.extract_strided_slice %933 {offsets = [0, 64], sizes = [16, 16], strides = [1, 1]} : vector<16x128xf32> to vector<16x16xf32>
    %954 = arith.addf %952, %953 : vector<16x16xf32>
    %955 = vector.extract_strided_slice %933 {offsets = [0, 96], sizes = [16, 16], strides = [1, 1]} : vector<16x128xf32> to vector<16x16xf32>
    %956 = arith.addf %954, %955 : vector<16x16xf32>
    %c0_609 = arith.constant 0 : index
    %957 = memref.load %arg3[%c0_609] : memref<4xf32, #tpu.memory_space<smem>>
    %958 = vector.broadcast %957 : f32 to vector<16x16xf32>
    %959 = arith.addf %956, %958 : vector<16x16xf32>
    %cst_610 = arith.constant 0.000000e+00 : f32
    %960 = vector.broadcast %cst_610 : f32 to vector<16x16xf32>
    %961 = arith.subf %960, %959 : vector<16x16xf32>
    %962 = math.exp %961 : vector<16x16xf32>
    %cst_611 = arith.constant 1.000000e+00 : f32
    %963 = vector.broadcast %cst_611 : f32 to vector<16x16xf32>
    %964 = arith.addf %963, %962 : vector<16x16xf32>
    %965 = tpu.reciprocal %964 : vector<16x16xf32> -> vector<16x16xf32>
    %c0_612 = arith.constant 0 : index
    %c0_613 = arith.constant 0 : index
    %c0_614 = arith.constant 0 : index
    %c0_615 = arith.constant 0 : index
    %966 = vector.load %arg4[%c0_612, %c0_613, %c0_614, %c0_615] : memref<2x4x16x16xf32, #tpu.memory_space<vmem>>, vector<1x1x16x16xf32>
    %967 = vector.shape_cast %966 : vector<1x1x16x16xf32> to vector<16x16xf32>
    %968 = vector.shape_cast %965 : vector<16x16xf32> to vector<1x1x16x16xf32>
    tpu.vector_store %arg4[%c0_612, %c0_613, %c0_614, %c0_615], %968 {strides = array<i32>} : memref<2x4x16x16xf32, #tpu.memory_space<vmem>>, vector<1x1x16x16xf32>,
    %969 = vector.extract_strided_slice %935 {offsets = [0, 0], sizes = [16, 16], strides = [1, 1]} : vector<16x128xf32> to vector<16x16xf32>
    %970 = vector.extract_strided_slice %935 {offsets = [0, 32], sizes = [16, 16], strides = [1, 1]} : vector<16x128xf32> to vector<16x16xf32>
    %971 = arith.addf %969, %970 : vector<16x16xf32>
    %972 = vector.extract_strided_slice %935 {offsets = [0, 64], sizes = [16, 16], strides = [1, 1]} : vector<16x128xf32> to vector<16x16xf32>
    %973 = arith.addf %971, %972 : vector<16x16xf32>
    %974 = vector.extract_strided_slice %935 {offsets = [0, 96], sizes = [16, 16], strides = [1, 1]} : vector<16x128xf32> to vector<16x16xf32>
    %975 = arith.addf %973, %974 : vector<16x16xf32>
    %c1_616 = arith.constant 1 : index
    %976 = memref.load %arg3[%c1_616] : memref<4xf32, #tpu.memory_space<smem>>
    %977 = vector.broadcast %976 : f32 to vector<16x16xf32>
    %978 = arith.addf %975, %977 : vector<16x16xf32>
    %cst_617 = arith.constant 0.000000e+00 : f32
    %979 = vector.broadcast %cst_617 : f32 to vector<16x16xf32>
    %980 = arith.subf %979, %978 : vector<16x16xf32>
    %981 = math.exp %980 : vector<16x16xf32>
    %cst_618 = arith.constant 1.000000e+00 : f32
    %982 = vector.broadcast %cst_618 : f32 to vector<16x16xf32>
    %983 = arith.addf %982, %981 : vector<16x16xf32>
    %984 = tpu.reciprocal %983 : vector<16x16xf32> -> vector<16x16xf32>
    %c0_619 = arith.constant 0 : index
    %c1_620 = arith.constant 1 : index
    %c0_621 = arith.constant 0 : index
    %c0_622 = arith.constant 0 : index
    %985 = vector.load %arg4[%c0_619, %c1_620, %c0_621, %c0_622] : memref<2x4x16x16xf32, #tpu.memory_space<vmem>>, vector<1x1x16x16xf32>
    %986 = vector.shape_cast %985 : vector<1x1x16x16xf32> to vector<16x16xf32>
    %987 = vector.shape_cast %984 : vector<16x16xf32> to vector<1x1x16x16xf32>
    tpu.vector_store %arg4[%c0_619, %c1_620, %c0_621, %c0_622], %987 {strides = array<i32>} : memref<2x4x16x16xf32, #tpu.memory_space<vmem>>, vector<1x1x16x16xf32>,
    %988 = vector.extract_strided_slice %937 {offsets = [0, 0], sizes = [16, 16], strides = [1, 1]} : vector<16x128xf32> to vector<16x16xf32>
    %989 = vector.extract_strided_slice %937 {offsets = [0, 32], sizes = [16, 16], strides = [1, 1]} : vector<16x128xf32> to vector<16x16xf32>
    %990 = arith.addf %988, %989 : vector<16x16xf32>
    %991 = vector.extract_strided_slice %937 {offsets = [0, 64], sizes = [16, 16], strides = [1, 1]} : vector<16x128xf32> to vector<16x16xf32>
    %992 = arith.addf %990, %991 : vector<16x16xf32>
    %993 = vector.extract_strided_slice %937 {offsets = [0, 96], sizes = [16, 16], strides = [1, 1]} : vector<16x128xf32> to vector<16x16xf32>
    %994 = arith.addf %992, %993 : vector<16x16xf32>
    %c2_623 = arith.constant 2 : index
    %995 = memref.load %arg3[%c2_623] : memref<4xf32, #tpu.memory_space<smem>>
    %996 = vector.broadcast %995 : f32 to vector<16x16xf32>
    %997 = arith.addf %994, %996 : vector<16x16xf32>
    %cst_624 = arith.constant 0.000000e+00 : f32
    %998 = vector.broadcast %cst_624 : f32 to vector<16x16xf32>
    %999 = arith.subf %998, %997 : vector<16x16xf32>
    %1000 = math.exp %999 : vector<16x16xf32>
    %cst_625 = arith.constant 1.000000e+00 : f32
    %1001 = vector.broadcast %cst_625 : f32 to vector<16x16xf32>
    %1002 = arith.addf %1001, %1000 : vector<16x16xf32>
    %1003 = tpu.reciprocal %1002 : vector<16x16xf32> -> vector<16x16xf32>
    %c0_626 = arith.constant 0 : index
    %c2_627 = arith.constant 2 : index
    %c0_628 = arith.constant 0 : index
    %c0_629 = arith.constant 0 : index
    %1004 = vector.load %arg4[%c0_626, %c2_627, %c0_628, %c0_629] : memref<2x4x16x16xf32, #tpu.memory_space<vmem>>, vector<1x1x16x16xf32>
    %1005 = vector.shape_cast %1004 : vector<1x1x16x16xf32> to vector<16x16xf32>
    %1006 = vector.shape_cast %1003 : vector<16x16xf32> to vector<1x1x16x16xf32>
    tpu.vector_store %arg4[%c0_626, %c2_627, %c0_628, %c0_629], %1006 {strides = array<i32>} : memref<2x4x16x16xf32, #tpu.memory_space<vmem>>, vector<1x1x16x16xf32>,
    %1007 = vector.extract_strided_slice %939 {offsets = [0, 0], sizes = [16, 16], strides = [1, 1]} : vector<16x128xf32> to vector<16x16xf32>
    %1008 = vector.extract_strided_slice %939 {offsets = [0, 32], sizes = [16, 16], strides = [1, 1]} : vector<16x128xf32> to vector<16x16xf32>
    %1009 = arith.addf %1007, %1008 : vector<16x16xf32>
    %1010 = vector.extract_strided_slice %939 {offsets = [0, 64], sizes = [16, 16], strides = [1, 1]} : vector<16x128xf32> to vector<16x16xf32>
    %1011 = arith.addf %1009, %1010 : vector<16x16xf32>
    %1012 = vector.extract_strided_slice %939 {offsets = [0, 96], sizes = [16, 16], strides = [1, 1]} : vector<16x128xf32> to vector<16x16xf32>
    %1013 = arith.addf %1011, %1012 : vector<16x16xf32>
    %c3_630 = arith.constant 3 : index
    %1014 = memref.load %arg3[%c3_630] : memref<4xf32, #tpu.memory_space<smem>>
    %1015 = vector.broadcast %1014 : f32 to vector<16x16xf32>
    %1016 = arith.addf %1013, %1015 : vector<16x16xf32>
    %cst_631 = arith.constant 0.000000e+00 : f32
    %1017 = vector.broadcast %cst_631 : f32 to vector<16x16xf32>
    %1018 = arith.subf %1017, %1016 : vector<16x16xf32>
    %1019 = math.exp %1018 : vector<16x16xf32>
    %cst_632 = arith.constant 1.000000e+00 : f32
    %1020 = vector.broadcast %cst_632 : f32 to vector<16x16xf32>
    %1021 = arith.addf %1020, %1019 : vector<16x16xf32>
    %1022 = tpu.reciprocal %1021 : vector<16x16xf32> -> vector<16x16xf32>
    %c0_633 = arith.constant 0 : index
    %c3_634 = arith.constant 3 : index
    %c0_635 = arith.constant 0 : index
    %c0_636 = arith.constant 0 : index
    %1023 = vector.load %arg4[%c0_633, %c3_634, %c0_635, %c0_636] : memref<2x4x16x16xf32, #tpu.memory_space<vmem>>, vector<1x1x16x16xf32>
    %1024 = vector.shape_cast %1023 : vector<1x1x16x16xf32> to vector<16x16xf32>
    %1025 = vector.shape_cast %1022 : vector<16x16xf32> to vector<1x1x16x16xf32>
    tpu.vector_store %arg4[%c0_633, %c3_634, %c0_635, %c0_636], %1025 {strides = array<i32>} : memref<2x4x16x16xf32, #tpu.memory_space<vmem>>, vector<1x1x16x16xf32>,
    %1026 = vector.extract_strided_slice %943 {offsets = [0, 0], sizes = [16, 16], strides = [1, 1]} : vector<16x128xf32> to vector<16x16xf32>
    %1027 = vector.extract_strided_slice %943 {offsets = [0, 32], sizes = [16, 16], strides = [1, 1]} : vector<16x128xf32> to vector<16x16xf32>
    %1028 = arith.addf %1026, %1027 : vector<16x16xf32>
    %1029 = vector.extract_strided_slice %943 {offsets = [0, 64], sizes = [16, 16], strides = [1, 1]} : vector<16x128xf32> to vector<16x16xf32>
    %1030 = arith.addf %1028, %1029 : vector<16x16xf32>
    %1031 = vector.extract_strided_slice %943 {offsets = [0, 96], sizes = [16, 16], strides = [1, 1]} : vector<16x128xf32> to vector<16x16xf32>
    %1032 = arith.addf %1030, %1031 : vector<16x16xf32>
    %c0_637 = arith.constant 0 : index
    %1033 = memref.load %arg3[%c0_637] : memref<4xf32, #tpu.memory_space<smem>>
    %1034 = vector.broadcast %1033 : f32 to vector<16x16xf32>
    %1035 = arith.addf %1032, %1034 : vector<16x16xf32>
    %cst_638 = arith.constant 0.000000e+00 : f32
    %1036 = vector.broadcast %cst_638 : f32 to vector<16x16xf32>
    %1037 = arith.subf %1036, %1035 : vector<16x16xf32>
    %1038 = math.exp %1037 : vector<16x16xf32>
    %cst_639 = arith.constant 1.000000e+00 : f32
    %1039 = vector.broadcast %cst_639 : f32 to vector<16x16xf32>
    %1040 = arith.addf %1039, %1038 : vector<16x16xf32>
    %1041 = tpu.reciprocal %1040 : vector<16x16xf32> -> vector<16x16xf32>
    %c1_640 = arith.constant 1 : index
    %c0_641 = arith.constant 0 : index
    %c0_642 = arith.constant 0 : index
    %c0_643 = arith.constant 0 : index
    %1042 = vector.load %arg4[%c1_640, %c0_641, %c0_642, %c0_643] : memref<2x4x16x16xf32, #tpu.memory_space<vmem>>, vector<1x1x16x16xf32>
    %1043 = vector.shape_cast %1042 : vector<1x1x16x16xf32> to vector<16x16xf32>
    %1044 = vector.shape_cast %1041 : vector<16x16xf32> to vector<1x1x16x16xf32>
    tpu.vector_store %arg4[%c1_640, %c0_641, %c0_642, %c0_643], %1044 {strides = array<i32>} : memref<2x4x16x16xf32, #tpu.memory_space<vmem>>, vector<1x1x16x16xf32>,
    %1045 = vector.extract_strided_slice %945 {offsets = [0, 0], sizes = [16, 16], strides = [1, 1]} : vector<16x128xf32> to vector<16x16xf32>
    %1046 = vector.extract_strided_slice %945 {offsets = [0, 32], sizes = [16, 16], strides = [1, 1]} : vector<16x128xf32> to vector<16x16xf32>
    %1047 = arith.addf %1045, %1046 : vector<16x16xf32>
    %1048 = vector.extract_strided_slice %945 {offsets = [0, 64], sizes = [16, 16], strides = [1, 1]} : vector<16x128xf32> to vector<16x16xf32>
    %1049 = arith.addf %1047, %1048 : vector<16x16xf32>
    %1050 = vector.extract_strided_slice %945 {offsets = [0, 96], sizes = [16, 16], strides = [1, 1]} : vector<16x128xf32> to vector<16x16xf32>
    %1051 = arith.addf %1049, %1050 : vector<16x16xf32>
    %c1_644 = arith.constant 1 : index
    %1052 = memref.load %arg3[%c1_644] : memref<4xf32, #tpu.memory_space<smem>>
    %1053 = vector.broadcast %1052 : f32 to vector<16x16xf32>
    %1054 = arith.addf %1051, %1053 : vector<16x16xf32>
    %cst_645 = arith.constant 0.000000e+00 : f32
    %1055 = vector.broadcast %cst_645 : f32 to vector<16x16xf32>
    %1056 = arith.subf %1055, %1054 : vector<16x16xf32>
    %1057 = math.exp %1056 : vector<16x16xf32>
    %cst_646 = arith.constant 1.000000e+00 : f32
    %1058 = vector.broadcast %cst_646 : f32 to vector<16x16xf32>
    %1059 = arith.addf %1058, %1057 : vector<16x16xf32>
    %1060 = tpu.reciprocal %1059 : vector<16x16xf32> -> vector<16x16xf32>
    %c1_647 = arith.constant 1 : index
    %c1_648 = arith.constant 1 : index
    %c0_649 = arith.constant 0 : index
    %c0_650 = arith.constant 0 : index
    %1061 = vector.load %arg4[%c1_647, %c1_648, %c0_649, %c0_650] : memref<2x4x16x16xf32, #tpu.memory_space<vmem>>, vector<1x1x16x16xf32>
    %1062 = vector.shape_cast %1061 : vector<1x1x16x16xf32> to vector<16x16xf32>
    %1063 = vector.shape_cast %1060 : vector<16x16xf32> to vector<1x1x16x16xf32>
    tpu.vector_store %arg4[%c1_647, %c1_648, %c0_649, %c0_650], %1063 {strides = array<i32>} : memref<2x4x16x16xf32, #tpu.memory_space<vmem>>, vector<1x1x16x16xf32>,
    %1064 = vector.extract_strided_slice %947 {offsets = [0, 0], sizes = [16, 16], strides = [1, 1]} : vector<16x128xf32> to vector<16x16xf32>
    %1065 = vector.extract_strided_slice %947 {offsets = [0, 32], sizes = [16, 16], strides = [1, 1]} : vector<16x128xf32> to vector<16x16xf32>
    %1066 = arith.addf %1064, %1065 : vector<16x16xf32>
    %1067 = vector.extract_strided_slice %947 {offsets = [0, 64], sizes = [16, 16], strides = [1, 1]} : vector<16x128xf32> to vector<16x16xf32>
    %1068 = arith.addf %1066, %1067 : vector<16x16xf32>
    %1069 = vector.extract_strided_slice %947 {offsets = [0, 96], sizes = [16, 16], strides = [1, 1]} : vector<16x128xf32> to vector<16x16xf32>
    %1070 = arith.addf %1068, %1069 : vector<16x16xf32>
    %c2_651 = arith.constant 2 : index
    %1071 = memref.load %arg3[%c2_651] : memref<4xf32, #tpu.memory_space<smem>>
    %1072 = vector.broadcast %1071 : f32 to vector<16x16xf32>
    %1073 = arith.addf %1070, %1072 : vector<16x16xf32>
    %cst_652 = arith.constant 0.000000e+00 : f32
    %1074 = vector.broadcast %cst_652 : f32 to vector<16x16xf32>
    %1075 = arith.subf %1074, %1073 : vector<16x16xf32>
    %1076 = math.exp %1075 : vector<16x16xf32>
    %cst_653 = arith.constant 1.000000e+00 : f32
    %1077 = vector.broadcast %cst_653 : f32 to vector<16x16xf32>
    %1078 = arith.addf %1077, %1076 : vector<16x16xf32>
    %1079 = tpu.reciprocal %1078 : vector<16x16xf32> -> vector<16x16xf32>
    %c1_654 = arith.constant 1 : index
    %c2_655 = arith.constant 2 : index
    %c0_656 = arith.constant 0 : index
    %c0_657 = arith.constant 0 : index
    %1080 = vector.load %arg4[%c1_654, %c2_655, %c0_656, %c0_657] : memref<2x4x16x16xf32, #tpu.memory_space<vmem>>, vector<1x1x16x16xf32>
    %1081 = vector.shape_cast %1080 : vector<1x1x16x16xf32> to vector<16x16xf32>
    %1082 = vector.shape_cast %1079 : vector<16x16xf32> to vector<1x1x16x16xf32>
    tpu.vector_store %arg4[%c1_654, %c2_655, %c0_656, %c0_657], %1082 {strides = array<i32>} : memref<2x4x16x16xf32, #tpu.memory_space<vmem>>, vector<1x1x16x16xf32>,
    %1083 = vector.extract_strided_slice %949 {offsets = [0, 0], sizes = [16, 16], strides = [1, 1]} : vector<16x128xf32> to vector<16x16xf32>
    %1084 = vector.extract_strided_slice %949 {offsets = [0, 32], sizes = [16, 16], strides = [1, 1]} : vector<16x128xf32> to vector<16x16xf32>
    %1085 = arith.addf %1083, %1084 : vector<16x16xf32>
    %1086 = vector.extract_strided_slice %949 {offsets = [0, 64], sizes = [16, 16], strides = [1, 1]} : vector<16x128xf32> to vector<16x16xf32>
    %1087 = arith.addf %1085, %1086 : vector<16x16xf32>
    %1088 = vector.extract_strided_slice %949 {offsets = [0, 96], sizes = [16, 16], strides = [1, 1]} : vector<16x128xf32> to vector<16x16xf32>
    %1089 = arith.addf %1087, %1088 : vector<16x16xf32>
    %c3_658 = arith.constant 3 : index
    %1090 = memref.load %arg3[%c3_658] : memref<4xf32, #tpu.memory_space<smem>>
    %1091 = vector.broadcast %1090 : f32 to vector<16x16xf32>
    %1092 = arith.addf %1089, %1091 : vector<16x16xf32>
    %cst_659 = arith.constant 0.000000e+00 : f32
    %1093 = vector.broadcast %cst_659 : f32 to vector<16x16xf32>
    %1094 = arith.subf %1093, %1092 : vector<16x16xf32>
    %1095 = math.exp %1094 : vector<16x16xf32>
    %cst_660 = arith.constant 1.000000e+00 : f32
    %1096 = vector.broadcast %cst_660 : f32 to vector<16x16xf32>
    %1097 = arith.addf %1096, %1095 : vector<16x16xf32>
    %1098 = tpu.reciprocal %1097 : vector<16x16xf32> -> vector<16x16xf32>
    %c1_661 = arith.constant 1 : index
    %c3_662 = arith.constant 3 : index
    %c0_663 = arith.constant 0 : index
    %c0_664 = arith.constant 0 : index
    %1099 = vector.load %arg4[%c1_661, %c3_662, %c0_663, %c0_664] : memref<2x4x16x16xf32, #tpu.memory_space<vmem>>, vector<1x1x16x16xf32>
    %1100 = vector.shape_cast %1099 : vector<1x1x16x16xf32> to vector<16x16xf32>
    %1101 = vector.shape_cast %1098 : vector<16x16xf32> to vector<1x1x16x16xf32>
    tpu.vector_store %arg4[%c1_661, %c3_662, %c0_663, %c0_664], %1101 {strides = array<i32>} : memref<2x4x16x16xf32, #tpu.memory_space<vmem>>, vector<1x1x16x16xf32>,
    return
  }
  func.func @transform_0(%arg0: i32) -> (i32, i32, i32, i32) {
    %c0_i32 = arith.constant 0 : i32
    %c0_i32_0 = arith.constant 0 : i32
    %c0_i32_1 = arith.constant 0 : i32
    %c0_i32_2 = arith.constant 0 : i32
    %c0_i32_3 = arith.constant 0 : i32
    return %c0_i32, %c0_i32_0, %c0_i32_1, %c0_i32_2 : i32, i32, i32, i32
  }
  func.func @transform_1(%arg0: i32) -> (i32, i32, i32, i32) {
    %c0_i32 = arith.constant 0 : i32
    %c0_i32_0 = arith.constant 0 : i32
    %c0_i32_1 = arith.constant 0 : i32
    %c0_i32_2 = arith.constant 0 : i32
    %c0_i32_3 = arith.constant 0 : i32
    return %c0_i32, %c0_i32_0, %c0_i32_1, %c0_i32_2 : i32, i32, i32, i32
  }
  func.func @transform_2(%arg0: i32) -> i32 {
    %c0_i32 = arith.constant 0 : i32
    %c0_i32_0 = arith.constant 0 : i32
    return %c0_i32 : i32
  }
  func.func @transform_3(%arg0: i32) -> (i32, i32, i32, i32) {
    %c0_i32 = arith.constant 0 : i32
    %c0_i32_0 = arith.constant 0 : i32
    %c0_i32_1 = arith.constant 0 : i32
    %c0_i32_2 = arith.constant 0 : i32
    %c0_i32_3 = arith.constant 0 : i32
    return %c0_i32, %c0_i32_0, %c0_i32_1, %c0_i32_2 : i32, i32, i32, i32
  }
}

</mosaic_0001>

<llo_original>
// kernel: img_disturb_forward.1
$region0: #{img_disturb_forward.1}
  #allocation0 [shape = 'u32[]', space=smem, size = 0x4, offset = 0x4, fixed_abs, tag = 'smem constant byte address 0x4 - core index']
  #allocation1 [shape = 'u32[144,128]{1,0:T(1,128)}', space=vmem, size = 0x12000, scoped, tag = 'internal scratch']
  #allocation2 [shape = 'f32[2,24,256]{2,1,0:T(8,128)}', space=vmem, size = 0xc000, scoped, tag = 'scratch operand']
  %s0 = inlined_call_operand.vmem [shape: f32[2,4,16,16], index: 0, kind: input, shape index: {}]
  %s1 = inlined_call_operand.vmem [shape: f32[4,5,5,128], index: 1, kind: input, shape index: {}]
  %s2 = inlined_call_operand.vmem [shape: f32[4], index: 2, kind: input, shape index: {}]
  %s3 = inlined_call_operand.hbm [shape: f32[2,4,16,16], index: 3, kind: output, shape index: {}]
  %s4 = sld [smem:[#allocation0]]
  $region26: #{img_disturb_forward.1} parent=0
    _
  %s6 = ssub.s32 1, %s4
  %s7 = scalar_select 0, %s6, %s4
  $region1: #{img_disturb_forward.1} parent=0
    #allocation3 [shape = 'u8[512]{0}', space=smem, size = 0x200, scoped, tag = 'input window, operand 2, single buffered']
    #allocation4 [shape = 's32[1]{0}', space=sflag, size = 0x4, scoped, tag = 'scoped memory for img_disturb_forward.1']
    #allocation5 [shape = 's32[1]{0}', space=sflag, size = 0x4, scoped, tag = 'scoped memory for img_disturb_forward.1']
    #allocation6 [shape = 'u8[65536]{0}', space=vmem, size = 0x10000, scoped, tag = 'output window, operand 0, single buffered']
    %8 = vsyncpa [#allocation5], 0
    %9 = vsyncpa [#allocation4], 0
    // Predicated region
    $region2: #{img_disturb_forward.1} parent=1 // pred_check
      _
    $region3: #{img_disturb_forward.1} parent=1 // pred_check_branch
      %11 = sbr.rel (0) target = $region5
    $region4: #{img_disturb_forward.1} parent=1 // pred_region
      _
    $region5: #{img_disturb_forward.1} parent=1 // pred_fallthru
      _
    // Predicated region
    $region6: #{img_disturb_forward.1} parent=1 // pred_check
      _
    $region7: #{img_disturb_forward.1} parent=1 // pred_check_branch
      %13 = sbr.rel (0) target = $region9
    $region8: #{img_disturb_forward.1} parent=1 // pred_region
      _
    $region9: #{img_disturb_forward.1} parent=1 // pred_fallthru
      _
    // Predicated region
    $region10: #{img_disturb_forward.1} parent=1 // pred_check
      _
    $region11: #{img_disturb_forward.1} parent=1 // pred_check_branch
      %15 = sbr.rel (0) target = $region13
    $region12: #{img_disturb_forward.1} parent=1 // pred_region
      %s17 = ssub.s32 16, 16
      %18 = vsyncadd [#allocation5], %s17
      %s20 = sshll.u32 %s2, 4
      %s21 = int_to_ptr.vmem [resolvable:$true] %s20
      %23 = dma.vmem_to_smem %s21, 16, [#allocation3], [#allocation5]
    $region13: #{img_disturb_forward.1} parent=1 // pred_fallthru
      _
    // Predicated region
    $region14: #{img_disturb_forward.1} parent=1 // pred_check
      _
    $region15: #{img_disturb_forward.1} parent=1 // pred_check_branch
      %25 = sbr.rel (0) target = $region17
    $region16: #{img_disturb_forward.1} parent=1 // pred_region
      %26 = dma.done [#allocation5], 16
    $region17: #{img_disturb_forward.1} parent=1 // pred_fallthru
      _
    %27 = sfence
    %28 = vst [vmem:[#allocation2] sm:$0xff] 0.0
    %29 = vst [vmem:[#allocation2 + $0x8] sm:$0xff] 0.0
    %30 = vst [vmem:[#allocation2 + $0x10] sm:$0xff] 0.0
    %31 = vst [vmem:[#allocation2 + $0x18] sm:$0xff] 0.0
    %32 = vst [vmem:[#allocation2 + $0x20] sm:$0xff] 0.0
    %33 = vst [vmem:[#allocation2 + $0x28] sm:$0xff] 0.0
    %34 = vst [vmem:[#allocation2 + $0x30] sm:$0xff] 0.0
    %35 = vst [vmem:[#allocation2 + $0x38] sm:$0xff] 0.0
    %36 = vst [vmem:[#allocation2 + $0x40] sm:$0xff] 0.0
    %37 = vst [vmem:[#allocation2 + $0x48] sm:$0xff] 0.0
    %38 = vst [vmem:[#allocation2 + $0x50] sm:$0xff] 0.0
    %39 = vst [vmem:[#allocation2 + $0x58] sm:$0xff] 0.0
    %v40 = vld [vmem:[%s0] sm:$0xff]
    %v41 = vld [vmem:[%s0 + $0x8] sm:$0xff]
    %vm44 = vcmask 1041408
    %v45 = vrot.slane %v40, 6
    %v46 = vrot.slane %v41, 6
    %v47 = vsel %vm44, %v45, %v46
    %48 = vrot.lane.b32.xlu0 %v45, 2
    %v49 = vpop.permute.xlu0 %48
    %50 = vrot.lane.b32.xlu0 %v47, 2
    %v51 = vpop.permute.xlu0 %50
    %52 = vrot.lane.b32.xlu0 %v46, 2
    %v53 = vpop.permute.xlu0 %52
    %vm57 = vcmask 146450
    %58 = vst.msk [vmem:[#allocation2] sm:$0xfc] %vm57, %v49
    %vm59 = vcmask 146448
    %60 = vst.msk [vmem:[#allocation2 + $0x10] sm:$0xff] %vm59, %v51
    %vm61 = vcmask 140304
    %62 = vst.msk [vmem:[#allocation2 + $0x20] sm:$0x3] %vm61, %v53
    %s63 = scalar_lea.vmem %s0, 16
    %v64 = vld [vmem:[%s63] sm:$0xff]
    %v65 = vld [vmem:[%s63 + $0x8] sm:$0xff]
    %v68 = vrot.slane %v64, 6
    %v69 = vrot.slane %v65, 6
    %v70 = vsel %vm44, %v68, %v69
    %71 = vrot.lane.b32.xlu0 %v68, 34
    %v72 = vpop.permute.xlu0 %71
    %73 = vrot.lane.b32.xlu0 %v70, 34
    %v74 = vpop.permute.xlu0 %73
    %75 = vrot.lane.b32.xlu0 %v69, 34
    %v76 = vpop.permute.xlu0 %75
    %vm80 = vcmask 408850
    %81 = vst.msk [vmem:[#allocation2] sm:$0xfc] %vm80, %v72
    %vm82 = vcmask 408848
    %83 = vst.msk [vmem:[#allocation2 + $0x10] sm:$0xff] %vm82, %v74
    %vm84 = vcmask 402704
    %85 = vst.msk [vmem:[#allocation2 + $0x20] sm:$0x3] %vm84, %v76
    %s86 = scalar_lea.vmem %s0, 32
    %v87 = vld [vmem:[%s86] sm:$0xff]
    %v88 = vld [vmem:[%s86 + $0x8] sm:$0xff]
    %v91 = vrot.slane %v87, 6
    %v92 = vrot.slane %v88, 6
    %v93 = vsel %vm44, %v91, %v92
    %94 = vrot.lane.b32.xlu0 %v91, 66
    %v95 = vpop.permute.xlu0 %94
    %96 = vrot.lane.b32.xlu0 %v93, 66
    %v97 = vpop.permute.xlu0 %96
    %98 = vrot.lane.b32.xlu0 %v92, 66
    %v99 = vpop.permute.xlu0 %98
    %vm103 = vcmask 671250
    %104 = vst.msk [vmem:[#allocation2] sm:$0xfc] %vm103, %v95
    %vm105 = vcmask 671248
    %106 = vst.msk [vmem:[#allocation2 + $0x10] sm:$0xff] %vm105, %v97
    %vm107 = vcmask 665104
    %108 = vst.msk [vmem:[#allocation2 + $0x20] sm:$0x3] %vm107, %v99
    %s109 = scalar_lea.vmem %s0, 48
    %v110 = vld [vmem:[%s109] sm:$0xff]
    %v111 = vld [vmem:[%s109 + $0x8] sm:$0xff]
    %v114 = vrot.slane %v110, 6
    %v115 = vrot.slane %v111, 6
    %v116 = vsel %vm44, %v114, %v115
    %117 = vrot.lane.b32.xlu0 %v114, 98
    %v118 = vpop.permute.xlu0 %117
    %119 = vrot.lane.b32.xlu0 %v116, 98
    %v120 = vpop.permute.xlu0 %119
    %121 = vrot.lane.b32.xlu0 %v115, 98
    %v122 = vpop.permute.xlu0 %121
    %vm126 = vcmask 933650
    %127 = vst.msk [vmem:[#allocation2] sm:$0xfc] %vm126, %v118
    %vm128 = vcmask 933648
    %129 = vst.msk [vmem:[#allocation2 + $0x10] sm:$0xff] %vm128, %v120
    %vm130 = vcmask 927504
    %131 = vst.msk [vmem:[#allocation2 + $0x20] sm:$0x3] %vm130, %v122
    %s132 = scalar_lea.vmem %s0, 64
    %v133 = vld [vmem:[%s132] sm:$0xff]
    %v134 = vld [vmem:[%s132 + $0x8] sm:$0xff]
    %v137 = vrot.slane %v133, 6
    %v138 = vrot.slane %v134, 6
    %v139 = vsel %vm44, %v137, %v138
    %140 = vrot.lane.b32.xlu0 %v137, 2
    %v141 = vpop.permute.xlu0 %140
    %142 = vrot.lane.b32.xlu0 %v139, 2
    %v143 = vpop.permute.xlu0 %142
    %144 = vrot.lane.b32.xlu0 %v138, 2
    %v145 = vpop.permute.xlu0 %144
    %s149 = scalar_lea.vmem [#allocation2], 48
    %150 = vst.msk [vmem:[%s149] sm:$0xfc] %vm57, %v141
    %151 = vst.msk [vmem:[%s149 + $0x10] sm:$0xff] %vm59, %v143
    %152 = vst.msk [vmem:[%s149 + $0x20] sm:$0x3] %vm61, %v145
    %s153 = scalar_lea.vmem %s0, 80
    %v154 = vld [vmem:[%s153] sm:$0xff]
    %v155 = vld [vmem:[%s153 + $0x8] sm:$0xff]
    %v158 = vrot.slane %v154, 6
    %v159 = vrot.slane %v155, 6
    %v160 = vsel %vm44, %v158, %v159
    %161 = vrot.lane.b32.xlu0 %v158, 34
    %v162 = vpop.permute.xlu0 %161
    %163 = vrot.lane.b32.xlu0 %v160, 34
    %v164 = vpop.permute.xlu0 %163
    %165 = vrot.lane.b32.xlu0 %v159, 34
    %v166 = vpop.permute.xlu0 %165
    %170 = vst.msk [vmem:[%s149] sm:$0xfc] %vm80, %v162
    %171 = vst.msk [vmem:[%s149 + $0x10] sm:$0xff] %vm82, %v164
    %172 = vst.msk [vmem:[%s149 + $0x20] sm:$0x3] %vm84, %v166
    %s173 = scalar_lea.vmem %s0, 96
    %v174 = vld [vmem:[%s173] sm:$0xff]
    %v175 = vld [vmem:[%s173 + $0x8] sm:$0xff]
    %v178 = vrot.slane %v174, 6
    %v179 = vrot.slane %v175, 6
    %v180 = vsel %vm44, %v178, %v179
    %181 = vrot.lane.b32.xlu0 %v178, 66
    %v182 = vpop.permute.xlu0 %181
    %183 = vrot.lane.b32.xlu0 %v180, 66
    %v184 = vpop.permute.xlu0 %183
    %185 = vrot.lane.b32.xlu0 %v179, 66
    %v186 = vpop.permute.xlu0 %185
    %190 = vst.msk [vmem:[%s149] sm:$0xfc] %vm103, %v182
    %191 = vst.msk [vmem:[%s149 + $0x10] sm:$0xff] %vm105, %v184
    %192 = vst.msk [vmem:[%s149 + $0x20] sm:$0x3] %vm107, %v186
    %s193 = scalar_lea.vmem %s0, 112
    %v194 = vld [vmem:[%s193] sm:$0xff]
    %v195 = vld [vmem:[%s193 + $0x8] sm:$0xff]
    %v198 = vrot.slane %v194, 6
    %v199 = vrot.slane %v195, 6
    %v200 = vsel %vm44, %v198, %v199
    %201 = vrot.lane.b32.xlu0 %v198, 98
    %v202 = vpop.permute.xlu0 %201
    %203 = vrot.lane.b32.xlu0 %v200, 98
    %v204 = vpop.permute.xlu0 %203
    %205 = vrot.lane.b32.xlu0 %v199, 98
    %v206 = vpop.permute.xlu0 %205
    %210 = vst.msk [vmem:[%s149] sm:$0xfc] %vm126, %v202
    %211 = vst.msk [vmem:[%s149 + $0x10] sm:$0xff] %vm128, %v204
    %212 = vst.msk [vmem:[%s149 + $0x20] sm:$0x3] %vm130, %v206
    %v213 = vld [vmem:[%s1] sm:$0x1]
    %v214 = vlaneseq
    %v215 = vshrl.u32 %v214, 7
    %v216 = vsub.s32 0, %v215
    %v217 = vrot.slane %v213, %v216
    %s218 = scalar_lea.vmem %s1, 40
    %v219 = vld [vmem:[%s218] sm:$0x1]
    %v220 = vlaneseq
    %v221 = vshrl.u32 %v220, 7
    %v222 = vsub.s32 0, %v221
    %v223 = vrot.slane %v219, %v222
    %s224 = scalar_lea.vmem %s1, 80
    %v225 = vld [vmem:[%s224] sm:$0x1]
    %v226 = vlaneseq
    %v227 = vshrl.u32 %v226, 7
    %v228 = vsub.s32 0, %v227
    %v229 = vrot.slane %v225, %v228
    %s230 = scalar_lea.vmem %s1, 120
    %v231 = vld [vmem:[%s230] sm:$0x1]
    %v232 = vlaneseq
    %v233 = vshrl.u32 %v232, 7
    %v234 = vsub.s32 0, %v233
    %v235 = vrot.slane %v231, %v234
    %v236 = vld [vmem:[#allocation2] sm:$0xff]
    %v237 = vld [vmem:[#allocation2 + $0x10] sm:$0xff]
    %v238 = vmul.f32 %v236, %v217
    %v239 = vmul.f32 %v237, %v217
    %v240 = vadd.f32 %v238, 0.0
    %v241 = vadd.f32 %v239, 0.0
    %v242 = vmul.f32 %v236, %v223
    %v243 = vmul.f32 %v237, %v223
    %v244 = vadd.f32 %v242, 0.0
    %v245 = vadd.f32 %v243, 0.0
    %v246 = vmul.f32 %v236, %v229
    %v247 = vmul.f32 %v237, %v229
    %v248 = vadd.f32 %v246, 0.0
    %v249 = vadd.f32 %v247, 0.0
    %v250 = vmul.f32 %v236, %v235
    %v251 = vmul.f32 %v237, %v235
    %v252 = vadd.f32 %v250, 0.0
    %v253 = vadd.f32 %v251, 0.0
    %v254 = vld [vmem:[%s149] sm:$0xff]
    %v255 = vld [vmem:[%s149 + $0x10] sm:$0xff]
    %v256 = vmul.f32 %v254, %v217
    %v257 = vmul.f32 %v255, %v217
    %v258 = vadd.f32 %v256, 0.0
    %v259 = vadd.f32 %v257, 0.0
    %v260 = vmul.f32 %v254, %v223
    %v261 = vmul.f32 %v255, %v223
    %v262 = vadd.f32 %v260, 0.0
    %v263 = vadd.f32 %v261, 0.0
    %v264 = vmul.f32 %v254, %v229
    %v265 = vmul.f32 %v255, %v229
    %v266 = vadd.f32 %v264, 0.0
    %v267 = vadd.f32 %v265, 0.0
    %v268 = vmul.f32 %v254, %v235
    %v269 = vmul.f32 %v255, %v235
    %v270 = vadd.f32 %v268, 0.0
    %v271 = vadd.f32 %v269, 0.0
    %v272 = vld [vmem:[%s1 + $0x1] sm:$0x1]
    %v273 = vlaneseq
    %v274 = vshrl.u32 %v273, 7
    %v275 = vsub.s32 0, %v274
    %v276 = vrot.slane %v272, %v275
    %v277 = vld [vmem:[%s218 + $0x1] sm:$0x1]
    %v278 = vlaneseq
    %v279 = vshrl.u32 %v278, 7
    %v280 = vsub.s32 0, %v279
    %v281 = vrot.slane %v277, %v280
    %v282 = vld [vmem:[%s224 + $0x1] sm:$0x1]
    %v283 = vlaneseq
    %v284 = vshrl.u32 %v283, 7
    %v285 = vsub.s32 0, %v284
    %v286 = vrot.slane %v282, %v285
    %v287 = vld [vmem:[%s230 + $0x1] sm:$0x1]
    %v288 = vlaneseq
    %v289 = vshrl.u32 %v288, 7
    %v290 = vsub.s32 0, %v289
    %v291 = vrot.slane %v287, %v290
    %v292 = vld [vmem:[#allocation2 + $0x8] sm:$0xff]
    %v293 = vld [vmem:[#allocation2 + $0x18] sm:$0xff]
    %295 = vrot.lane.b32.xlu0 %v276, 1
    %v296 = vpop.permute.xlu0 %295
    %v298 = vmul.f32 %v236, %v296
    %v299 = vmul.f32 %v292, %v296
    %v300 = vmul.f32 %v237, %v296
    %v301 = vmul.f32 %v293, %v296
    %306 = vrot.lane.b32.xlu0 %v298, 127
    %v307 = vpop.permute.xlu0 %306
    %308 = vrot.lane.b32.xlu0 %v299, 127
    %v309 = vpop.permute.xlu0 %308
    %310 = vrot.lane.b32.xlu0 %v300, 127
    %v311 = vpop.permute.xlu0 %310
    %312 = vrot.lane.b32.xlu0 %v301, 127
    %v313 = vpop.permute.xlu0 %312
    %vm314 = vcmask 1039360
    %v315 = vsel %vm314, %v307, %v309
    %v316 = vsel %vm314, %v311, %v313
    %v319 = vadd.f32 %v240, %v315
    %v320 = vadd.f32 %v241, %v316
    %322 = vrot.lane.b32.xlu0 %v281, 1
    %v323 = vpop.permute.xlu0 %322
    %v325 = vmul.f32 %v236, %v323
    %v326 = vmul.f32 %v292, %v323
    %v327 = vmul.f32 %v237, %v323
    %v328 = vmul.f32 %v293, %v323
    %333 = vrot.lane.b32.xlu0 %v325, 127
    %v334 = vpop.permute.xlu0 %333
    %335 = vrot.lane.b32.xlu0 %v326, 127
    %v336 = vpop.permute.xlu0 %335
    %337 = vrot.lane.b32.xlu0 %v327, 127
    %v338 = vpop.permute.xlu0 %337
    %339 = vrot.lane.b32.xlu0 %v328, 127
    %v340 = vpop.permute.xlu0 %339
    %v341 = vsel %vm314, %v334, %v336
    %v342 = vsel %vm314, %v338, %v340
    %v345 = vadd.f32 %v244, %v341
    %v346 = vadd.f32 %v245, %v342
    %348 = vrot.lane.b32.xlu0 %v286, 1
    %v349 = vpop.permute.xlu0 %348
    %v351 = vmul.f32 %v236, %v349
    %v352 = vmul.f32 %v292, %v349
    %v353 = vmul.f32 %v237, %v349
    %v354 = vmul.f32 %v293, %v349
    %359 = vrot.lane.b32.xlu0 %v351, 127
    %v360 = vpop.permute.xlu0 %359
    %361 = vrot.lane.b32.xlu0 %v352, 127
    %v362 = vpop.permute.xlu0 %361
    %363 = vrot.lane.b32.xlu0 %v353, 127
    %v364 = vpop.permute.xlu0 %363
    %365 = vrot.lane.b32.xlu0 %v354, 127
    %v366 = vpop.permute.xlu0 %365
    %v367 = vsel %vm314, %v360, %v362
    %v368 = vsel %vm314, %v364, %v366
    %v371 = vadd.f32 %v248, %v367
    %v372 = vadd.f32 %v249, %v368
    %374 = vrot.lane.b32.xlu0 %v291, 1
    %v375 = vpop.permute.xlu0 %374
    %v377 = vmul.f32 %v236, %v375
    %v378 = vmul.f32 %v292, %v375
    %v379 = vmul.f32 %v237, %v375
    %v380 = vmul.f32 %v293, %v375
    %385 = vrot.lane.b32.xlu0 %v377, 127
    %v386 = vpop.permute.xlu0 %385
    %387 = vrot.lane.b32.xlu0 %v378, 127
    %v388 = vpop.permute.xlu0 %387
    %389 = vrot.lane.b32.xlu0 %v379, 127
    %v390 = vpop.permute.xlu0 %389
    %391 = vrot.lane.b32.xlu0 %v380, 127
    %v392 = vpop.permute.xlu0 %391
    %v393 = vsel %vm314, %v386, %v388
    %v394 = vsel %vm314, %v390, %v392
    %v397 = vadd.f32 %v252, %v393
    %v398 = vadd.f32 %v253, %v394
    %v399 = vld [vmem:[%s149 + $0x8] sm:$0xff]
    %v400 = vld [vmem:[%s149 + $0x18] sm:$0xff]
    %v401 = vmul.f32 %v254, %v296
    %v402 = vmul.f32 %v399, %v296
    %v403 = vmul.f32 %v255, %v296
    %v404 = vmul.f32 %v400, %v296
    %409 = vrot.lane.b32.xlu0 %v401, 127
    %v410 = vpop.permute.xlu0 %409
    %411 = vrot.lane.b32.xlu0 %v402, 127
    %v412 = vpop.permute.xlu0 %411
    %413 = vrot.lane.b32.xlu0 %v403, 127
    %v414 = vpop.permute.xlu0 %413
    %415 = vrot.lane.b32.xlu0 %v404, 127
    %v416 = vpop.permute.xlu0 %415
    %v417 = vsel %vm314, %v410, %v412
    %v418 = vsel %vm314, %v414, %v416
    %v421 = vadd.f32 %v258, %v417
    %v422 = vadd.f32 %v259, %v418
    %v423 = vmul.f32 %v254, %v323
    %v424 = vmul.f32 %v399, %v323
    %v425 = vmul.f32 %v255, %v323
    %v426 = vmul.f32 %v400, %v323
    %431 = vrot.lane.b32.xlu0 %v423, 127
    %v432 = vpop.permute.xlu0 %431
    %433 = vrot.lane.b32.xlu0 %v424, 127
    %v434 = vpop.permute.xlu0 %433
    %435 = vrot.lane.b32.xlu0 %v425, 127
    %v436 = vpop.permute.xlu0 %435
    %437 = vrot.lane.b32.xlu0 %v426, 127
    %v438 = vpop.permute.xlu0 %437
    %v439 = vsel %vm314, %v432, %v434
    %v440 = vsel %vm314, %v436, %v438
    %v443 = vadd.f32 %v262, %v439
    %v444 = vadd.f32 %v263, %v440
    %v445 = vmul.f32 %v254, %v349
    %v446 = vmul.f32 %v399, %v349
    %v447 = vmul.f32 %v255, %v349
    %v448 = vmul.f32 %v400, %v349
    %453 = vrot.lane.b32.xlu0 %v445, 127
    %v454 = vpop.permute.xlu0 %453
    %455 = vrot.lane.b32.xlu0 %v446, 127
    %v456 = vpop.permute.xlu0 %455
    %457 = vrot.lane.b32.xlu0 %v447, 127
    %v458 = vpop.permute.xlu0 %457
    %459 = vrot.lane.b32.xlu0 %v448, 127
    %v460 = vpop.permute.xlu0 %459
    %v461 = vsel %vm314, %v454, %v456
    %v462 = vsel %vm314, %v458, %v460
    %v465 = vadd.f32 %v266, %v461
    %v466 = vadd.f32 %v267, %v462
    %v467 = vmul.f32 %v254, %v375
    %v468 = vmul.f32 %v399, %v375
    %v469 = vmul.f32 %v255, %v375
    %v470 = vmul.f32 %v400, %v375
    %475 = vrot.lane.b32.xlu0 %v467, 127
    %v476 = vpop.permute.xlu0 %475
    %477 = vrot.lane.b32.xlu0 %v468, 127
    %v478 = vpop.permute.xlu0 %477
    %479 = vrot.lane.b32.xlu0 %v469, 127
    %v480 = vpop.permute.xlu0 %479
    %481 = vrot.lane.b32.xlu0 %v470, 127
    %v482 = vpop.permute.xlu0 %481
    %v483 = vsel %vm314, %v476, %v478
    %v484 = vsel %vm314, %v480, %v482
    %v487 = vadd.f32 %v270, %v483
    %v488 = vadd.f32 %v271, %v484
    %v489 = vld [vmem:[%s1 + $0x2] sm:$0x1]
    %v490 = vlaneseq
    %v491 = vshrl.u32 %v490, 7
    %v492 = vsub.s32 0, %v491
    %v493 = vrot.slane %v489, %v492
    %v494 = vld [vmem:[%s218 + $0x2] sm:$0x1]
    %v495 = vlaneseq
    %v496 = vshrl.u32 %v495, 7
    %v497 = vsub.s32 0, %v496
    %v498 = vrot.slane %v494, %v497
    %v499 = vld [vmem:[%s224 + $0x2] sm:$0x1]
    %v500 = vlaneseq
    %v501 = vshrl.u32 %v500, 7
    %v502 = vsub.s32 0, %v501
    %v503 = vrot.slane %v499, %v502
    %v504 = vld [vmem:[%s230 + $0x2] sm:$0x1]
    %v505 = vlaneseq
    %v506 = vshrl.u32 %v505, 7
    %v507 = vsub.s32 0, %v506
    %v508 = vrot.slane %v504, %v507
    %510 = vrot.lane.b32.xlu0 %v493, 2
    %v511 = vpop.permute.xlu0 %510
    %v513 = vmul.f32 %v236, %v511
    %v514 = vmul.f32 %v292, %v511
    %v515 = vmul.f32 %v237, %v511
    %v516 = vmul.f32 %v293, %v511
    %521 = vrot.lane.b32.xlu0 %v513, 126
    %v522 = vpop.permute.xlu0 %521
    %523 = vrot.lane.b32.xlu0 %v514, 126
    %v524 = vpop.permute.xlu0 %523
    %525 = vrot.lane.b32.xlu0 %v515, 126
    %v526 = vpop.permute.xlu0 %525
    %527 = vrot.lane.b32.xlu0 %v516, 126
    %v528 = vpop.permute.xlu0 %527
    %vm529 = vcmask 1031168
    %v530 = vsel %vm529, %v522, %v524
    %v531 = vsel %vm529, %v526, %v528
    %v534 = vadd.f32 %v319, %v530
    %v535 = vadd.f32 %v320, %v531
    %537 = vrot.lane.b32.xlu0 %v498, 2
    %v538 = vpop.permute.xlu0 %537
    %v540 = vmul.f32 %v236, %v538
    %v541 = vmul.f32 %v292, %v538
    %v542 = vmul.f32 %v237, %v538
    %v543 = vmul.f32 %v293, %v538
    %548 = vrot.lane.b32.xlu0 %v540, 126
    %v549 = vpop.permute.xlu0 %548
    %550 = vrot.lane.b32.xlu0 %v541, 126
    %v551 = vpop.permute.xlu0 %550
    %552 = vrot.lane.b32.xlu0 %v542, 126
    %v553 = vpop.permute.xlu0 %552
    %554 = vrot.lane.b32.xlu0 %v543, 126
    %v555 = vpop.permute.xlu0 %554
    %v556 = vsel %vm529, %v549, %v551
    %v557 = vsel %vm529, %v553, %v555
    %v560 = vadd.f32 %v345, %v556
    %v561 = vadd.f32 %v346, %v557
    %563 = vrot.lane.b32.xlu0 %v503, 2
    %v564 = vpop.permute.xlu0 %563
    %v566 = vmul.f32 %v236, %v564
    %v567 = vmul.f32 %v292, %v564
    %v568 = vmul.f32 %v237, %v564
    %v569 = vmul.f32 %v293, %v564
    %574 = vrot.lane.b32.xlu0 %v566, 126
    %v575 = vpop.permute.xlu0 %574
    %576 = vrot.lane.b32.xlu0 %v567, 126
    %v577 = vpop.permute.xlu0 %576
    %578 = vrot.lane.b32.xlu0 %v568, 126
    %v579 = vpop.permute.xlu0 %578
    %580 = vrot.lane.b32.xlu0 %v569, 126
    %v581 = vpop.permute.xlu0 %580
    %v582 = vsel %vm529, %v575, %v577
    %v583 = vsel %vm529, %v579, %v581
    %v586 = vadd.f32 %v371, %v582
    %v587 = vadd.f32 %v372, %v583
    %589 = vrot.lane.b32.xlu0 %v508, 2
    %v590 = vpop.permute.xlu0 %589
    %v592 = vmul.f32 %v236, %v590
    %v593 = vmul.f32 %v292, %v590
    %v594 = vmul.f32 %v237, %v590
    %v595 = vmul.f32 %v293, %v590
    %600 = vrot.lane.b32.xlu0 %v592, 126
    %v601 = vpop.permute.xlu0 %600
    %602 = vrot.lane.b32.xlu0 %v593, 126
    %v603 = vpop.permute.xlu0 %602
    %604 = vrot.lane.b32.xlu0 %v594, 126
    %v605 = vpop.permute.xlu0 %604
    %606 = vrot.lane.b32.xlu0 %v595, 126
    %v607 = vpop.permute.xlu0 %606
    %v608 = vsel %vm529, %v601, %v603
    %v609 = vsel %vm529, %v605, %v607
    %v612 = vadd.f32 %v397, %v608
    %v613 = vadd.f32 %v398, %v609
    %v614 = vmul.f32 %v254, %v511
    %v615 = vmul.f32 %v399, %v511
    %v616 = vmul.f32 %v255, %v511
    %v617 = vmul.f32 %v400, %v511
    %622 = vrot.lane.b32.xlu0 %v614, 126
    %v623 = vpop.permute.xlu0 %622
    %624 = vrot.lane.b32.xlu0 %v615, 126
    %v625 = vpop.permute.xlu0 %624
    %626 = vrot.lane.b32.xlu0 %v616, 126
    %v627 = vpop.permute.xlu0 %626
    %628 = vrot.lane.b32.xlu0 %v617, 126
    %v629 = vpop.permute.xlu0 %628
    %v630 = vsel %vm529, %v623, %v625
    %v631 = vsel %vm529, %v627, %v629
    %v634 = vadd.f32 %v421, %v630
    %v635 = vadd.f32 %v422, %v631
    %v636 = vmul.f32 %v254, %v538
    %v637 = vmul.f32 %v399, %v538
    %v638 = vmul.f32 %v255, %v538
    %v639 = vmul.f32 %v400, %v538
    %644 = vrot.lane.b32.xlu0 %v636, 126
    %v645 = vpop.permute.xlu0 %644
    %646 = vrot.lane.b32.xlu0 %v637, 126
    %v647 = vpop.permute.xlu0 %646
    %648 = vrot.lane.b32.xlu0 %v638, 126
    %v649 = vpop.permute.xlu0 %648
    %650 = vrot.lane.b32.xlu0 %v639, 126
    %v651 = vpop.permute.xlu0 %650
    %v652 = vsel %vm529, %v645, %v647
    %v653 = vsel %vm529, %v649, %v651
    %v656 = vadd.f32 %v443, %v652
    %v657 = vadd.f32 %v444, %v653
    %v658 = vmul.f32 %v254, %v564
    %v659 = vmul.f32 %v399, %v564
    %v660 = vmul.f32 %v255, %v564
    %v661 = vmul.f32 %v400, %v564
    %666 = vrot.lane.b32.xlu0 %v658, 126
    %v667 = vpop.permute.xlu0 %666
    %668 = vrot.lane.b32.xlu0 %v659, 126
    %v669 = vpop.permute.xlu0 %668
    %670 = vrot.lane.b32.xlu0 %v660, 126
    %v671 = vpop.permute.xlu0 %670
    %672 = vrot.lane.b32.xlu0 %v661, 126
    %v673 = vpop.permute.xlu0 %672
    %v674 = vsel %vm529, %v667, %v669
    %v675 = vsel %vm529, %v671, %v673
    %v678 = vadd.f32 %v465, %v674
    %v679 = vadd.f32 %v466, %v675
    %v680 = vmul.f32 %v254, %v590
    %v681 = vmul.f32 %v399, %v590
    %v682 = vmul.f32 %v255, %v590
    %v683 = vmul.f32 %v400, %v590
    %688 = vrot.lane.b32.xlu0 %v680, 126
    %v689 = vpop.permute.xlu0 %688
    %690 = vrot.lane.b32.xlu0 %v681, 126
    %v691 = vpop.permute.xlu0 %690
    %692 = vrot.lane.b32.xlu0 %v682, 126
    %v693 = vpop.permute.xlu0 %692
    %694 = vrot.lane.b32.xlu0 %v683, 126
    %v695 = vpop.permute.xlu0 %694
    %v696 = vsel %vm529, %v689, %v691
    %v697 = vsel %vm529, %v693, %v695
    %v700 = vadd.f32 %v487, %v696
    %v701 = vadd.f32 %v488, %v697
    %v702 = vld [vmem:[%s1 + $0x3] sm:$0x1]
    %v703 = vlaneseq
    %v704 = vshrl.u32 %v703, 7
    %v705 = vsub.s32 0, %v704
    %v706 = vrot.slane %v702, %v705
    %v707 = vld [vmem:[%s218 + $0x3] sm:$0x1]
    %v708 = vlaneseq
    %v709 = vshrl.u32 %v708, 7
    %v710 = vsub.s32 0, %v709
    %v711 = vrot.slane %v707, %v710
    %v712 = vld [vmem:[%s224 + $0x3] sm:$0x1]
    %v713 = vlaneseq
    %v714 = vshrl.u32 %v713, 7
    %v715 = vsub.s32 0, %v714
    %v716 = vrot.slane %v712, %v715
    %v717 = vld [vmem:[%s230 + $0x3] sm:$0x1]
    %v718 = vlaneseq
    %v719 = vshrl.u32 %v718, 7
    %v720 = vsub.s32 0, %v719
    %v721 = vrot.slane %v717, %v720
    %723 = vrot.lane.b32.xlu0 %v706, 3
    %v724 = vpop.permute.xlu0 %723
    %v726 = vmul.f32 %v236, %v724
    %v727 = vmul.f32 %v292, %v724
    %v728 = vmul.f32 %v237, %v724
    %v729 = vmul.f32 %v293, %v724
    %734 = vrot.lane.b32.xlu0 %v726, 125
    %v735 = vpop.permute.xlu0 %734
    %736 = vrot.lane.b32.xlu0 %v727, 125
    %v737 = vpop.permute.xlu0 %736
    %738 = vrot.lane.b32.xlu0 %v728, 125
    %v739 = vpop.permute.xlu0 %738
    %740 = vrot.lane.b32.xlu0 %v729, 125
    %v741 = vpop.permute.xlu0 %740
    %vm742 = vcmask 1022976
    %v743 = vsel %vm742, %v735, %v737
    %v744 = vsel %vm742, %v739, %v741
    %v747 = vadd.f32 %v534, %v743
    %v748 = vadd.f32 %v535, %v744
    %750 = vrot.lane.b32.xlu0 %v711, 3
    %v751 = vpop.permute.xlu0 %750
    %v753 = vmul.f32 %v236, %v751
    %v754 = vmul.f32 %v292, %v751
    %v755 = vmul.f32 %v237, %v751
    %v756 = vmul.f32 %v293, %v751
    %761 = vrot.lane.b32.xlu0 %v753, 125
    %v762 = vpop.permute.xlu0 %761
    %763 = vrot.lane.b32.xlu0 %v754, 125
    %v764 = vpop.permute.xlu0 %763
    %765 = vrot.lane.b32.xlu0 %v755, 125
    %v766 = vpop.permute.xlu0 %765
    %767 = vrot.lane.b32.xlu0 %v756, 125
    %v768 = vpop.permute.xlu0 %767
    %v769 = vsel %vm742, %v762, %v764
    %v770 = vsel %vm742, %v766, %v768
    %v773 = vadd.f32 %v560, %v769
    %v774 = vadd.f32 %v561, %v770
    %776 = vrot.lane.b32.xlu0 %v716, 3
    %v777 = vpop.permute.xlu0 %776
    %v779 = vmul.f32 %v236, %v777
    %v780 = vmul.f32 %v292, %v777
    %v781 = vmul.f32 %v237, %v777
    %v782 = vmul.f32 %v293, %v777
    %787 = vrot.lane.b32.xlu0 %v779, 125
    %v788 = vpop.permute.xlu0 %787
    %789 = vrot.lane.b32.xlu0 %v780, 125
    %v790 = vpop.permute.xlu0 %789
    %791 = vrot.lane.b32.xlu0 %v781, 125
    %v792 = vpop.permute.xlu0 %791
    %793 = vrot.lane.b32.xlu0 %v782, 125
    %v794 = vpop.permute.xlu0 %793
    %v795 = vsel %vm742, %v788, %v790
    %v796 = vsel %vm742, %v792, %v794
    %v799 = vadd.f32 %v586, %v795
    %v800 = vadd.f32 %v587, %v796
    %802 = vrot.lane.b32.xlu0 %v721, 3
    %v803 = vpop.permute.xlu0 %802
    %v805 = vmul.f32 %v236, %v803
    %v806 = vmul.f32 %v292, %v803
    %v807 = vmul.f32 %v237, %v803
    %v808 = vmul.f32 %v293, %v803
    %813 = vrot.lane.b32.xlu0 %v805, 125
    %v814 = vpop.permute.xlu0 %813
    %815 = vrot.lane.b32.xlu0 %v806, 125
    %v816 = vpop.permute.xlu0 %815
    %817 = vrot.lane.b32.xlu0 %v807, 125
    %v818 = vpop.permute.xlu0 %817
    %819 = vrot.lane.b32.xlu0 %v808, 125
    %v820 = vpop.permute.xlu0 %819
    %v821 = vsel %vm742, %v814, %v816
    %v822 = vsel %vm742, %v818, %v820
    %v825 = vadd.f32 %v612, %v821
    %v826 = vadd.f32 %v613, %v822
    %v827 = vmul.f32 %v254, %v724
    %v828 = vmul.f32 %v399, %v724
    %v829 = vmul.f32 %v255, %v724
    %v830 = vmul.f32 %v400, %v724
    %835 = vrot.lane.b32.xlu0 %v827, 125
    %v836 = vpop.permute.xlu0 %835
    %837 = vrot.lane.b32.xlu0 %v828, 125
    %v838 = vpop.permute.xlu0 %837
    %839 = vrot.lane.b32.xlu0 %v829, 125
    %v840 = vpop.permute.xlu0 %839
    %841 = vrot.lane.b32.xlu0 %v830, 125
    %v842 = vpop.permute.xlu0 %841
    %v843 = vsel %vm742, %v836, %v838
    %v844 = vsel %vm742, %v840, %v842
    %v847 = vadd.f32 %v634, %v843
    %v848 = vadd.f32 %v635, %v844
    %v849 = vmul.f32 %v254, %v751
    %v850 = vmul.f32 %v399, %v751
    %v851 = vmul.f32 %v255, %v751
    %v852 = vmul.f32 %v400, %v751
    %857 = vrot.lane.b32.xlu0 %v849, 125
    %v858 = vpop.permute.xlu0 %857
    %859 = vrot.lane.b32.xlu0 %v850, 125
    %v860 = vpop.permute.xlu0 %859
    %861 = vrot.lane.b32.xlu0 %v851, 125
    %v862 = vpop.permute.xlu0 %861
    %863 = vrot.lane.b32.xlu0 %v852, 125
    %v864 = vpop.permute.xlu0 %863
    %v865 = vsel %vm742, %v858, %v860
    %v866 = vsel %vm742, %v862, %v864
    %v869 = vadd.f32 %v656, %v865
    %v870 = vadd.f32 %v657, %v866
    %v871 = vmul.f32 %v254, %v777
    %v872 = vmul.f32 %v399, %v777
    %v873 = vmul.f32 %v255, %v777
    %v874 = vmul.f32 %v400, %v777
    %879 = vrot.lane.b32.xlu0 %v871, 125
    %v880 = vpop.permute.xlu0 %879
    %881 = vrot.lane.b32.xlu0 %v872, 125
    %v882 = vpop.permute.xlu0 %881
    %883 = vrot.lane.b32.xlu0 %v873, 125
    %v884 = vpop.permute.xlu0 %883
    %885 = vrot.lane.b32.xlu0 %v874, 125
    %v886 = vpop.permute.xlu0 %885
    %v887 = vsel %vm742, %v880, %v882
    %v888 = vsel %vm742, %v884, %v886
    %v891 = vadd.f32 %v678, %v887
    %v892 = vadd.f32 %v679, %v888
    %v893 = vmul.f32 %v254, %v803
    %v894 = vmul.f32 %v399, %v803
    %v895 = vmul.f32 %v255, %v803
    %v896 = vmul.f32 %v400, %v803
    %901 = vrot.lane.b32.xlu0 %v893, 125
    %v902 = vpop.permute.xlu0 %901
    %903 = vrot.lane.b32.xlu0 %v894, 125
    %v904 = vpop.permute.xlu0 %903
    %905 = vrot.lane.b32.xlu0 %v895, 125
    %v906 = vpop.permute.xlu0 %905
    %907 = vrot.lane.b32.xlu0 %v896, 125
    %v908 = vpop.permute.xlu0 %907
    %v909 = vsel %vm742, %v902, %v904
    %v910 = vsel %vm742, %v906, %v908
    %v913 = vadd.f32 %v700, %v909
    %v914 = vadd.f32 %v701, %v910
    %v915 = vld [vmem:[%s1 + $0x4] sm:$0x1]
    %v916 = vlaneseq
    %v917 = vshrl.u32 %v916, 7
    %v918 = vsub.s32 0, %v917
    %v919 = vrot.slane %v915, %v918
    %v920 = vld [vmem:[%s218 + $0x4] sm:$0x1]
    %v921 = vlaneseq
    %v922 = vshrl.u32 %v921, 7
    %v923 = vsub.s32 0, %v922
    %v924 = vrot.slane %v920, %v923
    %v925 = vld [vmem:[%s224 + $0x4] sm:$0x1]
    %v926 = vlaneseq
    %v927 = vshrl.u32 %v926, 7
    %v928 = vsub.s32 0, %v927
    %v929 = vrot.slane %v925, %v928
    %v930 = vld [vmem:[%s230 + $0x4] sm:$0x1]
    %v931 = vlaneseq
    %v932 = vshrl.u32 %v931, 7
    %v933 = vsub.s32 0, %v932
    %v934 = vrot.slane %v930, %v933
    %936 = vrot.lane.b32.xlu0 %v919, 4
    %v937 = vpop.permute.xlu0 %936
    %v939 = vmul.f32 %v236, %v937
    %v940 = vmul.f32 %v292, %v937
    %v941 = vmul.f32 %v237, %v937
    %v942 = vmul.f32 %v293, %v937
    %947 = vrot.lane.b32.xlu0 %v939, 124
    %v948 = vpop.permute.xlu0 %947
    %949 = vrot.lane.b32.xlu0 %v940, 124
    %v950 = vpop.permute.xlu0 %949
    %951 = vrot.lane.b32.xlu0 %v941, 124
    %v952 = vpop.permute.xlu0 %951
    %953 = vrot.lane.b32.xlu0 %v942, 124
    %v954 = vpop.permute.xlu0 %953
    %vm955 = vcmask 1014784
    %v956 = vsel %vm955, %v948, %v950
    %v957 = vsel %vm955, %v952, %v954
    %v960 = vadd.f32 %v747, %v956
    %v961 = vadd.f32 %v748, %v957
    %963 = vrot.lane.b32.xlu0 %v924, 4
    %v964 = vpop.permute.xlu0 %963
    %v966 = vmul.f32 %v236, %v964
    %v967 = vmul.f32 %v292, %v964
    %v968 = vmul.f32 %v237, %v964
    %v969 = vmul.f32 %v293, %v964
    %974 = vrot.lane.b32.xlu0 %v966, 124
    %v975 = vpop.permute.xlu0 %974
    %976 = vrot.lane.b32.xlu0 %v967, 124
    %v977 = vpop.permute.xlu0 %976
    %978 = vrot.lane.b32.xlu0 %v968, 124
    %v979 = vpop.permute.xlu0 %978
    %980 = vrot.lane.b32.xlu0 %v969, 124
    %v981 = vpop.permute.xlu0 %980
    %v982 = vsel %vm955, %v975, %v977
    %v983 = vsel %vm955, %v979, %v981
    %v986 = vadd.f32 %v773, %v982
    %v987 = vadd.f32 %v774, %v983
    %989 = vrot.lane.b32.xlu0 %v929, 4
    %v990 = vpop.permute.xlu0 %989
    %v992 = vmul.f32 %v236, %v990
    %v993 = vmul.f32 %v292, %v990
    %v994 = vmul.f32 %v237, %v990
    %v995 = vmul.f32 %v293, %v990
    %1000 = vrot.lane.b32.xlu0 %v992, 124
    %v1001 = vpop.permute.xlu0 %1000
    %1002 = vrot.lane.b32.xlu0 %v993, 124
    %v1003 = vpop.permute.xlu0 %1002
    %1004 = vrot.lane.b32.xlu0 %v994, 124
    %v1005 = vpop.permute.xlu0 %1004
    %1006 = vrot.lane.b32.xlu0 %v995, 124
    %v1007 = vpop.permute.xlu0 %1006
    %v1008 = vsel %vm955, %v1001, %v1003
    %v1009 = vsel %vm955, %v1005, %v1007
    %v1012 = vadd.f32 %v799, %v1008
    %v1013 = vadd.f32 %v800, %v1009
    %1015 = vrot.lane.b32.xlu0 %v934, 4
    %v1016 = vpop.permute.xlu0 %1015
    %v1018 = vmul.f32 %v236, %v1016
    %v1019 = vmul.f32 %v292, %v1016
    %v1020 = vmul.f32 %v237, %v1016
    %v1021 = vmul.f32 %v293, %v1016
    %1026 = vrot.lane.b32.xlu0 %v1018, 124
    %v1027 = vpop.permute.xlu0 %1026
    %1028 = vrot.lane.b32.xlu0 %v1019, 124
    %v1029 = vpop.permute.xlu0 %1028
    %1030 = vrot.lane.b32.xlu0 %v1020, 124
    %v1031 = vpop.permute.xlu0 %1030
    %1032 = vrot.lane.b32.xlu0 %v1021, 124
    %v1033 = vpop.permute.xlu0 %1032
    %v1034 = vsel %vm955, %v1027, %v1029
    %v1035 = vsel %vm955, %v1031, %v1033
    %v1038 = vadd.f32 %v825, %v1034
    %v1039 = vadd.f32 %v826, %v1035
    %v1040 = vmul.f32 %v254, %v937
    %v1041 = vmul.f32 %v399, %v937
    %v1042 = vmul.f32 %v255, %v937
    %v1043 = vmul.f32 %v400, %v937
    %1048 = vrot.lane.b32.xlu0 %v1040, 124
    %v1049 = vpop.permute.xlu0 %1048
    %1050 = vrot.lane.b32.xlu0 %v1041, 124
    %v1051 = vpop.permute.xlu0 %1050
    %1052 = vrot.lane.b32.xlu0 %v1042, 124
    %v1053 = vpop.permute.xlu0 %1052
    %1054 = vrot.lane.b32.xlu0 %v1043, 124
    %v1055 = vpop.permute.xlu0 %1054
    %v1056 = vsel %vm955, %v1049, %v1051
    %v1057 = vsel %vm955, %v1053, %v1055
    %v1060 = vadd.f32 %v847, %v1056
    %v1061 = vadd.f32 %v848, %v1057
    %v1062 = vmul.f32 %v254, %v964
    %v1063 = vmul.f32 %v399, %v964
    %v1064 = vmul.f32 %v255, %v964
    %v1065 = vmul.f32 %v400, %v964
    %1070 = vrot.lane.b32.xlu0 %v1062, 124
    %v1071 = vpop.permute.xlu0 %1070
    %1072 = vrot.lane.b32.xlu0 %v1063, 124
    %v1073 = vpop.permute.xlu0 %1072
    %1074 = vrot.lane.b32.xlu0 %v1064, 124
    %v1075 = vpop.permute.xlu0 %1074
    %1076 = vrot.lane.b32.xlu0 %v1065, 124
    %v1077 = vpop.permute.xlu0 %1076
    %v1078 = vsel %vm955, %v1071, %v1073
    %v1079 = vsel %vm955, %v1075, %v1077
    %v1082 = vadd.f32 %v869, %v1078
    %v1083 = vadd.f32 %v870, %v1079
    %v1084 = vmul.f32 %v254, %v990
    %v1085 = vmul.f32 %v399, %v990
    %v1086 = vmul.f32 %v255, %v990
    %v1087 = vmul.f32 %v400, %v990
    %1092 = vrot.lane.b32.xlu0 %v1084, 124
    %v1093 = vpop.permute.xlu0 %1092
    %1094 = vrot.lane.b32.xlu0 %v1085, 124
    %v1095 = vpop.permute.xlu0 %1094
    %1096 = vrot.lane.b32.xlu0 %v1086, 124
    %v1097 = vpop.permute.xlu0 %1096
    %1098 = vrot.lane.b32.xlu0 %v1087, 124
    %v1099 = vpop.permute.xlu0 %1098
    %v1100 = vsel %vm955, %v1093, %v1095
    %v1101 = vsel %vm955, %v1097, %v1099
    %v1104 = vadd.f32 %v891, %v1100
    %v1105 = vadd.f32 %v892, %v1101
    %v1106 = vmul.f32 %v254, %v1016
    %v1107 = vmul.f32 %v399, %v1016
    %v1108 = vmul.f32 %v255, %v1016
    %v1109 = vmul.f32 %v400, %v1016
    %1114 = vrot.lane.b32.xlu0 %v1106, 124
    %v1115 = vpop.permute.xlu0 %1114
    %1116 = vrot.lane.b32.xlu0 %v1107, 124
    %v1117 = vpop.permute.xlu0 %1116
    %1118 = vrot.lane.b32.xlu0 %v1108, 124
    %v1119 = vpop.permute.xlu0 %1118
    %1120 = vrot.lane.b32.xlu0 %v1109, 124
    %v1121 = vpop.permute.xlu0 %1120
    %v1122 = vsel %vm955, %v1115, %v1117
    %v1123 = vsel %vm955, %v1119, %v1121
    %v1126 = vadd.f32 %v913, %v1122
    %v1127 = vadd.f32 %v914, %v1123
    %s1128 = scalar_lea.vmem %s1, 8
    %v1129 = vld [vmem:[%s1128] sm:$0x1]
    %v1130 = vlaneseq
    %v1131 = vshrl.u32 %v1130, 7
    %v1132 = vsub.s32 0, %v1131
    %v1133 = vrot.slane %v1129, %v1132
    %s1134 = scalar_lea.vmem %s1, 48
    %v1135 = vld [vmem:[%s1134] sm:$0x1]
    %v1136 = vlaneseq
    %v1137 = vshrl.u32 %v1136, 7
    %v1138 = vsub.s32 0, %v1137
    %v1139 = vrot.slane %v1135, %v1138
    %s1140 = scalar_lea.vmem %s1, 88
    %v1141 = vld [vmem:[%s1140] sm:$0x1]
    %v1142 = vlaneseq
    %v1143 = vshrl.u32 %v1142, 7
    %v1144 = vsub.s32 0, %v1143
    %v1145 = vrot.slane %v1141, %v1144
    %s1146 = scalar_lea.vmem %s1, 128
    %v1147 = vld [vmem:[%s1146] sm:$0x1]
    %v1148 = vlaneseq
    %v1149 = vshrl.u32 %v1148, 7
    %v1150 = vsub.s32 0, %v1149
    %v1151 = vrot.slane %v1147, %v1150
    %v1152 = vld [vmem:[#allocation2] sm:$0xfe]
    %v1153 = vld [vmem:[#allocation2 + $0x20] sm:$0x1]
    %v1154 = vmul.f32 %v1152, %v1133
    %v1155 = vmul.f32 %v237, %v1133
    %v1156 = vmul.f32 %v1153, %v1133
    %vm1160 = vcmask 1046528
    %v1161 = vrot.slane %v1154, 1
    %v1162 = vrot.slane %v1155, 1
    %v1163 = vsel %vm1160, %v1161, %v1162
    %v1164 = vrot.slane %v1156, 1
    %v1165 = vsel %vm1160, %v1162, %v1164
    %v1168 = vadd.f32 %v960, %v1163
    %v1169 = vadd.f32 %v961, %v1165
    %v1170 = vmul.f32 %v1152, %v1139
    %v1171 = vmul.f32 %v237, %v1139
    %v1172 = vmul.f32 %v1153, %v1139
    %v1176 = vrot.slane %v1170, 1
    %v1177 = vrot.slane %v1171, 1
    %v1178 = vsel %vm1160, %v1176, %v1177
    %v1179 = vrot.slane %v1172, 1
    %v1180 = vsel %vm1160, %v1177, %v1179
    %v1183 = vadd.f32 %v986, %v1178
    %v1184 = vadd.f32 %v987, %v1180
    %v1185 = vmul.f32 %v1152, %v1145
    %v1186 = vmul.f32 %v237, %v1145
    %v1187 = vmul.f32 %v1153, %v1145
    %v1191 = vrot.slane %v1185, 1
    %v1192 = vrot.slane %v1186, 1
    %v1193 = vsel %vm1160, %v1191, %v1192
    %v1194 = vrot.slane %v1187, 1
    %v1195 = vsel %vm1160, %v1192, %v1194
    %v1198 = vadd.f32 %v1012, %v1193
    %v1199 = vadd.f32 %v1013, %v1195
    %v1200 = vmul.f32 %v1152, %v1151
    %v1201 = vmul.f32 %v237, %v1151
    %v1202 = vmul.f32 %v1153, %v1151
    %v1206 = vrot.slane %v1200, 1
    %v1207 = vrot.slane %v1201, 1
    %v1208 = vsel %vm1160, %v1206, %v1207
    %v1209 = vrot.slane %v1202, 1
    %v1210 = vsel %vm1160, %v1207, %v1209
    %v1213 = vadd.f32 %v1038, %v1208
    %v1214 = vadd.f32 %v1039, %v1210
    %v1215 = vld [vmem:[%s149] sm:$0xfe]
    %v1216 = vld [vmem:[%s149 + $0x20] sm:$0x1]
    %v1217 = vmul.f32 %v1215, %v1133
    %v1218 = vmul.f32 %v255, %v1133
    %v1219 = vmul.f32 %v1216, %v1133
    %v1223 = vrot.slane %v1217, 1
    %v1224 = vrot.slane %v1218, 1
    %v1225 = vsel %vm1160, %v1223, %v1224
    %v1226 = vrot.slane %v1219, 1
    %v1227 = vsel %vm1160, %v1224, %v1226
    %v1230 = vadd.f32 %v1060, %v1225
    %v1231 = vadd.f32 %v1061, %v1227
    %v1232 = vmul.f32 %v1215, %v1139
    %v1233 = vmul.f32 %v255, %v1139
    %v1234 = vmul.f32 %v1216, %v1139
    %v1238 = vrot.slane %v1232, 1
    %v1239 = vrot.slane %v1233, 1
    %v1240 = vsel %vm1160, %v1238, %v1239
    %v1241 = vrot.slane %v1234, 1
    %v1242 = vsel %vm1160, %v1239, %v1241
    %v1245 = vadd.f32 %v1082, %v1240
    %v1246 = vadd.f32 %v1083, %v1242
    %v1247 = vmul.f32 %v1215, %v1145
    %v1248 = vmul.f32 %v255, %v1145
    %v1249 = vmul.f32 %v1216, %v1145
    %v1253 = vrot.slane %v1247, 1
    %v1254 = vrot.slane %v1248, 1
    %v1255 = vsel %vm1160, %v1253, %v1254
    %v1256 = vrot.slane %v1249, 1
    %v1257 = vsel %vm1160, %v1254, %v1256
    %v1260 = vadd.f32 %v1104, %v1255
    %v1261 = vadd.f32 %v1105, %v1257
    %v1262 = vmul.f32 %v1215, %v1151
    %v1263 = vmul.f32 %v255, %v1151
    %v1264 = vmul.f32 %v1216, %v1151
    %v1268 = vrot.slane %v1262, 1
    %v1269 = vrot.slane %v1263, 1
    %v1270 = vsel %vm1160, %v1268, %v1269
    %v1271 = vrot.slane %v1264, 1
    %v1272 = vsel %vm1160, %v1269, %v1271
    %v1275 = vadd.f32 %v1126, %v1270
    %v1276 = vadd.f32 %v1127, %v1272
    %v1277 = vld [vmem:[%s1128 + $0x1] sm:$0x1]
    %v1278 = vlaneseq
    %v1279 = vshrl.u32 %v1278, 7
    %v1280 = vsub.s32 0, %v1279
    %v1281 = vrot.slane %v1277, %v1280
    %v1282 = vld [vmem:[%s1134 + $0x1] sm:$0x1]
    %v1283 = vlaneseq
    %v1284 = vshrl.u32 %v1283, 7
    %v1285 = vsub.s32 0, %v1284
    %v1286 = vrot.slane %v1282, %v1285
    %v1287 = vld [vmem:[%s1140 + $0x1] sm:$0x1]
    %v1288 = vlaneseq
    %v1289 = vshrl.u32 %v1288, 7
    %v1290 = vsub.s32 0, %v1289
    %v1291 = vrot.slane %v1287, %v1290
    %v1292 = vld [vmem:[%s1146 + $0x1] sm:$0x1]
    %v1293 = vlaneseq
    %v1294 = vshrl.u32 %v1293, 7
    %v1295 = vsub.s32 0, %v1294
    %v1296 = vrot.slane %v1292, %v1295
    %v1297 = vld [vmem:[#allocation2 + $0x8] sm:$0xfe]
    %v1298 = vld [vmem:[#allocation2 + $0x28] sm:$0x1]
    %1300 = vrot.lane.b32.xlu0 %v1281, 1
    %v1301 = vpop.permute.xlu0 %1300
    %v1303 = vmul.f32 %v1152, %v1301
    %v1304 = vmul.f32 %v1297, %v1301
    %v1305 = vmul.f32 %v237, %v1301
    %v1306 = vmul.f32 %v293, %v1301
    %v1307 = vmul.f32 %v1153, %v1301
    %v1308 = vmul.f32 %v1298, %v1301
    %v1315 = vrot.slane %v1303, 1
    %v1316 = vrot.slane %v1305, 1
    %v1317 = vsel %vm1160, %v1315, %v1316
    %v1318 = vrot.slane %v1304, 1
    %v1319 = vrot.slane %v1306, 1
    %v1320 = vsel %vm1160, %v1318, %v1319
    %v1321 = vrot.slane %v1307, 1
    %v1322 = vsel %vm1160, %v1316, %v1321
    %v1323 = vrot.slane %v1308, 1
    %v1324 = vsel %vm1160, %v1319, %v1323
    %1325 = vrot.lane.b32.xlu0 %v1317, 127
    %v1326 = vpop.permute.xlu0 %1325
    %1327 = vrot.lane.b32.xlu0 %v1320, 127
    %v1328 = vpop.permute.xlu0 %1327
    %1329 = vrot.lane.b32.xlu0 %v1322, 127
    %v1330 = vpop.permute.xlu0 %1329
    %1331 = vrot.lane.b32.xlu0 %v1324, 127
    %v1332 = vpop.permute.xlu0 %1331
    %v1333 = vsel %vm314, %v1326, %v1328
    %v1334 = vsel %vm314, %v1330, %v1332
    %v1337 = vadd.f32 %v1168, %v1333
    %v1338 = vadd.f32 %v1169, %v1334
    %1340 = vrot.lane.b32.xlu0 %v1286, 1
    %v1341 = vpop.permute.xlu0 %1340
    %v1343 = vmul.f32 %v1152, %v1341
    %v1344 = vmul.f32 %v1297, %v1341
    %v1345 = vmul.f32 %v237, %v1341
    %v1346 = vmul.f32 %v293, %v1341
    %v1347 = vmul.f32 %v1153, %v1341
    %v1348 = vmul.f32 %v1298, %v1341
    %v1355 = vrot.slane %v1343, 1
    %v1356 = vrot.slane %v1345, 1
    %v1357 = vsel %vm1160, %v1355, %v1356
    %v1358 = vrot.slane %v1344, 1
    %v1359 = vrot.slane %v1346, 1
    %v1360 = vsel %vm1160, %v1358, %v1359
    %v1361 = vrot.slane %v1347, 1
    %v1362 = vsel %vm1160, %v1356, %v1361
    %v1363 = vrot.slane %v1348, 1
    %v1364 = vsel %vm1160, %v1359, %v1363
    %1365 = vrot.lane.b32.xlu0 %v1357, 127
    %v1366 = vpop.permute.xlu0 %1365
    %1367 = vrot.lane.b32.xlu0 %v1360, 127
    %v1368 = vpop.permute.xlu0 %1367
    %1369 = vrot.lane.b32.xlu0 %v1362, 127
    %v1370 = vpop.permute.xlu0 %1369
    %1371 = vrot.lane.b32.xlu0 %v1364, 127
    %v1372 = vpop.permute.xlu0 %1371
    %v1373 = vsel %vm314, %v1366, %v1368
    %v1374 = vsel %vm314, %v1370, %v1372
    %v1377 = vadd.f32 %v1183, %v1373
    %v1378 = vadd.f32 %v1184, %v1374
    %1380 = vrot.lane.b32.xlu0 %v1291, 1
    %v1381 = vpop.permute.xlu0 %1380
    %v1383 = vmul.f32 %v1152, %v1381
    %v1384 = vmul.f32 %v1297, %v1381
    %v1385 = vmul.f32 %v237, %v1381
    %v1386 = vmul.f32 %v293, %v1381
    %v1387 = vmul.f32 %v1153, %v1381
    %v1388 = vmul.f32 %v1298, %v1381
    %v1395 = vrot.slane %v1383, 1
    %v1396 = vrot.slane %v1385, 1
    %v1397 = vsel %vm1160, %v1395, %v1396
    %v1398 = vrot.slane %v1384, 1
    %v1399 = vrot.slane %v1386, 1
    %v1400 = vsel %vm1160, %v1398, %v1399
    %v1401 = vrot.slane %v1387, 1
    %v1402 = vsel %vm1160, %v1396, %v1401
    %v1403 = vrot.slane %v1388, 1
    %v1404 = vsel %vm1160, %v1399, %v1403
    %1405 = vrot.lane.b32.xlu0 %v1397, 127
    %v1406 = vpop.permute.xlu0 %1405
    %1407 = vrot.lane.b32.xlu0 %v1400, 127
    %v1408 = vpop.permute.xlu0 %1407
    %1409 = vrot.lane.b32.xlu0 %v1402, 127
    %v1410 = vpop.permute.xlu0 %1409
    %1411 = vrot.lane.b32.xlu0 %v1404, 127
    %v1412 = vpop.permute.xlu0 %1411
    %v1413 = vsel %vm314, %v1406, %v1408
    %v1414 = vsel %vm314, %v1410, %v1412
    %v1417 = vadd.f32 %v1198, %v1413
    %v1418 = vadd.f32 %v1199, %v1414
    %1420 = vrot.lane.b32.xlu0 %v1296, 1
    %v1421 = vpop.permute.xlu0 %1420
    %v1423 = vmul.f32 %v1152, %v1421
    %v1424 = vmul.f32 %v1297, %v1421
    %v1425 = vmul.f32 %v237, %v1421
    %v1426 = vmul.f32 %v293, %v1421
    %v1427 = vmul.f32 %v1153, %v1421
    %v1428 = vmul.f32 %v1298, %v1421
    %v1435 = vrot.slane %v1423, 1
    %v1436 = vrot.slane %v1425, 1
    %v1437 = vsel %vm1160, %v1435, %v1436
    %v1438 = vrot.slane %v1424, 1
    %v1439 = vrot.slane %v1426, 1
    %v1440 = vsel %vm1160, %v1438, %v1439
    %v1441 = vrot.slane %v1427, 1
    %v1442 = vsel %vm1160, %v1436, %v1441
    %v1443 = vrot.slane %v1428, 1
    %v1444 = vsel %vm1160, %v1439, %v1443
    %1445 = vrot.lane.b32.xlu0 %v1437, 127
    %v1446 = vpop.permute.xlu0 %1445
    %1447 = vrot.lane.b32.xlu0 %v1440, 127
    %v1448 = vpop.permute.xlu0 %1447
    %1449 = vrot.lane.b32.xlu0 %v1442, 127
    %v1450 = vpop.permute.xlu0 %1449
    %1451 = vrot.lane.b32.xlu0 %v1444, 127
    %v1452 = vpop.permute.xlu0 %1451
    %v1453 = vsel %vm314, %v1446, %v1448
    %v1454 = vsel %vm314, %v1450, %v1452
    %v1457 = vadd.f32 %v1213, %v1453
    %v1458 = vadd.f32 %v1214, %v1454
    %v1459 = vld [vmem:[%s149 + $0x8] sm:$0xfe]
    %v1460 = vld [vmem:[%s149 + $0x28] sm:$0x1]
    %v1461 = vmul.f32 %v1215, %v1301
    %v1462 = vmul.f32 %v1459, %v1301
    %v1463 = vmul.f32 %v255, %v1301
    %v1464 = vmul.f32 %v400, %v1301
    %v1465 = vmul.f32 %v1216, %v1301
    %v1466 = vmul.f32 %v1460, %v1301
    %v1473 = vrot.slane %v1461, 1
    %v1474 = vrot.slane %v1463, 1
    %v1475 = vsel %vm1160, %v1473, %v1474
    %v1476 = vrot.slane %v1462, 1
    %v1477 = vrot.slane %v1464, 1
    %v1478 = vsel %vm1160, %v1476, %v1477
    %v1479 = vrot.slane %v1465, 1
    %v1480 = vsel %vm1160, %v1474, %v1479
    %v1481 = vrot.slane %v1466, 1
    %v1482 = vsel %vm1160, %v1477, %v1481
    %1483 = vrot.lane.b32.xlu0 %v1475, 127
    %v1484 = vpop.permute.xlu0 %1483
    %1485 = vrot.lane.b32.xlu0 %v1478, 127
    %v1486 = vpop.permute.xlu0 %1485
    %1487 = vrot.lane.b32.xlu0 %v1480, 127
    %v1488 = vpop.permute.xlu0 %1487
    %1489 = vrot.lane.b32.xlu0 %v1482, 127
    %v1490 = vpop.permute.xlu0 %1489
    %v1491 = vsel %vm314, %v1484, %v1486
    %v1492 = vsel %vm314, %v1488, %v1490
    %v1495 = vadd.f32 %v1230, %v1491
    %v1496 = vadd.f32 %v1231, %v1492
    %v1497 = vmul.f32 %v1215, %v1341
    %v1498 = vmul.f32 %v1459, %v1341
    %v1499 = vmul.f32 %v255, %v1341
    %v1500 = vmul.f32 %v400, %v1341
    %v1501 = vmul.f32 %v1216, %v1341
    %v1502 = vmul.f32 %v1460, %v1341
    %v1509 = vrot.slane %v1497, 1
    %v1510 = vrot.slane %v1499, 1
    %v1511 = vsel %vm1160, %v1509, %v1510
    %v1512 = vrot.slane %v1498, 1
    %v1513 = vrot.slane %v1500, 1
    %v1514 = vsel %vm1160, %v1512, %v1513
    %v1515 = vrot.slane %v1501, 1
    %v1516 = vsel %vm1160, %v1510, %v1515
    %v1517 = vrot.slane %v1502, 1
    %v1518 = vsel %vm1160, %v1513, %v1517
    %1519 = vrot.lane.b32.xlu0 %v1511, 127
    %v1520 = vpop.permute.xlu0 %1519
    %1521 = vrot.lane.b32.xlu0 %v1514, 127
    %v1522 = vpop.permute.xlu0 %1521
    %1523 = vrot.lane.b32.xlu0 %v1516, 127
    %v1524 = vpop.permute.xlu0 %1523
    %1525 = vrot.lane.b32.xlu0 %v1518, 127
    %v1526 = vpop.permute.xlu0 %1525
    %v1527 = vsel %vm314, %v1520, %v1522
    %v1528 = vsel %vm314, %v1524, %v1526
    %v1531 = vadd.f32 %v1245, %v1527
    %v1532 = vadd.f32 %v1246, %v1528
    %v1533 = vmul.f32 %v1215, %v1381
    %v1534 = vmul.f32 %v1459, %v1381
    %v1535 = vmul.f32 %v255, %v1381
    %v1536 = vmul.f32 %v400, %v1381
    %v1537 = vmul.f32 %v1216, %v1381
    %v1538 = vmul.f32 %v1460, %v1381
    %v1545 = vrot.slane %v1533, 1
    %v1546 = vrot.slane %v1535, 1
    %v1547 = vsel %vm1160, %v1545, %v1546
    %v1548 = vrot.slane %v1534, 1
    %v1549 = vrot.slane %v1536, 1
    %v1550 = vsel %vm1160, %v1548, %v1549
    %v1551 = vrot.slane %v1537, 1
    %v1552 = vsel %vm1160, %v1546, %v1551
    %v1553 = vrot.slane %v1538, 1
    %v1554 = vsel %vm1160, %v1549, %v1553
    %1555 = vrot.lane.b32.xlu0 %v1547, 127
    %v1556 = vpop.permute.xlu0 %1555
    %1557 = vrot.lane.b32.xlu0 %v1550, 127
    %v1558 = vpop.permute.xlu0 %1557
    %1559 = vrot.lane.b32.xlu0 %v1552, 127
    %v1560 = vpop.permute.xlu0 %1559
    %1561 = vrot.lane.b32.xlu0 %v1554, 127
    %v1562 = vpop.permute.xlu0 %1561
    %v1563 = vsel %vm314, %v1556, %v1558
    %v1564 = vsel %vm314, %v1560, %v1562
    %v1567 = vadd.f32 %v1260, %v1563
    %v1568 = vadd.f32 %v1261, %v1564
    %v1569 = vmul.f32 %v1215, %v1421
    %v1570 = vmul.f32 %v1459, %v1421
    %v1571 = vmul.f32 %v255, %v1421
    %v1572 = vmul.f32 %v400, %v1421
    %v1573 = vmul.f32 %v1216, %v1421
    %v1574 = vmul.f32 %v1460, %v1421
    %v1581 = vrot.slane %v1569, 1
    %v1582 = vrot.slane %v1571, 1
    %v1583 = vsel %vm1160, %v1581, %v1582
    %v1584 = vrot.slane %v1570, 1
    %v1585 = vrot.slane %v1572, 1
    %v1586 = vsel %vm1160, %v1584, %v1585
    %v1587 = vrot.slane %v1573, 1
    %v1588 = vsel %vm1160, %v1582, %v1587
    %v1589 = vrot.slane %v1574, 1
    %v1590 = vsel %vm1160, %v1585, %v1589
    %1591 = vrot.lane.b32.xlu0 %v1583, 127
    %v1592 = vpop.permute.xlu0 %1591
    %1593 = vrot.lane.b32.xlu0 %v1586, 127
    %v1594 = vpop.permute.xlu0 %1593
    %1595 = vrot.lane.b32.xlu0 %v1588, 127
    %v1596 = vpop.permute.xlu0 %1595
    %1597 = vrot.lane.b32.xlu0 %v1590, 127
    %v1598 = vpop.permute.xlu0 %1597
    %v1599 = vsel %vm314, %v1592, %v1594
    %v1600 = vsel %vm314, %v1596, %v1598
    %v1603 = vadd.f32 %v1275, %v1599
    %v1604 = vadd.f32 %v1276, %v1600
    %v1605 = vld [vmem:[%s1128 + $0x2] sm:$0x1]
    %v1606 = vlaneseq
    %v1607 = vshrl.u32 %v1606, 7
    %v1608 = vsub.s32 0, %v1607
    %v1609 = vrot.slane %v1605, %v1608
    %v1610 = vld [vmem:[%s1134 + $0x2] sm:$0x1]
    %v1611 = vlaneseq
    %v1612 = vshrl.u32 %v1611, 7
    %v1613 = vsub.s32 0, %v1612
    %v1614 = vrot.slane %v1610, %v1613
    %v1615 = vld [vmem:[%s1140 + $0x2] sm:$0x1]
    %v1616 = vlaneseq
    %v1617 = vshrl.u32 %v1616, 7
    %v1618 = vsub.s32 0, %v1617
    %v1619 = vrot.slane %v1615, %v1618
    %v1620 = vld [vmem:[%s1146 + $0x2] sm:$0x1]
    %v1621 = vlaneseq
    %v1622 = vshrl.u32 %v1621, 7
    %v1623 = vsub.s32 0, %v1622
    %v1624 = vrot.slane %v1620, %v1623
    %1626 = vrot.lane.b32.xlu0 %v1609, 2
    %v1627 = vpop.permute.xlu0 %1626
    %v1629 = vmul.f32 %v1152, %v1627
    %v1630 = vmul.f32 %v1297, %v1627
    %v1631 = vmul.f32 %v237, %v1627
    %v1632 = vmul.f32 %v293, %v1627
    %v1633 = vmul.f32 %v1153, %v1627
    %v1634 = vmul.f32 %v1298, %v1627
    %v1641 = vrot.slane %v1629, 1
    %v1642 = vrot.slane %v1631, 1
    %v1643 = vsel %vm1160, %v1641, %v1642
    %v1644 = vrot.slane %v1630, 1
    %v1645 = vrot.slane %v1632, 1
    %v1646 = vsel %vm1160, %v1644, %v1645
    %v1647 = vrot.slane %v1633, 1
    %v1648 = vsel %vm1160, %v1642, %v1647
    %v1649 = vrot.slane %v1634, 1
    %v1650 = vsel %vm1160, %v1645, %v1649
    %1651 = vrot.lane.b32.xlu0 %v1643, 126
    %v1652 = vpop.permute.xlu0 %1651
    %1653 = vrot.lane.b32.xlu0 %v1646, 126
    %v1654 = vpop.permute.xlu0 %1653
    %1655 = vrot.lane.b32.xlu0 %v1648, 126
    %v1656 = vpop.permute.xlu0 %1655
    %1657 = vrot.lane.b32.xlu0 %v1650, 126
    %v1658 = vpop.permute.xlu0 %1657
    %v1659 = vsel %vm529, %v1652, %v1654
    %v1660 = vsel %vm529, %v1656, %v1658
    %v1663 = vadd.f32 %v1337, %v1659
    %v1664 = vadd.f32 %v1338, %v1660
    %1666 = vrot.lane.b32.xlu0 %v1614, 2
    %v1667 = vpop.permute.xlu0 %1666
    %v1669 = vmul.f32 %v1152, %v1667
    %v1670 = vmul.f32 %v1297, %v1667
    %v1671 = vmul.f32 %v237, %v1667
    %v1672 = vmul.f32 %v293, %v1667
    %v1673 = vmul.f32 %v1153, %v1667
    %v1674 = vmul.f32 %v1298, %v1667
    %v1681 = vrot.slane %v1669, 1
    %v1682 = vrot.slane %v1671, 1
    %v1683 = vsel %vm1160, %v1681, %v1682
    %v1684 = vrot.slane %v1670, 1
    %v1685 = vrot.slane %v1672, 1
    %v1686 = vsel %vm1160, %v1684, %v1685
    %v1687 = vrot.slane %v1673, 1
    %v1688 = vsel %vm1160, %v1682, %v1687
    %v1689 = vrot.slane %v1674, 1
    %v1690 = vsel %vm1160, %v1685, %v1689
    %1691 = vrot.lane.b32.xlu0 %v1683, 126
    %v1692 = vpop.permute.xlu0 %1691
    %1693 = vrot.lane.b32.xlu0 %v1686, 126
    %v1694 = vpop.permute.xlu0 %1693
    %1695 = vrot.lane.b32.xlu0 %v1688, 126
    %v1696 = vpop.permute.xlu0 %1695
    %1697 = vrot.lane.b32.xlu0 %v1690, 126
    %v1698 = vpop.permute.xlu0 %1697
    %v1699 = vsel %vm529, %v1692, %v1694
    %v1700 = vsel %vm529, %v1696, %v1698
    %v1703 = vadd.f32 %v1377, %v1699
    %v1704 = vadd.f32 %v1378, %v1700
    %1706 = vrot.lane.b32.xlu0 %v1619, 2
    %v1707 = vpop.permute.xlu0 %1706
    %v1709 = vmul.f32 %v1152, %v1707
    %v1710 = vmul.f32 %v1297, %v1707
    %v1711 = vmul.f32 %v237, %v1707
    %v1712 = vmul.f32 %v293, %v1707
    %v1713 = vmul.f32 %v1153, %v1707
    %v1714 = vmul.f32 %v1298, %v1707
    %v1721 = vrot.slane %v1709, 1
    %v1722 = vrot.slane %v1711, 1
    %v1723 = vsel %vm1160, %v1721, %v1722
    %v1724 = vrot.slane %v1710, 1
    %v1725 = vrot.slane %v1712, 1
    %v1726 = vsel %vm1160, %v1724, %v1725
    %v1727 = vrot.slane %v1713, 1
    %v1728 = vsel %vm1160, %v1722, %v1727
    %v1729 = vrot.slane %v1714, 1
    %v1730 = vsel %vm1160, %v1725, %v1729
    %1731 = vrot.lane.b32.xlu0 %v1723, 126
    %v1732 = vpop.permute.xlu0 %1731
    %1733 = vrot.lane.b32.xlu0 %v1726, 126
    %v1734 = vpop.permute.xlu0 %1733
    %1735 = vrot.lane.b32.xlu0 %v1728, 126
    %v1736 = vpop.permute.xlu0 %1735
    %1737 = vrot.lane.b32.xlu0 %v1730, 126
    %v1738 = vpop.permute.xlu0 %1737
    %v1739 = vsel %vm529, %v1732, %v1734
    %v1740 = vsel %vm529, %v1736, %v1738
    %v1743 = vadd.f32 %v1417, %v1739
    %v1744 = vadd.f32 %v1418, %v1740
    %1746 = vrot.lane.b32.xlu0 %v1624, 2
    %v1747 = vpop.permute.xlu0 %1746
    %v1749 = vmul.f32 %v1152, %v1747
    %v1750 = vmul.f32 %v1297, %v1747
    %v1751 = vmul.f32 %v237, %v1747
    %v1752 = vmul.f32 %v293, %v1747
    %v1753 = vmul.f32 %v1153, %v1747
    %v1754 = vmul.f32 %v1298, %v1747
    %v1761 = vrot.slane %v1749, 1
    %v1762 = vrot.slane %v1751, 1
    %v1763 = vsel %vm1160, %v1761, %v1762
    %v1764 = vrot.slane %v1750, 1
    %v1765 = vrot.slane %v1752, 1
    %v1766 = vsel %vm1160, %v1764, %v1765
    %v1767 = vrot.slane %v1753, 1
    %v1768 = vsel %vm1160, %v1762, %v1767
    %v1769 = vrot.slane %v1754, 1
    %v1770 = vsel %vm1160, %v1765, %v1769
    %1771 = vrot.lane.b32.xlu0 %v1763, 126
    %v1772 = vpop.permute.xlu0 %1771
    %1773 = vrot.lane.b32.xlu0 %v1766, 126
    %v1774 = vpop.permute.xlu0 %1773
    %1775 = vrot.lane.b32.xlu0 %v1768, 126
    %v1776 = vpop.permute.xlu0 %1775
    %1777 = vrot.lane.b32.xlu0 %v1770, 126
    %v1778 = vpop.permute.xlu0 %1777
    %v1779 = vsel %vm529, %v1772, %v1774
    %v1780 = vsel %vm529, %v1776, %v1778
    %v1783 = vadd.f32 %v1457, %v1779
    %v1784 = vadd.f32 %v1458, %v1780
    %v1785 = vmul.f32 %v1215, %v1627
    %v1786 = vmul.f32 %v1459, %v1627
    %v1787 = vmul.f32 %v255, %v1627
    %v1788 = vmul.f32 %v400, %v1627
    %v1789 = vmul.f32 %v1216, %v1627
    %v1790 = vmul.f32 %v1460, %v1627
    %v1797 = vrot.slane %v1785, 1
    %v1798 = vrot.slane %v1787, 1
    %v1799 = vsel %vm1160, %v1797, %v1798
    %v1800 = vrot.slane %v1786, 1
    %v1801 = vrot.slane %v1788, 1
    %v1802 = vsel %vm1160, %v1800, %v1801
    %v1803 = vrot.slane %v1789, 1
    %v1804 = vsel %vm1160, %v1798, %v1803
    %v1805 = vrot.slane %v1790, 1
    %v1806 = vsel %vm1160, %v1801, %v1805
    %1807 = vrot.lane.b32.xlu0 %v1799, 126
    %v1808 = vpop.permute.xlu0 %1807
    %1809 = vrot.lane.b32.xlu0 %v1802, 126
    %v1810 = vpop.permute.xlu0 %1809
    %1811 = vrot.lane.b32.xlu0 %v1804, 126
    %v1812 = vpop.permute.xlu0 %1811
    %1813 = vrot.lane.b32.xlu0 %v1806, 126
    %v1814 = vpop.permute.xlu0 %1813
    %v1815 = vsel %vm529, %v1808, %v1810
    %v1816 = vsel %vm529, %v1812, %v1814
    %v1819 = vadd.f32 %v1495, %v1815
    %v1820 = vadd.f32 %v1496, %v1816
    %v1821 = vmul.f32 %v1215, %v1667
    %v1822 = vmul.f32 %v1459, %v1667
    %v1823 = vmul.f32 %v255, %v1667
    %v1824 = vmul.f32 %v400, %v1667
    %v1825 = vmul.f32 %v1216, %v1667
    %v1826 = vmul.f32 %v1460, %v1667
    %v1833 = vrot.slane %v1821, 1
    %v1834 = vrot.slane %v1823, 1
    %v1835 = vsel %vm1160, %v1833, %v1834
    %v1836 = vrot.slane %v1822, 1
    %v1837 = vrot.slane %v1824, 1
    %v1838 = vsel %vm1160, %v1836, %v1837
    %v1839 = vrot.slane %v1825, 1
    %v1840 = vsel %vm1160, %v1834, %v1839
    %v1841 = vrot.slane %v1826, 1
    %v1842 = vsel %vm1160, %v1837, %v1841
    %1843 = vrot.lane.b32.xlu0 %v1835, 126
    %v1844 = vpop.permute.xlu0 %1843
    %1845 = vrot.lane.b32.xlu0 %v1838, 126
    %v1846 = vpop.permute.xlu0 %1845
    %1847 = vrot.lane.b32.xlu0 %v1840, 126
    %v1848 = vpop.permute.xlu0 %1847
    %1849 = vrot.lane.b32.xlu0 %v1842, 126
    %v1850 = vpop.permute.xlu0 %1849
    %v1851 = vsel %vm529, %v1844, %v1846
    %v1852 = vsel %vm529, %v1848, %v1850
    %v1855 = vadd.f32 %v1531, %v1851
    %v1856 = vadd.f32 %v1532, %v1852
    %v1857 = vmul.f32 %v1215, %v1707
    %v1858 = vmul.f32 %v1459, %v1707
    %v1859 = vmul.f32 %v255, %v1707
    %v1860 = vmul.f32 %v400, %v1707
    %v1861 = vmul.f32 %v1216, %v1707
    %v1862 = vmul.f32 %v1460, %v1707
    %v1869 = vrot.slane %v1857, 1
    %v1870 = vrot.slane %v1859, 1
    %v1871 = vsel %vm1160, %v1869, %v1870
    %v1872 = vrot.slane %v1858, 1
    %v1873 = vrot.slane %v1860, 1
    %v1874 = vsel %vm1160, %v1872, %v1873
    %v1875 = vrot.slane %v1861, 1
    %v1876 = vsel %vm1160, %v1870, %v1875
    %v1877 = vrot.slane %v1862, 1
    %v1878 = vsel %vm1160, %v1873, %v1877
    %1879 = vrot.lane.b32.xlu0 %v1871, 126
    %v1880 = vpop.permute.xlu0 %1879
    %1881 = vrot.lane.b32.xlu0 %v1874, 126
    %v1882 = vpop.permute.xlu0 %1881
    %1883 = vrot.lane.b32.xlu0 %v1876, 126
    %v1884 = vpop.permute.xlu0 %1883
    %1885 = vrot.lane.b32.xlu0 %v1878, 126
    %v1886 = vpop.permute.xlu0 %1885
    %v1887 = vsel %vm529, %v1880, %v1882
    %v1888 = vsel %vm529, %v1884, %v1886
    %v1891 = vadd.f32 %v1567, %v1887
    %v1892 = vadd.f32 %v1568, %v1888
    %v1893 = vmul.f32 %v1215, %v1747
    %v1894 = vmul.f32 %v1459, %v1747
    %v1895 = vmul.f32 %v255, %v1747
    %v1896 = vmul.f32 %v400, %v1747
    %v1897 = vmul.f32 %v1216, %v1747
    %v1898 = vmul.f32 %v1460, %v1747
    %v1905 = vrot.slane %v1893, 1
    %v1906 = vrot.slane %v1895, 1
    %v1907 = vsel %vm1160, %v1905, %v1906
    %v1908 = vrot.slane %v1894, 1
    %v1909 = vrot.slane %v1896, 1
    %v1910 = vsel %vm1160, %v1908, %v1909
    %v1911 = vrot.slane %v1897, 1
    %v1912 = vsel %vm1160, %v1906, %v1911
    %v1913 = vrot.slane %v1898, 1
    %v1914 = vsel %vm1160, %v1909, %v1913
    %1915 = vrot.lane.b32.xlu0 %v1907, 126
    %v1916 = vpop.permute.xlu0 %1915
    %1917 = vrot.lane.b32.xlu0 %v1910, 126
    %v1918 = vpop.permute.xlu0 %1917
    %1919 = vrot.lane.b32.xlu0 %v1912, 126
    %v1920 = vpop.permute.xlu0 %1919
    %1921 = vrot.lane.b32.xlu0 %v1914, 126
    %v1922 = vpop.permute.xlu0 %1921
    %v1923 = vsel %vm529, %v1916, %v1918
    %v1924 = vsel %vm529, %v1920, %v1922
    %v1927 = vadd.f32 %v1603, %v1923
    %v1928 = vadd.f32 %v1604, %v1924
    %v1929 = vld [vmem:[%s1128 + $0x3] sm:$0x1]
    %v1930 = vlaneseq
    %v1931 = vshrl.u32 %v1930, 7
    %v1932 = vsub.s32 0, %v1931
    %v1933 = vrot.slane %v1929, %v1932
    %v1934 = vld [vmem:[%s1134 + $0x3] sm:$0x1]
    %v1935 = vlaneseq
    %v1936 = vshrl.u32 %v1935, 7
    %v1937 = vsub.s32 0, %v1936
    %v1938 = vrot.slane %v1934, %v1937
    %v1939 = vld [vmem:[%s1140 + $0x3] sm:$0x1]
    %v1940 = vlaneseq
    %v1941 = vshrl.u32 %v1940, 7
    %v1942 = vsub.s32 0, %v1941
    %v1943 = vrot.slane %v1939, %v1942
    %v1944 = vld [vmem:[%s1146 + $0x3] sm:$0x1]
    %v1945 = vlaneseq
    %v1946 = vshrl.u32 %v1945, 7
    %v1947 = vsub.s32 0, %v1946
    %v1948 = vrot.slane %v1944, %v1947
    %1950 = vrot.lane.b32.xlu0 %v1933, 3
    %v1951 = vpop.permute.xlu0 %1950
    %v1953 = vmul.f32 %v1152, %v1951
    %v1954 = vmul.f32 %v1297, %v1951
    %v1955 = vmul.f32 %v237, %v1951
    %v1956 = vmul.f32 %v293, %v1951
    %v1957 = vmul.f32 %v1153, %v1951
    %v1958 = vmul.f32 %v1298, %v1951
    %v1965 = vrot.slane %v1953, 1
    %v1966 = vrot.slane %v1955, 1
    %v1967 = vsel %vm1160, %v1965, %v1966
    %v1968 = vrot.slane %v1954, 1
    %v1969 = vrot.slane %v1956, 1
    %v1970 = vsel %vm1160, %v1968, %v1969
    %v1971 = vrot.slane %v1957, 1
    %v1972 = vsel %vm1160, %v1966, %v1971
    %v1973 = vrot.slane %v1958, 1
    %v1974 = vsel %vm1160, %v1969, %v1973
    %1975 = vrot.lane.b32.xlu0 %v1967, 125
    %v1976 = vpop.permute.xlu0 %1975
    %1977 = vrot.lane.b32.xlu0 %v1970, 125
    %v1978 = vpop.permute.xlu0 %1977
    %1979 = vrot.lane.b32.xlu0 %v1972, 125
    %v1980 = vpop.permute.xlu0 %1979
    %1981 = vrot.lane.b32.xlu0 %v1974, 125
    %v1982 = vpop.permute.xlu0 %1981
    %v1983 = vsel %vm742, %v1976, %v1978
    %v1984 = vsel %vm742, %v1980, %v1982
    %v1987 = vadd.f32 %v1663, %v1983
    %v1988 = vadd.f32 %v1664, %v1984
    %1990 = vrot.lane.b32.xlu0 %v1938, 3
    %v1991 = vpop.permute.xlu0 %1990
    %v1993 = vmul.f32 %v1152, %v1991
    %v1994 = vmul.f32 %v1297, %v1991
    %v1995 = vmul.f32 %v237, %v1991
    %v1996 = vmul.f32 %v293, %v1991
    %v1997 = vmul.f32 %v1153, %v1991
    %v1998 = vmul.f32 %v1298, %v1991
    %v2005 = vrot.slane %v1993, 1
    %v2006 = vrot.slane %v1995, 1
    %v2007 = vsel %vm1160, %v2005, %v2006
    %v2008 = vrot.slane %v1994, 1
    %v2009 = vrot.slane %v1996, 1
    %v2010 = vsel %vm1160, %v2008, %v2009
    %v2011 = vrot.slane %v1997, 1
    %v2012 = vsel %vm1160, %v2006, %v2011
    %v2013 = vrot.slane %v1998, 1
    %v2014 = vsel %vm1160, %v2009, %v2013
    %2015 = vrot.lane.b32.xlu0 %v2007, 125
    %v2016 = vpop.permute.xlu0 %2015
    %2017 = vrot.lane.b32.xlu0 %v2010, 125
    %v2018 = vpop.permute.xlu0 %2017
    %2019 = vrot.lane.b32.xlu0 %v2012, 125
    %v2020 = vpop.permute.xlu0 %2019
    %2021 = vrot.lane.b32.xlu0 %v2014, 125
    %v2022 = vpop.permute.xlu0 %2021
    %v2023 = vsel %vm742, %v2016, %v2018
    %v2024 = vsel %vm742, %v2020, %v2022
    %v2027 = vadd.f32 %v1703, %v2023
    %v2028 = vadd.f32 %v1704, %v2024
    %2030 = vrot.lane.b32.xlu0 %v1943, 3
    %v2031 = vpop.permute.xlu0 %2030
    %v2033 = vmul.f32 %v1152, %v2031
    %v2034 = vmul.f32 %v1297, %v2031
    %v2035 = vmul.f32 %v237, %v2031
    %v2036 = vmul.f32 %v293, %v2031
    %v2037 = vmul.f32 %v1153, %v2031
    %v2038 = vmul.f32 %v1298, %v2031
    %v2045 = vrot.slane %v2033, 1
    %v2046 = vrot.slane %v2035, 1
    %v2047 = vsel %vm1160, %v2045, %v2046
    %v2048 = vrot.slane %v2034, 1
    %v2049 = vrot.slane %v2036, 1
    %v2050 = vsel %vm1160, %v2048, %v2049
    %v2051 = vrot.slane %v2037, 1
    %v2052 = vsel %vm1160, %v2046, %v2051
    %v2053 = vrot.slane %v2038, 1
    %v2054 = vsel %vm1160, %v2049, %v2053
    %2055 = vrot.lane.b32.xlu0 %v2047, 125
    %v2056 = vpop.permute.xlu0 %2055
    %2057 = vrot.lane.b32.xlu0 %v2050, 125
    %v2058 = vpop.permute.xlu0 %2057
    %2059 = vrot.lane.b32.xlu0 %v2052, 125
    %v2060 = vpop.permute.xlu0 %2059
    %2061 = vrot.lane.b32.xlu0 %v2054, 125
    %v2062 = vpop.permute.xlu0 %2061
    %v2063 = vsel %vm742, %v2056, %v2058
    %v2064 = vsel %vm742, %v2060, %v2062
    %v2067 = vadd.f32 %v1743, %v2063
    %v2068 = vadd.f32 %v1744, %v2064
    %2070 = vrot.lane.b32.xlu0 %v1948, 3
    %v2071 = vpop.permute.xlu0 %2070
    %v2073 = vmul.f32 %v1152, %v2071
    %v2074 = vmul.f32 %v1297, %v2071
    %v2075 = vmul.f32 %v237, %v2071
    %v2076 = vmul.f32 %v293, %v2071
    %v2077 = vmul.f32 %v1153, %v2071
    %v2078 = vmul.f32 %v1298, %v2071
    %v2085 = vrot.slane %v2073, 1
    %v2086 = vrot.slane %v2075, 1
    %v2087 = vsel %vm1160, %v2085, %v2086
    %v2088 = vrot.slane %v2074, 1
    %v2089 = vrot.slane %v2076, 1
    %v2090 = vsel %vm1160, %v2088, %v2089
    %v2091 = vrot.slane %v2077, 1
    %v2092 = vsel %vm1160, %v2086, %v2091
    %v2093 = vrot.slane %v2078, 1
    %v2094 = vsel %vm1160, %v2089, %v2093
    %2095 = vrot.lane.b32.xlu0 %v2087, 125
    %v2096 = vpop.permute.xlu0 %2095
    %2097 = vrot.lane.b32.xlu0 %v2090, 125
    %v2098 = vpop.permute.xlu0 %2097
    %2099 = vrot.lane.b32.xlu0 %v2092, 125
    %v2100 = vpop.permute.xlu0 %2099
    %2101 = vrot.lane.b32.xlu0 %v2094, 125
    %v2102 = vpop.permute.xlu0 %2101
    %v2103 = vsel %vm742, %v2096, %v2098
    %v2104 = vsel %vm742, %v2100, %v2102
    %v2107 = vadd.f32 %v1783, %v2103
    %v2108 = vadd.f32 %v1784, %v2104
    %v2109 = vmul.f32 %v1215, %v1951
    %v2110 = vmul.f32 %v1459, %v1951
    %v2111 = vmul.f32 %v255, %v1951
    %v2112 = vmul.f32 %v400, %v1951
    %v2113 = vmul.f32 %v1216, %v1951
    %v2114 = vmul.f32 %v1460, %v1951
    %v2121 = vrot.slane %v2109, 1
    %v2122 = vrot.slane %v2111, 1
    %v2123 = vsel %vm1160, %v2121, %v2122
    %v2124 = vrot.slane %v2110, 1
    %v2125 = vrot.slane %v2112, 1
    %v2126 = vsel %vm1160, %v2124, %v2125
    %v2127 = vrot.slane %v2113, 1
    %v2128 = vsel %vm1160, %v2122, %v2127
    %v2129 = vrot.slane %v2114, 1
    %v2130 = vsel %vm1160, %v2125, %v2129
    %2131 = vrot.lane.b32.xlu0 %v2123, 125
    %v2132 = vpop.permute.xlu0 %2131
    %2133 = vrot.lane.b32.xlu0 %v2126, 125
    %v2134 = vpop.permute.xlu0 %2133
    %2135 = vrot.lane.b32.xlu0 %v2128, 125
    %v2136 = vpop.permute.xlu0 %2135
    %2137 = vrot.lane.b32.xlu0 %v2130, 125
    %v2138 = vpop.permute.xlu0 %2137
    %v2139 = vsel %vm742, %v2132, %v2134
    %v2140 = vsel %vm742, %v2136, %v2138
    %v2143 = vadd.f32 %v1819, %v2139
    %v2144 = vadd.f32 %v1820, %v2140
    %v2145 = vmul.f32 %v1215, %v1991
    %v2146 = vmul.f32 %v1459, %v1991
    %v2147 = vmul.f32 %v255, %v1991
    %v2148 = vmul.f32 %v400, %v1991
    %v2149 = vmul.f32 %v1216, %v1991
    %v2150 = vmul.f32 %v1460, %v1991
    %v2157 = vrot.slane %v2145, 1
    %v2158 = vrot.slane %v2147, 1
    %v2159 = vsel %vm1160, %v2157, %v2158
    %v2160 = vrot.slane %v2146, 1
    %v2161 = vrot.slane %v2148, 1
    %v2162 = vsel %vm1160, %v2160, %v2161
    %v2163 = vrot.slane %v2149, 1
    %v2164 = vsel %vm1160, %v2158, %v2163
    %v2165 = vrot.slane %v2150, 1
    %v2166 = vsel %vm1160, %v2161, %v2165
    %2167 = vrot.lane.b32.xlu0 %v2159, 125
    %v2168 = vpop.permute.xlu0 %2167
    %2169 = vrot.lane.b32.xlu0 %v2162, 125
    %v2170 = vpop.permute.xlu0 %2169
    %2171 = vrot.lane.b32.xlu0 %v2164, 125
    %v2172 = vpop.permute.xlu0 %2171
    %2173 = vrot.lane.b32.xlu0 %v2166, 125
    %v2174 = vpop.permute.xlu0 %2173
    %v2175 = vsel %vm742, %v2168, %v2170
    %v2176 = vsel %vm742, %v2172, %v2174
    %v2179 = vadd.f32 %v1855, %v2175
    %v2180 = vadd.f32 %v1856, %v2176
    %v2181 = vmul.f32 %v1215, %v2031
    %v2182 = vmul.f32 %v1459, %v2031
    %v2183 = vmul.f32 %v255, %v2031
    %v2184 = vmul.f32 %v400, %v2031
    %v2185 = vmul.f32 %v1216, %v2031
    %v2186 = vmul.f32 %v1460, %v2031
    %v2193 = vrot.slane %v2181, 1
    %v2194 = vrot.slane %v2183, 1
    %v2195 = vsel %vm1160, %v2193, %v2194
    %v2196 = vrot.slane %v2182, 1
    %v2197 = vrot.slane %v2184, 1
    %v2198 = vsel %vm1160, %v2196, %v2197
    %v2199 = vrot.slane %v2185, 1
    %v2200 = vsel %vm1160, %v2194, %v2199
    %v2201 = vrot.slane %v2186, 1
    %v2202 = vsel %vm1160, %v2197, %v2201
    %2203 = vrot.lane.b32.xlu0 %v2195, 125
    %v2204 = vpop.permute.xlu0 %2203
    %2205 = vrot.lane.b32.xlu0 %v2198, 125
    %v2206 = vpop.permute.xlu0 %2205
    %2207 = vrot.lane.b32.xlu0 %v2200, 125
    %v2208 = vpop.permute.xlu0 %2207
    %2209 = vrot.lane.b32.xlu0 %v2202, 125
    %v2210 = vpop.permute.xlu0 %2209
    %v2211 = vsel %vm742, %v2204, %v2206
    %v2212 = vsel %vm742, %v2208, %v2210
    %v2215 = vadd.f32 %v1891, %v2211
    %v2216 = vadd.f32 %v1892, %v2212
    %v2217 = vmul.f32 %v1215, %v2071
    %v2218 = vmul.f32 %v1459, %v2071
    %v2219 = vmul.f32 %v255, %v2071
    %v2220 = vmul.f32 %v400, %v2071
    %v2221 = vmul.f32 %v1216, %v2071
    %v2222 = vmul.f32 %v1460, %v2071
    %v2229 = vrot.slane %v2217, 1
    %v2230 = vrot.slane %v2219, 1
    %v2231 = vsel %vm1160, %v2229, %v2230
    %v2232 = vrot.slane %v2218, 1
    %v2233 = vrot.slane %v2220, 1
    %v2234 = vsel %vm1160, %v2232, %v2233
    %v2235 = vrot.slane %v2221, 1
    %v2236 = vsel %vm1160, %v2230, %v2235
    %v2237 = vrot.slane %v2222, 1
    %v2238 = vsel %vm1160, %v2233, %v2237
    %2239 = vrot.lane.b32.xlu0 %v2231, 125
    %v2240 = vpop.permute.xlu0 %2239
    %2241 = vrot.lane.b32.xlu0 %v2234, 125
    %v2242 = vpop.permute.xlu0 %2241
    %2243 = vrot.lane.b32.xlu0 %v2236, 125
    %v2244 = vpop.permute.xlu0 %2243
    %2245 = vrot.lane.b32.xlu0 %v2238, 125
    %v2246 = vpop.permute.xlu0 %2245
    %v2247 = vsel %vm742, %v2240, %v2242
    %v2248 = vsel %vm742, %v2244, %v2246
    %v2251 = vadd.f32 %v1927, %v2247
    %v2252 = vadd.f32 %v1928, %v2248
    %v2253 = vld [vmem:[%s1128 + $0x4] sm:$0x1]
    %v2254 = vlaneseq
    %v2255 = vshrl.u32 %v2254, 7
    %v2256 = vsub.s32 0, %v2255
    %v2257 = vrot.slane %v2253, %v2256
    %v2258 = vld [vmem:[%s1134 + $0x4] sm:$0x1]
    %v2259 = vlaneseq
    %v2260 = vshrl.u32 %v2259, 7
    %v2261 = vsub.s32 0, %v2260
    %v2262 = vrot.slane %v2258, %v2261
    %v2263 = vld [vmem:[%s1140 + $0x4] sm:$0x1]
    %v2264 = vlaneseq
    %v2265 = vshrl.u32 %v2264, 7
    %v2266 = vsub.s32 0, %v2265
    %v2267 = vrot.slane %v2263, %v2266
    %v2268 = vld [vmem:[%s1146 + $0x4] sm:$0x1]
    %v2269 = vlaneseq
    %v2270 = vshrl.u32 %v2269, 7
    %v2271 = vsub.s32 0, %v2270
    %v2272 = vrot.slane %v2268, %v2271
    %2274 = vrot.lane.b32.xlu0 %v2257, 4
    %v2275 = vpop.permute.xlu0 %2274
    %v2277 = vmul.f32 %v1152, %v2275
    %v2278 = vmul.f32 %v1297, %v2275
    %v2279 = vmul.f32 %v237, %v2275
    %v2280 = vmul.f32 %v293, %v2275
    %v2281 = vmul.f32 %v1153, %v2275
    %v2282 = vmul.f32 %v1298, %v2275
    %v2289 = vrot.slane %v2277, 1
    %v2290 = vrot.slane %v2279, 1
    %v2291 = vsel %vm1160, %v2289, %v2290
    %v2292 = vrot.slane %v2278, 1
    %v2293 = vrot.slane %v2280, 1
    %v2294 = vsel %vm1160, %v2292, %v2293
    %v2295 = vrot.slane %v2281, 1
    %v2296 = vsel %vm1160, %v2290, %v2295
    %v2297 = vrot.slane %v2282, 1
    %v2298 = vsel %vm1160, %v2293, %v2297
    %2299 = vrot.lane.b32.xlu0 %v2291, 124
    %v2300 = vpop.permute.xlu0 %2299
    %2301 = vrot.lane.b32.xlu0 %v2294, 124
    %v2302 = vpop.permute.xlu0 %2301
    %2303 = vrot.lane.b32.xlu0 %v2296, 124
    %v2304 = vpop.permute.xlu0 %2303
    %2305 = vrot.lane.b32.xlu0 %v2298, 124
    %v2306 = vpop.permute.xlu0 %2305
    %v2307 = vsel %vm955, %v2300, %v2302
    %v2308 = vsel %vm955, %v2304, %v2306
    %v2311 = vadd.f32 %v1987, %v2307
    %v2312 = vadd.f32 %v1988, %v2308
    %2314 = vrot.lane.b32.xlu0 %v2262, 4
    %v2315 = vpop.permute.xlu0 %2314
    %v2317 = vmul.f32 %v1152, %v2315
    %v2318 = vmul.f32 %v1297, %v2315
    %v2319 = vmul.f32 %v237, %v2315
    %v2320 = vmul.f32 %v293, %v2315
    %v2321 = vmul.f32 %v1153, %v2315
    %v2322 = vmul.f32 %v1298, %v2315
    %v2329 = vrot.slane %v2317, 1
    %v2330 = vrot.slane %v2319, 1
    %v2331 = vsel %vm1160, %v2329, %v2330
    %v2332 = vrot.slane %v2318, 1
    %v2333 = vrot.slane %v2320, 1
    %v2334 = vsel %vm1160, %v2332, %v2333
    %v2335 = vrot.slane %v2321, 1
    %v2336 = vsel %vm1160, %v2330, %v2335
    %v2337 = vrot.slane %v2322, 1
    %v2338 = vsel %vm1160, %v2333, %v2337
    %2339 = vrot.lane.b32.xlu0 %v2331, 124
    %v2340 = vpop.permute.xlu0 %2339
    %2341 = vrot.lane.b32.xlu0 %v2334, 124
    %v2342 = vpop.permute.xlu0 %2341
    %2343 = vrot.lane.b32.xlu0 %v2336, 124
    %v2344 = vpop.permute.xlu0 %2343
    %2345 = vrot.lane.b32.xlu0 %v2338, 124
    %v2346 = vpop.permute.xlu0 %2345
    %v2347 = vsel %vm955, %v2340, %v2342
    %v2348 = vsel %vm955, %v2344, %v2346
    %v2351 = vadd.f32 %v2027, %v2347
    %v2352 = vadd.f32 %v2028, %v2348
    %2354 = vrot.lane.b32.xlu0 %v2267, 4
    %v2355 = vpop.permute.xlu0 %2354
    %v2357 = vmul.f32 %v1152, %v2355
    %v2358 = vmul.f32 %v1297, %v2355
    %v2359 = vmul.f32 %v237, %v2355
    %v2360 = vmul.f32 %v293, %v2355
    %v2361 = vmul.f32 %v1153, %v2355
    %v2362 = vmul.f32 %v1298, %v2355
    %v2369 = vrot.slane %v2357, 1
    %v2370 = vrot.slane %v2359, 1
    %v2371 = vsel %vm1160, %v2369, %v2370
    %v2372 = vrot.slane %v2358, 1
    %v2373 = vrot.slane %v2360, 1
    %v2374 = vsel %vm1160, %v2372, %v2373
    %v2375 = vrot.slane %v2361, 1
    %v2376 = vsel %vm1160, %v2370, %v2375
    %v2377 = vrot.slane %v2362, 1
    %v2378 = vsel %vm1160, %v2373, %v2377
    %2379 = vrot.lane.b32.xlu0 %v2371, 124
    %v2380 = vpop.permute.xlu0 %2379
    %2381 = vrot.lane.b32.xlu0 %v2374, 124
    %v2382 = vpop.permute.xlu0 %2381
    %2383 = vrot.lane.b32.xlu0 %v2376, 124
    %v2384 = vpop.permute.xlu0 %2383
    %2385 = vrot.lane.b32.xlu0 %v2378, 124
    %v2386 = vpop.permute.xlu0 %2385
    %v2387 = vsel %vm955, %v2380, %v2382
    %v2388 = vsel %vm955, %v2384, %v2386
    %v2391 = vadd.f32 %v2067, %v2387
    %v2392 = vadd.f32 %v2068, %v2388
    %2394 = vrot.lane.b32.xlu0 %v2272, 4
    %v2395 = vpop.permute.xlu0 %2394
    %v2397 = vmul.f32 %v1152, %v2395
    %v2398 = vmul.f32 %v1297, %v2395
    %v2399 = vmul.f32 %v237, %v2395
    %v2400 = vmul.f32 %v293, %v2395
    %v2401 = vmul.f32 %v1153, %v2395
    %v2402 = vmul.f32 %v1298, %v2395
    %v2409 = vrot.slane %v2397, 1
    %v2410 = vrot.slane %v2399, 1
    %v2411 = vsel %vm1160, %v2409, %v2410
    %v2412 = vrot.slane %v2398, 1
    %v2413 = vrot.slane %v2400, 1
    %v2414 = vsel %vm1160, %v2412, %v2413
    %v2415 = vrot.slane %v2401, 1
    %v2416 = vsel %vm1160, %v2410, %v2415
    %v2417 = vrot.slane %v2402, 1
    %v2418 = vsel %vm1160, %v2413, %v2417
    %2419 = vrot.lane.b32.xlu0 %v2411, 124
    %v2420 = vpop.permute.xlu0 %2419
    %2421 = vrot.lane.b32.xlu0 %v2414, 124
    %v2422 = vpop.permute.xlu0 %2421
    %2423 = vrot.lane.b32.xlu0 %v2416, 124
    %v2424 = vpop.permute.xlu0 %2423
    %2425 = vrot.lane.b32.xlu0 %v2418, 124
    %v2426 = vpop.permute.xlu0 %2425
    %v2427 = vsel %vm955, %v2420, %v2422
    %v2428 = vsel %vm955, %v2424, %v2426
    %v2431 = vadd.f32 %v2107, %v2427
    %v2432 = vadd.f32 %v2108, %v2428
    %v2433 = vmul.f32 %v1215, %v2275
    %v2434 = vmul.f32 %v1459, %v2275
    %v2435 = vmul.f32 %v255, %v2275
    %v2436 = vmul.f32 %v400, %v2275
    %v2437 = vmul.f32 %v1216, %v2275
    %v2438 = vmul.f32 %v1460, %v2275
    %v2445 = vrot.slane %v2433, 1
    %v2446 = vrot.slane %v2435, 1
    %v2447 = vsel %vm1160, %v2445, %v2446
    %v2448 = vrot.slane %v2434, 1
    %v2449 = vrot.slane %v2436, 1
    %v2450 = vsel %vm1160, %v2448, %v2449
    %v2451 = vrot.slane %v2437, 1
    %v2452 = vsel %vm1160, %v2446, %v2451
    %v2453 = vrot.slane %v2438, 1
    %v2454 = vsel %vm1160, %v2449, %v2453
    %2455 = vrot.lane.b32.xlu0 %v2447, 124
    %v2456 = vpop.permute.xlu0 %2455
    %2457 = vrot.lane.b32.xlu0 %v2450, 124
    %v2458 = vpop.permute.xlu0 %2457
    %2459 = vrot.lane.b32.xlu0 %v2452, 124
    %v2460 = vpop.permute.xlu0 %2459
    %2461 = vrot.lane.b32.xlu0 %v2454, 124
    %v2462 = vpop.permute.xlu0 %2461
    %v2463 = vsel %vm955, %v2456, %v2458
    %v2464 = vsel %vm955, %v2460, %v2462
    %v2467 = vadd.f32 %v2143, %v2463
    %v2468 = vadd.f32 %v2144, %v2464
    %v2469 = vmul.f32 %v1215, %v2315
    %v2470 = vmul.f32 %v1459, %v2315
    %v2471 = vmul.f32 %v255, %v2315
    %v2472 = vmul.f32 %v400, %v2315
    %v2473 = vmul.f32 %v1216, %v2315
    %v2474 = vmul.f32 %v1460, %v2315
    %v2481 = vrot.slane %v2469, 1
    %v2482 = vrot.slane %v2471, 1
    %v2483 = vsel %vm1160, %v2481, %v2482
    %v2484 = vrot.slane %v2470, 1
    %v2485 = vrot.slane %v2472, 1
    %v2486 = vsel %vm1160, %v2484, %v2485
    %v2487 = vrot.slane %v2473, 1
    %v2488 = vsel %vm1160, %v2482, %v2487
    %v2489 = vrot.slane %v2474, 1
    %v2490 = vsel %vm1160, %v2485, %v2489
    %2491 = vrot.lane.b32.xlu0 %v2483, 124
    %v2492 = vpop.permute.xlu0 %2491
    %2493 = vrot.lane.b32.xlu0 %v2486, 124
    %v2494 = vpop.permute.xlu0 %2493
    %2495 = vrot.lane.b32.xlu0 %v2488, 124
    %v2496 = vpop.permute.xlu0 %2495
    %2497 = vrot.lane.b32.xlu0 %v2490, 124
    %v2498 = vpop.permute.xlu0 %2497
    %v2499 = vsel %vm955, %v2492, %v2494
    %v2500 = vsel %vm955, %v2496, %v2498
    %v2503 = vadd.f32 %v2179, %v2499
    %v2504 = vadd.f32 %v2180, %v2500
    %v2505 = vmul.f32 %v1215, %v2355
    %v2506 = vmul.f32 %v1459, %v2355
    %v2507 = vmul.f32 %v255, %v2355
    %v2508 = vmul.f32 %v400, %v2355
    %v2509 = vmul.f32 %v1216, %v2355
    %v2510 = vmul.f32 %v1460, %v2355
    %v2517 = vrot.slane %v2505, 1
    %v2518 = vrot.slane %v2507, 1
    %v2519 = vsel %vm1160, %v2517, %v2518
    %v2520 = vrot.slane %v2506, 1
    %v2521 = vrot.slane %v2508, 1
    %v2522 = vsel %vm1160, %v2520, %v2521
    %v2523 = vrot.slane %v2509, 1
    %v2524 = vsel %vm1160, %v2518, %v2523
    %v2525 = vrot.slane %v2510, 1
    %v2526 = vsel %vm1160, %v2521, %v2525
    %2527 = vrot.lane.b32.xlu0 %v2519, 124
    %v2528 = vpop.permute.xlu0 %2527
    %2529 = vrot.lane.b32.xlu0 %v2522, 124
    %v2530 = vpop.permute.xlu0 %2529
    %2531 = vrot.lane.b32.xlu0 %v2524, 124
    %v2532 = vpop.permute.xlu0 %2531
    %2533 = vrot.lane.b32.xlu0 %v2526, 124
    %v2534 = vpop.permute.xlu0 %2533
    %v2535 = vsel %vm955, %v2528, %v2530
    %v2536 = vsel %vm955, %v2532, %v2534
    %v2539 = vadd.f32 %v2215, %v2535
    %v2540 = vadd.f32 %v2216, %v2536
    %v2541 = vmul.f32 %v1215, %v2395
    %v2542 = vmul.f32 %v1459, %v2395
    %v2543 = vmul.f32 %v255, %v2395
    %v2544 = vmul.f32 %v400, %v2395
    %v2545 = vmul.f32 %v1216, %v2395
    %v2546 = vmul.f32 %v1460, %v2395
    %v2553 = vrot.slane %v2541, 1
    %v2554 = vrot.slane %v2543, 1
    %v2555 = vsel %vm1160, %v2553, %v2554
    %v2556 = vrot.slane %v2542, 1
    %v2557 = vrot.slane %v2544, 1
    %v2558 = vsel %vm1160, %v2556, %v2557
    %v2559 = vrot.slane %v2545, 1
    %v2560 = vsel %vm1160, %v2554, %v2559
    %v2561 = vrot.slane %v2546, 1
    %v2562 = vsel %vm1160, %v2557, %v2561
    %2563 = vrot.lane.b32.xlu0 %v2555, 124
    %v2564 = vpop.permute.xlu0 %2563
    %2565 = vrot.lane.b32.xlu0 %v2558, 124
    %v2566 = vpop.permute.xlu0 %2565
    %2567 = vrot.lane.b32.xlu0 %v2560, 124
    %v2568 = vpop.permute.xlu0 %2567
    %2569 = vrot.lane.b32.xlu0 %v2562, 124
    %v2570 = vpop.permute.xlu0 %2569
    %v2571 = vsel %vm955, %v2564, %v2566
    %v2572 = vsel %vm955, %v2568, %v2570
    %v2575 = vadd.f32 %v2251, %v2571
    %v2576 = vadd.f32 %v2252, %v2572
    %s2577 = scalar_lea.vmem %s1, 16
    %v2578 = vld [vmem:[%s2577] sm:$0x1]
    %v2579 = vlaneseq
    %v2580 = vshrl.u32 %v2579, 7
    %v2581 = vsub.s32 0, %v2580
    %v2582 = vrot.slane %v2578, %v2581
    %s2583 = scalar_lea.vmem %s1, 56
    %v2584 = vld [vmem:[%s2583] sm:$0x1]
    %v2585 = vlaneseq
    %v2586 = vshrl.u32 %v2585, 7
    %v2587 = vsub.s32 0, %v2586
    %v2588 = vrot.slane %v2584, %v2587
    %s2589 = scalar_lea.vmem %s1, 96
    %v2590 = vld [vmem:[%s2589] sm:$0x1]
    %v2591 = vlaneseq
    %v2592 = vshrl.u32 %v2591, 7
    %v2593 = vsub.s32 0, %v2592
    %v2594 = vrot.slane %v2590, %v2593
    %s2595 = scalar_lea.vmem %s1, 136
    %v2596 = vld [vmem:[%s2595] sm:$0x1]
    %v2597 = vlaneseq
    %v2598 = vshrl.u32 %v2597, 7
    %v2599 = vsub.s32 0, %v2598
    %v2600 = vrot.slane %v2596, %v2599
    %v2601 = vld [vmem:[#allocation2] sm:$0xfc]
    %v2602 = vld [vmem:[#allocation2 + $0x20] sm:$0x3]
    %v2603 = vmul.f32 %v2601, %v2582
    %v2604 = vmul.f32 %v237, %v2582
    %v2605 = vmul.f32 %v2602, %v2582
    %vm2609 = vcmask 1045504
    %v2610 = vrot.slane %v2603, 2
    %v2611 = vrot.slane %v2604, 2
    %v2612 = vsel %vm2609, %v2610, %v2611
    %v2613 = vrot.slane %v2605, 2
    %v2614 = vsel %vm2609, %v2611, %v2613
    %v2617 = vadd.f32 %v2311, %v2612
    %v2618 = vadd.f32 %v2312, %v2614
    %v2619 = vmul.f32 %v2601, %v2588
    %v2620 = vmul.f32 %v237, %v2588
    %v2621 = vmul.f32 %v2602, %v2588
    %v2625 = vrot.slane %v2619, 2
    %v2626 = vrot.slane %v2620, 2
    %v2627 = vsel %vm2609, %v2625, %v2626
    %v2628 = vrot.slane %v2621, 2
    %v2629 = vsel %vm2609, %v2626, %v2628
    %v2632 = vadd.f32 %v2351, %v2627
    %v2633 = vadd.f32 %v2352, %v2629
    %v2634 = vmul.f32 %v2601, %v2594
    %v2635 = vmul.f32 %v237, %v2594
    %v2636 = vmul.f32 %v2602, %v2594
    %v2640 = vrot.slane %v2634, 2
    %v2641 = vrot.slane %v2635, 2
    %v2642 = vsel %vm2609, %v2640, %v2641
    %v2643 = vrot.slane %v2636, 2
    %v2644 = vsel %vm2609, %v2641, %v2643
    %v2647 = vadd.f32 %v2391, %v2642
    %v2648 = vadd.f32 %v2392, %v2644
    %v2649 = vmul.f32 %v2601, %v2600
    %v2650 = vmul.f32 %v237, %v2600
    %v2651 = vmul.f32 %v2602, %v2600
    %v2655 = vrot.slane %v2649, 2
    %v2656 = vrot.slane %v2650, 2
    %v2657 = vsel %vm2609, %v2655, %v2656
    %v2658 = vrot.slane %v2651, 2
    %v2659 = vsel %vm2609, %v2656, %v2658
    %v2662 = vadd.f32 %v2431, %v2657
    %v2663 = vadd.f32 %v2432, %v2659
    %v2664 = vld [vmem:[%s149] sm:$0xfc]
    %v2665 = vld [vmem:[%s149 + $0x20] sm:$0x3]
    %v2666 = vmul.f32 %v2664, %v2582
    %v2667 = vmul.f32 %v255, %v2582
    %v2668 = vmul.f32 %v2665, %v2582
    %v2672 = vrot.slane %v2666, 2
    %v2673 = vrot.slane %v2667, 2
    %v2674 = vsel %vm2609, %v2672, %v2673
    %v2675 = vrot.slane %v2668, 2
    %v2676 = vsel %vm2609, %v2673, %v2675
    %v2679 = vadd.f32 %v2467, %v2674
    %v2680 = vadd.f32 %v2468, %v2676
    %v2681 = vmul.f32 %v2664, %v2588
    %v2682 = vmul.f32 %v255, %v2588
    %v2683 = vmul.f32 %v2665, %v2588
    %v2687 = vrot.slane %v2681, 2
    %v2688 = vrot.slane %v2682, 2
    %v2689 = vsel %vm2609, %v2687, %v2688
    %v2690 = vrot.slane %v2683, 2
    %v2691 = vsel %vm2609, %v2688, %v2690
    %v2694 = vadd.f32 %v2503, %v2689
    %v2695 = vadd.f32 %v2504, %v2691
    %v2696 = vmul.f32 %v2664, %v2594
    %v2697 = vmul.f32 %v255, %v2594
    %v2698 = vmul.f32 %v2665, %v2594
    %v2702 = vrot.slane %v2696, 2
    %v2703 = vrot.slane %v2697, 2
    %v2704 = vsel %vm2609, %v2702, %v2703
    %v2705 = vrot.slane %v2698, 2
    %v2706 = vsel %vm2609, %v2703, %v2705
    %v2709 = vadd.f32 %v2539, %v2704
    %v2710 = vadd.f32 %v2540, %v2706
    %v2711 = vmul.f32 %v2664, %v2600
    %v2712 = vmul.f32 %v255, %v2600
    %v2713 = vmul.f32 %v2665, %v2600
    %v2717 = vrot.slane %v2711, 2
    %v2718 = vrot.slane %v2712, 2
    %v2719 = vsel %vm2609, %v2717, %v2718
    %v2720 = vrot.slane %v2713, 2
    %v2721 = vsel %vm2609, %v2718, %v2720
    %v2724 = vadd.f32 %v2575, %v2719
    %v2725 = vadd.f32 %v2576, %v2721
    %v2726 = vld [vmem:[%s2577 + $0x1] sm:$0x1]
    %v2727 = vlaneseq
    %v2728 = vshrl.u32 %v2727, 7
    %v2729 = vsub.s32 0, %v2728
    %v2730 = vrot.slane %v2726, %v2729
    %v2731 = vld [vmem:[%s2583 + $0x1] sm:$0x1]
    %v2732 = vlaneseq
    %v2733 = vshrl.u32 %v2732, 7
    %v2734 = vsub.s32 0, %v2733
    %v2735 = vrot.slane %v2731, %v2734
    %v2736 = vld [vmem:[%s2589 + $0x1] sm:$0x1]
    %v2737 = vlaneseq
    %v2738 = vshrl.u32 %v2737, 7
    %v2739 = vsub.s32 0, %v2738
    %v2740 = vrot.slane %v2736, %v2739
    %v2741 = vld [vmem:[%s2595 + $0x1] sm:$0x1]
    %v2742 = vlaneseq
    %v2743 = vshrl.u32 %v2742, 7
    %v2744 = vsub.s32 0, %v2743
    %v2745 = vrot.slane %v2741, %v2744
    %v2746 = vld [vmem:[#allocation2 + $0x8] sm:$0xfc]
    %v2747 = vld [vmem:[#allocation2 + $0x28] sm:$0x3]
    %2749 = vrot.lane.b32.xlu0 %v2730, 1
    %v2750 = vpop.permute.xlu0 %2749
    %v2752 = vmul.f32 %v2601, %v2750
    %v2753 = vmul.f32 %v2746, %v2750
    %v2754 = vmul.f32 %v237, %v2750
    %v2755 = vmul.f32 %v293, %v2750
    %v2756 = vmul.f32 %v2602, %v2750
    %v2757 = vmul.f32 %v2747, %v2750
    %v2764 = vrot.slane %v2752, 2
    %v2765 = vrot.slane %v2754, 2
    %v2766 = vsel %vm2609, %v2764, %v2765
    %v2767 = vrot.slane %v2753, 2
    %v2768 = vrot.slane %v2755, 2
    %v2769 = vsel %vm2609, %v2767, %v2768
    %v2770 = vrot.slane %v2756, 2
    %v2771 = vsel %vm2609, %v2765, %v2770
    %v2772 = vrot.slane %v2757, 2
    %v2773 = vsel %vm2609, %v2768, %v2772
    %2774 = vrot.lane.b32.xlu0 %v2766, 127
    %v2775 = vpop.permute.xlu0 %2774
    %2776 = vrot.lane.b32.xlu0 %v2769, 127
    %v2777 = vpop.permute.xlu0 %2776
    %2778 = vrot.lane.b32.xlu0 %v2771, 127
    %v2779 = vpop.permute.xlu0 %2778
    %2780 = vrot.lane.b32.xlu0 %v2773, 127
    %v2781 = vpop.permute.xlu0 %2780
    %v2782 = vsel %vm314, %v2775, %v2777
    %v2783 = vsel %vm314, %v2779, %v2781
    %v2786 = vadd.f32 %v2617, %v2782
    %v2787 = vadd.f32 %v2618, %v2783
    %2789 = vrot.lane.b32.xlu0 %v2735, 1
    %v2790 = vpop.permute.xlu0 %2789
    %v2792 = vmul.f32 %v2601, %v2790
    %v2793 = vmul.f32 %v2746, %v2790
    %v2794 = vmul.f32 %v237, %v2790
    %v2795 = vmul.f32 %v293, %v2790
    %v2796 = vmul.f32 %v2602, %v2790
    %v2797 = vmul.f32 %v2747, %v2790
    %v2804 = vrot.slane %v2792, 2
    %v2805 = vrot.slane %v2794, 2
    %v2806 = vsel %vm2609, %v2804, %v2805
    %v2807 = vrot.slane %v2793, 2
    %v2808 = vrot.slane %v2795, 2
    %v2809 = vsel %vm2609, %v2807, %v2808
    %v2810 = vrot.slane %v2796, 2
    %v2811 = vsel %vm2609, %v2805, %v2810
    %v2812 = vrot.slane %v2797, 2
    %v2813 = vsel %vm2609, %v2808, %v2812
    %2814 = vrot.lane.b32.xlu0 %v2806, 127
    %v2815 = vpop.permute.xlu0 %2814
    %2816 = vrot.lane.b32.xlu0 %v2809, 127
    %v2817 = vpop.permute.xlu0 %2816
    %2818 = vrot.lane.b32.xlu0 %v2811, 127
    %v2819 = vpop.permute.xlu0 %2818
    %2820 = vrot.lane.b32.xlu0 %v2813, 127
    %v2821 = vpop.permute.xlu0 %2820
    %v2822 = vsel %vm314, %v2815, %v2817
    %v2823 = vsel %vm314, %v2819, %v2821
    %v2826 = vadd.f32 %v2632, %v2822
    %v2827 = vadd.f32 %v2633, %v2823
    %2829 = vrot.lane.b32.xlu0 %v2740, 1
    %v2830 = vpop.permute.xlu0 %2829
    %v2832 = vmul.f32 %v2601, %v2830
    %v2833 = vmul.f32 %v2746, %v2830
    %v2834 = vmul.f32 %v237, %v2830
    %v2835 = vmul.f32 %v293, %v2830
    %v2836 = vmul.f32 %v2602, %v2830
    %v2837 = vmul.f32 %v2747, %v2830
    %v2844 = vrot.slane %v2832, 2
    %v2845 = vrot.slane %v2834, 2
    %v2846 = vsel %vm2609, %v2844, %v2845
    %v2847 = vrot.slane %v2833, 2
    %v2848 = vrot.slane %v2835, 2
    %v2849 = vsel %vm2609, %v2847, %v2848
    %v2850 = vrot.slane %v2836, 2
    %v2851 = vsel %vm2609, %v2845, %v2850
    %v2852 = vrot.slane %v2837, 2
    %v2853 = vsel %vm2609, %v2848, %v2852
    %2854 = vrot.lane.b32.xlu0 %v2846, 127
    %v2855 = vpop.permute.xlu0 %2854
    %2856 = vrot.lane.b32.xlu0 %v2849, 127
    %v2857 = vpop.permute.xlu0 %2856
    %2858 = vrot.lane.b32.xlu0 %v2851, 127
    %v2859 = vpop.permute.xlu0 %2858
    %2860 = vrot.lane.b32.xlu0 %v2853, 127
    %v2861 = vpop.permute.xlu0 %2860
    %v2862 = vsel %vm314, %v2855, %v2857
    %v2863 = vsel %vm314, %v2859, %v2861
    %v2866 = vadd.f32 %v2647, %v2862
    %v2867 = vadd.f32 %v2648, %v2863
    %2869 = vrot.lane.b32.xlu0 %v2745, 1
    %v2870 = vpop.permute.xlu0 %2869
    %v2872 = vmul.f32 %v2601, %v2870
    %v2873 = vmul.f32 %v2746, %v2870
    %v2874 = vmul.f32 %v237, %v2870
    %v2875 = vmul.f32 %v293, %v2870
    %v2876 = vmul.f32 %v2602, %v2870
    %v2877 = vmul.f32 %v2747, %v2870
    %v2884 = vrot.slane %v2872, 2
    %v2885 = vrot.slane %v2874, 2
    %v2886 = vsel %vm2609, %v2884, %v2885
    %v2887 = vrot.slane %v2873, 2
    %v2888 = vrot.slane %v2875, 2
    %v2889 = vsel %vm2609, %v2887, %v2888
    %v2890 = vrot.slane %v2876, 2
    %v2891 = vsel %vm2609, %v2885, %v2890
    %v2892 = vrot.slane %v2877, 2
    %v2893 = vsel %vm2609, %v2888, %v2892
    %2894 = vrot.lane.b32.xlu0 %v2886, 127
    %v2895 = vpop.permute.xlu0 %2894
    %2896 = vrot.lane.b32.xlu0 %v2889, 127
    %v2897 = vpop.permute.xlu0 %2896
    %2898 = vrot.lane.b32.xlu0 %v2891, 127
    %v2899 = vpop.permute.xlu0 %2898
    %2900 = vrot.lane.b32.xlu0 %v2893, 127
    %v2901 = vpop.permute.xlu0 %2900
    %v2902 = vsel %vm314, %v2895, %v2897
    %v2903 = vsel %vm314, %v2899, %v2901
    %v2906 = vadd.f32 %v2662, %v2902
    %v2907 = vadd.f32 %v2663, %v2903
    %v2908 = vld [vmem:[%s149 + $0x8] sm:$0xfc]
    %v2909 = vld [vmem:[%s149 + $0x28] sm:$0x3]
    %v2910 = vmul.f32 %v2664, %v2750
    %v2911 = vmul.f32 %v2908, %v2750
    %v2912 = vmul.f32 %v255, %v2750
    %v2913 = vmul.f32 %v400, %v2750
    %v2914 = vmul.f32 %v2665, %v2750
    %v2915 = vmul.f32 %v2909, %v2750
    %v2922 = vrot.slane %v2910, 2
    %v2923 = vrot.slane %v2912, 2
    %v2924 = vsel %vm2609, %v2922, %v2923
    %v2925 = vrot.slane %v2911, 2
    %v2926 = vrot.slane %v2913, 2
    %v2927 = vsel %vm2609, %v2925, %v2926
    %v2928 = vrot.slane %v2914, 2
    %v2929 = vsel %vm2609, %v2923, %v2928
    %v2930 = vrot.slane %v2915, 2
    %v2931 = vsel %vm2609, %v2926, %v2930
    %2932 = vrot.lane.b32.xlu0 %v2924, 127
    %v2933 = vpop.permute.xlu0 %2932
    %2934 = vrot.lane.b32.xlu0 %v2927, 127
    %v2935 = vpop.permute.xlu0 %2934
    %2936 = vrot.lane.b32.xlu0 %v2929, 127
    %v2937 = vpop.permute.xlu0 %2936
    %2938 = vrot.lane.b32.xlu0 %v2931, 127
    %v2939 = vpop.permute.xlu0 %2938
    %v2940 = vsel %vm314, %v2933, %v2935
    %v2941 = vsel %vm314, %v2937, %v2939
    %v2944 = vadd.f32 %v2679, %v2940
    %v2945 = vadd.f32 %v2680, %v2941
    %v2946 = vmul.f32 %v2664, %v2790
    %v2947 = vmul.f32 %v2908, %v2790
    %v2948 = vmul.f32 %v255, %v2790
    %v2949 = vmul.f32 %v400, %v2790
    %v2950 = vmul.f32 %v2665, %v2790
    %v2951 = vmul.f32 %v2909, %v2790
    %v2958 = vrot.slane %v2946, 2
    %v2959 = vrot.slane %v2948, 2
    %v2960 = vsel %vm2609, %v2958, %v2959
    %v2961 = vrot.slane %v2947, 2
    %v2962 = vrot.slane %v2949, 2
    %v2963 = vsel %vm2609, %v2961, %v2962
    %v2964 = vrot.slane %v2950, 2
    %v2965 = vsel %vm2609, %v2959, %v2964
    %v2966 = vrot.slane %v2951, 2
    %v2967 = vsel %vm2609, %v2962, %v2966
    %2968 = vrot.lane.b32.xlu0 %v2960, 127
    %v2969 = vpop.permute.xlu0 %2968
    %2970 = vrot.lane.b32.xlu0 %v2963, 127
    %v2971 = vpop.permute.xlu0 %2970
    %2972 = vrot.lane.b32.xlu0 %v2965, 127
    %v2973 = vpop.permute.xlu0 %2972
    %2974 = vrot.lane.b32.xlu0 %v2967, 127
    %v2975 = vpop.permute.xlu0 %2974
    %v2976 = vsel %vm314, %v2969, %v2971
    %v2977 = vsel %vm314, %v2973, %v2975
    %v2980 = vadd.f32 %v2694, %v2976
    %v2981 = vadd.f32 %v2695, %v2977
    %v2982 = vmul.f32 %v2664, %v2830
    %v2983 = vmul.f32 %v2908, %v2830
    %v2984 = vmul.f32 %v255, %v2830
    %v2985 = vmul.f32 %v400, %v2830
    %v2986 = vmul.f32 %v2665, %v2830
    %v2987 = vmul.f32 %v2909, %v2830
    %v2994 = vrot.slane %v2982, 2
    %v2995 = vrot.slane %v2984, 2
    %v2996 = vsel %vm2609, %v2994, %v2995
    %v2997 = vrot.slane %v2983, 2
    %v2998 = vrot.slane %v2985, 2
    %v2999 = vsel %vm2609, %v2997, %v2998
    %v3000 = vrot.slane %v2986, 2
    %v3001 = vsel %vm2609, %v2995, %v3000
    %v3002 = vrot.slane %v2987, 2
    %v3003 = vsel %vm2609, %v2998, %v3002
    %3004 = vrot.lane.b32.xlu0 %v2996, 127
    %v3005 = vpop.permute.xlu0 %3004
    %3006 = vrot.lane.b32.xlu0 %v2999, 127
    %v3007 = vpop.permute.xlu0 %3006
    %3008 = vrot.lane.b32.xlu0 %v3001, 127
    %v3009 = vpop.permute.xlu0 %3008
    %3010 = vrot.lane.b32.xlu0 %v3003, 127
    %v3011 = vpop.permute.xlu0 %3010
    %v3012 = vsel %vm314, %v3005, %v3007
    %v3013 = vsel %vm314, %v3009, %v3011
    %v3016 = vadd.f32 %v2709, %v3012
    %v3017 = vadd.f32 %v2710, %v3013
    %v3018 = vmul.f32 %v2664, %v2870
    %v3019 = vmul.f32 %v2908, %v2870
    %v3020 = vmul.f32 %v255, %v2870
    %v3021 = vmul.f32 %v400, %v2870
    %v3022 = vmul.f32 %v2665, %v2870
    %v3023 = vmul.f32 %v2909, %v2870
    %v3030 = vrot.slane %v3018, 2
    %v3031 = vrot.slane %v3020, 2
    %v3032 = vsel %vm2609, %v3030, %v3031
    %v3033 = vrot.slane %v3019, 2
    %v3034 = vrot.slane %v3021, 2
    %v3035 = vsel %vm2609, %v3033, %v3034
    %v3036 = vrot.slane %v3022, 2
    %v3037 = vsel %vm2609, %v3031, %v3036
    %v3038 = vrot.slane %v3023, 2
    %v3039 = vsel %vm2609, %v3034, %v3038
    %3040 = vrot.lane.b32.xlu0 %v3032, 127
    %v3041 = vpop.permute.xlu0 %3040
    %3042 = vrot.lane.b32.xlu0 %v3035, 127
    %v3043 = vpop.permute.xlu0 %3042
    %3044 = vrot.lane.b32.xlu0 %v3037, 127
    %v3045 = vpop.permute.xlu0 %3044
    %3046 = vrot.lane.b32.xlu0 %v3039, 127
    %v3047 = vpop.permute.xlu0 %3046
    %v3048 = vsel %vm314, %v3041, %v3043
    %v3049 = vsel %vm314, %v3045, %v3047
    %v3052 = vadd.f32 %v2724, %v3048
    %v3053 = vadd.f32 %v2725, %v3049
    %v3054 = vld [vmem:[%s2577 + $0x2] sm:$0x1]
    %v3055 = vlaneseq
    %v3056 = vshrl.u32 %v3055, 7
    %v3057 = vsub.s32 0, %v3056
    %v3058 = vrot.slane %v3054, %v3057
    %v3059 = vld [vmem:[%s2583 + $0x2] sm:$0x1]
    %v3060 = vlaneseq
    %v3061 = vshrl.u32 %v3060, 7
    %v3062 = vsub.s32 0, %v3061
    %v3063 = vrot.slane %v3059, %v3062
    %v3064 = vld [vmem:[%s2589 + $0x2] sm:$0x1]
    %v3065 = vlaneseq
    %v3066 = vshrl.u32 %v3065, 7
    %v3067 = vsub.s32 0, %v3066
    %v3068 = vrot.slane %v3064, %v3067
    %v3069 = vld [vmem:[%s2595 + $0x2] sm:$0x1]
    %v3070 = vlaneseq
    %v3071 = vshrl.u32 %v3070, 7
    %v3072 = vsub.s32 0, %v3071
    %v3073 = vrot.slane %v3069, %v3072
    %3075 = vrot.lane.b32.xlu0 %v3058, 2
    %v3076 = vpop.permute.xlu0 %3075
    %v3078 = vmul.f32 %v2601, %v3076
    %v3079 = vmul.f32 %v2746, %v3076
    %v3080 = vmul.f32 %v237, %v3076
    %v3081 = vmul.f32 %v293, %v3076
    %v3082 = vmul.f32 %v2602, %v3076
    %v3083 = vmul.f32 %v2747, %v3076
    %v3090 = vrot.slane %v3078, 2
    %v3091 = vrot.slane %v3080, 2
    %v3092 = vsel %vm2609, %v3090, %v3091
    %v3093 = vrot.slane %v3079, 2
    %v3094 = vrot.slane %v3081, 2
    %v3095 = vsel %vm2609, %v3093, %v3094
    %v3096 = vrot.slane %v3082, 2
    %v3097 = vsel %vm2609, %v3091, %v3096
    %v3098 = vrot.slane %v3083, 2
    %v3099 = vsel %vm2609, %v3094, %v3098
    %3100 = vrot.lane.b32.xlu0 %v3092, 126
    %v3101 = vpop.permute.xlu0 %3100
    %3102 = vrot.lane.b32.xlu0 %v3095, 126
    %v3103 = vpop.permute.xlu0 %3102
    %3104 = vrot.lane.b32.xlu0 %v3097, 126
    %v3105 = vpop.permute.xlu0 %3104
    %3106 = vrot.lane.b32.xlu0 %v3099, 126
    %v3107 = vpop.permute.xlu0 %3106
    %v3108 = vsel %vm529, %v3101, %v3103
    %v3109 = vsel %vm529, %v3105, %v3107
    %v3112 = vadd.f32 %v2786, %v3108
    %v3113 = vadd.f32 %v2787, %v3109
    %3115 = vrot.lane.b32.xlu0 %v3063, 2
    %v3116 = vpop.permute.xlu0 %3115
    %v3118 = vmul.f32 %v2601, %v3116
    %v3119 = vmul.f32 %v2746, %v3116
    %v3120 = vmul.f32 %v237, %v3116
    %v3121 = vmul.f32 %v293, %v3116
    %v3122 = vmul.f32 %v2602, %v3116
    %v3123 = vmul.f32 %v2747, %v3116
    %v3130 = vrot.slane %v3118, 2
    %v3131 = vrot.slane %v3120, 2
    %v3132 = vsel %vm2609, %v3130, %v3131
    %v3133 = vrot.slane %v3119, 2
    %v3134 = vrot.slane %v3121, 2
    %v3135 = vsel %vm2609, %v3133, %v3134
    %v3136 = vrot.slane %v3122, 2
    %v3137 = vsel %vm2609, %v3131, %v3136
    %v3138 = vrot.slane %v3123, 2
    %v3139 = vsel %vm2609, %v3134, %v3138
    %3140 = vrot.lane.b32.xlu0 %v3132, 126
    %v3141 = vpop.permute.xlu0 %3140
    %3142 = vrot.lane.b32.xlu0 %v3135, 126
    %v3143 = vpop.permute.xlu0 %3142
    %3144 = vrot.lane.b32.xlu0 %v3137, 126
    %v3145 = vpop.permute.xlu0 %3144
    %3146 = vrot.lane.b32.xlu0 %v3139, 126
    %v3147 = vpop.permute.xlu0 %3146
    %v3148 = vsel %vm529, %v3141, %v3143
    %v3149 = vsel %vm529, %v3145, %v3147
    %v3152 = vadd.f32 %v2826, %v3148
    %v3153 = vadd.f32 %v2827, %v3149
    %3155 = vrot.lane.b32.xlu0 %v3068, 2
    %v3156 = vpop.permute.xlu0 %3155
    %v3158 = vmul.f32 %v2601, %v3156
    %v3159 = vmul.f32 %v2746, %v3156
    %v3160 = vmul.f32 %v237, %v3156
    %v3161 = vmul.f32 %v293, %v3156
    %v3162 = vmul.f32 %v2602, %v3156
    %v3163 = vmul.f32 %v2747, %v3156
    %v3170 = vrot.slane %v3158, 2
    %v3171 = vrot.slane %v3160, 2
    %v3172 = vsel %vm2609, %v3170, %v3171
    %v3173 = vrot.slane %v3159, 2
    %v3174 = vrot.slane %v3161, 2
    %v3175 = vsel %vm2609, %v3173, %v3174
    %v3176 = vrot.slane %v3162, 2
    %v3177 = vsel %vm2609, %v3171, %v3176
    %v3178 = vrot.slane %v3163, 2
    %v3179 = vsel %vm2609, %v3174, %v3178
    %3180 = vrot.lane.b32.xlu0 %v3172, 126
    %v3181 = vpop.permute.xlu0 %3180
    %3182 = vrot.lane.b32.xlu0 %v3175, 126
    %v3183 = vpop.permute.xlu0 %3182
    %3184 = vrot.lane.b32.xlu0 %v3177, 126
    %v3185 = vpop.permute.xlu0 %3184
    %3186 = vrot.lane.b32.xlu0 %v3179, 126
    %v3187 = vpop.permute.xlu0 %3186
    %v3188 = vsel %vm529, %v3181, %v3183
    %v3189 = vsel %vm529, %v3185, %v3187
    %v3192 = vadd.f32 %v2866, %v3188
    %v3193 = vadd.f32 %v2867, %v3189
    %3195 = vrot.lane.b32.xlu0 %v3073, 2
    %v3196 = vpop.permute.xlu0 %3195
    %v3198 = vmul.f32 %v2601, %v3196
    %v3199 = vmul.f32 %v2746, %v3196
    %v3200 = vmul.f32 %v237, %v3196
    %v3201 = vmul.f32 %v293, %v3196
    %v3202 = vmul.f32 %v2602, %v3196
    %v3203 = vmul.f32 %v2747, %v3196
    %v3210 = vrot.slane %v3198, 2
    %v3211 = vrot.slane %v3200, 2
    %v3212 = vsel %vm2609, %v3210, %v3211
    %v3213 = vrot.slane %v3199, 2
    %v3214 = vrot.slane %v3201, 2
    %v3215 = vsel %vm2609, %v3213, %v3214
    %v3216 = vrot.slane %v3202, 2
    %v3217 = vsel %vm2609, %v3211, %v3216
    %v3218 = vrot.slane %v3203, 2
    %v3219 = vsel %vm2609, %v3214, %v3218
    %3220 = vrot.lane.b32.xlu0 %v3212, 126
    %v3221 = vpop.permute.xlu0 %3220
    %3222 = vrot.lane.b32.xlu0 %v3215, 126
    %v3223 = vpop.permute.xlu0 %3222
    %3224 = vrot.lane.b32.xlu0 %v3217, 126
    %v3225 = vpop.permute.xlu0 %3224
    %3226 = vrot.lane.b32.xlu0 %v3219, 126
    %v3227 = vpop.permute.xlu0 %3226
    %v3228 = vsel %vm529, %v3221, %v3223
    %v3229 = vsel %vm529, %v3225, %v3227
    %v3232 = vadd.f32 %v2906, %v3228
    %v3233 = vadd.f32 %v2907, %v3229
    %v3234 = vmul.f32 %v2664, %v3076
    %v3235 = vmul.f32 %v2908, %v3076
    %v3236 = vmul.f32 %v255, %v3076
    %v3237 = vmul.f32 %v400, %v3076
    %v3238 = vmul.f32 %v2665, %v3076
    %v3239 = vmul.f32 %v2909, %v3076
    %v3246 = vrot.slane %v3234, 2
    %v3247 = vrot.slane %v3236, 2
    %v3248 = vsel %vm2609, %v3246, %v3247
    %v3249 = vrot.slane %v3235, 2
    %v3250 = vrot.slane %v3237, 2
    %v3251 = vsel %vm2609, %v3249, %v3250
    %v3252 = vrot.slane %v3238, 2
    %v3253 = vsel %vm2609, %v3247, %v3252
    %v3254 = vrot.slane %v3239, 2
    %v3255 = vsel %vm2609, %v3250, %v3254
    %3256 = vrot.lane.b32.xlu0 %v3248, 126
    %v3257 = vpop.permute.xlu0 %3256
    %3258 = vrot.lane.b32.xlu0 %v3251, 126
    %v3259 = vpop.permute.xlu0 %3258
    %3260 = vrot.lane.b32.xlu0 %v3253, 126
    %v3261 = vpop.permute.xlu0 %3260
    %3262 = vrot.lane.b32.xlu0 %v3255, 126
    %v3263 = vpop.permute.xlu0 %3262
    %v3264 = vsel %vm529, %v3257, %v3259
    %v3265 = vsel %vm529, %v3261, %v3263
    %v3268 = vadd.f32 %v2944, %v3264
    %v3269 = vadd.f32 %v2945, %v3265
    %v3270 = vmul.f32 %v2664, %v3116
    %v3271 = vmul.f32 %v2908, %v3116
    %v3272 = vmul.f32 %v255, %v3116
    %v3273 = vmul.f32 %v400, %v3116
    %v3274 = vmul.f32 %v2665, %v3116
    %v3275 = vmul.f32 %v2909, %v3116
    %v3282 = vrot.slane %v3270, 2
    %v3283 = vrot.slane %v3272, 2
    %v3284 = vsel %vm2609, %v3282, %v3283
    %v3285 = vrot.slane %v3271, 2
    %v3286 = vrot.slane %v3273, 2
    %v3287 = vsel %vm2609, %v3285, %v3286
    %v3288 = vrot.slane %v3274, 2
    %v3289 = vsel %vm2609, %v3283, %v3288
    %v3290 = vrot.slane %v3275, 2
    %v3291 = vsel %vm2609, %v3286, %v3290
    %3292 = vrot.lane.b32.xlu0 %v3284, 126
    %v3293 = vpop.permute.xlu0 %3292
    %3294 = vrot.lane.b32.xlu0 %v3287, 126
    %v3295 = vpop.permute.xlu0 %3294
    %3296 = vrot.lane.b32.xlu0 %v3289, 126
    %v3297 = vpop.permute.xlu0 %3296
    %3298 = vrot.lane.b32.xlu0 %v3291, 126
    %v3299 = vpop.permute.xlu0 %3298
    %v3300 = vsel %vm529, %v3293, %v3295
    %v3301 = vsel %vm529, %v3297, %v3299
    %v3304 = vadd.f32 %v2980, %v3300
    %v3305 = vadd.f32 %v2981, %v3301
    %v3306 = vmul.f32 %v2664, %v3156
    %v3307 = vmul.f32 %v2908, %v3156
    %v3308 = vmul.f32 %v255, %v3156
    %v3309 = vmul.f32 %v400, %v3156
    %v3310 = vmul.f32 %v2665, %v3156
    %v3311 = vmul.f32 %v2909, %v3156
    %v3318 = vrot.slane %v3306, 2
    %v3319 = vrot.slane %v3308, 2
    %v3320 = vsel %vm2609, %v3318, %v3319
    %v3321 = vrot.slane %v3307, 2
    %v3322 = vrot.slane %v3309, 2
    %v3323 = vsel %vm2609, %v3321, %v3322
    %v3324 = vrot.slane %v3310, 2
    %v3325 = vsel %vm2609, %v3319, %v3324
    %v3326 = vrot.slane %v3311, 2
    %v3327 = vsel %vm2609, %v3322, %v3326
    %3328 = vrot.lane.b32.xlu0 %v3320, 126
    %v3329 = vpop.permute.xlu0 %3328
    %3330 = vrot.lane.b32.xlu0 %v3323, 126
    %v3331 = vpop.permute.xlu0 %3330
    %3332 = vrot.lane.b32.xlu0 %v3325, 126
    %v3333 = vpop.permute.xlu0 %3332
    %3334 = vrot.lane.b32.xlu0 %v3327, 126
    %v3335 = vpop.permute.xlu0 %3334
    %v3336 = vsel %vm529, %v3329, %v3331
    %v3337 = vsel %vm529, %v3333, %v3335
    %v3340 = vadd.f32 %v3016, %v3336
    %v3341 = vadd.f32 %v3017, %v3337
    %v3342 = vmul.f32 %v2664, %v3196
    %v3343 = vmul.f32 %v2908, %v3196
    %v3344 = vmul.f32 %v255, %v3196
    %v3345 = vmul.f32 %v400, %v3196
    %v3346 = vmul.f32 %v2665, %v3196
    %v3347 = vmul.f32 %v2909, %v3196
    %v3354 = vrot.slane %v3342, 2
    %v3355 = vrot.slane %v3344, 2
    %v3356 = vsel %vm2609, %v3354, %v3355
    %v3357 = vrot.slane %v3343, 2
    %v3358 = vrot.slane %v3345, 2
    %v3359 = vsel %vm2609, %v3357, %v3358
    %v3360 = vrot.slane %v3346, 2
    %v3361 = vsel %vm2609, %v3355, %v3360
    %v3362 = vrot.slane %v3347, 2
    %v3363 = vsel %vm2609, %v3358, %v3362
    %3364 = vrot.lane.b32.xlu0 %v3356, 126
    %v3365 = vpop.permute.xlu0 %3364
    %3366 = vrot.lane.b32.xlu0 %v3359, 126
    %v3367 = vpop.permute.xlu0 %3366
    %3368 = vrot.lane.b32.xlu0 %v3361, 126
    %v3369 = vpop.permute.xlu0 %3368
    %3370 = vrot.lane.b32.xlu0 %v3363, 126
    %v3371 = vpop.permute.xlu0 %3370
    %v3372 = vsel %vm529, %v3365, %v3367
    %v3373 = vsel %vm529, %v3369, %v3371
    %v3376 = vadd.f32 %v3052, %v3372
    %v3377 = vadd.f32 %v3053, %v3373
    %v3378 = vld [vmem:[%s2577 + $0x3] sm:$0x1]
    %v3379 = vlaneseq
    %v3380 = vshrl.u32 %v3379, 7
    %v3381 = vsub.s32 0, %v3380
    %v3382 = vrot.slane %v3378, %v3381
    %v3383 = vld [vmem:[%s2583 + $0x3] sm:$0x1]
    %v3384 = vlaneseq
    %v3385 = vshrl.u32 %v3384, 7
    %v3386 = vsub.s32 0, %v3385
    %v3387 = vrot.slane %v3383, %v3386
    %v3388 = vld [vmem:[%s2589 + $0x3] sm:$0x1]
    %v3389 = vlaneseq
    %v3390 = vshrl.u32 %v3389, 7
    %v3391 = vsub.s32 0, %v3390
    %v3392 = vrot.slane %v3388, %v3391
    %v3393 = vld [vmem:[%s2595 + $0x3] sm:$0x1]
    %v3394 = vlaneseq
    %v3395 = vshrl.u32 %v3394, 7
    %v3396 = vsub.s32 0, %v3395
    %v3397 = vrot.slane %v3393, %v3396
    %3399 = vrot.lane.b32.xlu0 %v3382, 3
    %v3400 = vpop.permute.xlu0 %3399
    %v3402 = vmul.f32 %v2601, %v3400
    %v3403 = vmul.f32 %v2746, %v3400
    %v3404 = vmul.f32 %v237, %v3400
    %v3405 = vmul.f32 %v293, %v3400
    %v3406 = vmul.f32 %v2602, %v3400
    %v3407 = vmul.f32 %v2747, %v3400
    %v3414 = vrot.slane %v3402, 2
    %v3415 = vrot.slane %v3404, 2
    %v3416 = vsel %vm2609, %v3414, %v3415
    %v3417 = vrot.slane %v3403, 2
    %v3418 = vrot.slane %v3405, 2
    %v3419 = vsel %vm2609, %v3417, %v3418
    %v3420 = vrot.slane %v3406, 2
    %v3421 = vsel %vm2609, %v3415, %v3420
    %v3422 = vrot.slane %v3407, 2
    %v3423 = vsel %vm2609, %v3418, %v3422
    %3424 = vrot.lane.b32.xlu0 %v3416, 125
    %v3425 = vpop.permute.xlu0 %3424
    %3426 = vrot.lane.b32.xlu0 %v3419, 125
    %v3427 = vpop.permute.xlu0 %3426
    %3428 = vrot.lane.b32.xlu0 %v3421, 125
    %v3429 = vpop.permute.xlu0 %3428
    %3430 = vrot.lane.b32.xlu0 %v3423, 125
    %v3431 = vpop.permute.xlu0 %3430
    %v3432 = vsel %vm742, %v3425, %v3427
    %v3433 = vsel %vm742, %v3429, %v3431
    %v3436 = vadd.f32 %v3112, %v3432
    %v3437 = vadd.f32 %v3113, %v3433
    %3439 = vrot.lane.b32.xlu0 %v3387, 3
    %v3440 = vpop.permute.xlu0 %3439
    %v3442 = vmul.f32 %v2601, %v3440
    %v3443 = vmul.f32 %v2746, %v3440
    %v3444 = vmul.f32 %v237, %v3440
    %v3445 = vmul.f32 %v293, %v3440
    %v3446 = vmul.f32 %v2602, %v3440
    %v3447 = vmul.f32 %v2747, %v3440
    %v3454 = vrot.slane %v3442, 2
    %v3455 = vrot.slane %v3444, 2
    %v3456 = vsel %vm2609, %v3454, %v3455
    %v3457 = vrot.slane %v3443, 2
    %v3458 = vrot.slane %v3445, 2
    %v3459 = vsel %vm2609, %v3457, %v3458
    %v3460 = vrot.slane %v3446, 2
    %v3461 = vsel %vm2609, %v3455, %v3460
    %v3462 = vrot.slane %v3447, 2
    %v3463 = vsel %vm2609, %v3458, %v3462
    %3464 = vrot.lane.b32.xlu0 %v3456, 125
    %v3465 = vpop.permute.xlu0 %3464
    %3466 = vrot.lane.b32.xlu0 %v3459, 125
    %v3467 = vpop.permute.xlu0 %3466
    %3468 = vrot.lane.b32.xlu0 %v3461, 125
    %v3469 = vpop.permute.xlu0 %3468
    %3470 = vrot.lane.b32.xlu0 %v3463, 125
    %v3471 = vpop.permute.xlu0 %3470
    %v3472 = vsel %vm742, %v3465, %v3467
    %v3473 = vsel %vm742, %v3469, %v3471
    %v3476 = vadd.f32 %v3152, %v3472
    %v3477 = vadd.f32 %v3153, %v3473
    %3479 = vrot.lane.b32.xlu0 %v3392, 3
    %v3480 = vpop.permute.xlu0 %3479
    %v3482 = vmul.f32 %v2601, %v3480
    %v3483 = vmul.f32 %v2746, %v3480
    %v3484 = vmul.f32 %v237, %v3480
    %v3485 = vmul.f32 %v293, %v3480
    %v3486 = vmul.f32 %v2602, %v3480
    %v3487 = vmul.f32 %v2747, %v3480
    %v3494 = vrot.slane %v3482, 2
    %v3495 = vrot.slane %v3484, 2
    %v3496 = vsel %vm2609, %v3494, %v3495
    %v3497 = vrot.slane %v3483, 2
    %v3498 = vrot.slane %v3485, 2
    %v3499 = vsel %vm2609, %v3497, %v3498
    %v3500 = vrot.slane %v3486, 2
    %v3501 = vsel %vm2609, %v3495, %v3500
    %v3502 = vrot.slane %v3487, 2
    %v3503 = vsel %vm2609, %v3498, %v3502
    %3504 = vrot.lane.b32.xlu0 %v3496, 125
    %v3505 = vpop.permute.xlu0 %3504
    %3506 = vrot.lane.b32.xlu0 %v3499, 125
    %v3507 = vpop.permute.xlu0 %3506
    %3508 = vrot.lane.b32.xlu0 %v3501, 125
    %v3509 = vpop.permute.xlu0 %3508
    %3510 = vrot.lane.b32.xlu0 %v3503, 125
    %v3511 = vpop.permute.xlu0 %3510
    %v3512 = vsel %vm742, %v3505, %v3507
    %v3513 = vsel %vm742, %v3509, %v3511
    %v3516 = vadd.f32 %v3192, %v3512
    %v3517 = vadd.f32 %v3193, %v3513
    %3519 = vrot.lane.b32.xlu0 %v3397, 3
    %v3520 = vpop.permute.xlu0 %3519
    %v3522 = vmul.f32 %v2601, %v3520
    %v3523 = vmul.f32 %v2746, %v3520
    %v3524 = vmul.f32 %v237, %v3520
    %v3525 = vmul.f32 %v293, %v3520
    %v3526 = vmul.f32 %v2602, %v3520
    %v3527 = vmul.f32 %v2747, %v3520
    %v3534 = vrot.slane %v3522, 2
    %v3535 = vrot.slane %v3524, 2
    %v3536 = vsel %vm2609, %v3534, %v3535
    %v3537 = vrot.slane %v3523, 2
    %v3538 = vrot.slane %v3525, 2
    %v3539 = vsel %vm2609, %v3537, %v3538
    %v3540 = vrot.slane %v3526, 2
    %v3541 = vsel %vm2609, %v3535, %v3540
    %v3542 = vrot.slane %v3527, 2
    %v3543 = vsel %vm2609, %v3538, %v3542
    %3544 = vrot.lane.b32.xlu0 %v3536, 125
    %v3545 = vpop.permute.xlu0 %3544
    %3546 = vrot.lane.b32.xlu0 %v3539, 125
    %v3547 = vpop.permute.xlu0 %3546
    %3548 = vrot.lane.b32.xlu0 %v3541, 125
    %v3549 = vpop.permute.xlu0 %3548
    %3550 = vrot.lane.b32.xlu0 %v3543, 125
    %v3551 = vpop.permute.xlu0 %3550
    %v3552 = vsel %vm742, %v3545, %v3547
    %v3553 = vsel %vm742, %v3549, %v3551
    %v3556 = vadd.f32 %v3232, %v3552
    %v3557 = vadd.f32 %v3233, %v3553
    %v3558 = vmul.f32 %v2664, %v3400
    %v3559 = vmul.f32 %v2908, %v3400
    %v3560 = vmul.f32 %v255, %v3400
    %v3561 = vmul.f32 %v400, %v3400
    %v3562 = vmul.f32 %v2665, %v3400
    %v3563 = vmul.f32 %v2909, %v3400
    %v3570 = vrot.slane %v3558, 2
    %v3571 = vrot.slane %v3560, 2
    %v3572 = vsel %vm2609, %v3570, %v3571
    %v3573 = vrot.slane %v3559, 2
    %v3574 = vrot.slane %v3561, 2
    %v3575 = vsel %vm2609, %v3573, %v3574
    %v3576 = vrot.slane %v3562, 2
    %v3577 = vsel %vm2609, %v3571, %v3576
    %v3578 = vrot.slane %v3563, 2
    %v3579 = vsel %vm2609, %v3574, %v3578
    %3580 = vrot.lane.b32.xlu0 %v3572, 125
    %v3581 = vpop.permute.xlu0 %3580
    %3582 = vrot.lane.b32.xlu0 %v3575, 125
    %v3583 = vpop.permute.xlu0 %3582
    %3584 = vrot.lane.b32.xlu0 %v3577, 125
    %v3585 = vpop.permute.xlu0 %3584
    %3586 = vrot.lane.b32.xlu0 %v3579, 125
    %v3587 = vpop.permute.xlu0 %3586
    %v3588 = vsel %vm742, %v3581, %v3583
    %v3589 = vsel %vm742, %v3585, %v3587
    %v3592 = vadd.f32 %v3268, %v3588
    %v3593 = vadd.f32 %v3269, %v3589
    %v3594 = vmul.f32 %v2664, %v3440
    %v3595 = vmul.f32 %v2908, %v3440
    %v3596 = vmul.f32 %v255, %v3440
    %v3597 = vmul.f32 %v400, %v3440
    %v3598 = vmul.f32 %v2665, %v3440
    %v3599 = vmul.f32 %v2909, %v3440
    %v3606 = vrot.slane %v3594, 2
    %v3607 = vrot.slane %v3596, 2
    %v3608 = vsel %vm2609, %v3606, %v3607
    %v3609 = vrot.slane %v3595, 2
    %v3610 = vrot.slane %v3597, 2
    %v3611 = vsel %vm2609, %v3609, %v3610
    %v3612 = vrot.slane %v3598, 2
    %v3613 = vsel %vm2609, %v3607, %v3612
    %v3614 = vrot.slane %v3599, 2
    %v3615 = vsel %vm2609, %v3610, %v3614
    %3616 = vrot.lane.b32.xlu0 %v3608, 125
    %v3617 = vpop.permute.xlu0 %3616
    %3618 = vrot.lane.b32.xlu0 %v3611, 125
    %v3619 = vpop.permute.xlu0 %3618
    %3620 = vrot.lane.b32.xlu0 %v3613, 125
    %v3621 = vpop.permute.xlu0 %3620
    %3622 = vrot.lane.b32.xlu0 %v3615, 125
    %v3623 = vpop.permute.xlu0 %3622
    %v3624 = vsel %vm742, %v3617, %v3619
    %v3625 = vsel %vm742, %v3621, %v3623
    %v3628 = vadd.f32 %v3304, %v3624
    %v3629 = vadd.f32 %v3305, %v3625
    %v3630 = vmul.f32 %v2664, %v3480
    %v3631 = vmul.f32 %v2908, %v3480
    %v3632 = vmul.f32 %v255, %v3480
    %v3633 = vmul.f32 %v400, %v3480
    %v3634 = vmul.f32 %v2665, %v3480
    %v3635 = vmul.f32 %v2909, %v3480
    %v3642 = vrot.slane %v3630, 2
    %v3643 = vrot.slane %v3632, 2
    %v3644 = vsel %vm2609, %v3642, %v3643
    %v3645 = vrot.slane %v3631, 2
    %v3646 = vrot.slane %v3633, 2
    %v3647 = vsel %vm2609, %v3645, %v3646
    %v3648 = vrot.slane %v3634, 2
    %v3649 = vsel %vm2609, %v3643, %v3648
    %v3650 = vrot.slane %v3635, 2
    %v3651 = vsel %vm2609, %v3646, %v3650
    %3652 = vrot.lane.b32.xlu0 %v3644, 125
    %v3653 = vpop.permute.xlu0 %3652
    %3654 = vrot.lane.b32.xlu0 %v3647, 125
    %v3655 = vpop.permute.xlu0 %3654
    %3656 = vrot.lane.b32.xlu0 %v3649, 125
    %v3657 = vpop.permute.xlu0 %3656
    %3658 = vrot.lane.b32.xlu0 %v3651, 125
    %v3659 = vpop.permute.xlu0 %3658
    %v3660 = vsel %vm742, %v3653, %v3655
    %v3661 = vsel %vm742, %v3657, %v3659
    %v3664 = vadd.f32 %v3340, %v3660
    %v3665 = vadd.f32 %v3341, %v3661
    %v3666 = vmul.f32 %v2664, %v3520
    %v3667 = vmul.f32 %v2908, %v3520
    %v3668 = vmul.f32 %v255, %v3520
    %v3669 = vmul.f32 %v400, %v3520
    %v3670 = vmul.f32 %v2665, %v3520
    %v3671 = vmul.f32 %v2909, %v3520
    %v3678 = vrot.slane %v3666, 2
    %v3679 = vrot.slane %v3668, 2
    %v3680 = vsel %vm2609, %v3678, %v3679
    %v3681 = vrot.slane %v3667, 2
    %v3682 = vrot.slane %v3669, 2
    %v3683 = vsel %vm2609, %v3681, %v3682
    %v3684 = vrot.slane %v3670, 2
    %v3685 = vsel %vm2609, %v3679, %v3684
    %v3686 = vrot.slane %v3671, 2
    %v3687 = vsel %vm2609, %v3682, %v3686
    %3688 = vrot.lane.b32.xlu0 %v3680, 125
    %v3689 = vpop.permute.xlu0 %3688
    %3690 = vrot.lane.b32.xlu0 %v3683, 125
    %v3691 = vpop.permute.xlu0 %3690
    %3692 = vrot.lane.b32.xlu0 %v3685, 125
    %v3693 = vpop.permute.xlu0 %3692
    %3694 = vrot.lane.b32.xlu0 %v3687, 125
    %v3695 = vpop.permute.xlu0 %3694
    %v3696 = vsel %vm742, %v3689, %v3691
    %v3697 = vsel %vm742, %v3693, %v3695
    %v3700 = vadd.f32 %v3376, %v3696
    %v3701 = vadd.f32 %v3377, %v3697
    %v3702 = vld [vmem:[%s2577 + $0x4] sm:$0x1]
    %v3703 = vlaneseq
    %v3704 = vshrl.u32 %v3703, 7
    %v3705 = vsub.s32 0, %v3704
    %v3706 = vrot.slane %v3702, %v3705
    %v3707 = vld [vmem:[%s2583 + $0x4] sm:$0x1]
    %v3708 = vlaneseq
    %v3709 = vshrl.u32 %v3708, 7
    %v3710 = vsub.s32 0, %v3709
    %v3711 = vrot.slane %v3707, %v3710
    %v3712 = vld [vmem:[%s2589 + $0x4] sm:$0x1]
    %v3713 = vlaneseq
    %v3714 = vshrl.u32 %v3713, 7
    %v3715 = vsub.s32 0, %v3714
    %v3716 = vrot.slane %v3712, %v3715
    %v3717 = vld [vmem:[%s2595 + $0x4] sm:$0x1]
    %v3718 = vlaneseq
    %v3719 = vshrl.u32 %v3718, 7
    %v3720 = vsub.s32 0, %v3719
    %v3721 = vrot.slane %v3717, %v3720
    %3723 = vrot.lane.b32.xlu0 %v3706, 4
    %v3724 = vpop.permute.xlu0 %3723
    %v3726 = vmul.f32 %v2601, %v3724
    %v3727 = vmul.f32 %v2746, %v3724
    %v3728 = vmul.f32 %v237, %v3724
    %v3729 = vmul.f32 %v293, %v3724
    %v3730 = vmul.f32 %v2602, %v3724
    %v3731 = vmul.f32 %v2747, %v3724
    %v3738 = vrot.slane %v3726, 2
    %v3739 = vrot.slane %v3728, 2
    %v3740 = vsel %vm2609, %v3738, %v3739
    %v3741 = vrot.slane %v3727, 2
    %v3742 = vrot.slane %v3729, 2
    %v3743 = vsel %vm2609, %v3741, %v3742
    %v3744 = vrot.slane %v3730, 2
    %v3745 = vsel %vm2609, %v3739, %v3744
    %v3746 = vrot.slane %v3731, 2
    %v3747 = vsel %vm2609, %v3742, %v3746
    %3748 = vrot.lane.b32.xlu0 %v3740, 124
    %v3749 = vpop.permute.xlu0 %3748
    %3750 = vrot.lane.b32.xlu0 %v3743, 124
    %v3751 = vpop.permute.xlu0 %3750
    %3752 = vrot.lane.b32.xlu0 %v3745, 124
    %v3753 = vpop.permute.xlu0 %3752
    %3754 = vrot.lane.b32.xlu0 %v3747, 124
    %v3755 = vpop.permute.xlu0 %3754
    %v3756 = vsel %vm955, %v3749, %v3751
    %v3757 = vsel %vm955, %v3753, %v3755
    %v3760 = vadd.f32 %v3436, %v3756
    %v3761 = vadd.f32 %v3437, %v3757
    %3763 = vrot.lane.b32.xlu0 %v3711, 4
    %v3764 = vpop.permute.xlu0 %3763
    %v3766 = vmul.f32 %v2601, %v3764
    %v3767 = vmul.f32 %v2746, %v3764
    %v3768 = vmul.f32 %v237, %v3764
    %v3769 = vmul.f32 %v293, %v3764
    %v3770 = vmul.f32 %v2602, %v3764
    %v3771 = vmul.f32 %v2747, %v3764
    %v3778 = vrot.slane %v3766, 2
    %v3779 = vrot.slane %v3768, 2
    %v3780 = vsel %vm2609, %v3778, %v3779
    %v3781 = vrot.slane %v3767, 2
    %v3782 = vrot.slane %v3769, 2
    %v3783 = vsel %vm2609, %v3781, %v3782
    %v3784 = vrot.slane %v3770, 2
    %v3785 = vsel %vm2609, %v3779, %v3784
    %v3786 = vrot.slane %v3771, 2
    %v3787 = vsel %vm2609, %v3782, %v3786
    %3788 = vrot.lane.b32.xlu0 %v3780, 124
    %v3789 = vpop.permute.xlu0 %3788
    %3790 = vrot.lane.b32.xlu0 %v3783, 124
    %v3791 = vpop.permute.xlu0 %3790
    %3792 = vrot.lane.b32.xlu0 %v3785, 124
    %v3793 = vpop.permute.xlu0 %3792
    %3794 = vrot.lane.b32.xlu0 %v3787, 124
    %v3795 = vpop.permute.xlu0 %3794
    %v3796 = vsel %vm955, %v3789, %v3791
    %v3797 = vsel %vm955, %v3793, %v3795
    %v3800 = vadd.f32 %v3476, %v3796
    %v3801 = vadd.f32 %v3477, %v3797
    %3803 = vrot.lane.b32.xlu0 %v3716, 4
    %v3804 = vpop.permute.xlu0 %3803
    %v3806 = vmul.f32 %v2601, %v3804
    %v3807 = vmul.f32 %v2746, %v3804
    %v3808 = vmul.f32 %v237, %v3804
    %v3809 = vmul.f32 %v293, %v3804
    %v3810 = vmul.f32 %v2602, %v3804
    %v3811 = vmul.f32 %v2747, %v3804
    %v3818 = vrot.slane %v3806, 2
    %v3819 = vrot.slane %v3808, 2
    %v3820 = vsel %vm2609, %v3818, %v3819
    %v3821 = vrot.slane %v3807, 2
    %v3822 = vrot.slane %v3809, 2
    %v3823 = vsel %vm2609, %v3821, %v3822
    %v3824 = vrot.slane %v3810, 2
    %v3825 = vsel %vm2609, %v3819, %v3824
    %v3826 = vrot.slane %v3811, 2
    %v3827 = vsel %vm2609, %v3822, %v3826
    %3828 = vrot.lane.b32.xlu0 %v3820, 124
    %v3829 = vpop.permute.xlu0 %3828
    %3830 = vrot.lane.b32.xlu0 %v3823, 124
    %v3831 = vpop.permute.xlu0 %3830
    %3832 = vrot.lane.b32.xlu0 %v3825, 124
    %v3833 = vpop.permute.xlu0 %3832
    %3834 = vrot.lane.b32.xlu0 %v3827, 124
    %v3835 = vpop.permute.xlu0 %3834
    %v3836 = vsel %vm955, %v3829, %v3831
    %v3837 = vsel %vm955, %v3833, %v3835
    %v3840 = vadd.f32 %v3516, %v3836
    %v3841 = vadd.f32 %v3517, %v3837
    %3843 = vrot.lane.b32.xlu0 %v3721, 4
    %v3844 = vpop.permute.xlu0 %3843
    %v3846 = vmul.f32 %v2601, %v3844
    %v3847 = vmul.f32 %v2746, %v3844
    %v3848 = vmul.f32 %v237, %v3844
    %v3849 = vmul.f32 %v293, %v3844
    %v3850 = vmul.f32 %v2602, %v3844
    %v3851 = vmul.f32 %v2747, %v3844
    %v3858 = vrot.slane %v3846, 2
    %v3859 = vrot.slane %v3848, 2
    %v3860 = vsel %vm2609, %v3858, %v3859
    %v3861 = vrot.slane %v3847, 2
    %v3862 = vrot.slane %v3849, 2
    %v3863 = vsel %vm2609, %v3861, %v3862
    %v3864 = vrot.slane %v3850, 2
    %v3865 = vsel %vm2609, %v3859, %v3864
    %v3866 = vrot.slane %v3851, 2
    %v3867 = vsel %vm2609, %v3862, %v3866
    %3868 = vrot.lane.b32.xlu0 %v3860, 124
    %v3869 = vpop.permute.xlu0 %3868
    %3870 = vrot.lane.b32.xlu0 %v3863, 124
    %v3871 = vpop.permute.xlu0 %3870
    %3872 = vrot.lane.b32.xlu0 %v3865, 124
    %v3873 = vpop.permute.xlu0 %3872
    %3874 = vrot.lane.b32.xlu0 %v3867, 124
    %v3875 = vpop.permute.xlu0 %3874
    %v3876 = vsel %vm955, %v3869, %v3871
    %v3877 = vsel %vm955, %v3873, %v3875
    %v3880 = vadd.f32 %v3556, %v3876
    %v3881 = vadd.f32 %v3557, %v3877
    %v3882 = vmul.f32 %v2664, %v3724
    %v3883 = vmul.f32 %v2908, %v3724
    %v3884 = vmul.f32 %v255, %v3724
    %v3885 = vmul.f32 %v400, %v3724
    %v3886 = vmul.f32 %v2665, %v3724
    %v3887 = vmul.f32 %v2909, %v3724
    %v3894 = vrot.slane %v3882, 2
    %v3895 = vrot.slane %v3884, 2
    %v3896 = vsel %vm2609, %v3894, %v3895
    %v3897 = vrot.slane %v3883, 2
    %v3898 = vrot.slane %v3885, 2
    %v3899 = vsel %vm2609, %v3897, %v3898
    %v3900 = vrot.slane %v3886, 2
    %v3901 = vsel %vm2609, %v3895, %v3900
    %v3902 = vrot.slane %v3887, 2
    %v3903 = vsel %vm2609, %v3898, %v3902
    %3904 = vrot.lane.b32.xlu0 %v3896, 124
    %v3905 = vpop.permute.xlu0 %3904
    %3906 = vrot.lane.b32.xlu0 %v3899, 124
    %v3907 = vpop.permute.xlu0 %3906
    %3908 = vrot.lane.b32.xlu0 %v3901, 124
    %v3909 = vpop.permute.xlu0 %3908
    %3910 = vrot.lane.b32.xlu0 %v3903, 124
    %v3911 = vpop.permute.xlu0 %3910
    %v3912 = vsel %vm955, %v3905, %v3907
    %v3913 = vsel %vm955, %v3909, %v3911
    %v3916 = vadd.f32 %v3592, %v3912
    %v3917 = vadd.f32 %v3593, %v3913
    %v3918 = vmul.f32 %v2664, %v3764
    %v3919 = vmul.f32 %v2908, %v3764
    %v3920 = vmul.f32 %v255, %v3764
    %v3921 = vmul.f32 %v400, %v3764
    %v3922 = vmul.f32 %v2665, %v3764
    %v3923 = vmul.f32 %v2909, %v3764
    %v3930 = vrot.slane %v3918, 2
    %v3931 = vrot.slane %v3920, 2
    %v3932 = vsel %vm2609, %v3930, %v3931
    %v3933 = vrot.slane %v3919, 2
    %v3934 = vrot.slane %v3921, 2
    %v3935 = vsel %vm2609, %v3933, %v3934
    %v3936 = vrot.slane %v3922, 2
    %v3937 = vsel %vm2609, %v3931, %v3936
    %v3938 = vrot.slane %v3923, 2
    %v3939 = vsel %vm2609, %v3934, %v3938
    %3940 = vrot.lane.b32.xlu0 %v3932, 124
    %v3941 = vpop.permute.xlu0 %3940
    %3942 = vrot.lane.b32.xlu0 %v3935, 124
    %v3943 = vpop.permute.xlu0 %3942
    %3944 = vrot.lane.b32.xlu0 %v3937, 124
    %v3945 = vpop.permute.xlu0 %3944
    %3946 = vrot.lane.b32.xlu0 %v3939, 124
    %v3947 = vpop.permute.xlu0 %3946
    %v3948 = vsel %vm955, %v3941, %v3943
    %v3949 = vsel %vm955, %v3945, %v3947
    %v3952 = vadd.f32 %v3628, %v3948
    %v3953 = vadd.f32 %v3629, %v3949
    %v3954 = vmul.f32 %v2664, %v3804
    %v3955 = vmul.f32 %v2908, %v3804
    %v3956 = vmul.f32 %v255, %v3804
    %v3957 = vmul.f32 %v400, %v3804
    %v3958 = vmul.f32 %v2665, %v3804
    %v3959 = vmul.f32 %v2909, %v3804
    %v3966 = vrot.slane %v3954, 2
    %v3967 = vrot.slane %v3956, 2
    %v3968 = vsel %vm2609, %v3966, %v3967
    %v3969 = vrot.slane %v3955, 2
    %v3970 = vrot.slane %v3957, 2
    %v3971 = vsel %vm2609, %v3969, %v3970
    %v3972 = vrot.slane %v3958, 2
    %v3973 = vsel %vm2609, %v3967, %v3972
    %v3974 = vrot.slane %v3959, 2
    %v3975 = vsel %vm2609, %v3970, %v3974
    %3976 = vrot.lane.b32.xlu0 %v3968, 124
    %v3977 = vpop.permute.xlu0 %3976
    %3978 = vrot.lane.b32.xlu0 %v3971, 124
    %v3979 = vpop.permute.xlu0 %3978
    %3980 = vrot.lane.b32.xlu0 %v3973, 124
    %v3981 = vpop.permute.xlu0 %3980
    %3982 = vrot.lane.b32.xlu0 %v3975, 124
    %v3983 = vpop.permute.xlu0 %3982
    %v3984 = vsel %vm955, %v3977, %v3979
    %v3985 = vsel %vm955, %v3981, %v3983
    %v3988 = vadd.f32 %v3664, %v3984
    %v3989 = vadd.f32 %v3665, %v3985
    %v3990 = vmul.f32 %v2664, %v3844
    %v3991 = vmul.f32 %v2908, %v3844
    %v3992 = vmul.f32 %v255, %v3844
    %v3993 = vmul.f32 %v400, %v3844
    %v3994 = vmul.f32 %v2665, %v3844
    %v3995 = vmul.f32 %v2909, %v3844
    %v4002 = vrot.slane %v3990, 2
    %v4003 = vrot.slane %v3992, 2
    %v4004 = vsel %vm2609, %v4002, %v4003
    %v4005 = vrot.slane %v3991, 2
    %v4006 = vrot.slane %v3993, 2
    %v4007 = vsel %vm2609, %v4005, %v4006
    %v4008 = vrot.slane %v3994, 2
    %v4009 = vsel %vm2609, %v4003, %v4008
    %v4010 = vrot.slane %v3995, 2
    %v4011 = vsel %vm2609, %v4006, %v4010
    %4012 = vrot.lane.b32.xlu0 %v4004, 124
    %v4013 = vpop.permute.xlu0 %4012
    %4014 = vrot.lane.b32.xlu0 %v4007, 124
    %v4015 = vpop.permute.xlu0 %4014
    %4016 = vrot.lane.b32.xlu0 %v4009, 124
    %v4017 = vpop.permute.xlu0 %4016
    %4018 = vrot.lane.b32.xlu0 %v4011, 124
    %v4019 = vpop.permute.xlu0 %4018
    %v4020 = vsel %vm955, %v4013, %v4015
    %v4021 = vsel %vm955, %v4017, %v4019
    %v4024 = vadd.f32 %v3700, %v4020
    %v4025 = vadd.f32 %v3701, %v4021
    %s4026 = scalar_lea.vmem %s1, 24
    %v4027 = vld [vmem:[%s4026] sm:$0x1]
    %v4028 = vlaneseq
    %v4029 = vshrl.u32 %v4028, 7
    %v4030 = vsub.s32 0, %v4029
    %v4031 = vrot.slane %v4027, %v4030
    %s4032 = scalar_lea.vmem %s1, 64
    %v4033 = vld [vmem:[%s4032] sm:$0x1]
    %v4034 = vlaneseq
    %v4035 = vshrl.u32 %v4034, 7
    %v4036 = vsub.s32 0, %v4035
    %v4037 = vrot.slane %v4033, %v4036
    %s4038 = scalar_lea.vmem %s1, 104
    %v4039 = vld [vmem:[%s4038] sm:$0x1]
    %v4040 = vlaneseq
    %v4041 = vshrl.u32 %v4040, 7
    %v4042 = vsub.s32 0, %v4041
    %v4043 = vrot.slane %v4039, %v4042
    %s4044 = scalar_lea.vmem %s1, 144
    %v4045 = vld [vmem:[%s4044] sm:$0x1]
    %v4046 = vlaneseq
    %v4047 = vshrl.u32 %v4046, 7
    %v4048 = vsub.s32 0, %v4047
    %v4049 = vrot.slane %v4045, %v4048
    %v4050 = vld [vmem:[#allocation2] sm:$0xf8]
    %v4051 = vld [vmem:[#allocation2 + $0x20] sm:$0x7]
    %v4052 = vmul.f32 %v4050, %v4031
    %v4053 = vmul.f32 %v237, %v4031
    %v4054 = vmul.f32 %v4051, %v4031
    %vm4058 = vcmask 1044480
    %v4059 = vrot.slane %v4052, 3
    %v4060 = vrot.slane %v4053, 3
    %v4061 = vsel %vm4058, %v4059, %v4060
    %v4062 = vrot.slane %v4054, 3
    %v4063 = vsel %vm4058, %v4060, %v4062
    %v4066 = vadd.f32 %v3760, %v4061
    %v4067 = vadd.f32 %v3761, %v4063
    %v4068 = vmul.f32 %v4050, %v4037
    %v4069 = vmul.f32 %v237, %v4037
    %v4070 = vmul.f32 %v4051, %v4037
    %v4074 = vrot.slane %v4068, 3
    %v4075 = vrot.slane %v4069, 3
    %v4076 = vsel %vm4058, %v4074, %v4075
    %v4077 = vrot.slane %v4070, 3
    %v4078 = vsel %vm4058, %v4075, %v4077
    %v4081 = vadd.f32 %v3800, %v4076
    %v4082 = vadd.f32 %v3801, %v4078
    %v4083 = vmul.f32 %v4050, %v4043
    %v4084 = vmul.f32 %v237, %v4043
    %v4085 = vmul.f32 %v4051, %v4043
    %v4089 = vrot.slane %v4083, 3
    %v4090 = vrot.slane %v4084, 3
    %v4091 = vsel %vm4058, %v4089, %v4090
    %v4092 = vrot.slane %v4085, 3
    %v4093 = vsel %vm4058, %v4090, %v4092
    %v4096 = vadd.f32 %v3840, %v4091
    %v4097 = vadd.f32 %v3841, %v4093
    %v4098 = vmul.f32 %v4050, %v4049
    %v4099 = vmul.f32 %v237, %v4049
    %v4100 = vmul.f32 %v4051, %v4049
    %v4104 = vrot.slane %v4098, 3
    %v4105 = vrot.slane %v4099, 3
    %v4106 = vsel %vm4058, %v4104, %v4105
    %v4107 = vrot.slane %v4100, 3
    %v4108 = vsel %vm4058, %v4105, %v4107
    %v4111 = vadd.f32 %v3880, %v4106
    %v4112 = vadd.f32 %v3881, %v4108
    %v4113 = vld [vmem:[%s149] sm:$0xf8]
    %v4114 = vld [vmem:[%s149 + $0x20] sm:$0x7]
    %v4115 = vmul.f32 %v4113, %v4031
    %v4116 = vmul.f32 %v255, %v4031
    %v4117 = vmul.f32 %v4114, %v4031
    %v4121 = vrot.slane %v4115, 3
    %v4122 = vrot.slane %v4116, 3
    %v4123 = vsel %vm4058, %v4121, %v4122
    %v4124 = vrot.slane %v4117, 3
    %v4125 = vsel %vm4058, %v4122, %v4124
    %v4128 = vadd.f32 %v3916, %v4123
    %v4129 = vadd.f32 %v3917, %v4125
    %v4130 = vmul.f32 %v4113, %v4037
    %v4131 = vmul.f32 %v255, %v4037
    %v4132 = vmul.f32 %v4114, %v4037
    %v4136 = vrot.slane %v4130, 3
    %v4137 = vrot.slane %v4131, 3
    %v4138 = vsel %vm4058, %v4136, %v4137
    %v4139 = vrot.slane %v4132, 3
    %v4140 = vsel %vm4058, %v4137, %v4139
    %v4143 = vadd.f32 %v3952, %v4138
    %v4144 = vadd.f32 %v3953, %v4140
    %v4145 = vmul.f32 %v4113, %v4043
    %v4146 = vmul.f32 %v255, %v4043
    %v4147 = vmul.f32 %v4114, %v4043
    %v4151 = vrot.slane %v4145, 3
    %v4152 = vrot.slane %v4146, 3
    %v4153 = vsel %vm4058, %v4151, %v4152
    %v4154 = vrot.slane %v4147, 3
    %v4155 = vsel %vm4058, %v4152, %v4154
    %v4158 = vadd.f32 %v3988, %v4153
    %v4159 = vadd.f32 %v3989, %v4155
    %v4160 = vmul.f32 %v4113, %v4049
    %v4161 = vmul.f32 %v255, %v4049
    %v4162 = vmul.f32 %v4114, %v4049
    %v4166 = vrot.slane %v4160, 3
    %v4167 = vrot.slane %v4161, 3
    %v4168 = vsel %vm4058, %v4166, %v4167
    %v4169 = vrot.slane %v4162, 3
    %v4170 = vsel %vm4058, %v4167, %v4169
    %v4173 = vadd.f32 %v4024, %v4168
    %v4174 = vadd.f32 %v4025, %v4170
    %v4175 = vld [vmem:[%s4026 + $0x1] sm:$0x1]
    %v4176 = vlaneseq
    %v4177 = vshrl.u32 %v4176, 7
    %v4178 = vsub.s32 0, %v4177
    %v4179 = vrot.slane %v4175, %v4178
    %v4180 = vld [vmem:[%s4032 + $0x1] sm:$0x1]
    %v4181 = vlaneseq
    %v4182 = vshrl.u32 %v4181, 7
    %v4183 = vsub.s32 0, %v4182
    %v4184 = vrot.slane %v4180, %v4183
    %v4185 = vld [vmem:[%s4038 + $0x1] sm:$0x1]
    %v4186 = vlaneseq
    %v4187 = vshrl.u32 %v4186, 7
    %v4188 = vsub.s32 0, %v4187
    %v4189 = vrot.slane %v4185, %v4188
    %v4190 = vld [vmem:[%s4044 + $0x1] sm:$0x1]
    %v4191 = vlaneseq
    %v4192 = vshrl.u32 %v4191, 7
    %v4193 = vsub.s32 0, %v4192
    %v4194 = vrot.slane %v4190, %v4193
    %v4195 = vld [vmem:[#allocation2 + $0x8] sm:$0xf8]
    %v4196 = vld [vmem:[#allocation2 + $0x28] sm:$0x7]
    %4198 = vrot.lane.b32.xlu0 %v4179, 1
    %v4199 = vpop.permute.xlu0 %4198
    %v4201 = vmul.f32 %v4050, %v4199
    %v4202 = vmul.f32 %v4195, %v4199
    %v4203 = vmul.f32 %v237, %v4199
    %v4204 = vmul.f32 %v293, %v4199
    %v4205 = vmul.f32 %v4051, %v4199
    %v4206 = vmul.f32 %v4196, %v4199
    %v4213 = vrot.slane %v4201, 3
    %v4214 = vrot.slane %v4203, 3
    %v4215 = vsel %vm4058, %v4213, %v4214
    %v4216 = vrot.slane %v4202, 3
    %v4217 = vrot.slane %v4204, 3
    %v4218 = vsel %vm4058, %v4216, %v4217
    %v4219 = vrot.slane %v4205, 3
    %v4220 = vsel %vm4058, %v4214, %v4219
    %v4221 = vrot.slane %v4206, 3
    %v4222 = vsel %vm4058, %v4217, %v4221
    %4223 = vrot.lane.b32.xlu0 %v4215, 127
    %v4224 = vpop.permute.xlu0 %4223
    %4225 = vrot.lane.b32.xlu0 %v4218, 127
    %v4226 = vpop.permute.xlu0 %4225
    %4227 = vrot.lane.b32.xlu0 %v4220, 127
    %v4228 = vpop.permute.xlu0 %4227
    %4229 = vrot.lane.b32.xlu0 %v4222, 127
    %v4230 = vpop.permute.xlu0 %4229
    %v4231 = vsel %vm314, %v4224, %v4226
    %v4232 = vsel %vm314, %v4228, %v4230
    %v4235 = vadd.f32 %v4066, %v4231
    %v4236 = vadd.f32 %v4067, %v4232
    %4238 = vrot.lane.b32.xlu0 %v4184, 1
    %v4239 = vpop.permute.xlu0 %4238
    %v4241 = vmul.f32 %v4050, %v4239
    %v4242 = vmul.f32 %v4195, %v4239
    %v4243 = vmul.f32 %v237, %v4239
    %v4244 = vmul.f32 %v293, %v4239
    %v4245 = vmul.f32 %v4051, %v4239
    %v4246 = vmul.f32 %v4196, %v4239
    %v4253 = vrot.slane %v4241, 3
    %v4254 = vrot.slane %v4243, 3
    %v4255 = vsel %vm4058, %v4253, %v4254
    %v4256 = vrot.slane %v4242, 3
    %v4257 = vrot.slane %v4244, 3
    %v4258 = vsel %vm4058, %v4256, %v4257
    %v4259 = vrot.slane %v4245, 3
    %v4260 = vsel %vm4058, %v4254, %v4259
    %v4261 = vrot.slane %v4246, 3
    %v4262 = vsel %vm4058, %v4257, %v4261
    %4263 = vrot.lane.b32.xlu0 %v4255, 127
    %v4264 = vpop.permute.xlu0 %4263
    %4265 = vrot.lane.b32.xlu0 %v4258, 127
    %v4266 = vpop.permute.xlu0 %4265
    %4267 = vrot.lane.b32.xlu0 %v4260, 127
    %v4268 = vpop.permute.xlu0 %4267
    %4269 = vrot.lane.b32.xlu0 %v4262, 127
    %v4270 = vpop.permute.xlu0 %4269
    %v4271 = vsel %vm314, %v4264, %v4266
    %v4272 = vsel %vm314, %v4268, %v4270
    %v4275 = vadd.f32 %v4081, %v4271
    %v4276 = vadd.f32 %v4082, %v4272
    %4278 = vrot.lane.b32.xlu0 %v4189, 1
    %v4279 = vpop.permute.xlu0 %4278
    %v4281 = vmul.f32 %v4050, %v4279
    %v4282 = vmul.f32 %v4195, %v4279
    %v4283 = vmul.f32 %v237, %v4279
    %v4284 = vmul.f32 %v293, %v4279
    %v4285 = vmul.f32 %v4051, %v4279
    %v4286 = vmul.f32 %v4196, %v4279
    %v4293 = vrot.slane %v4281, 3
    %v4294 = vrot.slane %v4283, 3
    %v4295 = vsel %vm4058, %v4293, %v4294
    %v4296 = vrot.slane %v4282, 3
    %v4297 = vrot.slane %v4284, 3
    %v4298 = vsel %vm4058, %v4296, %v4297
    %v4299 = vrot.slane %v4285, 3
    %v4300 = vsel %vm4058, %v4294, %v4299
    %v4301 = vrot.slane %v4286, 3
    %v4302 = vsel %vm4058, %v4297, %v4301
    %4303 = vrot.lane.b32.xlu0 %v4295, 127
    %v4304 = vpop.permute.xlu0 %4303
    %4305 = vrot.lane.b32.xlu0 %v4298, 127
    %v4306 = vpop.permute.xlu0 %4305
    %4307 = vrot.lane.b32.xlu0 %v4300, 127
    %v4308 = vpop.permute.xlu0 %4307
    %4309 = vrot.lane.b32.xlu0 %v4302, 127
    %v4310 = vpop.permute.xlu0 %4309
    %v4311 = vsel %vm314, %v4304, %v4306
    %v4312 = vsel %vm314, %v4308, %v4310
    %v4315 = vadd.f32 %v4096, %v4311
    %v4316 = vadd.f32 %v4097, %v4312
    %4318 = vrot.lane.b32.xlu0 %v4194, 1
    %v4319 = vpop.permute.xlu0 %4318
    %v4321 = vmul.f32 %v4050, %v4319
    %v4322 = vmul.f32 %v4195, %v4319
    %v4323 = vmul.f32 %v237, %v4319
    %v4324 = vmul.f32 %v293, %v4319
    %v4325 = vmul.f32 %v4051, %v4319
    %v4326 = vmul.f32 %v4196, %v4319
    %v4333 = vrot.slane %v4321, 3
    %v4334 = vrot.slane %v4323, 3
    %v4335 = vsel %vm4058, %v4333, %v4334
    %v4336 = vrot.slane %v4322, 3
    %v4337 = vrot.slane %v4324, 3
    %v4338 = vsel %vm4058, %v4336, %v4337
    %v4339 = vrot.slane %v4325, 3
    %v4340 = vsel %vm4058, %v4334, %v4339
    %v4341 = vrot.slane %v4326, 3
    %v4342 = vsel %vm4058, %v4337, %v4341
    %4343 = vrot.lane.b32.xlu0 %v4335, 127
    %v4344 = vpop.permute.xlu0 %4343
    %4345 = vrot.lane.b32.xlu0 %v4338, 127
    %v4346 = vpop.permute.xlu0 %4345
    %4347 = vrot.lane.b32.xlu0 %v4340, 127
    %v4348 = vpop.permute.xlu0 %4347
    %4349 = vrot.lane.b32.xlu0 %v4342, 127
    %v4350 = vpop.permute.xlu0 %4349
    %v4351 = vsel %vm314, %v4344, %v4346
    %v4352 = vsel %vm314, %v4348, %v4350
    %v4355 = vadd.f32 %v4111, %v4351
    %v4356 = vadd.f32 %v4112, %v4352
    %v4357 = vld [vmem:[%s149 + $0x8] sm:$0xf8]
    %v4358 = vld [vmem:[%s149 + $0x28] sm:$0x7]
    %v4359 = vmul.f32 %v4113, %v4199
    %v4360 = vmul.f32 %v4357, %v4199
    %v4361 = vmul.f32 %v255, %v4199
    %v4362 = vmul.f32 %v400, %v4199
    %v4363 = vmul.f32 %v4114, %v4199
    %v4364 = vmul.f32 %v4358, %v4199
    %v4371 = vrot.slane %v4359, 3
    %v4372 = vrot.slane %v4361, 3
    %v4373 = vsel %vm4058, %v4371, %v4372
    %v4374 = vrot.slane %v4360, 3
    %v4375 = vrot.slane %v4362, 3
    %v4376 = vsel %vm4058, %v4374, %v4375
    %v4377 = vrot.slane %v4363, 3
    %v4378 = vsel %vm4058, %v4372, %v4377
    %v4379 = vrot.slane %v4364, 3
    %v4380 = vsel %vm4058, %v4375, %v4379
    %4381 = vrot.lane.b32.xlu0 %v4373, 127
    %v4382 = vpop.permute.xlu0 %4381
    %4383 = vrot.lane.b32.xlu0 %v4376, 127
    %v4384 = vpop.permute.xlu0 %4383
    %4385 = vrot.lane.b32.xlu0 %v4378, 127
    %v4386 = vpop.permute.xlu0 %4385
    %4387 = vrot.lane.b32.xlu0 %v4380, 127
    %v4388 = vpop.permute.xlu0 %4387
    %v4389 = vsel %vm314, %v4382, %v4384
    %v4390 = vsel %vm314, %v4386, %v4388
    %v4393 = vadd.f32 %v4128, %v4389
    %v4394 = vadd.f32 %v4129, %v4390
    %v4395 = vmul.f32 %v4113, %v4239
    %v4396 = vmul.f32 %v4357, %v4239
    %v4397 = vmul.f32 %v255, %v4239
    %v4398 = vmul.f32 %v400, %v4239
    %v4399 = vmul.f32 %v4114, %v4239
    %v4400 = vmul.f32 %v4358, %v4239
    %v4407 = vrot.slane %v4395, 3
    %v4408 = vrot.slane %v4397, 3
    %v4409 = vsel %vm4058, %v4407, %v4408
    %v4410 = vrot.slane %v4396, 3
    %v4411 = vrot.slane %v4398, 3
    %v4412 = vsel %vm4058, %v4410, %v4411
    %v4413 = vrot.slane %v4399, 3
    %v4414 = vsel %vm4058, %v4408, %v4413
    %v4415 = vrot.slane %v4400, 3
    %v4416 = vsel %vm4058, %v4411, %v4415
    %4417 = vrot.lane.b32.xlu0 %v4409, 127
    %v4418 = vpop.permute.xlu0 %4417
    %4419 = vrot.lane.b32.xlu0 %v4412, 127
    %v4420 = vpop.permute.xlu0 %4419
    %4421 = vrot.lane.b32.xlu0 %v4414, 127
    %v4422 = vpop.permute.xlu0 %4421
    %4423 = vrot.lane.b32.xlu0 %v4416, 127
    %v4424 = vpop.permute.xlu0 %4423
    %v4425 = vsel %vm314, %v4418, %v4420
    %v4426 = vsel %vm314, %v4422, %v4424
    %v4429 = vadd.f32 %v4143, %v4425
    %v4430 = vadd.f32 %v4144, %v4426
    %v4431 = vmul.f32 %v4113, %v4279
    %v4432 = vmul.f32 %v4357, %v4279
    %v4433 = vmul.f32 %v255, %v4279
    %v4434 = vmul.f32 %v400, %v4279
    %v4435 = vmul.f32 %v4114, %v4279
    %v4436 = vmul.f32 %v4358, %v4279
    %v4443 = vrot.slane %v4431, 3
    %v4444 = vrot.slane %v4433, 3
    %v4445 = vsel %vm4058, %v4443, %v4444
    %v4446 = vrot.slane %v4432, 3
    %v4447 = vrot.slane %v4434, 3
    %v4448 = vsel %vm4058, %v4446, %v4447
    %v4449 = vrot.slane %v4435, 3
    %v4450 = vsel %vm4058, %v4444, %v4449
    %v4451 = vrot.slane %v4436, 3
    %v4452 = vsel %vm4058, %v4447, %v4451
    %4453 = vrot.lane.b32.xlu0 %v4445, 127
    %v4454 = vpop.permute.xlu0 %4453
    %4455 = vrot.lane.b32.xlu0 %v4448, 127
    %v4456 = vpop.permute.xlu0 %4455
    %4457 = vrot.lane.b32.xlu0 %v4450, 127
    %v4458 = vpop.permute.xlu0 %4457
    %4459 = vrot.lane.b32.xlu0 %v4452, 127
    %v4460 = vpop.permute.xlu0 %4459
    %v4461 = vsel %vm314, %v4454, %v4456
    %v4462 = vsel %vm314, %v4458, %v4460
    %v4465 = vadd.f32 %v4158, %v4461
    %v4466 = vadd.f32 %v4159, %v4462
    %v4467 = vmul.f32 %v4113, %v4319
    %v4468 = vmul.f32 %v4357, %v4319
    %v4469 = vmul.f32 %v255, %v4319
    %v4470 = vmul.f32 %v400, %v4319
    %v4471 = vmul.f32 %v4114, %v4319
    %v4472 = vmul.f32 %v4358, %v4319
    %v4479 = vrot.slane %v4467, 3
    %v4480 = vrot.slane %v4469, 3
    %v4481 = vsel %vm4058, %v4479, %v4480
    %v4482 = vrot.slane %v4468, 3
    %v4483 = vrot.slane %v4470, 3
    %v4484 = vsel %vm4058, %v4482, %v4483
    %v4485 = vrot.slane %v4471, 3
    %v4486 = vsel %vm4058, %v4480, %v4485
    %v4487 = vrot.slane %v4472, 3
    %v4488 = vsel %vm4058, %v4483, %v4487
    %4489 = vrot.lane.b32.xlu0 %v4481, 127
    %v4490 = vpop.permute.xlu0 %4489
    %4491 = vrot.lane.b32.xlu0 %v4484, 127
    %v4492 = vpop.permute.xlu0 %4491
    %4493 = vrot.lane.b32.xlu0 %v4486, 127
    %v4494 = vpop.permute.xlu0 %4493
    %4495 = vrot.lane.b32.xlu0 %v4488, 127
    %v4496 = vpop.permute.xlu0 %4495
    %v4497 = vsel %vm314, %v4490, %v4492
    %v4498 = vsel %vm314, %v4494, %v4496
    %v4501 = vadd.f32 %v4173, %v4497
    %v4502 = vadd.f32 %v4174, %v4498
    %v4503 = vld [vmem:[%s4026 + $0x2] sm:$0x1]
    %v4504 = vlaneseq
    %v4505 = vshrl.u32 %v4504, 7
    %v4506 = vsub.s32 0, %v4505
    %v4507 = vrot.slane %v4503, %v4506
    %v4508 = vld [vmem:[%s4032 + $0x2] sm:$0x1]
    %v4509 = vlaneseq
    %v4510 = vshrl.u32 %v4509, 7
    %v4511 = vsub.s32 0, %v4510
    %v4512 = vrot.slane %v4508, %v4511
    %v4513 = vld [vmem:[%s4038 + $0x2] sm:$0x1]
    %v4514 = vlaneseq
    %v4515 = vshrl.u32 %v4514, 7
    %v4516 = vsub.s32 0, %v4515
    %v4517 = vrot.slane %v4513, %v4516
    %v4518 = vld [vmem:[%s4044 + $0x2] sm:$0x1]
    %v4519 = vlaneseq
    %v4520 = vshrl.u32 %v4519, 7
    %v4521 = vsub.s32 0, %v4520
    %v4522 = vrot.slane %v4518, %v4521
    %4524 = vrot.lane.b32.xlu0 %v4507, 2
    %v4525 = vpop.permute.xlu0 %4524
    %v4527 = vmul.f32 %v4050, %v4525
    %v4528 = vmul.f32 %v4195, %v4525
    %v4529 = vmul.f32 %v237, %v4525
    %v4530 = vmul.f32 %v293, %v4525
    %v4531 = vmul.f32 %v4051, %v4525
    %v4532 = vmul.f32 %v4196, %v4525
    %v4539 = vrot.slane %v4527, 3
    %v4540 = vrot.slane %v4529, 3
    %v4541 = vsel %vm4058, %v4539, %v4540
    %v4542 = vrot.slane %v4528, 3
    %v4543 = vrot.slane %v4530, 3
    %v4544 = vsel %vm4058, %v4542, %v4543
    %v4545 = vrot.slane %v4531, 3
    %v4546 = vsel %vm4058, %v4540, %v4545
    %v4547 = vrot.slane %v4532, 3
    %v4548 = vsel %vm4058, %v4543, %v4547
    %4549 = vrot.lane.b32.xlu0 %v4541, 126
    %v4550 = vpop.permute.xlu0 %4549
    %4551 = vrot.lane.b32.xlu0 %v4544, 126
    %v4552 = vpop.permute.xlu0 %4551
    %4553 = vrot.lane.b32.xlu0 %v4546, 126
    %v4554 = vpop.permute.xlu0 %4553
    %4555 = vrot.lane.b32.xlu0 %v4548, 126
    %v4556 = vpop.permute.xlu0 %4555
    %v4557 = vsel %vm529, %v4550, %v4552
    %v4558 = vsel %vm529, %v4554, %v4556
    %v4561 = vadd.f32 %v4235, %v4557
    %v4562 = vadd.f32 %v4236, %v4558
    %4564 = vrot.lane.b32.xlu0 %v4512, 2
    %v4565 = vpop.permute.xlu0 %4564
    %v4567 = vmul.f32 %v4050, %v4565
    %v4568 = vmul.f32 %v4195, %v4565
    %v4569 = vmul.f32 %v237, %v4565
    %v4570 = vmul.f32 %v293, %v4565
    %v4571 = vmul.f32 %v4051, %v4565
    %v4572 = vmul.f32 %v4196, %v4565
    %v4579 = vrot.slane %v4567, 3
    %v4580 = vrot.slane %v4569, 3
    %v4581 = vsel %vm4058, %v4579, %v4580
    %v4582 = vrot.slane %v4568, 3
    %v4583 = vrot.slane %v4570, 3
    %v4584 = vsel %vm4058, %v4582, %v4583
    %v4585 = vrot.slane %v4571, 3
    %v4586 = vsel %vm4058, %v4580, %v4585
    %v4587 = vrot.slane %v4572, 3
    %v4588 = vsel %vm4058, %v4583, %v4587
    %4589 = vrot.lane.b32.xlu0 %v4581, 126
    %v4590 = vpop.permute.xlu0 %4589
    %4591 = vrot.lane.b32.xlu0 %v4584, 126
    %v4592 = vpop.permute.xlu0 %4591
    %4593 = vrot.lane.b32.xlu0 %v4586, 126
    %v4594 = vpop.permute.xlu0 %4593
    %4595 = vrot.lane.b32.xlu0 %v4588, 126
    %v4596 = vpop.permute.xlu0 %4595
    %v4597 = vsel %vm529, %v4590, %v4592
    %v4598 = vsel %vm529, %v4594, %v4596
    %v4601 = vadd.f32 %v4275, %v4597
    %v4602 = vadd.f32 %v4276, %v4598
    %4604 = vrot.lane.b32.xlu0 %v4517, 2
    %v4605 = vpop.permute.xlu0 %4604
    %v4607 = vmul.f32 %v4050, %v4605
    %v4608 = vmul.f32 %v4195, %v4605
    %v4609 = vmul.f32 %v237, %v4605
    %v4610 = vmul.f32 %v293, %v4605
    %v4611 = vmul.f32 %v4051, %v4605
    %v4612 = vmul.f32 %v4196, %v4605
    %v4619 = vrot.slane %v4607, 3
    %v4620 = vrot.slane %v4609, 3
    %v4621 = vsel %vm4058, %v4619, %v4620
    %v4622 = vrot.slane %v4608, 3
    %v4623 = vrot.slane %v4610, 3
    %v4624 = vsel %vm4058, %v4622, %v4623
    %v4625 = vrot.slane %v4611, 3
    %v4626 = vsel %vm4058, %v4620, %v4625
    %v4627 = vrot.slane %v4612, 3
    %v4628 = vsel %vm4058, %v4623, %v4627
    %4629 = vrot.lane.b32.xlu0 %v4621, 126
    %v4630 = vpop.permute.xlu0 %4629
    %4631 = vrot.lane.b32.xlu0 %v4624, 126
    %v4632 = vpop.permute.xlu0 %4631
    %4633 = vrot.lane.b32.xlu0 %v4626, 126
    %v4634 = vpop.permute.xlu0 %4633
    %4635 = vrot.lane.b32.xlu0 %v4628, 126
    %v4636 = vpop.permute.xlu0 %4635
    %v4637 = vsel %vm529, %v4630, %v4632
    %v4638 = vsel %vm529, %v4634, %v4636
    %v4641 = vadd.f32 %v4315, %v4637
    %v4642 = vadd.f32 %v4316, %v4638
    %4644 = vrot.lane.b32.xlu0 %v4522, 2
    %v4645 = vpop.permute.xlu0 %4644
    %v4647 = vmul.f32 %v4050, %v4645
    %v4648 = vmul.f32 %v4195, %v4645
    %v4649 = vmul.f32 %v237, %v4645
    %v4650 = vmul.f32 %v293, %v4645
    %v4651 = vmul.f32 %v4051, %v4645
    %v4652 = vmul.f32 %v4196, %v4645
    %v4659 = vrot.slane %v4647, 3
    %v4660 = vrot.slane %v4649, 3
    %v4661 = vsel %vm4058, %v4659, %v4660
    %v4662 = vrot.slane %v4648, 3
    %v4663 = vrot.slane %v4650, 3
    %v4664 = vsel %vm4058, %v4662, %v4663
    %v4665 = vrot.slane %v4651, 3
    %v4666 = vsel %vm4058, %v4660, %v4665
    %v4667 = vrot.slane %v4652, 3
    %v4668 = vsel %vm4058, %v4663, %v4667
    %4669 = vrot.lane.b32.xlu0 %v4661, 126
    %v4670 = vpop.permute.xlu0 %4669
    %4671 = vrot.lane.b32.xlu0 %v4664, 126
    %v4672 = vpop.permute.xlu0 %4671
    %4673 = vrot.lane.b32.xlu0 %v4666, 126
    %v4674 = vpop.permute.xlu0 %4673
    %4675 = vrot.lane.b32.xlu0 %v4668, 126
    %v4676 = vpop.permute.xlu0 %4675
    %v4677 = vsel %vm529, %v4670, %v4672
    %v4678 = vsel %vm529, %v4674, %v4676
    %v4681 = vadd.f32 %v4355, %v4677
    %v4682 = vadd.f32 %v4356, %v4678
    %v4683 = vmul.f32 %v4113, %v4525
    %v4684 = vmul.f32 %v4357, %v4525
    %v4685 = vmul.f32 %v255, %v4525
    %v4686 = vmul.f32 %v400, %v4525
    %v4687 = vmul.f32 %v4114, %v4525
    %v4688 = vmul.f32 %v4358, %v4525
    %v4695 = vrot.slane %v4683, 3
    %v4696 = vrot.slane %v4685, 3
    %v4697 = vsel %vm4058, %v4695, %v4696
    %v4698 = vrot.slane %v4684, 3
    %v4699 = vrot.slane %v4686, 3
    %v4700 = vsel %vm4058, %v4698, %v4699
    %v4701 = vrot.slane %v4687, 3
    %v4702 = vsel %vm4058, %v4696, %v4701
    %v4703 = vrot.slane %v4688, 3
    %v4704 = vsel %vm4058, %v4699, %v4703
    %4705 = vrot.lane.b32.xlu0 %v4697, 126
    %v4706 = vpop.permute.xlu0 %4705
    %4707 = vrot.lane.b32.xlu0 %v4700, 126
    %v4708 = vpop.permute.xlu0 %4707
    %4709 = vrot.lane.b32.xlu0 %v4702, 126
    %v4710 = vpop.permute.xlu0 %4709
    %4711 = vrot.lane.b32.xlu0 %v4704, 126
    %v4712 = vpop.permute.xlu0 %4711
    %v4713 = vsel %vm529, %v4706, %v4708
    %v4714 = vsel %vm529, %v4710, %v4712
    %v4717 = vadd.f32 %v4393, %v4713
    %v4718 = vadd.f32 %v4394, %v4714
    %v4719 = vmul.f32 %v4113, %v4565
    %v4720 = vmul.f32 %v4357, %v4565
    %v4721 = vmul.f32 %v255, %v4565
    %v4722 = vmul.f32 %v400, %v4565
    %v4723 = vmul.f32 %v4114, %v4565
    %v4724 = vmul.f32 %v4358, %v4565
    %v4731 = vrot.slane %v4719, 3
    %v4732 = vrot.slane %v4721, 3
    %v4733 = vsel %vm4058, %v4731, %v4732
    %v4734 = vrot.slane %v4720, 3
    %v4735 = vrot.slane %v4722, 3
    %v4736 = vsel %vm4058, %v4734, %v4735
    %v4737 = vrot.slane %v4723, 3
    %v4738 = vsel %vm4058, %v4732, %v4737
    %v4739 = vrot.slane %v4724, 3
    %v4740 = vsel %vm4058, %v4735, %v4739
    %4741 = vrot.lane.b32.xlu0 %v4733, 126
    %v4742 = vpop.permute.xlu0 %4741
    %4743 = vrot.lane.b32.xlu0 %v4736, 126
    %v4744 = vpop.permute.xlu0 %4743
    %4745 = vrot.lane.b32.xlu0 %v4738, 126
    %v4746 = vpop.permute.xlu0 %4745
    %4747 = vrot.lane.b32.xlu0 %v4740, 126
    %v4748 = vpop.permute.xlu0 %4747
    %v4749 = vsel %vm529, %v4742, %v4744
    %v4750 = vsel %vm529, %v4746, %v4748
    %v4753 = vadd.f32 %v4429, %v4749
    %v4754 = vadd.f32 %v4430, %v4750
    %v4755 = vmul.f32 %v4113, %v4605
    %v4756 = vmul.f32 %v4357, %v4605
    %v4757 = vmul.f32 %v255, %v4605
    %v4758 = vmul.f32 %v400, %v4605
    %v4759 = vmul.f32 %v4114, %v4605
    %v4760 = vmul.f32 %v4358, %v4605
    %v4767 = vrot.slane %v4755, 3
    %v4768 = vrot.slane %v4757, 3
    %v4769 = vsel %vm4058, %v4767, %v4768
    %v4770 = vrot.slane %v4756, 3
    %v4771 = vrot.slane %v4758, 3
    %v4772 = vsel %vm4058, %v4770, %v4771
    %v4773 = vrot.slane %v4759, 3
    %v4774 = vsel %vm4058, %v4768, %v4773
    %v4775 = vrot.slane %v4760, 3
    %v4776 = vsel %vm4058, %v4771, %v4775
    %4777 = vrot.lane.b32.xlu0 %v4769, 126
    %v4778 = vpop.permute.xlu0 %4777
    %4779 = vrot.lane.b32.xlu0 %v4772, 126
    %v4780 = vpop.permute.xlu0 %4779
    %4781 = vrot.lane.b32.xlu0 %v4774, 126
    %v4782 = vpop.permute.xlu0 %4781
    %4783 = vrot.lane.b32.xlu0 %v4776, 126
    %v4784 = vpop.permute.xlu0 %4783
    %v4785 = vsel %vm529, %v4778, %v4780
    %v4786 = vsel %vm529, %v4782, %v4784
    %v4789 = vadd.f32 %v4465, %v4785
    %v4790 = vadd.f32 %v4466, %v4786
    %v4791 = vmul.f32 %v4113, %v4645
    %v4792 = vmul.f32 %v4357, %v4645
    %v4793 = vmul.f32 %v255, %v4645
    %v4794 = vmul.f32 %v400, %v4645
    %v4795 = vmul.f32 %v4114, %v4645
    %v4796 = vmul.f32 %v4358, %v4645
    %v4803 = vrot.slane %v4791, 3
    %v4804 = vrot.slane %v4793, 3
    %v4805 = vsel %vm4058, %v4803, %v4804
    %v4806 = vrot.slane %v4792, 3
    %v4807 = vrot.slane %v4794, 3
    %v4808 = vsel %vm4058, %v4806, %v4807
    %v4809 = vrot.slane %v4795, 3
    %v4810 = vsel %vm4058, %v4804, %v4809
    %v4811 = vrot.slane %v4796, 3
    %v4812 = vsel %vm4058, %v4807, %v4811
    %4813 = vrot.lane.b32.xlu0 %v4805, 126
    %v4814 = vpop.permute.xlu0 %4813
    %4815 = vrot.lane.b32.xlu0 %v4808, 126
    %v4816 = vpop.permute.xlu0 %4815
    %4817 = vrot.lane.b32.xlu0 %v4810, 126
    %v4818 = vpop.permute.xlu0 %4817
    %4819 = vrot.lane.b32.xlu0 %v4812, 126
    %v4820 = vpop.permute.xlu0 %4819
    %v4821 = vsel %vm529, %v4814, %v4816
    %v4822 = vsel %vm529, %v4818, %v4820
    %v4825 = vadd.f32 %v4501, %v4821
    %v4826 = vadd.f32 %v4502, %v4822
    %v4827 = vld [vmem:[%s4026 + $0x3] sm:$0x1]
    %v4828 = vlaneseq
    %v4829 = vshrl.u32 %v4828, 7
    %v4830 = vsub.s32 0, %v4829
    %v4831 = vrot.slane %v4827, %v4830
    %v4832 = vld [vmem:[%s4032 + $0x3] sm:$0x1]
    %v4833 = vlaneseq
    %v4834 = vshrl.u32 %v4833, 7
    %v4835 = vsub.s32 0, %v4834
    %v4836 = vrot.slane %v4832, %v4835
    %v4837 = vld [vmem:[%s4038 + $0x3] sm:$0x1]
    %v4838 = vlaneseq
    %v4839 = vshrl.u32 %v4838, 7
    %v4840 = vsub.s32 0, %v4839
    %v4841 = vrot.slane %v4837, %v4840
    %v4842 = vld [vmem:[%s4044 + $0x3] sm:$0x1]
    %v4843 = vlaneseq
    %v4844 = vshrl.u32 %v4843, 7
    %v4845 = vsub.s32 0, %v4844
    %v4846 = vrot.slane %v4842, %v4845
    %4848 = vrot.lane.b32.xlu0 %v4831, 3
    %v4849 = vpop.permute.xlu0 %4848
    %v4851 = vmul.f32 %v4050, %v4849
    %v4852 = vmul.f32 %v4195, %v4849
    %v4853 = vmul.f32 %v237, %v4849
    %v4854 = vmul.f32 %v293, %v4849
    %v4855 = vmul.f32 %v4051, %v4849
    %v4856 = vmul.f32 %v4196, %v4849
    %v4863 = vrot.slane %v4851, 3
    %v4864 = vrot.slane %v4853, 3
    %v4865 = vsel %vm4058, %v4863, %v4864
    %v4866 = vrot.slane %v4852, 3
    %v4867 = vrot.slane %v4854, 3
    %v4868 = vsel %vm4058, %v4866, %v4867
    %v4869 = vrot.slane %v4855, 3
    %v4870 = vsel %vm4058, %v4864, %v4869
    %v4871 = vrot.slane %v4856, 3
    %v4872 = vsel %vm4058, %v4867, %v4871
    %4873 = vrot.lane.b32.xlu0 %v4865, 125
    %v4874 = vpop.permute.xlu0 %4873
    %4875 = vrot.lane.b32.xlu0 %v4868, 125
    %v4876 = vpop.permute.xlu0 %4875
    %4877 = vrot.lane.b32.xlu0 %v4870, 125
    %v4878 = vpop.permute.xlu0 %4877
    %4879 = vrot.lane.b32.xlu0 %v4872, 125
    %v4880 = vpop.permute.xlu0 %4879
    %v4881 = vsel %vm742, %v4874, %v4876
    %v4882 = vsel %vm742, %v4878, %v4880
    %v4885 = vadd.f32 %v4561, %v4881
    %v4886 = vadd.f32 %v4562, %v4882
    %4888 = vrot.lane.b32.xlu0 %v4836, 3
    %v4889 = vpop.permute.xlu0 %4888
    %v4891 = vmul.f32 %v4050, %v4889
    %v4892 = vmul.f32 %v4195, %v4889
    %v4893 = vmul.f32 %v237, %v4889
    %v4894 = vmul.f32 %v293, %v4889
    %v4895 = vmul.f32 %v4051, %v4889
    %v4896 = vmul.f32 %v4196, %v4889
    %v4903 = vrot.slane %v4891, 3
    %v4904 = vrot.slane %v4893, 3
    %v4905 = vsel %vm4058, %v4903, %v4904
    %v4906 = vrot.slane %v4892, 3
    %v4907 = vrot.slane %v4894, 3
    %v4908 = vsel %vm4058, %v4906, %v4907
    %v4909 = vrot.slane %v4895, 3
    %v4910 = vsel %vm4058, %v4904, %v4909
    %v4911 = vrot.slane %v4896, 3
    %v4912 = vsel %vm4058, %v4907, %v4911
    %4913 = vrot.lane.b32.xlu0 %v4905, 125
    %v4914 = vpop.permute.xlu0 %4913
    %4915 = vrot.lane.b32.xlu0 %v4908, 125
    %v4916 = vpop.permute.xlu0 %4915
    %4917 = vrot.lane.b32.xlu0 %v4910, 125
    %v4918 = vpop.permute.xlu0 %4917
    %4919 = vrot.lane.b32.xlu0 %v4912, 125
    %v4920 = vpop.permute.xlu0 %4919
    %v4921 = vsel %vm742, %v4914, %v4916
    %v4922 = vsel %vm742, %v4918, %v4920
    %v4925 = vadd.f32 %v4601, %v4921
    %v4926 = vadd.f32 %v4602, %v4922
    %4928 = vrot.lane.b32.xlu0 %v4841, 3
    %v4929 = vpop.permute.xlu0 %4928
    %v4931 = vmul.f32 %v4050, %v4929
    %v4932 = vmul.f32 %v4195, %v4929
    %v4933 = vmul.f32 %v237, %v4929
    %v4934 = vmul.f32 %v293, %v4929
    %v4935 = vmul.f32 %v4051, %v4929
    %v4936 = vmul.f32 %v4196, %v4929
    %v4943 = vrot.slane %v4931, 3
    %v4944 = vrot.slane %v4933, 3
    %v4945 = vsel %vm4058, %v4943, %v4944
    %v4946 = vrot.slane %v4932, 3
    %v4947 = vrot.slane %v4934, 3
    %v4948 = vsel %vm4058, %v4946, %v4947
    %v4949 = vrot.slane %v4935, 3
    %v4950 = vsel %vm4058, %v4944, %v4949
    %v4951 = vrot.slane %v4936, 3
    %v4952 = vsel %vm4058, %v4947, %v4951
    %4953 = vrot.lane.b32.xlu0 %v4945, 125
    %v4954 = vpop.permute.xlu0 %4953
    %4955 = vrot.lane.b32.xlu0 %v4948, 125
    %v4956 = vpop.permute.xlu0 %4955
    %4957 = vrot.lane.b32.xlu0 %v4950, 125
    %v4958 = vpop.permute.xlu0 %4957
    %4959 = vrot.lane.b32.xlu0 %v4952, 125
    %v4960 = vpop.permute.xlu0 %4959
    %v4961 = vsel %vm742, %v4954, %v4956
    %v4962 = vsel %vm742, %v4958, %v4960
    %v4965 = vadd.f32 %v4641, %v4961
    %v4966 = vadd.f32 %v4642, %v4962
    %4968 = vrot.lane.b32.xlu0 %v4846, 3
    %v4969 = vpop.permute.xlu0 %4968
    %v4971 = vmul.f32 %v4050, %v4969
    %v4972 = vmul.f32 %v4195, %v4969
    %v4973 = vmul.f32 %v237, %v4969
    %v4974 = vmul.f32 %v293, %v4969
    %v4975 = vmul.f32 %v4051, %v4969
    %v4976 = vmul.f32 %v4196, %v4969
    %v4983 = vrot.slane %v4971, 3
    %v4984 = vrot.slane %v4973, 3
    %v4985 = vsel %vm4058, %v4983, %v4984
    %v4986 = vrot.slane %v4972, 3
    %v4987 = vrot.slane %v4974, 3
    %v4988 = vsel %vm4058, %v4986, %v4987
    %v4989 = vrot.slane %v4975, 3
    %v4990 = vsel %vm4058, %v4984, %v4989
    %v4991 = vrot.slane %v4976, 3
    %v4992 = vsel %vm4058, %v4987, %v4991
    %4993 = vrot.lane.b32.xlu0 %v4985, 125
    %v4994 = vpop.permute.xlu0 %4993
    %4995 = vrot.lane.b32.xlu0 %v4988, 125
    %v4996 = vpop.permute.xlu0 %4995
    %4997 = vrot.lane.b32.xlu0 %v4990, 125
    %v4998 = vpop.permute.xlu0 %4997
    %4999 = vrot.lane.b32.xlu0 %v4992, 125
    %v5000 = vpop.permute.xlu0 %4999
    %v5001 = vsel %vm742, %v4994, %v4996
    %v5002 = vsel %vm742, %v4998, %v5000
    %v5005 = vadd.f32 %v4681, %v5001
    %v5006 = vadd.f32 %v4682, %v5002
    %v5007 = vmul.f32 %v4113, %v4849
    %v5008 = vmul.f32 %v4357, %v4849
    %v5009 = vmul.f32 %v255, %v4849
    %v5010 = vmul.f32 %v400, %v4849
    %v5011 = vmul.f32 %v4114, %v4849
    %v5012 = vmul.f32 %v4358, %v4849
    %v5019 = vrot.slane %v5007, 3
    %v5020 = vrot.slane %v5009, 3
    %v5021 = vsel %vm4058, %v5019, %v5020
    %v5022 = vrot.slane %v5008, 3
    %v5023 = vrot.slane %v5010, 3
    %v5024 = vsel %vm4058, %v5022, %v5023
    %v5025 = vrot.slane %v5011, 3
    %v5026 = vsel %vm4058, %v5020, %v5025
    %v5027 = vrot.slane %v5012, 3
    %v5028 = vsel %vm4058, %v5023, %v5027
    %5029 = vrot.lane.b32.xlu0 %v5021, 125
    %v5030 = vpop.permute.xlu0 %5029
    %5031 = vrot.lane.b32.xlu0 %v5024, 125
    %v5032 = vpop.permute.xlu0 %5031
    %5033 = vrot.lane.b32.xlu0 %v5026, 125
    %v5034 = vpop.permute.xlu0 %5033
    %5035 = vrot.lane.b32.xlu0 %v5028, 125
    %v5036 = vpop.permute.xlu0 %5035
    %v5037 = vsel %vm742, %v5030, %v5032
    %v5038 = vsel %vm742, %v5034, %v5036
    %v5041 = vadd.f32 %v4717, %v5037
    %v5042 = vadd.f32 %v4718, %v5038
    %v5043 = vmul.f32 %v4113, %v4889
    %v5044 = vmul.f32 %v4357, %v4889
    %v5045 = vmul.f32 %v255, %v4889
    %v5046 = vmul.f32 %v400, %v4889
    %v5047 = vmul.f32 %v4114, %v4889
    %v5048 = vmul.f32 %v4358, %v4889
    %v5055 = vrot.slane %v5043, 3
    %v5056 = vrot.slane %v5045, 3
    %v5057 = vsel %vm4058, %v5055, %v5056
    %v5058 = vrot.slane %v5044, 3
    %v5059 = vrot.slane %v5046, 3
    %v5060 = vsel %vm4058, %v5058, %v5059
    %v5061 = vrot.slane %v5047, 3
    %v5062 = vsel %vm4058, %v5056, %v5061
    %v5063 = vrot.slane %v5048, 3
    %v5064 = vsel %vm4058, %v5059, %v5063
    %5065 = vrot.lane.b32.xlu0 %v5057, 125
    %v5066 = vpop.permute.xlu0 %5065
    %5067 = vrot.lane.b32.xlu0 %v5060, 125
    %v5068 = vpop.permute.xlu0 %5067
    %5069 = vrot.lane.b32.xlu0 %v5062, 125
    %v5070 = vpop.permute.xlu0 %5069
    %5071 = vrot.lane.b32.xlu0 %v5064, 125
    %v5072 = vpop.permute.xlu0 %5071
    %v5073 = vsel %vm742, %v5066, %v5068
    %v5074 = vsel %vm742, %v5070, %v5072
    %v5077 = vadd.f32 %v4753, %v5073
    %v5078 = vadd.f32 %v4754, %v5074
    %v5079 = vmul.f32 %v4113, %v4929
    %v5080 = vmul.f32 %v4357, %v4929
    %v5081 = vmul.f32 %v255, %v4929
    %v5082 = vmul.f32 %v400, %v4929
    %v5083 = vmul.f32 %v4114, %v4929
    %v5084 = vmul.f32 %v4358, %v4929
    %v5091 = vrot.slane %v5079, 3
    %v5092 = vrot.slane %v5081, 3
    %v5093 = vsel %vm4058, %v5091, %v5092
    %v5094 = vrot.slane %v5080, 3
    %v5095 = vrot.slane %v5082, 3
    %v5096 = vsel %vm4058, %v5094, %v5095
    %v5097 = vrot.slane %v5083, 3
    %v5098 = vsel %vm4058, %v5092, %v5097
    %v5099 = vrot.slane %v5084, 3
    %v5100 = vsel %vm4058, %v5095, %v5099
    %5101 = vrot.lane.b32.xlu0 %v5093, 125
    %v5102 = vpop.permute.xlu0 %5101
    %5103 = vrot.lane.b32.xlu0 %v5096, 125
    %v5104 = vpop.permute.xlu0 %5103
    %5105 = vrot.lane.b32.xlu0 %v5098, 125
    %v5106 = vpop.permute.xlu0 %5105
    %5107 = vrot.lane.b32.xlu0 %v5100, 125
    %v5108 = vpop.permute.xlu0 %5107
    %v5109 = vsel %vm742, %v5102, %v5104
    %v5110 = vsel %vm742, %v5106, %v5108
    %v5113 = vadd.f32 %v4789, %v5109
    %v5114 = vadd.f32 %v4790, %v5110
    %v5115 = vmul.f32 %v4113, %v4969
    %v5116 = vmul.f32 %v4357, %v4969
    %v5117 = vmul.f32 %v255, %v4969
    %v5118 = vmul.f32 %v400, %v4969
    %v5119 = vmul.f32 %v4114, %v4969
    %v5120 = vmul.f32 %v4358, %v4969
    %v5127 = vrot.slane %v5115, 3
    %v5128 = vrot.slane %v5117, 3
    %v5129 = vsel %vm4058, %v5127, %v5128
    %v5130 = vrot.slane %v5116, 3
    %v5131 = vrot.slane %v5118, 3
    %v5132 = vsel %vm4058, %v5130, %v5131
    %v5133 = vrot.slane %v5119, 3
    %v5134 = vsel %vm4058, %v5128, %v5133
    %v5135 = vrot.slane %v5120, 3
    %v5136 = vsel %vm4058, %v5131, %v5135
    %5137 = vrot.lane.b32.xlu0 %v5129, 125
    %v5138 = vpop.permute.xlu0 %5137
    %5139 = vrot.lane.b32.xlu0 %v5132, 125
    %v5140 = vpop.permute.xlu0 %5139
    %5141 = vrot.lane.b32.xlu0 %v5134, 125
    %v5142 = vpop.permute.xlu0 %5141
    %5143 = vrot.lane.b32.xlu0 %v5136, 125
    %v5144 = vpop.permute.xlu0 %5143
    %v5145 = vsel %vm742, %v5138, %v5140
    %v5146 = vsel %vm742, %v5142, %v5144
    %v5149 = vadd.f32 %v4825, %v5145
    %v5150 = vadd.f32 %v4826, %v5146
    %v5151 = vld [vmem:[%s4026 + $0x4] sm:$0x1]
    %v5152 = vlaneseq
    %v5153 = vshrl.u32 %v5152, 7
    %v5154 = vsub.s32 0, %v5153
    %v5155 = vrot.slane %v5151, %v5154
    %v5156 = vld [vmem:[%s4032 + $0x4] sm:$0x1]
    %v5157 = vlaneseq
    %v5158 = vshrl.u32 %v5157, 7
    %v5159 = vsub.s32 0, %v5158
    %v5160 = vrot.slane %v5156, %v5159
    %v5161 = vld [vmem:[%s4038 + $0x4] sm:$0x1]
    %v5162 = vlaneseq
    %v5163 = vshrl.u32 %v5162, 7
    %v5164 = vsub.s32 0, %v5163
    %v5165 = vrot.slane %v5161, %v5164
    %v5166 = vld [vmem:[%s4044 + $0x4] sm:$0x1]
    %v5167 = vlaneseq
    %v5168 = vshrl.u32 %v5167, 7
    %v5169 = vsub.s32 0, %v5168
    %v5170 = vrot.slane %v5166, %v5169
    %5172 = vrot.lane.b32.xlu0 %v5155, 4
    %v5173 = vpop.permute.xlu0 %5172
    %v5175 = vmul.f32 %v4050, %v5173
    %v5176 = vmul.f32 %v4195, %v5173
    %v5177 = vmul.f32 %v237, %v5173
    %v5178 = vmul.f32 %v293, %v5173
    %v5179 = vmul.f32 %v4051, %v5173
    %v5180 = vmul.f32 %v4196, %v5173
    %v5187 = vrot.slane %v5175, 3
    %v5188 = vrot.slane %v5177, 3
    %v5189 = vsel %vm4058, %v5187, %v5188
    %v5190 = vrot.slane %v5176, 3
    %v5191 = vrot.slane %v5178, 3
    %v5192 = vsel %vm4058, %v5190, %v5191
    %v5193 = vrot.slane %v5179, 3
    %v5194 = vsel %vm4058, %v5188, %v5193
    %v5195 = vrot.slane %v5180, 3
    %v5196 = vsel %vm4058, %v5191, %v5195
    %5197 = vrot.lane.b32.xlu0 %v5189, 124
    %v5198 = vpop.permute.xlu0 %5197
    %5199 = vrot.lane.b32.xlu0 %v5192, 124
    %v5200 = vpop.permute.xlu0 %5199
    %5201 = vrot.lane.b32.xlu0 %v5194, 124
    %v5202 = vpop.permute.xlu0 %5201
    %5203 = vrot.lane.b32.xlu0 %v5196, 124
    %v5204 = vpop.permute.xlu0 %5203
    %v5205 = vsel %vm955, %v5198, %v5200
    %v5206 = vsel %vm955, %v5202, %v5204
    %v5209 = vadd.f32 %v4885, %v5205
    %v5210 = vadd.f32 %v4886, %v5206
    %5212 = vrot.lane.b32.xlu0 %v5160, 4
    %v5213 = vpop.permute.xlu0 %5212
    %v5215 = vmul.f32 %v4050, %v5213
    %v5216 = vmul.f32 %v4195, %v5213
    %v5217 = vmul.f32 %v237, %v5213
    %v5218 = vmul.f32 %v293, %v5213
    %v5219 = vmul.f32 %v4051, %v5213
    %v5220 = vmul.f32 %v4196, %v5213
    %v5227 = vrot.slane %v5215, 3
    %v5228 = vrot.slane %v5217, 3
    %v5229 = vsel %vm4058, %v5227, %v5228
    %v5230 = vrot.slane %v5216, 3
    %v5231 = vrot.slane %v5218, 3
    %v5232 = vsel %vm4058, %v5230, %v5231
    %v5233 = vrot.slane %v5219, 3
    %v5234 = vsel %vm4058, %v5228, %v5233
    %v5235 = vrot.slane %v5220, 3
    %v5236 = vsel %vm4058, %v5231, %v5235
    %5237 = vrot.lane.b32.xlu0 %v5229, 124
    %v5238 = vpop.permute.xlu0 %5237
    %5239 = vrot.lane.b32.xlu0 %v5232, 124
    %v5240 = vpop.permute.xlu0 %5239
    %5241 = vrot.lane.b32.xlu0 %v5234, 124
    %v5242 = vpop.permute.xlu0 %5241
    %5243 = vrot.lane.b32.xlu0 %v5236, 124
    %v5244 = vpop.permute.xlu0 %5243
    %v5245 = vsel %vm955, %v5238, %v5240
    %v5246 = vsel %vm955, %v5242, %v5244
    %v5249 = vadd.f32 %v4925, %v5245
    %v5250 = vadd.f32 %v4926, %v5246
    %5252 = vrot.lane.b32.xlu0 %v5165, 4
    %v5253 = vpop.permute.xlu0 %5252
    %v5255 = vmul.f32 %v4050, %v5253
    %v5256 = vmul.f32 %v4195, %v5253
    %v5257 = vmul.f32 %v237, %v5253
    %v5258 = vmul.f32 %v293, %v5253
    %v5259 = vmul.f32 %v4051, %v5253
    %v5260 = vmul.f32 %v4196, %v5253
    %v5267 = vrot.slane %v5255, 3
    %v5268 = vrot.slane %v5257, 3
    %v5269 = vsel %vm4058, %v5267, %v5268
    %v5270 = vrot.slane %v5256, 3
    %v5271 = vrot.slane %v5258, 3
    %v5272 = vsel %vm4058, %v5270, %v5271
    %v5273 = vrot.slane %v5259, 3
    %v5274 = vsel %vm4058, %v5268, %v5273
    %v5275 = vrot.slane %v5260, 3
    %v5276 = vsel %vm4058, %v5271, %v5275
    %5277 = vrot.lane.b32.xlu0 %v5269, 124
    %v5278 = vpop.permute.xlu0 %5277
    %5279 = vrot.lane.b32.xlu0 %v5272, 124
    %v5280 = vpop.permute.xlu0 %5279
    %5281 = vrot.lane.b32.xlu0 %v5274, 124
    %v5282 = vpop.permute.xlu0 %5281
    %5283 = vrot.lane.b32.xlu0 %v5276, 124
    %v5284 = vpop.permute.xlu0 %5283
    %v5285 = vsel %vm955, %v5278, %v5280
    %v5286 = vsel %vm955, %v5282, %v5284
    %v5289 = vadd.f32 %v4965, %v5285
    %v5290 = vadd.f32 %v4966, %v5286
    %5292 = vrot.lane.b32.xlu0 %v5170, 4
    %v5293 = vpop.permute.xlu0 %5292
    %v5295 = vmul.f32 %v4050, %v5293
    %v5296 = vmul.f32 %v4195, %v5293
    %v5297 = vmul.f32 %v237, %v5293
    %v5298 = vmul.f32 %v293, %v5293
    %v5299 = vmul.f32 %v4051, %v5293
    %v5300 = vmul.f32 %v4196, %v5293
    %v5307 = vrot.slane %v5295, 3
    %v5308 = vrot.slane %v5297, 3
    %v5309 = vsel %vm4058, %v5307, %v5308
    %v5310 = vrot.slane %v5296, 3
    %v5311 = vrot.slane %v5298, 3
    %v5312 = vsel %vm4058, %v5310, %v5311
    %v5313 = vrot.slane %v5299, 3
    %v5314 = vsel %vm4058, %v5308, %v5313
    %v5315 = vrot.slane %v5300, 3
    %v5316 = vsel %vm4058, %v5311, %v5315
    %5317 = vrot.lane.b32.xlu0 %v5309, 124
    %v5318 = vpop.permute.xlu0 %5317
    %5319 = vrot.lane.b32.xlu0 %v5312, 124
    %v5320 = vpop.permute.xlu0 %5319
    %5321 = vrot.lane.b32.xlu0 %v5314, 124
    %v5322 = vpop.permute.xlu0 %5321
    %5323 = vrot.lane.b32.xlu0 %v5316, 124
    %v5324 = vpop.permute.xlu0 %5323
    %v5325 = vsel %vm955, %v5318, %v5320
    %v5326 = vsel %vm955, %v5322, %v5324
    %v5329 = vadd.f32 %v5005, %v5325
    %v5330 = vadd.f32 %v5006, %v5326
    %v5331 = vmul.f32 %v4113, %v5173
    %v5332 = vmul.f32 %v4357, %v5173
    %v5333 = vmul.f32 %v255, %v5173
    %v5334 = vmul.f32 %v400, %v5173
    %v5335 = vmul.f32 %v4114, %v5173
    %v5336 = vmul.f32 %v4358, %v5173
    %v5343 = vrot.slane %v5331, 3
    %v5344 = vrot.slane %v5333, 3
    %v5345 = vsel %vm4058, %v5343, %v5344
    %v5346 = vrot.slane %v5332, 3
    %v5347 = vrot.slane %v5334, 3
    %v5348 = vsel %vm4058, %v5346, %v5347
    %v5349 = vrot.slane %v5335, 3
    %v5350 = vsel %vm4058, %v5344, %v5349
    %v5351 = vrot.slane %v5336, 3
    %v5352 = vsel %vm4058, %v5347, %v5351
    %5353 = vrot.lane.b32.xlu0 %v5345, 124
    %v5354 = vpop.permute.xlu0 %5353
    %5355 = vrot.lane.b32.xlu0 %v5348, 124
    %v5356 = vpop.permute.xlu0 %5355
    %5357 = vrot.lane.b32.xlu0 %v5350, 124
    %v5358 = vpop.permute.xlu0 %5357
    %5359 = vrot.lane.b32.xlu0 %v5352, 124
    %v5360 = vpop.permute.xlu0 %5359
    %v5361 = vsel %vm955, %v5354, %v5356
    %v5362 = vsel %vm955, %v5358, %v5360
    %v5365 = vadd.f32 %v5041, %v5361
    %v5366 = vadd.f32 %v5042, %v5362
    %v5367 = vmul.f32 %v4113, %v5213
    %v5368 = vmul.f32 %v4357, %v5213
    %v5369 = vmul.f32 %v255, %v5213
    %v5370 = vmul.f32 %v400, %v5213
    %v5371 = vmul.f32 %v4114, %v5213
    %v5372 = vmul.f32 %v4358, %v5213
    %v5379 = vrot.slane %v5367, 3
    %v5380 = vrot.slane %v5369, 3
    %v5381 = vsel %vm4058, %v5379, %v5380
    %v5382 = vrot.slane %v5368, 3
    %v5383 = vrot.slane %v5370, 3
    %v5384 = vsel %vm4058, %v5382, %v5383
    %v5385 = vrot.slane %v5371, 3
    %v5386 = vsel %vm4058, %v5380, %v5385
    %v5387 = vrot.slane %v5372, 3
    %v5388 = vsel %vm4058, %v5383, %v5387
    %5389 = vrot.lane.b32.xlu0 %v5381, 124
    %v5390 = vpop.permute.xlu0 %5389
    %5391 = vrot.lane.b32.xlu0 %v5384, 124
    %v5392 = vpop.permute.xlu0 %5391
    %5393 = vrot.lane.b32.xlu0 %v5386, 124
    %v5394 = vpop.permute.xlu0 %5393
    %5395 = vrot.lane.b32.xlu0 %v5388, 124
    %v5396 = vpop.permute.xlu0 %5395
    %v5397 = vsel %vm955, %v5390, %v5392
    %v5398 = vsel %vm955, %v5394, %v5396
    %v5401 = vadd.f32 %v5077, %v5397
    %v5402 = vadd.f32 %v5078, %v5398
    %v5403 = vmul.f32 %v4113, %v5253
    %v5404 = vmul.f32 %v4357, %v5253
    %v5405 = vmul.f32 %v255, %v5253
    %v5406 = vmul.f32 %v400, %v5253
    %v5407 = vmul.f32 %v4114, %v5253
    %v5408 = vmul.f32 %v4358, %v5253
    %v5415 = vrot.slane %v5403, 3
    %v5416 = vrot.slane %v5405, 3
    %v5417 = vsel %vm4058, %v5415, %v5416
    %v5418 = vrot.slane %v5404, 3
    %v5419 = vrot.slane %v5406, 3
    %v5420 = vsel %vm4058, %v5418, %v5419
    %v5421 = vrot.slane %v5407, 3
    %v5422 = vsel %vm4058, %v5416, %v5421
    %v5423 = vrot.slane %v5408, 3
    %v5424 = vsel %vm4058, %v5419, %v5423
    %5425 = vrot.lane.b32.xlu0 %v5417, 124
    %v5426 = vpop.permute.xlu0 %5425
    %5427 = vrot.lane.b32.xlu0 %v5420, 124
    %v5428 = vpop.permute.xlu0 %5427
    %5429 = vrot.lane.b32.xlu0 %v5422, 124
    %v5430 = vpop.permute.xlu0 %5429
    %5431 = vrot.lane.b32.xlu0 %v5424, 124
    %v5432 = vpop.permute.xlu0 %5431
    %v5433 = vsel %vm955, %v5426, %v5428
    %v5434 = vsel %vm955, %v5430, %v5432
    %v5437 = vadd.f32 %v5113, %v5433
    %v5438 = vadd.f32 %v5114, %v5434
    %v5439 = vmul.f32 %v4113, %v5293
    %v5440 = vmul.f32 %v4357, %v5293
    %v5441 = vmul.f32 %v255, %v5293
    %v5442 = vmul.f32 %v400, %v5293
    %v5443 = vmul.f32 %v4114, %v5293
    %v5444 = vmul.f32 %v4358, %v5293
    %v5451 = vrot.slane %v5439, 3
    %v5452 = vrot.slane %v5441, 3
    %v5453 = vsel %vm4058, %v5451, %v5452
    %v5454 = vrot.slane %v5440, 3
    %v5455 = vrot.slane %v5442, 3
    %v5456 = vsel %vm4058, %v5454, %v5455
    %v5457 = vrot.slane %v5443, 3
    %v5458 = vsel %vm4058, %v5452, %v5457
    %v5459 = vrot.slane %v5444, 3
    %v5460 = vsel %vm4058, %v5455, %v5459
    %5461 = vrot.lane.b32.xlu0 %v5453, 124
    %v5462 = vpop.permute.xlu0 %5461
    %5463 = vrot.lane.b32.xlu0 %v5456, 124
    %v5464 = vpop.permute.xlu0 %5463
    %5465 = vrot.lane.b32.xlu0 %v5458, 124
    %v5466 = vpop.permute.xlu0 %5465
    %5467 = vrot.lane.b32.xlu0 %v5460, 124
    %v5468 = vpop.permute.xlu0 %5467
    %v5469 = vsel %vm955, %v5462, %v5464
    %v5470 = vsel %vm955, %v5466, %v5468
    %v5473 = vadd.f32 %v5149, %v5469
    %v5474 = vadd.f32 %v5150, %v5470
    %s5475 = scalar_lea.vmem %s1, 32
    %v5476 = vld [vmem:[%s5475] sm:$0x1]
    %v5477 = vlaneseq
    %v5478 = vshrl.u32 %v5477, 7
    %v5479 = vsub.s32 0, %v5478
    %v5480 = vrot.slane %v5476, %v5479
    %s5481 = scalar_lea.vmem %s1, 72
    %v5482 = vld [vmem:[%s5481] sm:$0x1]
    %v5483 = vlaneseq
    %v5484 = vshrl.u32 %v5483, 7
    %v5485 = vsub.s32 0, %v5484
    %v5486 = vrot.slane %v5482, %v5485
    %s5487 = scalar_lea.vmem %s1, 112
    %v5488 = vld [vmem:[%s5487] sm:$0x1]
    %v5489 = vlaneseq
    %v5490 = vshrl.u32 %v5489, 7
    %v5491 = vsub.s32 0, %v5490
    %v5492 = vrot.slane %v5488, %v5491
    %s5493 = scalar_lea.vmem %s1, 152
    %v5494 = vld [vmem:[%s5493] sm:$0x1]
    %v5495 = vlaneseq
    %v5496 = vshrl.u32 %v5495, 7
    %v5497 = vsub.s32 0, %v5496
    %v5498 = vrot.slane %v5494, %v5497
    %v5499 = vld [vmem:[#allocation2] sm:$0xf0]
    %v5500 = vld [vmem:[#allocation2 + $0x20] sm:$0xf]
    %v5501 = vmul.f32 %v5499, %v5480
    %v5502 = vmul.f32 %v237, %v5480
    %v5503 = vmul.f32 %v5500, %v5480
    %vm5507 = vcmask 1043456
    %v5508 = vrot.slane %v5501, 4
    %v5509 = vrot.slane %v5502, 4
    %v5510 = vsel %vm5507, %v5508, %v5509
    %v5511 = vrot.slane %v5503, 4
    %v5512 = vsel %vm5507, %v5509, %v5511
    %v5515 = vadd.f32 %v5209, %v5510
    %v5516 = vadd.f32 %v5210, %v5512
    %v5517 = vmul.f32 %v5499, %v5486
    %v5518 = vmul.f32 %v237, %v5486
    %v5519 = vmul.f32 %v5500, %v5486
    %v5523 = vrot.slane %v5517, 4
    %v5524 = vrot.slane %v5518, 4
    %v5525 = vsel %vm5507, %v5523, %v5524
    %v5526 = vrot.slane %v5519, 4
    %v5527 = vsel %vm5507, %v5524, %v5526
    %v5530 = vadd.f32 %v5249, %v5525
    %v5531 = vadd.f32 %v5250, %v5527
    %v5532 = vmul.f32 %v5499, %v5492
    %v5533 = vmul.f32 %v237, %v5492
    %v5534 = vmul.f32 %v5500, %v5492
    %v5538 = vrot.slane %v5532, 4
    %v5539 = vrot.slane %v5533, 4
    %v5540 = vsel %vm5507, %v5538, %v5539
    %v5541 = vrot.slane %v5534, 4
    %v5542 = vsel %vm5507, %v5539, %v5541
    %v5545 = vadd.f32 %v5289, %v5540
    %v5546 = vadd.f32 %v5290, %v5542
    %v5547 = vmul.f32 %v5499, %v5498
    %v5548 = vmul.f32 %v237, %v5498
    %v5549 = vmul.f32 %v5500, %v5498
    %v5553 = vrot.slane %v5547, 4
    %v5554 = vrot.slane %v5548, 4
    %v5555 = vsel %vm5507, %v5553, %v5554
    %v5556 = vrot.slane %v5549, 4
    %v5557 = vsel %vm5507, %v5554, %v5556
    %v5560 = vadd.f32 %v5329, %v5555
    %v5561 = vadd.f32 %v5330, %v5557
    %v5562 = vld [vmem:[%s149] sm:$0xf0]
    %v5563 = vld [vmem:[%s149 + $0x20] sm:$0xf]
    %v5564 = vmul.f32 %v5562, %v5480
    %v5565 = vmul.f32 %v255, %v5480
    %v5566 = vmul.f32 %v5563, %v5480
    %v5570 = vrot.slane %v5564, 4
    %v5571 = vrot.slane %v5565, 4
    %v5572 = vsel %vm5507, %v5570, %v5571
    %v5573 = vrot.slane %v5566, 4
    %v5574 = vsel %vm5507, %v5571, %v5573
    %v5577 = vadd.f32 %v5365, %v5572
    %v5578 = vadd.f32 %v5366, %v5574
    %v5579 = vmul.f32 %v5562, %v5486
    %v5580 = vmul.f32 %v255, %v5486
    %v5581 = vmul.f32 %v5563, %v5486
    %v5585 = vrot.slane %v5579, 4
    %v5586 = vrot.slane %v5580, 4
    %v5587 = vsel %vm5507, %v5585, %v5586
    %v5588 = vrot.slane %v5581, 4
    %v5589 = vsel %vm5507, %v5586, %v5588
    %v5592 = vadd.f32 %v5401, %v5587
    %v5593 = vadd.f32 %v5402, %v5589
    %v5594 = vmul.f32 %v5562, %v5492
    %v5595 = vmul.f32 %v255, %v5492
    %v5596 = vmul.f32 %v5563, %v5492
    %v5600 = vrot.slane %v5594, 4
    %v5601 = vrot.slane %v5595, 4
    %v5602 = vsel %vm5507, %v5600, %v5601
    %v5603 = vrot.slane %v5596, 4
    %v5604 = vsel %vm5507, %v5601, %v5603
    %v5607 = vadd.f32 %v5437, %v5602
    %v5608 = vadd.f32 %v5438, %v5604
    %v5609 = vmul.f32 %v5562, %v5498
    %v5610 = vmul.f32 %v255, %v5498
    %v5611 = vmul.f32 %v5563, %v5498
    %v5615 = vrot.slane %v5609, 4
    %v5616 = vrot.slane %v5610, 4
    %v5617 = vsel %vm5507, %v5615, %v5616
    %v5618 = vrot.slane %v5611, 4
    %v5619 = vsel %vm5507, %v5616, %v5618
    %v5622 = vadd.f32 %v5473, %v5617
    %v5623 = vadd.f32 %v5474, %v5619
    %v5624 = vld [vmem:[%s5475 + $0x1] sm:$0x1]
    %v5625 = vlaneseq
    %v5626 = vshrl.u32 %v5625, 7
    %v5627 = vsub.s32 0, %v5626
    %v5628 = vrot.slane %v5624, %v5627
    %v5629 = vld [vmem:[%s5481 + $0x1] sm:$0x1]
    %v5630 = vlaneseq
    %v5631 = vshrl.u32 %v5630, 7
    %v5632 = vsub.s32 0, %v5631
    %v5633 = vrot.slane %v5629, %v5632
    %v5634 = vld [vmem:[%s5487 + $0x1] sm:$0x1]
    %v5635 = vlaneseq
    %v5636 = vshrl.u32 %v5635, 7
    %v5637 = vsub.s32 0, %v5636
    %v5638 = vrot.slane %v5634, %v5637
    %v5639 = vld [vmem:[%s5493 + $0x1] sm:$0x1]
    %v5640 = vlaneseq
    %v5641 = vshrl.u32 %v5640, 7
    %v5642 = vsub.s32 0, %v5641
    %v5643 = vrot.slane %v5639, %v5642
    %v5644 = vld [vmem:[#allocation2 + $0x8] sm:$0xf0]
    %v5645 = vld [vmem:[#allocation2 + $0x28] sm:$0xf]
    %5647 = vrot.lane.b32.xlu0 %v5628, 1
    %v5648 = vpop.permute.xlu0 %5647
    %v5650 = vmul.f32 %v5499, %v5648
    %v5651 = vmul.f32 %v5644, %v5648
    %v5652 = vmul.f32 %v237, %v5648
    %v5653 = vmul.f32 %v293, %v5648
    %v5654 = vmul.f32 %v5500, %v5648
    %v5655 = vmul.f32 %v5645, %v5648
    %v5662 = vrot.slane %v5650, 4
    %v5663 = vrot.slane %v5652, 4
    %v5664 = vsel %vm5507, %v5662, %v5663
    %v5665 = vrot.slane %v5651, 4
    %v5666 = vrot.slane %v5653, 4
    %v5667 = vsel %vm5507, %v5665, %v5666
    %v5668 = vrot.slane %v5654, 4
    %v5669 = vsel %vm5507, %v5663, %v5668
    %v5670 = vrot.slane %v5655, 4
    %v5671 = vsel %vm5507, %v5666, %v5670
    %5672 = vrot.lane.b32.xlu0 %v5664, 127
    %v5673 = vpop.permute.xlu0 %5672
    %5674 = vrot.lane.b32.xlu0 %v5667, 127
    %v5675 = vpop.permute.xlu0 %5674
    %5676 = vrot.lane.b32.xlu0 %v5669, 127
    %v5677 = vpop.permute.xlu0 %5676
    %5678 = vrot.lane.b32.xlu0 %v5671, 127
    %v5679 = vpop.permute.xlu0 %5678
    %v5680 = vsel %vm314, %v5673, %v5675
    %v5681 = vsel %vm314, %v5677, %v5679
    %v5684 = vadd.f32 %v5515, %v5680
    %v5685 = vadd.f32 %v5516, %v5681
    %5687 = vrot.lane.b32.xlu0 %v5633, 1
    %v5688 = vpop.permute.xlu0 %5687
    %v5690 = vmul.f32 %v5499, %v5688
    %v5691 = vmul.f32 %v5644, %v5688
    %v5692 = vmul.f32 %v237, %v5688
    %v5693 = vmul.f32 %v293, %v5688
    %v5694 = vmul.f32 %v5500, %v5688
    %v5695 = vmul.f32 %v5645, %v5688
    %v5702 = vrot.slane %v5690, 4
    %v5703 = vrot.slane %v5692, 4
    %v5704 = vsel %vm5507, %v5702, %v5703
    %v5705 = vrot.slane %v5691, 4
    %v5706 = vrot.slane %v5693, 4
    %v5707 = vsel %vm5507, %v5705, %v5706
    %v5708 = vrot.slane %v5694, 4
    %v5709 = vsel %vm5507, %v5703, %v5708
    %v5710 = vrot.slane %v5695, 4
    %v5711 = vsel %vm5507, %v5706, %v5710
    %5712 = vrot.lane.b32.xlu0 %v5704, 127
    %v5713 = vpop.permute.xlu0 %5712
    %5714 = vrot.lane.b32.xlu0 %v5707, 127
    %v5715 = vpop.permute.xlu0 %5714
    %5716 = vrot.lane.b32.xlu0 %v5709, 127
    %v5717 = vpop.permute.xlu0 %5716
    %5718 = vrot.lane.b32.xlu0 %v5711, 127
    %v5719 = vpop.permute.xlu0 %5718
    %v5720 = vsel %vm314, %v5713, %v5715
    %v5721 = vsel %vm314, %v5717, %v5719
    %v5724 = vadd.f32 %v5530, %v5720
    %v5725 = vadd.f32 %v5531, %v5721
    %5727 = vrot.lane.b32.xlu0 %v5638, 1
    %v5728 = vpop.permute.xlu0 %5727
    %v5730 = vmul.f32 %v5499, %v5728
    %v5731 = vmul.f32 %v5644, %v5728
    %v5732 = vmul.f32 %v237, %v5728
    %v5733 = vmul.f32 %v293, %v5728
    %v5734 = vmul.f32 %v5500, %v5728
    %v5735 = vmul.f32 %v5645, %v5728
    %v5742 = vrot.slane %v5730, 4
    %v5743 = vrot.slane %v5732, 4
    %v5744 = vsel %vm5507, %v5742, %v5743
    %v5745 = vrot.slane %v5731, 4
    %v5746 = vrot.slane %v5733, 4
    %v5747 = vsel %vm5507, %v5745, %v5746
    %v5748 = vrot.slane %v5734, 4
    %v5749 = vsel %vm5507, %v5743, %v5748
    %v5750 = vrot.slane %v5735, 4
    %v5751 = vsel %vm5507, %v5746, %v5750
    %5752 = vrot.lane.b32.xlu0 %v5744, 127
    %v5753 = vpop.permute.xlu0 %5752
    %5754 = vrot.lane.b32.xlu0 %v5747, 127
    %v5755 = vpop.permute.xlu0 %5754
    %5756 = vrot.lane.b32.xlu0 %v5749, 127
    %v5757 = vpop.permute.xlu0 %5756
    %5758 = vrot.lane.b32.xlu0 %v5751, 127
    %v5759 = vpop.permute.xlu0 %5758
    %v5760 = vsel %vm314, %v5753, %v5755
    %v5761 = vsel %vm314, %v5757, %v5759
    %v5764 = vadd.f32 %v5545, %v5760
    %v5765 = vadd.f32 %v5546, %v5761
    %5767 = vrot.lane.b32.xlu0 %v5643, 1
    %v5768 = vpop.permute.xlu0 %5767
    %v5770 = vmul.f32 %v5499, %v5768
    %v5771 = vmul.f32 %v5644, %v5768
    %v5772 = vmul.f32 %v237, %v5768
    %v5773 = vmul.f32 %v293, %v5768
    %v5774 = vmul.f32 %v5500, %v5768
    %v5775 = vmul.f32 %v5645, %v5768
    %v5782 = vrot.slane %v5770, 4
    %v5783 = vrot.slane %v5772, 4
    %v5784 = vsel %vm5507, %v5782, %v5783
    %v5785 = vrot.slane %v5771, 4
    %v5786 = vrot.slane %v5773, 4
    %v5787 = vsel %vm5507, %v5785, %v5786
    %v5788 = vrot.slane %v5774, 4
    %v5789 = vsel %vm5507, %v5783, %v5788
    %v5790 = vrot.slane %v5775, 4
    %v5791 = vsel %vm5507, %v5786, %v5790
    %5792 = vrot.lane.b32.xlu0 %v5784, 127
    %v5793 = vpop.permute.xlu0 %5792
    %5794 = vrot.lane.b32.xlu0 %v5787, 127
    %v5795 = vpop.permute.xlu0 %5794
    %5796 = vrot.lane.b32.xlu0 %v5789, 127
    %v5797 = vpop.permute.xlu0 %5796
    %5798 = vrot.lane.b32.xlu0 %v5791, 127
    %v5799 = vpop.permute.xlu0 %5798
    %v5800 = vsel %vm314, %v5793, %v5795
    %v5801 = vsel %vm314, %v5797, %v5799
    %v5804 = vadd.f32 %v5560, %v5800
    %v5805 = vadd.f32 %v5561, %v5801
    %v5806 = vld [vmem:[%s149 + $0x8] sm:$0xf0]
    %v5807 = vld [vmem:[%s149 + $0x28] sm:$0xf]
    %v5808 = vmul.f32 %v5562, %v5648
    %v5809 = vmul.f32 %v5806, %v5648
    %v5810 = vmul.f32 %v255, %v5648
    %v5811 = vmul.f32 %v400, %v5648
    %v5812 = vmul.f32 %v5563, %v5648
    %v5813 = vmul.f32 %v5807, %v5648
    %v5820 = vrot.slane %v5808, 4
    %v5821 = vrot.slane %v5810, 4
    %v5822 = vsel %vm5507, %v5820, %v5821
    %v5823 = vrot.slane %v5809, 4
    %v5824 = vrot.slane %v5811, 4
    %v5825 = vsel %vm5507, %v5823, %v5824
    %v5826 = vrot.slane %v5812, 4
    %v5827 = vsel %vm5507, %v5821, %v5826
    %v5828 = vrot.slane %v5813, 4
    %v5829 = vsel %vm5507, %v5824, %v5828
    %5830 = vrot.lane.b32.xlu0 %v5822, 127
    %v5831 = vpop.permute.xlu0 %5830
    %5832 = vrot.lane.b32.xlu0 %v5825, 127
    %v5833 = vpop.permute.xlu0 %5832
    %5834 = vrot.lane.b32.xlu0 %v5827, 127
    %v5835 = vpop.permute.xlu0 %5834
    %5836 = vrot.lane.b32.xlu0 %v5829, 127
    %v5837 = vpop.permute.xlu0 %5836
    %v5838 = vsel %vm314, %v5831, %v5833
    %v5839 = vsel %vm314, %v5835, %v5837
    %v5842 = vadd.f32 %v5577, %v5838
    %v5843 = vadd.f32 %v5578, %v5839
    %v5844 = vmul.f32 %v5562, %v5688
    %v5845 = vmul.f32 %v5806, %v5688
    %v5846 = vmul.f32 %v255, %v5688
    %v5847 = vmul.f32 %v400, %v5688
    %v5848 = vmul.f32 %v5563, %v5688
    %v5849 = vmul.f32 %v5807, %v5688
    %v5856 = vrot.slane %v5844, 4
    %v5857 = vrot.slane %v5846, 4
    %v5858 = vsel %vm5507, %v5856, %v5857
    %v5859 = vrot.slane %v5845, 4
    %v5860 = vrot.slane %v5847, 4
    %v5861 = vsel %vm5507, %v5859, %v5860
    %v5862 = vrot.slane %v5848, 4
    %v5863 = vsel %vm5507, %v5857, %v5862
    %v5864 = vrot.slane %v5849, 4
    %v5865 = vsel %vm5507, %v5860, %v5864
    %5866 = vrot.lane.b32.xlu0 %v5858, 127
    %v5867 = vpop.permute.xlu0 %5866
    %5868 = vrot.lane.b32.xlu0 %v5861, 127
    %v5869 = vpop.permute.xlu0 %5868
    %5870 = vrot.lane.b32.xlu0 %v5863, 127
    %v5871 = vpop.permute.xlu0 %5870
    %5872 = vrot.lane.b32.xlu0 %v5865, 127
    %v5873 = vpop.permute.xlu0 %5872
    %v5874 = vsel %vm314, %v5867, %v5869
    %v5875 = vsel %vm314, %v5871, %v5873
    %v5878 = vadd.f32 %v5592, %v5874
    %v5879 = vadd.f32 %v5593, %v5875
    %v5880 = vmul.f32 %v5562, %v5728
    %v5881 = vmul.f32 %v5806, %v5728
    %v5882 = vmul.f32 %v255, %v5728
    %v5883 = vmul.f32 %v400, %v5728
    %v5884 = vmul.f32 %v5563, %v5728
    %v5885 = vmul.f32 %v5807, %v5728
    %v5892 = vrot.slane %v5880, 4
    %v5893 = vrot.slane %v5882, 4
    %v5894 = vsel %vm5507, %v5892, %v5893
    %v5895 = vrot.slane %v5881, 4
    %v5896 = vrot.slane %v5883, 4
    %v5897 = vsel %vm5507, %v5895, %v5896
    %v5898 = vrot.slane %v5884, 4
    %v5899 = vsel %vm5507, %v5893, %v5898
    %v5900 = vrot.slane %v5885, 4
    %v5901 = vsel %vm5507, %v5896, %v5900
    %5902 = vrot.lane.b32.xlu0 %v5894, 127
    %v5903 = vpop.permute.xlu0 %5902
    %5904 = vrot.lane.b32.xlu0 %v5897, 127
    %v5905 = vpop.permute.xlu0 %5904
    %5906 = vrot.lane.b32.xlu0 %v5899, 127
    %v5907 = vpop.permute.xlu0 %5906
    %5908 = vrot.lane.b32.xlu0 %v5901, 127
    %v5909 = vpop.permute.xlu0 %5908
    %v5910 = vsel %vm314, %v5903, %v5905
    %v5911 = vsel %vm314, %v5907, %v5909
    %v5914 = vadd.f32 %v5607, %v5910
    %v5915 = vadd.f32 %v5608, %v5911
    %v5916 = vmul.f32 %v5562, %v5768
    %v5917 = vmul.f32 %v5806, %v5768
    %v5918 = vmul.f32 %v255, %v5768
    %v5919 = vmul.f32 %v400, %v5768
    %v5920 = vmul.f32 %v5563, %v5768
    %v5921 = vmul.f32 %v5807, %v5768
    %v5928 = vrot.slane %v5916, 4
    %v5929 = vrot.slane %v5918, 4
    %v5930 = vsel %vm5507, %v5928, %v5929
    %v5931 = vrot.slane %v5917, 4
    %v5932 = vrot.slane %v5919, 4
    %v5933 = vsel %vm5507, %v5931, %v5932
    %v5934 = vrot.slane %v5920, 4
    %v5935 = vsel %vm5507, %v5929, %v5934
    %v5936 = vrot.slane %v5921, 4
    %v5937 = vsel %vm5507, %v5932, %v5936
    %5938 = vrot.lane.b32.xlu0 %v5930, 127
    %v5939 = vpop.permute.xlu0 %5938
    %5940 = vrot.lane.b32.xlu0 %v5933, 127
    %v5941 = vpop.permute.xlu0 %5940
    %5942 = vrot.lane.b32.xlu0 %v5935, 127
    %v5943 = vpop.permute.xlu0 %5942
    %5944 = vrot.lane.b32.xlu0 %v5937, 127
    %v5945 = vpop.permute.xlu0 %5944
    %v5946 = vsel %vm314, %v5939, %v5941
    %v5947 = vsel %vm314, %v5943, %v5945
    %v5950 = vadd.f32 %v5622, %v5946
    %v5951 = vadd.f32 %v5623, %v5947
    %v5952 = vld [vmem:[%s5475 + $0x2] sm:$0x1]
    %v5953 = vlaneseq
    %v5954 = vshrl.u32 %v5953, 7
    %v5955 = vsub.s32 0, %v5954
    %v5956 = vrot.slane %v5952, %v5955
    %v5957 = vld [vmem:[%s5481 + $0x2] sm:$0x1]
    %v5958 = vlaneseq
    %v5959 = vshrl.u32 %v5958, 7
    %v5960 = vsub.s32 0, %v5959
    %v5961 = vrot.slane %v5957, %v5960
    %v5962 = vld [vmem:[%s5487 + $0x2] sm:$0x1]
    %v5963 = vlaneseq
    %v5964 = vshrl.u32 %v5963, 7
    %v5965 = vsub.s32 0, %v5964
    %v5966 = vrot.slane %v5962, %v5965
    %v5967 = vld [vmem:[%s5493 + $0x2] sm:$0x1]
    %v5968 = vlaneseq
    %v5969 = vshrl.u32 %v5968, 7
    %v5970 = vsub.s32 0, %v5969
    %v5971 = vrot.slane %v5967, %v5970
    %5973 = vrot.lane.b32.xlu0 %v5956, 2
    %v5974 = vpop.permute.xlu0 %5973
    %v5976 = vmul.f32 %v5499, %v5974
    %v5977 = vmul.f32 %v5644, %v5974
    %v5978 = vmul.f32 %v237, %v5974
    %v5979 = vmul.f32 %v293, %v5974
    %v5980 = vmul.f32 %v5500, %v5974
    %v5981 = vmul.f32 %v5645, %v5974
    %v5988 = vrot.slane %v5976, 4
    %v5989 = vrot.slane %v5978, 4
    %v5990 = vsel %vm5507, %v5988, %v5989
    %v5991 = vrot.slane %v5977, 4
    %v5992 = vrot.slane %v5979, 4
    %v5993 = vsel %vm5507, %v5991, %v5992
    %v5994 = vrot.slane %v5980, 4
    %v5995 = vsel %vm5507, %v5989, %v5994
    %v5996 = vrot.slane %v5981, 4
    %v5997 = vsel %vm5507, %v5992, %v5996
    %5998 = vrot.lane.b32.xlu0 %v5990, 126
    %v5999 = vpop.permute.xlu0 %5998
    %6000 = vrot.lane.b32.xlu0 %v5993, 126
    %v6001 = vpop.permute.xlu0 %6000
    %6002 = vrot.lane.b32.xlu0 %v5995, 126
    %v6003 = vpop.permute.xlu0 %6002
    %6004 = vrot.lane.b32.xlu0 %v5997, 126
    %v6005 = vpop.permute.xlu0 %6004
    %v6006 = vsel %vm529, %v5999, %v6001
    %v6007 = vsel %vm529, %v6003, %v6005
    %v6010 = vadd.f32 %v5684, %v6006
    %v6011 = vadd.f32 %v5685, %v6007
    %6013 = vrot.lane.b32.xlu0 %v5961, 2
    %v6014 = vpop.permute.xlu0 %6013
    %v6016 = vmul.f32 %v5499, %v6014
    %v6017 = vmul.f32 %v5644, %v6014
    %v6018 = vmul.f32 %v237, %v6014
    %v6019 = vmul.f32 %v293, %v6014
    %v6020 = vmul.f32 %v5500, %v6014
    %v6021 = vmul.f32 %v5645, %v6014
    %v6028 = vrot.slane %v6016, 4
    %v6029 = vrot.slane %v6018, 4
    %v6030 = vsel %vm5507, %v6028, %v6029
    %v6031 = vrot.slane %v6017, 4
    %v6032 = vrot.slane %v6019, 4
    %v6033 = vsel %vm5507, %v6031, %v6032
    %v6034 = vrot.slane %v6020, 4
    %v6035 = vsel %vm5507, %v6029, %v6034
    %v6036 = vrot.slane %v6021, 4
    %v6037 = vsel %vm5507, %v6032, %v6036
    %6038 = vrot.lane.b32.xlu0 %v6030, 126
    %v6039 = vpop.permute.xlu0 %6038
    %6040 = vrot.lane.b32.xlu0 %v6033, 126
    %v6041 = vpop.permute.xlu0 %6040
    %6042 = vrot.lane.b32.xlu0 %v6035, 126
    %v6043 = vpop.permute.xlu0 %6042
    %6044 = vrot.lane.b32.xlu0 %v6037, 126
    %v6045 = vpop.permute.xlu0 %6044
    %v6046 = vsel %vm529, %v6039, %v6041
    %v6047 = vsel %vm529, %v6043, %v6045
    %v6050 = vadd.f32 %v5724, %v6046
    %v6051 = vadd.f32 %v5725, %v6047
    %6053 = vrot.lane.b32.xlu0 %v5966, 2
    %v6054 = vpop.permute.xlu0 %6053
    %v6056 = vmul.f32 %v5499, %v6054
    %v6057 = vmul.f32 %v5644, %v6054
    %v6058 = vmul.f32 %v237, %v6054
    %v6059 = vmul.f32 %v293, %v6054
    %v6060 = vmul.f32 %v5500, %v6054
    %v6061 = vmul.f32 %v5645, %v6054
    %v6068 = vrot.slane %v6056, 4
    %v6069 = vrot.slane %v6058, 4
    %v6070 = vsel %vm5507, %v6068, %v6069
    %v6071 = vrot.slane %v6057, 4
    %v6072 = vrot.slane %v6059, 4
    %v6073 = vsel %vm5507, %v6071, %v6072
    %v6074 = vrot.slane %v6060, 4
    %v6075 = vsel %vm5507, %v6069, %v6074
    %v6076 = vrot.slane %v6061, 4
    %v6077 = vsel %vm5507, %v6072, %v6076
    %6078 = vrot.lane.b32.xlu0 %v6070, 126
    %v6079 = vpop.permute.xlu0 %6078
    %6080 = vrot.lane.b32.xlu0 %v6073, 126
    %v6081 = vpop.permute.xlu0 %6080
    %6082 = vrot.lane.b32.xlu0 %v6075, 126
    %v6083 = vpop.permute.xlu0 %6082
    %6084 = vrot.lane.b32.xlu0 %v6077, 126
    %v6085 = vpop.permute.xlu0 %6084
    %v6086 = vsel %vm529, %v6079, %v6081
    %v6087 = vsel %vm529, %v6083, %v6085
    %v6090 = vadd.f32 %v5764, %v6086
    %v6091 = vadd.f32 %v5765, %v6087
    %6093 = vrot.lane.b32.xlu0 %v5971, 2
    %v6094 = vpop.permute.xlu0 %6093
    %v6096 = vmul.f32 %v5499, %v6094
    %v6097 = vmul.f32 %v5644, %v6094
    %v6098 = vmul.f32 %v237, %v6094
    %v6099 = vmul.f32 %v293, %v6094
    %v6100 = vmul.f32 %v5500, %v6094
    %v6101 = vmul.f32 %v5645, %v6094
    %v6108 = vrot.slane %v6096, 4
    %v6109 = vrot.slane %v6098, 4
    %v6110 = vsel %vm5507, %v6108, %v6109
    %v6111 = vrot.slane %v6097, 4
    %v6112 = vrot.slane %v6099, 4
    %v6113 = vsel %vm5507, %v6111, %v6112
    %v6114 = vrot.slane %v6100, 4
    %v6115 = vsel %vm5507, %v6109, %v6114
    %v6116 = vrot.slane %v6101, 4
    %v6117 = vsel %vm5507, %v6112, %v6116
    %6118 = vrot.lane.b32.xlu0 %v6110, 126
    %v6119 = vpop.permute.xlu0 %6118
    %6120 = vrot.lane.b32.xlu0 %v6113, 126
    %v6121 = vpop.permute.xlu0 %6120
    %6122 = vrot.lane.b32.xlu0 %v6115, 126
    %v6123 = vpop.permute.xlu0 %6122
    %6124 = vrot.lane.b32.xlu0 %v6117, 126
    %v6125 = vpop.permute.xlu0 %6124
    %v6126 = vsel %vm529, %v6119, %v6121
    %v6127 = vsel %vm529, %v6123, %v6125
    %v6130 = vadd.f32 %v5804, %v6126
    %v6131 = vadd.f32 %v5805, %v6127
    %v6132 = vmul.f32 %v5562, %v5974
    %v6133 = vmul.f32 %v5806, %v5974
    %v6134 = vmul.f32 %v255, %v5974
    %v6135 = vmul.f32 %v400, %v5974
    %v6136 = vmul.f32 %v5563, %v5974
    %v6137 = vmul.f32 %v5807, %v5974
    %v6144 = vrot.slane %v6132, 4
    %v6145 = vrot.slane %v6134, 4
    %v6146 = vsel %vm5507, %v6144, %v6145
    %v6147 = vrot.slane %v6133, 4
    %v6148 = vrot.slane %v6135, 4
    %v6149 = vsel %vm5507, %v6147, %v6148
    %v6150 = vrot.slane %v6136, 4
    %v6151 = vsel %vm5507, %v6145, %v6150
    %v6152 = vrot.slane %v6137, 4
    %v6153 = vsel %vm5507, %v6148, %v6152
    %6154 = vrot.lane.b32.xlu0 %v6146, 126
    %v6155 = vpop.permute.xlu0 %6154
    %6156 = vrot.lane.b32.xlu0 %v6149, 126
    %v6157 = vpop.permute.xlu0 %6156
    %6158 = vrot.lane.b32.xlu0 %v6151, 126
    %v6159 = vpop.permute.xlu0 %6158
    %6160 = vrot.lane.b32.xlu0 %v6153, 126
    %v6161 = vpop.permute.xlu0 %6160
    %v6162 = vsel %vm529, %v6155, %v6157
    %v6163 = vsel %vm529, %v6159, %v6161
    %v6166 = vadd.f32 %v5842, %v6162
    %v6167 = vadd.f32 %v5843, %v6163
    %v6168 = vmul.f32 %v5562, %v6014
    %v6169 = vmul.f32 %v5806, %v6014
    %v6170 = vmul.f32 %v255, %v6014
    %v6171 = vmul.f32 %v400, %v6014
    %v6172 = vmul.f32 %v5563, %v6014
    %v6173 = vmul.f32 %v5807, %v6014
    %v6180 = vrot.slane %v6168, 4
    %v6181 = vrot.slane %v6170, 4
    %v6182 = vsel %vm5507, %v6180, %v6181
    %v6183 = vrot.slane %v6169, 4
    %v6184 = vrot.slane %v6171, 4
    %v6185 = vsel %vm5507, %v6183, %v6184
    %v6186 = vrot.slane %v6172, 4
    %v6187 = vsel %vm5507, %v6181, %v6186
    %v6188 = vrot.slane %v6173, 4
    %v6189 = vsel %vm5507, %v6184, %v6188
    %6190 = vrot.lane.b32.xlu0 %v6182, 126
    %v6191 = vpop.permute.xlu0 %6190
    %6192 = vrot.lane.b32.xlu0 %v6185, 126
    %v6193 = vpop.permute.xlu0 %6192
    %6194 = vrot.lane.b32.xlu0 %v6187, 126
    %v6195 = vpop.permute.xlu0 %6194
    %6196 = vrot.lane.b32.xlu0 %v6189, 126
    %v6197 = vpop.permute.xlu0 %6196
    %v6198 = vsel %vm529, %v6191, %v6193
    %v6199 = vsel %vm529, %v6195, %v6197
    %v6202 = vadd.f32 %v5878, %v6198
    %v6203 = vadd.f32 %v5879, %v6199
    %v6204 = vmul.f32 %v5562, %v6054
    %v6205 = vmul.f32 %v5806, %v6054
    %v6206 = vmul.f32 %v255, %v6054
    %v6207 = vmul.f32 %v400, %v6054
    %v6208 = vmul.f32 %v5563, %v6054
    %v6209 = vmul.f32 %v5807, %v6054
    %v6216 = vrot.slane %v6204, 4
    %v6217 = vrot.slane %v6206, 4
    %v6218 = vsel %vm5507, %v6216, %v6217
    %v6219 = vrot.slane %v6205, 4
    %v6220 = vrot.slane %v6207, 4
    %v6221 = vsel %vm5507, %v6219, %v6220
    %v6222 = vrot.slane %v6208, 4
    %v6223 = vsel %vm5507, %v6217, %v6222
    %v6224 = vrot.slane %v6209, 4
    %v6225 = vsel %vm5507, %v6220, %v6224
    %6226 = vrot.lane.b32.xlu0 %v6218, 126
    %v6227 = vpop.permute.xlu0 %6226
    %6228 = vrot.lane.b32.xlu0 %v6221, 126
    %v6229 = vpop.permute.xlu0 %6228
    %6230 = vrot.lane.b32.xlu0 %v6223, 126
    %v6231 = vpop.permute.xlu0 %6230
    %6232 = vrot.lane.b32.xlu0 %v6225, 126
    %v6233 = vpop.permute.xlu0 %6232
    %v6234 = vsel %vm529, %v6227, %v6229
    %v6235 = vsel %vm529, %v6231, %v6233
    %v6238 = vadd.f32 %v5914, %v6234
    %v6239 = vadd.f32 %v5915, %v6235
    %v6240 = vmul.f32 %v5562, %v6094
    %v6241 = vmul.f32 %v5806, %v6094
    %v6242 = vmul.f32 %v255, %v6094
    %v6243 = vmul.f32 %v400, %v6094
    %v6244 = vmul.f32 %v5563, %v6094
    %v6245 = vmul.f32 %v5807, %v6094
    %v6252 = vrot.slane %v6240, 4
    %v6253 = vrot.slane %v6242, 4
    %v6254 = vsel %vm5507, %v6252, %v6253
    %v6255 = vrot.slane %v6241, 4
    %v6256 = vrot.slane %v6243, 4
    %v6257 = vsel %vm5507, %v6255, %v6256
    %v6258 = vrot.slane %v6244, 4
    %v6259 = vsel %vm5507, %v6253, %v6258
    %v6260 = vrot.slane %v6245, 4
    %v6261 = vsel %vm5507, %v6256, %v6260
    %6262 = vrot.lane.b32.xlu0 %v6254, 126
    %v6263 = vpop.permute.xlu0 %6262
    %6264 = vrot.lane.b32.xlu0 %v6257, 126
    %v6265 = vpop.permute.xlu0 %6264
    %6266 = vrot.lane.b32.xlu0 %v6259, 126
    %v6267 = vpop.permute.xlu0 %6266
    %6268 = vrot.lane.b32.xlu0 %v6261, 126
    %v6269 = vpop.permute.xlu0 %6268
    %v6270 = vsel %vm529, %v6263, %v6265
    %v6271 = vsel %vm529, %v6267, %v6269
    %v6274 = vadd.f32 %v5950, %v6270
    %v6275 = vadd.f32 %v5951, %v6271
    %v6276 = vld [vmem:[%s5475 + $0x3] sm:$0x1]
    %v6277 = vlaneseq
    %v6278 = vshrl.u32 %v6277, 7
    %v6279 = vsub.s32 0, %v6278
    %v6280 = vrot.slane %v6276, %v6279
    %v6281 = vld [vmem:[%s5481 + $0x3] sm:$0x1]
    %v6282 = vlaneseq
    %v6283 = vshrl.u32 %v6282, 7
    %v6284 = vsub.s32 0, %v6283
    %v6285 = vrot.slane %v6281, %v6284
    %v6286 = vld [vmem:[%s5487 + $0x3] sm:$0x1]
    %v6287 = vlaneseq
    %v6288 = vshrl.u32 %v6287, 7
    %v6289 = vsub.s32 0, %v6288
    %v6290 = vrot.slane %v6286, %v6289
    %v6291 = vld [vmem:[%s5493 + $0x3] sm:$0x1]
    %v6292 = vlaneseq
    %v6293 = vshrl.u32 %v6292, 7
    %v6294 = vsub.s32 0, %v6293
    %v6295 = vrot.slane %v6291, %v6294
    %6297 = vrot.lane.b32.xlu0 %v6280, 3
    %v6298 = vpop.permute.xlu0 %6297
    %v6300 = vmul.f32 %v5499, %v6298
    %v6301 = vmul.f32 %v5644, %v6298
    %v6302 = vmul.f32 %v237, %v6298
    %v6303 = vmul.f32 %v293, %v6298
    %v6304 = vmul.f32 %v5500, %v6298
    %v6305 = vmul.f32 %v5645, %v6298
    %v6312 = vrot.slane %v6300, 4
    %v6313 = vrot.slane %v6302, 4
    %v6314 = vsel %vm5507, %v6312, %v6313
    %v6315 = vrot.slane %v6301, 4
    %v6316 = vrot.slane %v6303, 4
    %v6317 = vsel %vm5507, %v6315, %v6316
    %v6318 = vrot.slane %v6304, 4
    %v6319 = vsel %vm5507, %v6313, %v6318
    %v6320 = vrot.slane %v6305, 4
    %v6321 = vsel %vm5507, %v6316, %v6320
    %6322 = vrot.lane.b32.xlu0 %v6314, 125
    %v6323 = vpop.permute.xlu0 %6322
    %6324 = vrot.lane.b32.xlu0 %v6317, 125
    %v6325 = vpop.permute.xlu0 %6324
    %6326 = vrot.lane.b32.xlu0 %v6319, 125
    %v6327 = vpop.permute.xlu0 %6326
    %6328 = vrot.lane.b32.xlu0 %v6321, 125
    %v6329 = vpop.permute.xlu0 %6328
    %v6330 = vsel %vm742, %v6323, %v6325
    %v6331 = vsel %vm742, %v6327, %v6329
    %v6334 = vadd.f32 %v6010, %v6330
    %v6335 = vadd.f32 %v6011, %v6331
    %6337 = vrot.lane.b32.xlu0 %v6285, 3
    %v6338 = vpop.permute.xlu0 %6337
    %v6340 = vmul.f32 %v5499, %v6338
    %v6341 = vmul.f32 %v5644, %v6338
    %v6342 = vmul.f32 %v237, %v6338
    %v6343 = vmul.f32 %v293, %v6338
    %v6344 = vmul.f32 %v5500, %v6338
    %v6345 = vmul.f32 %v5645, %v6338
    %v6352 = vrot.slane %v6340, 4
    %v6353 = vrot.slane %v6342, 4
    %v6354 = vsel %vm5507, %v6352, %v6353
    %v6355 = vrot.slane %v6341, 4
    %v6356 = vrot.slane %v6343, 4
    %v6357 = vsel %vm5507, %v6355, %v6356
    %v6358 = vrot.slane %v6344, 4
    %v6359 = vsel %vm5507, %v6353, %v6358
    %v6360 = vrot.slane %v6345, 4
    %v6361 = vsel %vm5507, %v6356, %v6360
    %6362 = vrot.lane.b32.xlu0 %v6354, 125
    %v6363 = vpop.permute.xlu0 %6362
    %6364 = vrot.lane.b32.xlu0 %v6357, 125
    %v6365 = vpop.permute.xlu0 %6364
    %6366 = vrot.lane.b32.xlu0 %v6359, 125
    %v6367 = vpop.permute.xlu0 %6366
    %6368 = vrot.lane.b32.xlu0 %v6361, 125
    %v6369 = vpop.permute.xlu0 %6368
    %v6370 = vsel %vm742, %v6363, %v6365
    %v6371 = vsel %vm742, %v6367, %v6369
    %v6374 = vadd.f32 %v6050, %v6370
    %v6375 = vadd.f32 %v6051, %v6371
    %6377 = vrot.lane.b32.xlu0 %v6290, 3
    %v6378 = vpop.permute.xlu0 %6377
    %v6380 = vmul.f32 %v5499, %v6378
    %v6381 = vmul.f32 %v5644, %v6378
    %v6382 = vmul.f32 %v237, %v6378
    %v6383 = vmul.f32 %v293, %v6378
    %v6384 = vmul.f32 %v5500, %v6378
    %v6385 = vmul.f32 %v5645, %v6378
    %v6392 = vrot.slane %v6380, 4
    %v6393 = vrot.slane %v6382, 4
    %v6394 = vsel %vm5507, %v6392, %v6393
    %v6395 = vrot.slane %v6381, 4
    %v6396 = vrot.slane %v6383, 4
    %v6397 = vsel %vm5507, %v6395, %v6396
    %v6398 = vrot.slane %v6384, 4
    %v6399 = vsel %vm5507, %v6393, %v6398
    %v6400 = vrot.slane %v6385, 4
    %v6401 = vsel %vm5507, %v6396, %v6400
    %6402 = vrot.lane.b32.xlu0 %v6394, 125
    %v6403 = vpop.permute.xlu0 %6402
    %6404 = vrot.lane.b32.xlu0 %v6397, 125
    %v6405 = vpop.permute.xlu0 %6404
    %6406 = vrot.lane.b32.xlu0 %v6399, 125
    %v6407 = vpop.permute.xlu0 %6406
    %6408 = vrot.lane.b32.xlu0 %v6401, 125
    %v6409 = vpop.permute.xlu0 %6408
    %v6410 = vsel %vm742, %v6403, %v6405
    %v6411 = vsel %vm742, %v6407, %v6409
    %v6414 = vadd.f32 %v6090, %v6410
    %v6415 = vadd.f32 %v6091, %v6411
    %6417 = vrot.lane.b32.xlu0 %v6295, 3
    %v6418 = vpop.permute.xlu0 %6417
    %v6420 = vmul.f32 %v5499, %v6418
    %v6421 = vmul.f32 %v5644, %v6418
    %v6422 = vmul.f32 %v237, %v6418
    %v6423 = vmul.f32 %v293, %v6418
    %v6424 = vmul.f32 %v5500, %v6418
    %v6425 = vmul.f32 %v5645, %v6418
    %v6432 = vrot.slane %v6420, 4
    %v6433 = vrot.slane %v6422, 4
    %v6434 = vsel %vm5507, %v6432, %v6433
    %v6435 = vrot.slane %v6421, 4
    %v6436 = vrot.slane %v6423, 4
    %v6437 = vsel %vm5507, %v6435, %v6436
    %v6438 = vrot.slane %v6424, 4
    %v6439 = vsel %vm5507, %v6433, %v6438
    %v6440 = vrot.slane %v6425, 4
    %v6441 = vsel %vm5507, %v6436, %v6440
    %6442 = vrot.lane.b32.xlu0 %v6434, 125
    %v6443 = vpop.permute.xlu0 %6442
    %6444 = vrot.lane.b32.xlu0 %v6437, 125
    %v6445 = vpop.permute.xlu0 %6444
    %6446 = vrot.lane.b32.xlu0 %v6439, 125
    %v6447 = vpop.permute.xlu0 %6446
    %6448 = vrot.lane.b32.xlu0 %v6441, 125
    %v6449 = vpop.permute.xlu0 %6448
    %v6450 = vsel %vm742, %v6443, %v6445
    %v6451 = vsel %vm742, %v6447, %v6449
    %v6454 = vadd.f32 %v6130, %v6450
    %v6455 = vadd.f32 %v6131, %v6451
    %v6456 = vmul.f32 %v5562, %v6298
    %v6457 = vmul.f32 %v5806, %v6298
    %v6458 = vmul.f32 %v255, %v6298
    %v6459 = vmul.f32 %v400, %v6298
    %v6460 = vmul.f32 %v5563, %v6298
    %v6461 = vmul.f32 %v5807, %v6298
    %v6468 = vrot.slane %v6456, 4
    %v6469 = vrot.slane %v6458, 4
    %v6470 = vsel %vm5507, %v6468, %v6469
    %v6471 = vrot.slane %v6457, 4
    %v6472 = vrot.slane %v6459, 4
    %v6473 = vsel %vm5507, %v6471, %v6472
    %v6474 = vrot.slane %v6460, 4
    %v6475 = vsel %vm5507, %v6469, %v6474
    %v6476 = vrot.slane %v6461, 4
    %v6477 = vsel %vm5507, %v6472, %v6476
    %6478 = vrot.lane.b32.xlu0 %v6470, 125
    %v6479 = vpop.permute.xlu0 %6478
    %6480 = vrot.lane.b32.xlu0 %v6473, 125
    %v6481 = vpop.permute.xlu0 %6480
    %6482 = vrot.lane.b32.xlu0 %v6475, 125
    %v6483 = vpop.permute.xlu0 %6482
    %6484 = vrot.lane.b32.xlu0 %v6477, 125
    %v6485 = vpop.permute.xlu0 %6484
    %v6486 = vsel %vm742, %v6479, %v6481
    %v6487 = vsel %vm742, %v6483, %v6485
    %v6490 = vadd.f32 %v6166, %v6486
    %v6491 = vadd.f32 %v6167, %v6487
    %v6492 = vmul.f32 %v5562, %v6338
    %v6493 = vmul.f32 %v5806, %v6338
    %v6494 = vmul.f32 %v255, %v6338
    %v6495 = vmul.f32 %v400, %v6338
    %v6496 = vmul.f32 %v5563, %v6338
    %v6497 = vmul.f32 %v5807, %v6338
    %v6504 = vrot.slane %v6492, 4
    %v6505 = vrot.slane %v6494, 4
    %v6506 = vsel %vm5507, %v6504, %v6505
    %v6507 = vrot.slane %v6493, 4
    %v6508 = vrot.slane %v6495, 4
    %v6509 = vsel %vm5507, %v6507, %v6508
    %v6510 = vrot.slane %v6496, 4
    %v6511 = vsel %vm5507, %v6505, %v6510
    %v6512 = vrot.slane %v6497, 4
    %v6513 = vsel %vm5507, %v6508, %v6512
    %6514 = vrot.lane.b32.xlu0 %v6506, 125
    %v6515 = vpop.permute.xlu0 %6514
    %6516 = vrot.lane.b32.xlu0 %v6509, 125
    %v6517 = vpop.permute.xlu0 %6516
    %6518 = vrot.lane.b32.xlu0 %v6511, 125
    %v6519 = vpop.permute.xlu0 %6518
    %6520 = vrot.lane.b32.xlu0 %v6513, 125
    %v6521 = vpop.permute.xlu0 %6520
    %v6522 = vsel %vm742, %v6515, %v6517
    %v6523 = vsel %vm742, %v6519, %v6521
    %v6526 = vadd.f32 %v6202, %v6522
    %v6527 = vadd.f32 %v6203, %v6523
    %v6528 = vmul.f32 %v5562, %v6378
    %v6529 = vmul.f32 %v5806, %v6378
    %v6530 = vmul.f32 %v255, %v6378
    %v6531 = vmul.f32 %v400, %v6378
    %v6532 = vmul.f32 %v5563, %v6378
    %v6533 = vmul.f32 %v5807, %v6378
    %v6540 = vrot.slane %v6528, 4
    %v6541 = vrot.slane %v6530, 4
    %v6542 = vsel %vm5507, %v6540, %v6541
    %v6543 = vrot.slane %v6529, 4
    %v6544 = vrot.slane %v6531, 4
    %v6545 = vsel %vm5507, %v6543, %v6544
    %v6546 = vrot.slane %v6532, 4
    %v6547 = vsel %vm5507, %v6541, %v6546
    %v6548 = vrot.slane %v6533, 4
    %v6549 = vsel %vm5507, %v6544, %v6548
    %6550 = vrot.lane.b32.xlu0 %v6542, 125
    %v6551 = vpop.permute.xlu0 %6550
    %6552 = vrot.lane.b32.xlu0 %v6545, 125
    %v6553 = vpop.permute.xlu0 %6552
    %6554 = vrot.lane.b32.xlu0 %v6547, 125
    %v6555 = vpop.permute.xlu0 %6554
    %6556 = vrot.lane.b32.xlu0 %v6549, 125
    %v6557 = vpop.permute.xlu0 %6556
    %v6558 = vsel %vm742, %v6551, %v6553
    %v6559 = vsel %vm742, %v6555, %v6557
    %v6562 = vadd.f32 %v6238, %v6558
    %v6563 = vadd.f32 %v6239, %v6559
    %v6564 = vmul.f32 %v5562, %v6418
    %v6565 = vmul.f32 %v5806, %v6418
    %v6566 = vmul.f32 %v255, %v6418
    %v6567 = vmul.f32 %v400, %v6418
    %v6568 = vmul.f32 %v5563, %v6418
    %v6569 = vmul.f32 %v5807, %v6418
    %v6576 = vrot.slane %v6564, 4
    %v6577 = vrot.slane %v6566, 4
    %v6578 = vsel %vm5507, %v6576, %v6577
    %v6579 = vrot.slane %v6565, 4
    %v6580 = vrot.slane %v6567, 4
    %v6581 = vsel %vm5507, %v6579, %v6580
    %v6582 = vrot.slane %v6568, 4
    %v6583 = vsel %vm5507, %v6577, %v6582
    %v6584 = vrot.slane %v6569, 4
    %v6585 = vsel %vm5507, %v6580, %v6584
    %6586 = vrot.lane.b32.xlu0 %v6578, 125
    %v6587 = vpop.permute.xlu0 %6586
    %6588 = vrot.lane.b32.xlu0 %v6581, 125
    %v6589 = vpop.permute.xlu0 %6588
    %6590 = vrot.lane.b32.xlu0 %v6583, 125
    %v6591 = vpop.permute.xlu0 %6590
    %6592 = vrot.lane.b32.xlu0 %v6585, 125
    %v6593 = vpop.permute.xlu0 %6592
    %v6594 = vsel %vm742, %v6587, %v6589
    %v6595 = vsel %vm742, %v6591, %v6593
    %v6598 = vadd.f32 %v6274, %v6594
    %v6599 = vadd.f32 %v6275, %v6595
    %v6600 = vld [vmem:[%s5475 + $0x4] sm:$0x1]
    %v6601 = vlaneseq
    %v6602 = vshrl.u32 %v6601, 7
    %v6603 = vsub.s32 0, %v6602
    %v6604 = vrot.slane %v6600, %v6603
    %v6605 = vld [vmem:[%s5481 + $0x4] sm:$0x1]
    %v6606 = vlaneseq
    %v6607 = vshrl.u32 %v6606, 7
    %v6608 = vsub.s32 0, %v6607
    %v6609 = vrot.slane %v6605, %v6608
    %v6610 = vld [vmem:[%s5487 + $0x4] sm:$0x1]
    %v6611 = vlaneseq
    %v6612 = vshrl.u32 %v6611, 7
    %v6613 = vsub.s32 0, %v6612
    %v6614 = vrot.slane %v6610, %v6613
    %v6615 = vld [vmem:[%s5493 + $0x4] sm:$0x1]
    %v6616 = vlaneseq
    %v6617 = vshrl.u32 %v6616, 7
    %v6618 = vsub.s32 0, %v6617
    %v6619 = vrot.slane %v6615, %v6618
    %6621 = vrot.lane.b32.xlu0 %v6604, 4
    %v6622 = vpop.permute.xlu0 %6621
    %v6624 = vmul.f32 %v5499, %v6622
    %v6625 = vmul.f32 %v5644, %v6622
    %v6626 = vmul.f32 %v237, %v6622
    %v6627 = vmul.f32 %v293, %v6622
    %v6628 = vmul.f32 %v5500, %v6622
    %v6629 = vmul.f32 %v5645, %v6622
    %v6636 = vrot.slane %v6624, 4
    %v6637 = vrot.slane %v6626, 4
    %v6638 = vsel %vm5507, %v6636, %v6637
    %v6639 = vrot.slane %v6625, 4
    %v6640 = vrot.slane %v6627, 4
    %v6641 = vsel %vm5507, %v6639, %v6640
    %v6642 = vrot.slane %v6628, 4
    %v6643 = vsel %vm5507, %v6637, %v6642
    %v6644 = vrot.slane %v6629, 4
    %v6645 = vsel %vm5507, %v6640, %v6644
    %6646 = vrot.lane.b32.xlu0 %v6638, 124
    %v6647 = vpop.permute.xlu0 %6646
    %6648 = vrot.lane.b32.xlu0 %v6641, 124
    %v6649 = vpop.permute.xlu0 %6648
    %6650 = vrot.lane.b32.xlu0 %v6643, 124
    %v6651 = vpop.permute.xlu0 %6650
    %6652 = vrot.lane.b32.xlu0 %v6645, 124
    %v6653 = vpop.permute.xlu0 %6652
    %v6654 = vsel %vm955, %v6647, %v6649
    %v6655 = vsel %vm955, %v6651, %v6653
    %v6658 = vadd.f32 %v6334, %v6654
    %v6659 = vadd.f32 %v6335, %v6655
    %6661 = vrot.lane.b32.xlu0 %v6609, 4
    %v6662 = vpop.permute.xlu0 %6661
    %v6664 = vmul.f32 %v5499, %v6662
    %v6665 = vmul.f32 %v5644, %v6662
    %v6666 = vmul.f32 %v237, %v6662
    %v6667 = vmul.f32 %v293, %v6662
    %v6668 = vmul.f32 %v5500, %v6662
    %v6669 = vmul.f32 %v5645, %v6662
    %v6676 = vrot.slane %v6664, 4
    %v6677 = vrot.slane %v6666, 4
    %v6678 = vsel %vm5507, %v6676, %v6677
    %v6679 = vrot.slane %v6665, 4
    %v6680 = vrot.slane %v6667, 4
    %v6681 = vsel %vm5507, %v6679, %v6680
    %v6682 = vrot.slane %v6668, 4
    %v6683 = vsel %vm5507, %v6677, %v6682
    %v6684 = vrot.slane %v6669, 4
    %v6685 = vsel %vm5507, %v6680, %v6684
    %6686 = vrot.lane.b32.xlu0 %v6678, 124
    %v6687 = vpop.permute.xlu0 %6686
    %6688 = vrot.lane.b32.xlu0 %v6681, 124
    %v6689 = vpop.permute.xlu0 %6688
    %6690 = vrot.lane.b32.xlu0 %v6683, 124
    %v6691 = vpop.permute.xlu0 %6690
    %6692 = vrot.lane.b32.xlu0 %v6685, 124
    %v6693 = vpop.permute.xlu0 %6692
    %v6694 = vsel %vm955, %v6687, %v6689
    %v6695 = vsel %vm955, %v6691, %v6693
    %v6698 = vadd.f32 %v6374, %v6694
    %v6699 = vadd.f32 %v6375, %v6695
    %6701 = vrot.lane.b32.xlu0 %v6614, 4
    %v6702 = vpop.permute.xlu0 %6701
    %v6704 = vmul.f32 %v5499, %v6702
    %v6705 = vmul.f32 %v5644, %v6702
    %v6706 = vmul.f32 %v237, %v6702
    %v6707 = vmul.f32 %v293, %v6702
    %v6708 = vmul.f32 %v5500, %v6702
    %v6709 = vmul.f32 %v5645, %v6702
    %v6716 = vrot.slane %v6704, 4
    %v6717 = vrot.slane %v6706, 4
    %v6718 = vsel %vm5507, %v6716, %v6717
    %v6719 = vrot.slane %v6705, 4
    %v6720 = vrot.slane %v6707, 4
    %v6721 = vsel %vm5507, %v6719, %v6720
    %v6722 = vrot.slane %v6708, 4
    %v6723 = vsel %vm5507, %v6717, %v6722
    %v6724 = vrot.slane %v6709, 4
    %v6725 = vsel %vm5507, %v6720, %v6724
    %6726 = vrot.lane.b32.xlu0 %v6718, 124
    %v6727 = vpop.permute.xlu0 %6726
    %6728 = vrot.lane.b32.xlu0 %v6721, 124
    %v6729 = vpop.permute.xlu0 %6728
    %6730 = vrot.lane.b32.xlu0 %v6723, 124
    %v6731 = vpop.permute.xlu0 %6730
    %6732 = vrot.lane.b32.xlu0 %v6725, 124
    %v6733 = vpop.permute.xlu0 %6732
    %v6734 = vsel %vm955, %v6727, %v6729
    %v6735 = vsel %vm955, %v6731, %v6733
    %v6738 = vadd.f32 %v6414, %v6734
    %v6739 = vadd.f32 %v6415, %v6735
    %6741 = vrot.lane.b32.xlu0 %v6619, 4
    %v6742 = vpop.permute.xlu0 %6741
    %v6744 = vmul.f32 %v5499, %v6742
    %v6745 = vmul.f32 %v5644, %v6742
    %v6746 = vmul.f32 %v237, %v6742
    %v6747 = vmul.f32 %v293, %v6742
    %v6748 = vmul.f32 %v5500, %v6742
    %v6749 = vmul.f32 %v5645, %v6742
    %v6756 = vrot.slane %v6744, 4
    %v6757 = vrot.slane %v6746, 4
    %v6758 = vsel %vm5507, %v6756, %v6757
    %v6759 = vrot.slane %v6745, 4
    %v6760 = vrot.slane %v6747, 4
    %v6761 = vsel %vm5507, %v6759, %v6760
    %v6762 = vrot.slane %v6748, 4
    %v6763 = vsel %vm5507, %v6757, %v6762
    %v6764 = vrot.slane %v6749, 4
    %v6765 = vsel %vm5507, %v6760, %v6764
    %6766 = vrot.lane.b32.xlu0 %v6758, 124
    %v6767 = vpop.permute.xlu0 %6766
    %6768 = vrot.lane.b32.xlu0 %v6761, 124
    %v6769 = vpop.permute.xlu0 %6768
    %6770 = vrot.lane.b32.xlu0 %v6763, 124
    %v6771 = vpop.permute.xlu0 %6770
    %6772 = vrot.lane.b32.xlu0 %v6765, 124
    %v6773 = vpop.permute.xlu0 %6772
    %v6774 = vsel %vm955, %v6767, %v6769
    %v6775 = vsel %vm955, %v6771, %v6773
    %v6778 = vadd.f32 %v6454, %v6774
    %v6779 = vadd.f32 %v6455, %v6775
    %v6780 = vmul.f32 %v5562, %v6622
    %v6781 = vmul.f32 %v5806, %v6622
    %v6782 = vmul.f32 %v255, %v6622
    %v6783 = vmul.f32 %v400, %v6622
    %v6784 = vmul.f32 %v5563, %v6622
    %v6785 = vmul.f32 %v5807, %v6622
    %v6792 = vrot.slane %v6780, 4
    %v6793 = vrot.slane %v6782, 4
    %v6794 = vsel %vm5507, %v6792, %v6793
    %v6795 = vrot.slane %v6781, 4
    %v6796 = vrot.slane %v6783, 4
    %v6797 = vsel %vm5507, %v6795, %v6796
    %v6798 = vrot.slane %v6784, 4
    %v6799 = vsel %vm5507, %v6793, %v6798
    %v6800 = vrot.slane %v6785, 4
    %v6801 = vsel %vm5507, %v6796, %v6800
    %6802 = vrot.lane.b32.xlu0 %v6794, 124
    %v6803 = vpop.permute.xlu0 %6802
    %6804 = vrot.lane.b32.xlu0 %v6797, 124
    %v6805 = vpop.permute.xlu0 %6804
    %6806 = vrot.lane.b32.xlu0 %v6799, 124
    %v6807 = vpop.permute.xlu0 %6806
    %6808 = vrot.lane.b32.xlu0 %v6801, 124
    %v6809 = vpop.permute.xlu0 %6808
    %v6810 = vsel %vm955, %v6803, %v6805
    %v6811 = vsel %vm955, %v6807, %v6809
    %v6814 = vadd.f32 %v6490, %v6810
    %v6815 = vadd.f32 %v6491, %v6811
    %v6816 = vmul.f32 %v5562, %v6662
    %v6817 = vmul.f32 %v5806, %v6662
    %v6818 = vmul.f32 %v255, %v6662
    %v6819 = vmul.f32 %v400, %v6662
    %v6820 = vmul.f32 %v5563, %v6662
    %v6821 = vmul.f32 %v5807, %v6662
    %v6828 = vrot.slane %v6816, 4
    %v6829 = vrot.slane %v6818, 4
    %v6830 = vsel %vm5507, %v6828, %v6829
    %v6831 = vrot.slane %v6817, 4
    %v6832 = vrot.slane %v6819, 4
    %v6833 = vsel %vm5507, %v6831, %v6832
    %v6834 = vrot.slane %v6820, 4
    %v6835 = vsel %vm5507, %v6829, %v6834
    %v6836 = vrot.slane %v6821, 4
    %v6837 = vsel %vm5507, %v6832, %v6836
    %6838 = vrot.lane.b32.xlu0 %v6830, 124
    %v6839 = vpop.permute.xlu0 %6838
    %6840 = vrot.lane.b32.xlu0 %v6833, 124
    %v6841 = vpop.permute.xlu0 %6840
    %6842 = vrot.lane.b32.xlu0 %v6835, 124
    %v6843 = vpop.permute.xlu0 %6842
    %6844 = vrot.lane.b32.xlu0 %v6837, 124
    %v6845 = vpop.permute.xlu0 %6844
    %v6846 = vsel %vm955, %v6839, %v6841
    %v6847 = vsel %vm955, %v6843, %v6845
    %v6850 = vadd.f32 %v6526, %v6846
    %v6851 = vadd.f32 %v6527, %v6847
    %v6852 = vmul.f32 %v5562, %v6702
    %v6853 = vmul.f32 %v5806, %v6702
    %v6854 = vmul.f32 %v255, %v6702
    %v6855 = vmul.f32 %v400, %v6702
    %v6856 = vmul.f32 %v5563, %v6702
    %v6857 = vmul.f32 %v5807, %v6702
    %v6864 = vrot.slane %v6852, 4
    %v6865 = vrot.slane %v6854, 4
    %v6866 = vsel %vm5507, %v6864, %v6865
    %v6867 = vrot.slane %v6853, 4
    %v6868 = vrot.slane %v6855, 4
    %v6869 = vsel %vm5507, %v6867, %v6868
    %v6870 = vrot.slane %v6856, 4
    %v6871 = vsel %vm5507, %v6865, %v6870
    %v6872 = vrot.slane %v6857, 4
    %v6873 = vsel %vm5507, %v6868, %v6872
    %6874 = vrot.lane.b32.xlu0 %v6866, 124
    %v6875 = vpop.permute.xlu0 %6874
    %6876 = vrot.lane.b32.xlu0 %v6869, 124
    %v6877 = vpop.permute.xlu0 %6876
    %6878 = vrot.lane.b32.xlu0 %v6871, 124
    %v6879 = vpop.permute.xlu0 %6878
    %6880 = vrot.lane.b32.xlu0 %v6873, 124
    %v6881 = vpop.permute.xlu0 %6880
    %v6882 = vsel %vm955, %v6875, %v6877
    %v6883 = vsel %vm955, %v6879, %v6881
    %v6886 = vadd.f32 %v6562, %v6882
    %v6887 = vadd.f32 %v6563, %v6883
    %v6888 = vmul.f32 %v5562, %v6742
    %v6889 = vmul.f32 %v5806, %v6742
    %v6890 = vmul.f32 %v255, %v6742
    %v6891 = vmul.f32 %v400, %v6742
    %v6892 = vmul.f32 %v5563, %v6742
    %v6893 = vmul.f32 %v5807, %v6742
    %v6900 = vrot.slane %v6888, 4
    %v6901 = vrot.slane %v6890, 4
    %v6902 = vsel %vm5507, %v6900, %v6901
    %v6903 = vrot.slane %v6889, 4
    %v6904 = vrot.slane %v6891, 4
    %v6905 = vsel %vm5507, %v6903, %v6904
    %v6906 = vrot.slane %v6892, 4
    %v6907 = vsel %vm5507, %v6901, %v6906
    %v6908 = vrot.slane %v6893, 4
    %v6909 = vsel %vm5507, %v6904, %v6908
    %6910 = vrot.lane.b32.xlu0 %v6902, 124
    %v6911 = vpop.permute.xlu0 %6910
    %6912 = vrot.lane.b32.xlu0 %v6905, 124
    %v6913 = vpop.permute.xlu0 %6912
    %6914 = vrot.lane.b32.xlu0 %v6907, 124
    %v6915 = vpop.permute.xlu0 %6914
    %6916 = vrot.lane.b32.xlu0 %v6909, 124
    %v6917 = vpop.permute.xlu0 %6916
    %v6918 = vsel %vm955, %v6911, %v6913
    %v6919 = vsel %vm955, %v6915, %v6917
    %v6922 = vadd.f32 %v6598, %v6918
    %v6923 = vadd.f32 %v6599, %v6919
    %6926 = vrot.lane.b32.xlu0 %v6658, 96
    %v6927 = vpop.permute.xlu0 %6926
    %6928 = vrot.lane.b32.xlu0 %v6659, 96
    %v6929 = vpop.permute.xlu0 %6928
    %v6932 = vadd.f32 %v6658, %v6927
    %v6933 = vadd.f32 %v6659, %v6929
    %6934 = vrot.lane.b32.xlu0 %v6658, 64
    %v6935 = vpop.permute.xlu0 %6934
    %6936 = vrot.lane.b32.xlu0 %v6659, 64
    %v6937 = vpop.permute.xlu0 %6936
    %v6940 = vadd.f32 %v6932, %v6935
    %v6941 = vadd.f32 %v6933, %v6937
    %6942 = vrot.lane.b32.xlu0 %v6658, 32
    %v6943 = vpop.permute.xlu0 %6942
    %6944 = vrot.lane.b32.xlu0 %v6659, 32
    %v6945 = vpop.permute.xlu0 %6944
    %v6948 = vadd.f32 %v6940, %v6943
    %v6949 = vadd.f32 %v6941, %v6945
    %s6950 = sld [smem:[#allocation3]]
    %v6951 = vstv %s6950
    %v6952 = vadd.f32 %v6948, %v6951
    %v6953 = vadd.f32 %v6949, %v6951
    %v6954 = vsub.f32 0.0, %v6952
    %v6955 = vsub.f32 0.0, %v6953
    %v6956 = vmul.f32 %v6954, 1.442695
    %v6957 = vpow.pop %v6956
    %v6958 = vmul.f32 %v6955, 1.442695
    %v6959 = vpow.pop %v6958
    %v6960 = vadd.f32 %v6957, 1.0
    %v6961 = vadd.f32 %v6959, 1.0
    %v6962 = vrcp.pop %v6960
    %v6963 = vrcp.pop %v6961
    %vm6964 = vcmask 130048
    %6965 = vst.msk [vmem:[#allocation6] sm:$0xff] %vm6964, %v6962
    %6966 = vst.msk [vmem:[#allocation6 + $0x8] sm:$0xff] %vm6964, %v6963
    %6969 = vrot.lane.b32.xlu0 %v6698, 96
    %v6970 = vpop.permute.xlu0 %6969
    %6971 = vrot.lane.b32.xlu0 %v6699, 96
    %v6972 = vpop.permute.xlu0 %6971
    %v6975 = vadd.f32 %v6698, %v6970
    %v6976 = vadd.f32 %v6699, %v6972
    %6977 = vrot.lane.b32.xlu0 %v6698, 64
    %v6978 = vpop.permute.xlu0 %6977
    %6979 = vrot.lane.b32.xlu0 %v6699, 64
    %v6980 = vpop.permute.xlu0 %6979
    %v6983 = vadd.f32 %v6975, %v6978
    %v6984 = vadd.f32 %v6976, %v6980
    %6985 = vrot.lane.b32.xlu0 %v6698, 32
    %v6986 = vpop.permute.xlu0 %6985
    %6987 = vrot.lane.b32.xlu0 %v6699, 32
    %v6988 = vpop.permute.xlu0 %6987
    %v6991 = vadd.f32 %v6983, %v6986
    %v6992 = vadd.f32 %v6984, %v6988
    %s6993 = sld [smem:[#allocation3 + $0x1]]
    %v6994 = vstv %s6993
    %v6995 = vadd.f32 %v6991, %v6994
    %v6996 = vadd.f32 %v6992, %v6994
    %v6997 = vsub.f32 0.0, %v6995
    %v6998 = vsub.f32 0.0, %v6996
    %v6999 = vmul.f32 %v6997, 1.442695
    %v7000 = vpow.pop %v6999
    %v7001 = vmul.f32 %v6998, 1.442695
    %v7002 = vpow.pop %v7001
    %v7003 = vadd.f32 %v7000, 1.0
    %v7004 = vadd.f32 %v7002, 1.0
    %v7005 = vrcp.pop %v7003
    %v7006 = vrcp.pop %v7004
    %s7007 = scalar_lea.vmem [#allocation6], 16
    %7008 = vst.msk [vmem:[%s7007] sm:$0xff] %vm6964, %v7005
    %7009 = vst.msk [vmem:[%s7007 + $0x8] sm:$0xff] %vm6964, %v7006
    %7012 = vrot.lane.b32.xlu0 %v6738, 96
    %v7013 = vpop.permute.xlu0 %7012
    %7014 = vrot.lane.b32.xlu0 %v6739, 96
    %v7015 = vpop.permute.xlu0 %7014
    %v7018 = vadd.f32 %v6738, %v7013
    %v7019 = vadd.f32 %v6739, %v7015
    %7020 = vrot.lane.b32.xlu0 %v6738, 64
    %v7021 = vpop.permute.xlu0 %7020
    %7022 = vrot.lane.b32.xlu0 %v6739, 64
    %v7023 = vpop.permute.xlu0 %7022
    %v7026 = vadd.f32 %v7018, %v7021
    %v7027 = vadd.f32 %v7019, %v7023
    %7028 = vrot.lane.b32.xlu0 %v6738, 32
    %v7029 = vpop.permute.xlu0 %7028
    %7030 = vrot.lane.b32.xlu0 %v6739, 32
    %v7031 = vpop.permute.xlu0 %7030
    %v7034 = vadd.f32 %v7026, %v7029
    %v7035 = vadd.f32 %v7027, %v7031
    %s7036 = sld [smem:[#allocation3 + $0x2]]
    %v7037 = vstv %s7036
    %v7038 = vadd.f32 %v7034, %v7037
    %v7039 = vadd.f32 %v7035, %v7037
    %v7040 = vsub.f32 0.0, %v7038
    %v7041 = vsub.f32 0.0, %v7039
    %v7042 = vmul.f32 %v7040, 1.442695
    %v7043 = vpow.pop %v7042
    %v7044 = vmul.f32 %v7041, 1.442695
    %v7045 = vpow.pop %v7044
    %v7046 = vadd.f32 %v7043, 1.0
    %v7047 = vadd.f32 %v7045, 1.0
    %v7048 = vrcp.pop %v7046
    %v7049 = vrcp.pop %v7047
    %s7050 = scalar_lea.vmem [#allocation6], 32
    %7051 = vst.msk [vmem:[%s7050] sm:$0xff] %vm6964, %v7048
    %7052 = vst.msk [vmem:[%s7050 + $0x8] sm:$0xff] %vm6964, %v7049
    %7055 = vrot.lane.b32.xlu0 %v6778, 96
    %v7056 = vpop.permute.xlu0 %7055
    %7057 = vrot.lane.b32.xlu0 %v6779, 96
    %v7058 = vpop.permute.xlu0 %7057
    %v7061 = vadd.f32 %v6778, %v7056
    %v7062 = vadd.f32 %v6779, %v7058
    %7063 = vrot.lane.b32.xlu0 %v6778, 64
    %v7064 = vpop.permute.xlu0 %7063
    %7065 = vrot.lane.b32.xlu0 %v6779, 64
    %v7066 = vpop.permute.xlu0 %7065
    %v7069 = vadd.f32 %v7061, %v7064
    %v7070 = vadd.f32 %v7062, %v7066
    %7071 = vrot.lane.b32.xlu0 %v6778, 32
    %v7072 = vpop.permute.xlu0 %7071
    %7073 = vrot.lane.b32.xlu0 %v6779, 32
    %v7074 = vpop.permute.xlu0 %7073
    %v7077 = vadd.f32 %v7069, %v7072
    %v7078 = vadd.f32 %v7070, %v7074
    %s7079 = sld [smem:[#allocation3 + $0x3]]
    %v7080 = vstv %s7079
    %v7081 = vadd.f32 %v7077, %v7080
    %v7082 = vadd.f32 %v7078, %v7080
    %v7083 = vsub.f32 0.0, %v7081
    %v7084 = vsub.f32 0.0, %v7082
    %v7085 = vmul.f32 %v7083, 1.442695
    %v7086 = vpow.pop %v7085
    %v7087 = vmul.f32 %v7084, 1.442695
    %v7088 = vpow.pop %v7087
    %v7089 = vadd.f32 %v7086, 1.0
    %v7090 = vadd.f32 %v7088, 1.0
    %v7091 = vrcp.pop %v7089
    %v7092 = vrcp.pop %v7090
    %s7093 = scalar_lea.vmem [#allocation6], 48
    %7094 = vst.msk [vmem:[%s7093] sm:$0xff] %vm6964, %v7091
    %7095 = vst.msk [vmem:[%s7093 + $0x8] sm:$0xff] %vm6964, %v7092
    %7098 = vrot.lane.b32.xlu0 %v6814, 96
    %v7099 = vpop.permute.xlu0 %7098
    %7100 = vrot.lane.b32.xlu0 %v6815, 96
    %v7101 = vpop.permute.xlu0 %7100
    %v7104 = vadd.f32 %v6814, %v7099
    %v7105 = vadd.f32 %v6815, %v7101
    %7106 = vrot.lane.b32.xlu0 %v6814, 64
    %v7107 = vpop.permute.xlu0 %7106
    %7108 = vrot.lane.b32.xlu0 %v6815, 64
    %v7109 = vpop.permute.xlu0 %7108
    %v7112 = vadd.f32 %v7104, %v7107
    %v7113 = vadd.f32 %v7105, %v7109
    %7114 = vrot.lane.b32.xlu0 %v6814, 32
    %v7115 = vpop.permute.xlu0 %7114
    %7116 = vrot.lane.b32.xlu0 %v6815, 32
    %v7117 = vpop.permute.xlu0 %7116
    %v7120 = vadd.f32 %v7112, %v7115
    %v7121 = vadd.f32 %v7113, %v7117
    %s7122 = sld [smem:[#allocation3]]
    %v7123 = vstv %s7122
    %v7124 = vadd.f32 %v7120, %v7123
    %v7125 = vadd.f32 %v7121, %v7123
    %v7126 = vsub.f32 0.0, %v7124
    %v7127 = vsub.f32 0.0, %v7125
    %v7128 = vmul.f32 %v7126, 1.442695
    %v7129 = vpow.pop %v7128
    %v7130 = vmul.f32 %v7127, 1.442695
    %v7131 = vpow.pop %v7130
    %v7132 = vadd.f32 %v7129, 1.0
    %v7133 = vadd.f32 %v7131, 1.0
    %v7134 = vrcp.pop %v7132
    %v7135 = vrcp.pop %v7133
    %s7136 = scalar_lea.vmem [#allocation6], 64
    %7137 = vst.msk [vmem:[%s7136] sm:$0xff] %vm6964, %v7134
    %7138 = vst.msk [vmem:[%s7136 + $0x8] sm:$0xff] %vm6964, %v7135
    %7141 = vrot.lane.b32.xlu0 %v6850, 96
    %v7142 = vpop.permute.xlu0 %7141
    %7143 = vrot.lane.b32.xlu0 %v6851, 96
    %v7144 = vpop.permute.xlu0 %7143
    %v7147 = vadd.f32 %v6850, %v7142
    %v7148 = vadd.f32 %v6851, %v7144
    %7149 = vrot.lane.b32.xlu0 %v6850, 64
    %v7150 = vpop.permute.xlu0 %7149
    %7151 = vrot.lane.b32.xlu0 %v6851, 64
    %v7152 = vpop.permute.xlu0 %7151
    %v7155 = vadd.f32 %v7147, %v7150
    %v7156 = vadd.f32 %v7148, %v7152
    %7157 = vrot.lane.b32.xlu0 %v6850, 32
    %v7158 = vpop.permute.xlu0 %7157
    %7159 = vrot.lane.b32.xlu0 %v6851, 32
    %v7160 = vpop.permute.xlu0 %7159
    %v7163 = vadd.f32 %v7155, %v7158
    %v7164 = vadd.f32 %v7156, %v7160
    %s7165 = sld [smem:[#allocation3 + $0x1]]
    %v7166 = vstv %s7165
    %v7167 = vadd.f32 %v7163, %v7166
    %v7168 = vadd.f32 %v7164, %v7166
    %v7169 = vsub.f32 0.0, %v7167
    %v7170 = vsub.f32 0.0, %v7168
    %v7171 = vmul.f32 %v7169, 1.442695
    %v7172 = vpow.pop %v7171
    %v7173 = vmul.f32 %v7170, 1.442695
    %v7174 = vpow.pop %v7173
    %v7175 = vadd.f32 %v7172, 1.0
    %v7176 = vadd.f32 %v7174, 1.0
    %v7177 = vrcp.pop %v7175
    %v7178 = vrcp.pop %v7176
    %s7179 = scalar_lea.vmem [#allocation6], 80
    %7180 = vst.msk [vmem:[%s7179] sm:$0xff] %vm6964, %v7177
    %7181 = vst.msk [vmem:[%s7179 + $0x8] sm:$0xff] %vm6964, %v7178
    %7184 = vrot.lane.b32.xlu0 %v6886, 96
    %v7185 = vpop.permute.xlu0 %7184
    %7186 = vrot.lane.b32.xlu0 %v6887, 96
    %v7187 = vpop.permute.xlu0 %7186
    %v7190 = vadd.f32 %v6886, %v7185
    %v7191 = vadd.f32 %v6887, %v7187
    %7192 = vrot.lane.b32.xlu0 %v6886, 64
    %v7193 = vpop.permute.xlu0 %7192
    %7194 = vrot.lane.b32.xlu0 %v6887, 64
    %v7195 = vpop.permute.xlu0 %7194
    %v7198 = vadd.f32 %v7190, %v7193
    %v7199 = vadd.f32 %v7191, %v7195
    %7200 = vrot.lane.b32.xlu0 %v6886, 32
    %v7201 = vpop.permute.xlu0 %7200
    %7202 = vrot.lane.b32.xlu0 %v6887, 32
    %v7203 = vpop.permute.xlu0 %7202
    %v7206 = vadd.f32 %v7198, %v7201
    %v7207 = vadd.f32 %v7199, %v7203
    %s7208 = sld [smem:[#allocation3 + $0x2]]
    %v7209 = vstv %s7208
    %v7210 = vadd.f32 %v7206, %v7209
    %v7211 = vadd.f32 %v7207, %v7209
    %v7212 = vsub.f32 0.0, %v7210
    %v7213 = vsub.f32 0.0, %v7211
    %v7214 = vmul.f32 %v7212, 1.442695
    %v7215 = vpow.pop %v7214
    %v7216 = vmul.f32 %v7213, 1.442695
    %v7217 = vpow.pop %v7216
    %v7218 = vadd.f32 %v7215, 1.0
    %v7219 = vadd.f32 %v7217, 1.0
    %v7220 = vrcp.pop %v7218
    %v7221 = vrcp.pop %v7219
    %s7222 = scalar_lea.vmem [#allocation6], 96
    %7223 = vst.msk [vmem:[%s7222] sm:$0xff] %vm6964, %v7220
    %7224 = vst.msk [vmem:[%s7222 + $0x8] sm:$0xff] %vm6964, %v7221
    %7227 = vrot.lane.b32.xlu0 %v6922, 96
    %v7228 = vpop.permute.xlu0 %7227
    %7229 = vrot.lane.b32.xlu0 %v6923, 96
    %v7230 = vpop.permute.xlu0 %7229
    %v7233 = vadd.f32 %v6922, %v7228
    %v7234 = vadd.f32 %v6923, %v7230
    %7235 = vrot.lane.b32.xlu0 %v6922, 64
    %v7236 = vpop.permute.xlu0 %7235
    %7237 = vrot.lane.b32.xlu0 %v6923, 64
    %v7238 = vpop.permute.xlu0 %7237
    %v7241 = vadd.f32 %v7233, %v7236
    %v7242 = vadd.f32 %v7234, %v7238
    %7243 = vrot.lane.b32.xlu0 %v6922, 32
    %v7244 = vpop.permute.xlu0 %7243
    %7245 = vrot.lane.b32.xlu0 %v6923, 32
    %v7246 = vpop.permute.xlu0 %7245
    %v7249 = vadd.f32 %v7241, %v7244
    %v7250 = vadd.f32 %v7242, %v7246
    %s7251 = sld [smem:[#allocation3 + $0x3]]
    %v7252 = vstv %s7251
    %v7253 = vadd.f32 %v7249, %v7252
    %v7254 = vadd.f32 %v7250, %v7252
    %v7255 = vsub.f32 0.0, %v7253
    %v7256 = vsub.f32 0.0, %v7254
    %v7257 = vmul.f32 %v7255, 1.442695
    %v7258 = vpow.pop %v7257
    %v7259 = vmul.f32 %v7256, 1.442695
    %v7260 = vpow.pop %v7259
    %v7261 = vadd.f32 %v7258, 1.0
    %v7262 = vadd.f32 %v7260, 1.0
    %v7263 = vrcp.pop %v7261
    %v7264 = vrcp.pop %v7262
    %s7265 = scalar_lea.vmem [#allocation6], 112
    %7266 = vst.msk [vmem:[%s7265] sm:$0xff] %vm6964, %v7263
    %7267 = vst.msk [vmem:[%s7265 + $0x8] sm:$0xff] %vm6964, %v7264
    // Predicated region
    $region18: #{img_disturb_forward.1} parent=1 // pred_check
      _
    $region19: #{img_disturb_forward.1} parent=1 // pred_check_branch
      %7269 = sbr.rel (0) target = $region21
    $region20: #{img_disturb_forward.1} parent=1 // pred_region
      %s7271 = ssub.s32 2048, 2048
      %7272 = vsyncadd [#allocation4], %s7271
      %s7273 = sshll.u32 [#allocation6], 4
      %s7274 = int_to_ptr.vmem [resolvable:$true] %s7273
      %7279 = dma.vmem_to_hbm [thread:$0]  %s7274, 2048, %s3, [#allocation4], 128, 128, 8
    $region21: #{img_disturb_forward.1} parent=1 // pred_fallthru
      _
    // Predicated region
    $region22: #{img_disturb_forward.1} parent=1 // pred_check
      _
    $region23: #{img_disturb_forward.1} parent=1 // pred_check_branch
      %7281 = sbr.rel (0) target = $region25
    $region24: #{img_disturb_forward.1} parent=1 // pred_region
      %7282 = dma.done [#allocation4], 2048
    $region25: #{img_disturb_forward.1} parent=1 // pred_fallthru
      _
    %7283 = vsyncpa [#allocation4], 1
    %7284 = vsyncpa [#allocation5], 1

</llo_original>
